<compile_context>
chip_gen: v7x
topology: tpu7x:2x2x1
jax: 0.10.0
libtpu: 0.0.40
codegen_flags: <defaults>
</compile_context>

<pallas_src>
import jax
import jax.numpy as jnp
from jax import lax
from jax.experimental import pallas as pl
from jax.experimental.pallas import tpu as pltpu

# ---- model hyper-parameters (small, consistent with the module) -------------
DIM = 128          # embed dim C
HEADS = 8          # num_heads
HEAD_DIM = DIM // HEADS
MLP_RATIO = 4
FFN = DIM * MLP_RATIO
DEPTH = 3
LN_EPS = 1e-5      # nn.LayerNorm default
NEG_INF = -1.0e9
SCALE = HEAD_DIM ** (-0.5)


# ----------------------------- Pallas kernel ---------------------------------
def encoder_kernel(x_ref, bias_ref,
                   wqkv_ref, bqkv_ref, wo_ref, bo_ref, g1_ref, be1_ref,
                   w1_ref, b1_ref, w2_ref, b2_ref, g2_ref, be2_ref,
                   o_ref, gx_ref, act_ref):
    d = pl.program_id(1)
    BB, L, C = x_ref.shape
    N = BB * L

    # Load the activation slab into the resident VMEM scratch at the first layer.
    @pl.when(d == 0)
    def _():
        act_ref[...] = x_ref[...].reshape(N, C)

    x = act_ref[...]                       # (N, C) f32 residual stream
    xb = x.astype(jnp.bfloat16)

    # --- MSA: fused QKV projection (one MXU op, lane-dense 3C output) --------
    qkv = jnp.dot(xb, wqkv_ref[...],
                  preferred_element_type=jnp.float32) + bqkv_ref[...]   # (N, 3C)
    q = qkv[:, :DIM]
    k = qkv[:, DIM:2 * DIM]
    v = qkv[:, 2 * DIM:]

    def heads(t):                          # (N, C) -> (BB*H, L, hd)
        return (t.reshape(BB, L, HEADS, HEAD_DIM)
                 .transpose(0, 2, 1, 3)
                 .reshape(BB * HEADS, L, HEAD_DIM))

    qh, kh, vh = heads(q), heads(k), heads(v)

    # --- batched scaled-dot-product attention over the (batch, head) axis ----
    s = jnp.einsum('bld,bmd->blm', qh, kh,
                   preferred_element_type=jnp.float32)                  # (BB*H, L, L)
    bias = bias_ref[...].reshape(BB * HEADS, 1, L)                      # additive mask
    s = s * SCALE + bias
    s = s - jnp.max(s, axis=-1, keepdims=True)
    e = jnp.exp(s)
    p = e * pl.reciprocal(jnp.sum(e, axis=-1, keepdims=True), approx=True)
    oh = jnp.einsum('blm,bmd->bld', p, vh,
                    preferred_element_type=jnp.float32)                 # (BB*H, L, hd)
    attn = (oh.reshape(BB, HEADS, L, HEAD_DIM)
              .transpose(0, 2, 1, 3)
              .reshape(N, C))                                           # (N, C)
    attn = jnp.dot(attn.astype(jnp.bfloat16), wo_ref[...],
                   preferred_element_type=jnp.float32) + bo_ref[...]

    # dropout == identity (inference semantics)

    # --- residual + LayerNorm 1 (single-pass variance) -----------------------
    y = x + attn
    mu = jnp.mean(y, axis=-1, keepdims=True)
    var = jnp.mean(y * y, axis=-1, keepdims=True) - mu * mu
    y = (y - mu) * lax.rsqrt(var + LN_EPS) * g1_ref[...] + be1_ref[...]

    # --- FeedForward: fc1 -> ReLU -> fc2 -------------------------------------
    h1 = jnp.dot(y.astype(jnp.bfloat16), w1_ref[...],
                 preferred_element_type=jnp.float32) + b1_ref[...]
    h1 = jnp.maximum(h1, 0.0)
    f = jnp.dot(h1.astype(jnp.bfloat16), w2_ref[...],
                preferred_element_type=jnp.float32) + b2_ref[...]

    # --- residual + LayerNorm 2 ----------------------------------------------
    z = y + f
    mu2 = jnp.mean(z, axis=-1, keepdims=True)
    var2 = jnp.mean(z * z, axis=-1, keepdims=True) - mu2 * mu2
    z = (z - mu2) * lax.rsqrt(var2 + LN_EPS) * g2_ref[...] + be2_ref[...]

    act_ref[...] = z                       # carry to next layer

    # --- epilogue: write encoder output + fused gx mean on the last layer ----
    @pl.when(d == pl.num_programs(1) - 1)
    def _():
        z3 = z.reshape(BB, L, C)
        o_ref[...] = z3.astype(o_ref.dtype)
        gx_ref[...] = jnp.mean(z3, axis=1, keepdims=True).astype(gx_ref.dtype)


# ------------------------------ wrapper ---------------------------------------
def _pick_block_b(B):
    for bb in (8, 4, 2, 1):
        if B % bb == 0:
            return bb
    return 1


def encoder_forward(x, att_mask, stacked_params):
    """Encoder.forward with use_gx=False (default). Returns (gx, x_out).

    x: (B, L, C) f32, att_mask: (B, L) 1.0 valid / 0.0 padded.
    stacked_params: 12 arrays, each with a leading DEPTH axis.
    """
    B, L, C = x.shape
    BB = _pick_block_b(B)
    # NOTE: with use_gx=False the initial masked-mean gx computed in the
    # PyTorch forward is immediately discarded, so it is skipped here.
    # Additive mask bias (0 valid / -1e9 padded), pre-broadcast over heads.
    bias = jnp.where(att_mask == 0.0, NEG_INF, 0.0).astype(jnp.float32)   # (B, L)
    bias = jnp.broadcast_to(bias[:, None, :], (B, HEADS, L))              # (B, H, L)

    def param_spec(p):
        return pl.BlockSpec((None,) + p.shape[1:], lambda b, d: (d, 0, 0))

    in_specs = [
        pl.BlockSpec((BB, L, C), lambda b, d: (b, 0, 0)),       # x (fetched once per b)
        pl.BlockSpec((BB, HEADS, L), lambda b, d: (b, 0, 0)),   # mask bias
    ] + [param_spec(p) for p in stacked_params]

    out_specs = [
        pl.BlockSpec((BB, L, C), lambda b, d: (b, 0, 0)),       # encoder output
        pl.BlockSpec((BB, 1, C), lambda b, d: (b, 0, 0)),       # gx
    ]

    x_out, gx3 = pl.pallas_call(
        encoder_kernel,
        out_shape=(jax.ShapeDtypeStruct((B, L, C), x.dtype),
                   jax.ShapeDtypeStruct((B, 1, C), jnp.float32)),
        grid_spec=pltpu.PrefetchScalarGridSpec(
            num_scalar_prefetch=0,
            grid=(B // BB, DEPTH),
            in_specs=in_specs,
            out_specs=out_specs,
            scratch_shapes=[pltpu.VMEM((BB * L, C), jnp.float32)],  # resident activation
        ),
        compiler_params=pltpu.CompilerParams(
            dimension_semantics=("parallel", "arbitrary")),
    )(x, bias, *stacked_params)
    return gx3[:, 0, :], x_out


# ----------------------- parameter construction ------------------------------
def init_layer_params(key):
    """Deterministic synthetic f32 params for one EncoderLayer.

    Linear weights are stored (in_features, out_features), i.e. the transpose of
    PyTorch's nn.Linear.weight, so the kernel computes x @ W + b == x @ W_pt.T + b.
    """
    ks = jax.random.split(key, 8)
    std = 0.02
    wq = jax.random.normal(ks[0], (DIM, DIM), jnp.float32) * std
    wk = jax.random.normal(ks[1], (DIM, DIM), jnp.float32) * std
    wv = jax.random.normal(ks[2], (DIM, DIM), jnp.float32) * std
    wo = jax.random.normal(ks[3], (DIM, DIM), jnp.float32) * std
    w1 = jax.random.normal(ks[4], (DIM, FFN), jnp.float32) * std
    w2 = jax.random.normal(ks[5], (FFN, DIM), jnp.float32) * std
    bq = jax.random.normal(ks[6], (1, DIM), jnp.float32) * std
    bk = jnp.zeros((1, DIM), jnp.float32)
    bv = jax.random.normal(ks[7], (1, DIM), jnp.float32) * std
    bo = jnp.zeros((1, DIM), jnp.float32)
    b1 = jnp.zeros((1, FFN), jnp.float32)
    b2 = jnp.zeros((1, DIM), jnp.float32)
    g1 = jnp.ones((1, DIM), jnp.float32)
    be1 = jnp.zeros((1, DIM), jnp.float32)
    g2 = jnp.ones((1, DIM), jnp.float32)
    be2 = jnp.zeros((1, DIM), jnp.float32)
    return [wq, bq, wk, bk, wv, bv, wo, bo, g1, be1, w1, b1, w2, b2, g2, be2]


def stack_params(layer_params):
    """Stack per-layer params along DEPTH; dense weights cast to bf16 (MXU),
    biases / LayerNorm params stay f32 (VPU math stays f32)."""
    def stk(fn, dtype=None):
        arr = jnp.stack([fn(p) for p in layer_params], axis=0)
        return arr.astype(dtype) if dtype is not None else arr

    wqkv = stk(lambda p: jnp.concatenate([p[0], p[2], p[4]], axis=1), jnp.bfloat16)
    bqkv = stk(lambda p: jnp.concatenate([p[1], p[3], p[5]], axis=1))
    wo = stk(lambda p: p[6], jnp.bfloat16)
    bo = stk(lambda p: p[7])
    g1 = stk(lambda p: p[8])
    be1 = stk(lambda p: p[9])
    w1 = stk(lambda p: p[10], jnp.bfloat16)
    b1 = stk(lambda p: p[11])
    w2 = stk(lambda p: p[12], jnp.bfloat16)
    b2 = stk(lambda p: p[13])
    g2 = stk(lambda p: p[14])
    be2 = stk(lambda p: p[15])
    return [wqkv, bqkv, wo, bo, g1, be1, w1, b1, w2, b2, g2, be2]


# ---------------------- pure-JAX reference (for checking) --------------------
def _ref_layer(x, mask, p):
    (wq, bq, wk, bk, wv, bv, wo, bo, g1, be1, w1, b1, w2, b2, g2, be2) = p
    B, L, C = x.shape
    q = (x @ wq + bq).reshape(B, L, HEADS, HEAD_DIM).transpose(0, 2, 1, 3)
    k = (x @ wk + bk).reshape(B, L, HEADS, HEAD_DIM).transpose(0, 2, 1, 3)
    v = (x @ wv + bv).reshape(B, L, HEADS, HEAD_DIM).transpose(0, 2, 1, 3)
    s = jnp.einsum("bhqd,bhkd->bhqk", q, k) * SCALE
    m = mask[:, None, None, :]
    s = jnp.where(m == 0.0, NEG_INF, s)
    a = jax.nn.softmax(s, axis=-1)
    o = jnp.einsum("bhqk,bhkd->bhqd", a, v).transpose(0, 2, 1, 3).reshape(B, L, C)
    o = o @ wo + bo

    def ln(t, g, b):
        mu = t.mean(-1, keepdims=True)
        var = ((t - mu) ** 2).mean(-1, keepdims=True)
        return (t - mu) * lax.rsqrt(var + LN_EPS) * g + b

    y = ln(x + o, g1, be1)
    f = jnp.maximum(y @ w1 + b1, 0.0) @ w2 + b2
    return ln(y + f, g2, be2)


def _ref_encoder(x, att_mask, layer_params):
    O = x
    for p in layer_params:
        O = _ref_layer(O, att_mask.astype(x.dtype), p)
    return jnp.mean(O, axis=1), O


# ---------------------------------- main --------------------------------------
if __name__ == "__main__":
    B, L = 2, 16
    key = jax.random.PRNGKey(0)
    kx, kp = jax.random.split(key)

    x = jax.random.normal(kx, (B, L, DIM), jnp.float32)
    lengths = jnp.array([L, L - 4], jnp.int32)
    att_mask = (jnp.arange(L)[None, :] < lengths[:, None]).astype(jnp.float32)  # (B, L)

    layer_params = [init_layer_params(k) for k in jax.random.split(kp, DEPTH)]
    stacked = stack_params(layer_params)

    gx, x_out = encoder_forward(x, att_mask, stacked)
    jax.block_until_ready((gx, x_out))

    gx_ref, x_out_ref = _ref_encoder(x, att_mask, layer_params)
    assert gx.shape == (B, DIM) and x_out.shape == (B, L, DIM)
    err_x = float(jnp.max(jnp.abs(x_out - x_out_ref)))
    err_g = float(jnp.max(jnp.abs(gx - gx_ref)))
    # Tolerance accounts for bf16 MXU operands (f32 accumulation) + approx recip.
    assert jnp.allclose(x_out, x_out_ref, atol=3e-2, rtol=3e-2), f"x err {err_x}"
    assert jnp.allclose(gx, gx_ref, atol=3e-2, rtol=3e-2), f"gx err {err_g}"

    print("KERNEL_OK")
</pallas_src>

<mosaic_0001>
module attributes {stable_mosaic.version = 11 : i64} {
  func.func @encoder_kernel(%arg0: i32, %arg1: i32, %arg2: memref<2x16x128xf32, #tpu.memory_space<vmem>>, %arg3: memref<2x8x16xf32, #tpu.memory_space<vmem>>, %arg4: memref<1x128x384xbf16, #tpu.memory_space<vmem>>, %arg5: memref<1x1x384xf32, #tpu.memory_space<vmem>>, %arg6: memref<1x128x128xbf16, #tpu.memory_space<vmem>>, %arg7: memref<1x1x128xf32, #tpu.memory_space<vmem>>, %arg8: memref<1x1x128xf32, #tpu.memory_space<vmem>>, %arg9: memref<1x1x128xf32, #tpu.memory_space<vmem>>, %arg10: memref<1x128x512xbf16, #tpu.memory_space<vmem>>, %arg11: memref<1x1x512xf32, #tpu.memory_space<vmem>>, %arg12: memref<1x512x128xbf16, #tpu.memory_space<vmem>>, %arg13: memref<1x1x128xf32, #tpu.memory_space<vmem>>, %arg14: memref<1x1x128xf32, #tpu.memory_space<vmem>>, %arg15: memref<1x1x128xf32, #tpu.memory_space<vmem>>, %arg16: memref<2x16x128xf32, #tpu.memory_space<vmem>>, %arg17: memref<2x1x128xf32, #tpu.memory_space<vmem>>, %arg18: memref<32x128xf32, #tpu.memory_space<vmem>>) attributes {dimension_semantics = [#tpu.dimension_semantics<parallel>, #tpu.dimension_semantics<arbitrary>], iteration_bounds = array<i64: 1, 3>, scalar_prefetch = 0 : i64, scratch_operands = 1 : i64, tpu.core_type = #tpu.core_type<tc>, window_params = [{transform_indices = @transform_0, window_bounds = array<i64: 2, 16, 128>}, {transform_indices = @transform_1, window_bounds = array<i64: 2, 8, 16>}, {transform_indices = @transform_2, window_bounds = array<i64: 1, 128, 384>}, {transform_indices = @transform_3, window_bounds = array<i64: 1, 1, 384>}, {transform_indices = @transform_4, window_bounds = array<i64: 1, 128, 128>}, {transform_indices = @transform_5, window_bounds = array<i64: 1, 1, 128>}, {transform_indices = @transform_6, window_bounds = array<i64: 1, 1, 128>}, {transform_indices = @transform_7, window_bounds = array<i64: 1, 1, 128>}, {transform_indices = @transform_8, window_bounds = array<i64: 1, 128, 512>}, {transform_indices = @transform_9, window_bounds = array<i64: 1, 1, 512>}, {transform_indices = @transform_10, window_bounds = array<i64: 1, 512, 128>}, {transform_indices = @transform_11, window_bounds = array<i64: 1, 1, 128>}, {transform_indices = @transform_12, window_bounds = array<i64: 1, 1, 128>}, {transform_indices = @transform_13, window_bounds = array<i64: 1, 1, 128>}, {transform_indices = @transform_14, window_bounds = array<i64: 2, 16, 128>}, {transform_indices = @transform_15, window_bounds = array<i64: 2, 1, 128>}]} {
    %c0_i32 = arith.constant 0 : i32
    %0 = arith.cmpi eq, %arg1, %c0_i32 : i32
    %1 = arith.extui %0 : i1 to i32
    %c0_i32_0 = arith.constant 0 : i32
    %2 = arith.cmpi ne, %1, %c0_i32_0 : i32
    scf.if %2 {
      %c0_63 = arith.constant 0 : index
      %c0_64 = arith.constant 0 : index
      %c0_65 = arith.constant 0 : index
      %129 = vector.load %arg2[%c0_63, %c0_64, %c0_65] : memref<2x16x128xf32, #tpu.memory_space<vmem>>, vector<2x16x128xf32>
      %130 = vector.shape_cast %129 : vector<2x16x128xf32> to vector<32x128xf32>
      %c0_66 = arith.constant 0 : index
      %c0_67 = arith.constant 0 : index
      %131 = vector.load %arg18[%c0_66, %c0_67] : memref<32x128xf32, #tpu.memory_space<vmem>>, vector<32x128xf32>
      tpu.vector_store %arg18[%c0_66, %c0_67], %130 {strides = array<i32>} : memref<32x128xf32, #tpu.memory_space<vmem>>, vector<32x128xf32>,
    } else {
    }
    %c0 = arith.constant 0 : index
    %c0_1 = arith.constant 0 : index
    %3 = vector.load %arg18[%c0, %c0_1] : memref<32x128xf32, #tpu.memory_space<vmem>>, vector<32x128xf32>
    %4 = arith.truncf %3 : vector<32x128xf32> to vector<32x128xbf16>
    %c0_2 = arith.constant 0 : index
    %c0_3 = arith.constant 0 : index
    %c0_4 = arith.constant 0 : index
    %5 = vector.load %arg4[%c0_2, %c0_3, %c0_4] : memref<1x128x384xbf16, #tpu.memory_space<vmem>>, vector<1x128x384xbf16>
    %6 = vector.shape_cast %5 : vector<1x128x384xbf16> to vector<128x384xbf16>
    %cst = arith.constant dense<0.000000e+00> : vector<32x384xf32>
    %7 = tpu.matmul %4, %6, %cst {dimension_numbers = #tpu.dot_dimension_numbers<[1], [0], [0], [1], [0, 0, 1, 1], [], []>} : vector<32x128xbf16>, vector<128x384xbf16>, vector<32x384xf32> -> vector<32x384xf32>
    %c0_5 = arith.constant 0 : index
    %c0_6 = arith.constant 0 : index
    %c0_7 = arith.constant 0 : index
    %8 = vector.load %arg5[%c0_5, %c0_6, %c0_7] : memref<1x1x384xf32, #tpu.memory_space<vmem>>, vector<1x1x384xf32>
    %9 = vector.shape_cast %8 : vector<1x1x384xf32> to vector<1x384xf32>
    %10 = vector.broadcast %9 : vector<1x384xf32> to vector<32x384xf32>
    %11 = arith.addf %7, %10 : vector<32x384xf32>
    %12 = vector.extract_strided_slice %11 {offsets = [0, 0], sizes = [32, 128], strides = [1, 1]} : vector<32x384xf32> to vector<32x128xf32>
    %13 = vector.extract_strided_slice %11 {offsets = [0, 128], sizes = [32, 128], strides = [1, 1]} : vector<32x384xf32> to vector<32x128xf32>
    %14 = vector.extract_strided_slice %11 {offsets = [0, 256], sizes = [32, 128], strides = [1, 1]} : vector<32x384xf32> to vector<32x128xf32>
    %15 = vector.shape_cast %12 : vector<32x128xf32> to vector<2x16x8x16xf32>
    %16 = tpu.transpose %15, [0, 2, 1, 3] : vector<2x16x8x16xf32> -> vector<2x8x16x16xf32>
    %17 = vector.shape_cast %16 : vector<2x8x16x16xf32> to vector<16x16x16xf32>
    %18 = vector.shape_cast %13 : vector<32x128xf32> to vector<2x16x8x16xf32>
    %19 = tpu.transpose %18, [0, 2, 1, 3] : vector<2x16x8x16xf32> -> vector<2x8x16x16xf32>
    %20 = vector.shape_cast %19 : vector<2x8x16x16xf32> to vector<16x16x16xf32>
    %21 = vector.shape_cast %14 : vector<32x128xf32> to vector<2x16x8x16xf32>
    %22 = tpu.transpose %21, [0, 2, 1, 3] : vector<2x16x8x16xf32> -> vector<2x8x16x16xf32>
    %23 = vector.shape_cast %22 : vector<2x8x16x16xf32> to vector<16x16x16xf32>
    "tpu.trace_start"() <{level = 10 : i32, message = "bld,bmd->blm"}> : () -> ()
    %cst_8 = arith.constant dense<0.000000e+00> : vector<16x16x16xf32>
    %24 = tpu.matmul %17, %20, %cst_8 {dimension_numbers = #tpu.dot_dimension_numbers<[2], [2], [1], [1], [0, 0, 0, 1, 1, 1], [0], [0]>} : vector<16x16x16xf32>, vector<16x16x16xf32>, vector<16x16x16xf32> -> vector<16x16x16xf32>
    "tpu.trace_stop"() : () -> ()
    %c0_9 = arith.constant 0 : index
    %c0_10 = arith.constant 0 : index
    %c0_11 = arith.constant 0 : index
    %25 = vector.load %arg3[%c0_9, %c0_10, %c0_11] : memref<2x8x16xf32, #tpu.memory_space<vmem>>, vector<2x8x16xf32>
    %26 = vector.shape_cast %25 : vector<2x8x16xf32> to vector<16x1x16xf32>
    %cst_12 = arith.constant 2.500000e-01 : f32
    %27 = vector.broadcast %cst_12 : f32 to vector<16x16x16xf32>
    %28 = arith.mulf %24, %27 : vector<16x16x16xf32>
    %29 = vector.broadcast %26 : vector<16x1x16xf32> to vector<16x16x16xf32>
    %30 = arith.addf %28, %29 : vector<16x16x16xf32>
    %cst_13 = arith.constant dense<0xFF800000> : vector<16x16xf32>
    %31 = vector.multi_reduction <maximumf>, %30, %cst_13 [2] : vector<16x16x16xf32> to vector<16x16xf32>
    %32 = vector.shape_cast %31 : vector<16x16xf32> to vector<16x16x1xf32>
    %33 = vector.broadcast %32 : vector<16x16x1xf32> to vector<16x16x16xf32>
    %34 = arith.subf %30, %33 : vector<16x16x16xf32>
    %35 = math.exp %34 : vector<16x16x16xf32>
    %cst_14 = arith.constant dense<0.000000e+00> : vector<16x16xf32>
    %36 = vector.multi_reduction <add>, %35, %cst_14 [2] : vector<16x16x16xf32> to vector<16x16xf32>
    %37 = vector.shape_cast %36 : vector<16x16xf32> to vector<16x16x1xf32>
    %38 = tpu.reciprocal %37 {approx = true} : vector<16x16x1xf32> -> vector<16x16x1xf32>
    %39 = vector.broadcast %38 : vector<16x16x1xf32> to vector<16x16x16xf32>
    %40 = arith.mulf %35, %39 : vector<16x16x16xf32>
    "tpu.trace_start"() <{level = 10 : i32, message = "blm,bmd->bld"}> : () -> ()
    %cst_15 = arith.constant dense<0.000000e+00> : vector<16x16x16xf32>
    %41 = tpu.matmul %40, %23, %cst_15 {dimension_numbers = #tpu.dot_dimension_numbers<[2], [1], [1], [2], [0, 0, 0, 1, 1, 2], [0], [0]>} : vector<16x16x16xf32>, vector<16x16x16xf32>, vector<16x16x16xf32> -> vector<16x16x16xf32>
    "tpu.trace_stop"() : () -> ()
    %42 = vector.shape_cast %41 : vector<16x16x16xf32> to vector<2x8x16x16xf32>
    %43 = tpu.transpose %42, [0, 2, 1, 3] : vector<2x8x16x16xf32> -> vector<2x16x8x16xf32>
    %44 = vector.shape_cast %43 : vector<2x16x8x16xf32> to vector<32x128xf32>
    %45 = arith.truncf %44 : vector<32x128xf32> to vector<32x128xbf16>
    %c0_16 = arith.constant 0 : index
    %c0_17 = arith.constant 0 : index
    %c0_18 = arith.constant 0 : index
    %46 = vector.load %arg6[%c0_16, %c0_17, %c0_18] : memref<1x128x128xbf16, #tpu.memory_space<vmem>>, vector<1x128x128xbf16>
    %47 = vector.shape_cast %46 : vector<1x128x128xbf16> to vector<128x128xbf16>
    %cst_19 = arith.constant dense<0.000000e+00> : vector<32x128xf32>
    %48 = tpu.matmul %45, %47, %cst_19 {dimension_numbers = #tpu.dot_dimension_numbers<[1], [0], [0], [1], [0, 0, 1, 1], [], []>} : vector<32x128xbf16>, vector<128x128xbf16>, vector<32x128xf32> -> vector<32x128xf32>
    %c0_20 = arith.constant 0 : index
    %c0_21 = arith.constant 0 : index
    %c0_22 = arith.constant 0 : index
    %49 = vector.load %arg7[%c0_20, %c0_21, %c0_22] : memref<1x1x128xf32, #tpu.memory_space<vmem>>, vector<1x1x128xf32>
    %50 = vector.shape_cast %49 : vector<1x1x128xf32> to vector<1x128xf32>
    %51 = vector.broadcast %50 : vector<1x128xf32> to vector<32x128xf32>
    %52 = arith.addf %48, %51 : vector<32x128xf32>
    %53 = arith.addf %3, %52 : vector<32x128xf32>
    %cst_23 = arith.constant dense<0.000000e+00> : vector<32xf32>
    %54 = vector.multi_reduction <add>, %53, %cst_23 [1] : vector<32x128xf32> to vector<32xf32>
    %55 = vector.shape_cast %54 : vector<32xf32> to vector<32x1xf32>
    %cst_24 = arith.constant 1.280000e+02 : f32
    %56 = vector.broadcast %cst_24 : f32 to vector<32x1xf32>
    %57 = arith.divf %55, %56 : vector<32x1xf32>
    %58 = arith.mulf %53, %53 : vector<32x128xf32>
    %cst_25 = arith.constant dense<0.000000e+00> : vector<32xf32>
    %59 = vector.multi_reduction <add>, %58, %cst_25 [1] : vector<32x128xf32> to vector<32xf32>
    %60 = vector.shape_cast %59 : vector<32xf32> to vector<32x1xf32>
    %cst_26 = arith.constant 1.280000e+02 : f32
    %61 = vector.broadcast %cst_26 : f32 to vector<32x1xf32>
    %62 = arith.divf %60, %61 : vector<32x1xf32>
    %63 = arith.mulf %57, %57 : vector<32x1xf32>
    %64 = arith.subf %62, %63 : vector<32x1xf32>
    %65 = vector.broadcast %57 : vector<32x1xf32> to vector<32x128xf32>
    %66 = arith.subf %53, %65 : vector<32x128xf32>
    %cst_27 = arith.constant 9.99999974E-6 : f32
    %67 = vector.broadcast %cst_27 : f32 to vector<32x1xf32>
    %68 = arith.addf %64, %67 : vector<32x1xf32>
    %69 = math.rsqrt %68 : vector<32x1xf32>
    %70 = vector.broadcast %69 : vector<32x1xf32> to vector<32x128xf32>
    %71 = arith.mulf %66, %70 : vector<32x128xf32>
    %c0_28 = arith.constant 0 : index
    %c0_29 = arith.constant 0 : index
    %c0_30 = arith.constant 0 : index
    %72 = vector.load %arg8[%c0_28, %c0_29, %c0_30] : memref<1x1x128xf32, #tpu.memory_space<vmem>>, vector<1x1x128xf32>
    %73 = vector.shape_cast %72 : vector<1x1x128xf32> to vector<1x128xf32>
    %74 = vector.broadcast %73 : vector<1x128xf32> to vector<32x128xf32>
    %75 = arith.mulf %71, %74 : vector<32x128xf32>
    %c0_31 = arith.constant 0 : index
    %c0_32 = arith.constant 0 : index
    %c0_33 = arith.constant 0 : index
    %76 = vector.load %arg9[%c0_31, %c0_32, %c0_33] : memref<1x1x128xf32, #tpu.memory_space<vmem>>, vector<1x1x128xf32>
    %77 = vector.shape_cast %76 : vector<1x1x128xf32> to vector<1x128xf32>
    %78 = vector.broadcast %77 : vector<1x128xf32> to vector<32x128xf32>
    %79 = arith.addf %75, %78 : vector<32x128xf32>
    %80 = arith.truncf %79 : vector<32x128xf32> to vector<32x128xbf16>
    %c0_34 = arith.constant 0 : index
    %c0_35 = arith.constant 0 : index
    %c0_36 = arith.constant 0 : index
    %81 = vector.load %arg10[%c0_34, %c0_35, %c0_36] : memref<1x128x512xbf16, #tpu.memory_space<vmem>>, vector<1x128x512xbf16>
    %82 = vector.shape_cast %81 : vector<1x128x512xbf16> to vector<128x512xbf16>
    %cst_37 = arith.constant dense<0.000000e+00> : vector<32x512xf32>
    %83 = tpu.matmul %80, %82, %cst_37 {dimension_numbers = #tpu.dot_dimension_numbers<[1], [0], [0], [1], [0, 0, 1, 1], [], []>} : vector<32x128xbf16>, vector<128x512xbf16>, vector<32x512xf32> -> vector<32x512xf32>
    %c0_38 = arith.constant 0 : index
    %c0_39 = arith.constant 0 : index
    %c0_40 = arith.constant 0 : index
    %84 = vector.load %arg11[%c0_38, %c0_39, %c0_40] : memref<1x1x512xf32, #tpu.memory_space<vmem>>, vector<1x1x512xf32>
    %85 = vector.shape_cast %84 : vector<1x1x512xf32> to vector<1x512xf32>
    %86 = vector.broadcast %85 : vector<1x512xf32> to vector<32x512xf32>
    %87 = arith.addf %83, %86 : vector<32x512xf32>
    %cst_41 = arith.constant 0.000000e+00 : f32
    %88 = vector.broadcast %cst_41 : f32 to vector<32x512xf32>
    %89 = arith.maximumf %87, %88 : vector<32x512xf32>
    %90 = arith.truncf %89 : vector<32x512xf32> to vector<32x512xbf16>
    %c0_42 = arith.constant 0 : index
    %c0_43 = arith.constant 0 : index
    %c0_44 = arith.constant 0 : index
    %91 = vector.load %arg12[%c0_42, %c0_43, %c0_44] : memref<1x512x128xbf16, #tpu.memory_space<vmem>>, vector<1x512x128xbf16>
    %92 = vector.shape_cast %91 : vector<1x512x128xbf16> to vector<512x128xbf16>
    %cst_45 = arith.constant dense<0.000000e+00> : vector<32x128xf32>
    %93 = tpu.matmul %90, %92, %cst_45 {dimension_numbers = #tpu.dot_dimension_numbers<[1], [0], [0], [1], [0, 0, 1, 1], [], []>} : vector<32x512xbf16>, vector<512x128xbf16>, vector<32x128xf32> -> vector<32x128xf32>
    %c0_46 = arith.constant 0 : index
    %c0_47 = arith.constant 0 : index
    %c0_48 = arith.constant 0 : index
    %94 = vector.load %arg13[%c0_46, %c0_47, %c0_48] : memref<1x1x128xf32, #tpu.memory_space<vmem>>, vector<1x1x128xf32>
    %95 = vector.shape_cast %94 : vector<1x1x128xf32> to vector<1x128xf32>
    %96 = vector.broadcast %95 : vector<1x128xf32> to vector<32x128xf32>
    %97 = arith.addf %93, %96 : vector<32x128xf32>
    %98 = arith.addf %79, %97 : vector<32x128xf32>
    %cst_49 = arith.constant dense<0.000000e+00> : vector<32xf32>
    %99 = vector.multi_reduction <add>, %98, %cst_49 [1] : vector<32x128xf32> to vector<32xf32>
    %100 = vector.shape_cast %99 : vector<32xf32> to vector<32x1xf32>
    %cst_50 = arith.constant 1.280000e+02 : f32
    %101 = vector.broadcast %cst_50 : f32 to vector<32x1xf32>
    %102 = arith.divf %100, %101 : vector<32x1xf32>
    %103 = arith.mulf %98, %98 : vector<32x128xf32>
    %cst_51 = arith.constant dense<0.000000e+00> : vector<32xf32>
    %104 = vector.multi_reduction <add>, %103, %cst_51 [1] : vector<32x128xf32> to vector<32xf32>
    %105 = vector.shape_cast %104 : vector<32xf32> to vector<32x1xf32>
    %cst_52 = arith.constant 1.280000e+02 : f32
    %106 = vector.broadcast %cst_52 : f32 to vector<32x1xf32>
    %107 = arith.divf %105, %106 : vector<32x1xf32>
    %108 = arith.mulf %102, %102 : vector<32x1xf32>
    %109 = arith.subf %107, %108 : vector<32x1xf32>
    %110 = vector.broadcast %102 : vector<32x1xf32> to vector<32x128xf32>
    %111 = arith.subf %98, %110 : vector<32x128xf32>
    %cst_53 = arith.constant 9.99999974E-6 : f32
    %112 = vector.broadcast %cst_53 : f32 to vector<32x1xf32>
    %113 = arith.addf %109, %112 : vector<32x1xf32>
    %114 = math.rsqrt %113 : vector<32x1xf32>
    %115 = vector.broadcast %114 : vector<32x1xf32> to vector<32x128xf32>
    %116 = arith.mulf %111, %115 : vector<32x128xf32>
    %c0_54 = arith.constant 0 : index
    %c0_55 = arith.constant 0 : index
    %c0_56 = arith.constant 0 : index
    %117 = vector.load %arg14[%c0_54, %c0_55, %c0_56] : memref<1x1x128xf32, #tpu.memory_space<vmem>>, vector<1x1x128xf32>
    %118 = vector.shape_cast %117 : vector<1x1x128xf32> to vector<1x128xf32>
    %119 = vector.broadcast %118 : vector<1x128xf32> to vector<32x128xf32>
    %120 = arith.mulf %116, %119 : vector<32x128xf32>
    %c0_57 = arith.constant 0 : index
    %c0_58 = arith.constant 0 : index
    %c0_59 = arith.constant 0 : index
    %121 = vector.load %arg15[%c0_57, %c0_58, %c0_59] : memref<1x1x128xf32, #tpu.memory_space<vmem>>, vector<1x1x128xf32>
    %122 = vector.shape_cast %121 : vector<1x1x128xf32> to vector<1x128xf32>
    %123 = vector.broadcast %122 : vector<1x128xf32> to vector<32x128xf32>
    %124 = arith.addf %120, %123 : vector<32x128xf32>
    %c0_60 = arith.constant 0 : index
    %c0_61 = arith.constant 0 : index
    %125 = vector.load %arg18[%c0_60, %c0_61] : memref<32x128xf32, #tpu.memory_space<vmem>>, vector<32x128xf32>
    tpu.vector_store %arg18[%c0_60, %c0_61], %124 {strides = array<i32>} : memref<32x128xf32, #tpu.memory_space<vmem>>, vector<32x128xf32>,
    %c2_i32 = arith.constant 2 : i32
    %126 = arith.cmpi eq, %arg1, %c2_i32 : i32
    %127 = arith.extui %126 : i1 to i32
    %c0_i32_62 = arith.constant 0 : i32
    %128 = arith.cmpi ne, %127, %c0_i32_62 : i32
    scf.if %128 {
      %129 = vector.shape_cast %124 : vector<32x128xf32> to vector<2x16x128xf32>
      %c0_63 = arith.constant 0 : index
      %c0_64 = arith.constant 0 : index
      %c0_65 = arith.constant 0 : index
      %130 = vector.load %arg16[%c0_63, %c0_64, %c0_65] : memref<2x16x128xf32, #tpu.memory_space<vmem>>, vector<2x16x128xf32>
      tpu.vector_store %arg16[%c0_63, %c0_64, %c0_65], %129 {strides = array<i32>} : memref<2x16x128xf32, #tpu.memory_space<vmem>>, vector<2x16x128xf32>,
      %cst_66 = arith.constant dense<0.000000e+00> : vector<2x128xf32>
      %131 = vector.multi_reduction <add>, %129, %cst_66 [1] : vector<2x16x128xf32> to vector<2x128xf32>
      %132 = vector.shape_cast %131 : vector<2x128xf32> to vector<2x1x128xf32>
      %cst_67 = arith.constant 1.600000e+01 : f32
      %133 = vector.broadcast %cst_67 : f32 to vector<2x1x128xf32>
      %134 = arith.divf %132, %133 : vector<2x1x128xf32>
      %c0_68 = arith.constant 0 : index
      %c0_69 = arith.constant 0 : index
      %c0_70 = arith.constant 0 : index
      %135 = vector.load %arg17[%c0_68, %c0_69, %c0_70] : memref<2x1x128xf32, #tpu.memory_space<vmem>>, vector<2x1x128xf32>
      tpu.vector_store %arg17[%c0_68, %c0_69, %c0_70], %134 {strides = array<i32>} : memref<2x1x128xf32, #tpu.memory_space<vmem>>, vector<2x1x128xf32>,
    } else {
    }
    return
  }
  func.func @transform_0(%arg0: i32, %arg1: i32) -> (i32, i32, i32) {
    %c0_i32 = arith.constant 0 : i32
    %c0_i32_0 = arith.constant 0 : i32
    %c0_i32_1 = arith.constant 0 : i32
    return %arg0, %c0_i32, %c0_i32_0 : i32, i32, i32
  }
  func.func @transform_1(%arg0: i32, %arg1: i32) -> (i32, i32, i32) {
    %c0_i32 = arith.constant 0 : i32
    %c0_i32_0 = arith.constant 0 : i32
    %c0_i32_1 = arith.constant 0 : i32
    return %arg0, %c0_i32, %c0_i32_0 : i32, i32, i32
  }
  func.func @transform_2(%arg0: i32, %arg1: i32) -> (i32, i32, i32) {
    %c0_i32 = arith.constant 0 : i32
    %c0_i32_0 = arith.constant 0 : i32
    %c0_i32_1 = arith.constant 0 : i32
    return %arg1, %c0_i32, %c0_i32_0 : i32, i32, i32
  }
  func.func @transform_3(%arg0: i32, %arg1: i32) -> (i32, i32, i32) {
    %c0_i32 = arith.constant 0 : i32
    %c0_i32_0 = arith.constant 0 : i32
    %c0_i32_1 = arith.constant 0 : i32
    return %arg1, %c0_i32, %c0_i32_0 : i32, i32, i32
  }
  func.func @transform_4(%arg0: i32, %arg1: i32) -> (i32, i32, i32) {
    %c0_i32 = arith.constant 0 : i32
    %c0_i32_0 = arith.constant 0 : i32
    %c0_i32_1 = arith.constant 0 : i32
    return %arg1, %c0_i32, %c0_i32_0 : i32, i32, i32
  }
  func.func @transform_5(%arg0: i32, %arg1: i32) -> (i32, i32, i32) {
    %c0_i32 = arith.constant 0 : i32
    %c0_i32_0 = arith.constant 0 : i32
    %c0_i32_1 = arith.constant 0 : i32
    return %arg1, %c0_i32, %c0_i32_0 : i32, i32, i32
  }
  func.func @transform_6(%arg0: i32, %arg1: i32) -> (i32, i32, i32) {
    %c0_i32 = arith.constant 0 : i32
    %c0_i32_0 = arith.constant 0 : i32
    %c0_i32_1 = arith.constant 0 : i32
    return %arg1, %c0_i32, %c0_i32_0 : i32, i32, i32
  }
  func.func @transform_7(%arg0: i32, %arg1: i32) -> (i32, i32, i32) {
    %c0_i32 = arith.constant 0 : i32
    %c0_i32_0 = arith.constant 0 : i32
    %c0_i32_1 = arith.constant 0 : i32
    return %arg1, %c0_i32, %c0_i32_0 : i32, i32, i32
  }
  func.func @transform_8(%arg0: i32, %arg1: i32) -> (i32, i32, i32) {
    %c0_i32 = arith.constant 0 : i32
    %c0_i32_0 = arith.constant 0 : i32
    %c0_i32_1 = arith.constant 0 : i32
    return %arg1, %c0_i32, %c0_i32_0 : i32, i32, i32
  }
  func.func @transform_9(%arg0: i32, %arg1: i32) -> (i32, i32, i32) {
    %c0_i32 = arith.constant 0 : i32
    %c0_i32_0 = arith.constant 0 : i32
    %c0_i32_1 = arith.constant 0 : i32
    return %arg1, %c0_i32, %c0_i32_0 : i32, i32, i32
  }
  func.func @transform_10(%arg0: i32, %arg1: i32) -> (i32, i32, i32) {
    %c0_i32 = arith.constant 0 : i32
    %c0_i32_0 = arith.constant 0 : i32
    %c0_i32_1 = arith.constant 0 : i32
    return %arg1, %c0_i32, %c0_i32_0 : i32, i32, i32
  }
  func.func @transform_11(%arg0: i32, %arg1: i32) -> (i32, i32, i32) {
    %c0_i32 = arith.constant 0 : i32
    %c0_i32_0 = arith.constant 0 : i32
    %c0_i32_1 = arith.constant 0 : i32
    return %arg1, %c0_i32, %c0_i32_0 : i32, i32, i32
  }
  func.func @transform_12(%arg0: i32, %arg1: i32) -> (i32, i32, i32) {
    %c0_i32 = arith.constant 0 : i32
    %c0_i32_0 = arith.constant 0 : i32
    %c0_i32_1 = arith.constant 0 : i32
    return %arg1, %c0_i32, %c0_i32_0 : i32, i32, i32
  }
  func.func @transform_13(%arg0: i32, %arg1: i32) -> (i32, i32, i32) {
    %c0_i32 = arith.constant 0 : i32
    %c0_i32_0 = arith.constant 0 : i32
    %c0_i32_1 = arith.constant 0 : i32
    return %arg1, %c0_i32, %c0_i32_0 : i32, i32, i32
  }
  func.func @transform_14(%arg0: i32, %arg1: i32) -> (i32, i32, i32) {
    %c0_i32 = arith.constant 0 : i32
    %c0_i32_0 = arith.constant 0 : i32
    %c0_i32_1 = arith.constant 0 : i32
    return %arg0, %c0_i32, %c0_i32_0 : i32, i32, i32
  }
  func.func @transform_15(%arg0: i32, %arg1: i32) -> (i32, i32, i32) {
    %c0_i32 = arith.constant 0 : i32
    %c0_i32_0 = arith.constant 0 : i32
    %c0_i32_1 = arith.constant 0 : i32
    return %arg0, %c0_i32, %c0_i32_0 : i32, i32, i32
  }
}

</mosaic_0001>

<llo_original>
// kernel: tpu_custom_call.1
$region0: #{tpu_custom_call.1}
  #allocation0 [shape = 'u32[]', space=smem, size = 0x4, offset = 0x4, fixed_abs, tag = 'smem constant byte address 0x4 - core index']
  #allocation1 [shape = 'u32[144,128]{1,0:T(1,128)}', space=vmem, size = 0x12000, scoped, tag = 'internal scratch']
  #allocation2 [shape = 'f32[32,128]{1,0:T(8,128)}', space=vmem, size = 0x4000, scoped, tag = 'scratch operand']
  %s0 = inlined_call_operand.hbm [shape: f32[2,16,128], index: 0, kind: input, shape index: {}]
  %s1 = inlined_call_operand.hbm [shape: f32[2,8,16], index: 1, kind: input, shape index: {}]
  %s2 = inlined_call_operand.hbm [shape: bf16[3,128,384], index: 2, kind: input, shape index: {}]
  %s3 = inlined_call_operand.vmem [shape: f32[3,1,384], index: 3, kind: input, shape index: {}]
  %s4 = inlined_call_operand.hbm [shape: bf16[3,128,128], index: 4, kind: input, shape index: {}]
  %s5 = inlined_call_operand.hbm [shape: f32[3,1,128], index: 5, kind: input, shape index: {}]
  %s6 = inlined_call_operand.hbm [shape: f32[3,1,128], index: 6, kind: input, shape index: {}]
  %s7 = inlined_call_operand.vmem [shape: f32[3,1,128], index: 7, kind: input, shape index: {}]
  %s8 = inlined_call_operand.hbm [shape: bf16[3,128,512], index: 8, kind: input, shape index: {}]
  %s9 = inlined_call_operand.vmem [shape: f32[3,1,512], index: 9, kind: input, shape index: {}]
  %s10 = inlined_call_operand.hbm [shape: bf16[3,512,128], index: 10, kind: input, shape index: {}]
  %s11 = inlined_call_operand.vmem [shape: f32[3,1,128], index: 11, kind: input, shape index: {}]
  %s12 = inlined_call_operand.vmem [shape: f32[3,1,128], index: 12, kind: input, shape index: {}]
  %s13 = inlined_call_operand.vmem [shape: f32[3,1,128], index: 13, kind: input, shape index: {}]
  %s14 = inlined_call_operand.hbm [shape: f32[2,16,128], index: 14, kind: output, shape index: {0}]
  %s15 = inlined_call_operand.hbm [shape: f32[2,1,128], index: 15, kind: output, shape index: {1}]
  %16 = xla_tuple %s14, %s15
  %s17 = sld [smem:[#allocation0]]
  $region137: #{tpu_custom_call.1} parent=0
    _
  %s19 = ssub.s32 1, %s17
  %s20 = scalar_select 0, %s19, %s17
  $region1: #{tpu_custom_call.1} parent=0
    #allocation3 [shape = 'u8[16384]{0}', space=vmem, size = 0x4000, scoped, tag = 'input window, operand 0, single buffered']
    #allocation4 [shape = 's32[2]{0}', space=sflag, size = 0x8, scoped, tag = 'scoped memory for tpu_custom_call.1']
    #allocation5 [shape = 's32[2]{0}', space=sflag, size = 0x8, scoped, tag = 'scoped memory for tpu_custom_call.1']
    #allocation6 [shape = 'u8[8192]{0}', space=vmem, size = 0x2000, scoped, tag = 'input window, operand 1, single buffered']
    #allocation7 [shape = 's32[1]{0}', space=sflag, size = 0x4, scoped, tag = 'scoped memory for tpu_custom_call.1']
    #allocation8 [shape = 'u8[196608]{0}', space=vmem, size = 0x30000, scoped, tag = 'input window, operand 2']
    #allocation9 [shape = 'u8[65536]{0}', space=vmem, size = 0x10000, scoped, tag = 'input window, operand 4']
    #allocation10 [shape = 'u8[1024]{0}', space=vmem, size = 0x400, scoped, tag = 'input window, operand 5']
    #allocation11 [shape = 'u8[1024]{0}', space=vmem, size = 0x400, scoped, tag = 'input window, operand 6']
    #allocation12 [shape = 'u8[262144]{0}', space=vmem, size = 0x40000, scoped, tag = 'input window, operand 8']
    #allocation13 [shape = 'u8[262144]{0}', space=vmem, size = 0x40000, scoped, tag = 'input window, operand 10']
    #allocation14 [shape = 'u8[16384]{0}', space=vmem, size = 0x4000, scoped, tag = 'output window, operand 0, single buffered']
    #allocation15 [shape = 'u8[1024]{0}', space=vmem, size = 0x400, scoped, tag = 'output window, operand 1, single buffered']
    #allocation16 [shape = 's32[1]{0}', space=sflag, size = 0x4, scoped, tag = 'scoped memory for tpu_custom_call.1']
    %21 = vsyncpa [#allocation4], 0
    %22 = vsyncpa [#allocation7], 0
    %23 = vsyncpa [#allocation5], 0
    %24 = vsyncpa [#allocation16], 0
    loop: start=0, step=1, limit=5
    $region2: #{tpu_custom_call.1} parent=1 // loop_pre_header
      _
    $region3: #{tpu_custom_call.1} parent=1 // loop_header
      %s26 = sphi 0, %s30
      %p27 = scmp.ge.s32.totalorder %s26, 5
      %s33 = sphi 0, %s45
      %s34 = sphi 0, %s41
      %s35 = sphi 0, %s33
      %s36 = sphi 0, %s34
      %s37 = sphi 0, %s35
      %s38 = sphi 0, %s36
      %s48 = sphi 0, %s50
      %s51 = sphi 0, %s48
      %s52 = sphi 0, %s51
      %s68 = sphi 0, %s52
      %s74 = sphi 0, %s76
      %s77 = sphi 0, %s74
      %s78 = sphi 0, %s77
      %s94 = sphi 0, %s78
      %s100 = sphi 0, %s102
      %s103 = sphi 0, %s100
      %s104 = sphi 0, %s103
      %s120 = sphi 0, %s104
      %s126 = sphi 0, %s128
      %s129 = sphi 0, %s126
      %s130 = sphi 0, %s129
      %s146 = sphi 0, %s130
      %s152 = sphi 0, %s154
      %s155 = sphi 0, %s152
      %s156 = sphi 0, %s155
      %s172 = sphi 0, %s156
      %s178 = sphi 0, %s180
      %s181 = sphi 0, %s178
      %s182 = sphi 0, %s181
      %s198 = sphi 0, %s182
      %s204 = sphi 0, %s206
      %s207 = sphi 0, %s204
      %s208 = sphi 0, %s207
      %s224 = sphi 0, %s208
      %s230 = sphi 0, %s232
      %s233 = sphi 0, %s230
      %s234 = sphi 0, %s233
      %s250 = sphi 0, %s234
      %s256 = sphi 0, %s258
      %s259 = sphi 0, %s256
      %s260 = sphi 0, %s259
      %s276 = sphi 0, %s260
      %s282 = sphi 0, %s284
      %s285 = sphi 0, %s282
      %s286 = sphi 0, %s285
      %s302 = sphi 0, %s286
      %s308 = sphi 0, %s310
      %s311 = sphi 0, %s308
      %s312 = sphi 0, %s311
      %s328 = sphi 0, %s312
      %s334 = sphi 0, %s336
      %s337 = sphi 0, %s334
      %s338 = sphi 0, %s337
      %s354 = sphi 0, %s338
      %s360 = sphi 0, %s362
      %s363 = sphi 0, %s360
      %s364 = sphi 0, %s363
      %s380 = sphi 0, %s364
      %s386 = sphi 0, %s388
      %s389 = sphi 0, %s386
      %s390 = sphi 0, %s389
      %s406 = sphi 0, %s390
      %s412 = sphi 0, %s414
      %s415 = sphi 0, %s412
      %s416 = sphi 0, %s415
      %s432 = sphi 0, %s416
      %s438 = sphi 0, %s440
      %s441 = sphi 0, %s438
      %s442 = sphi 0, %s441
      %s458 = sphi 0, %s442
    $region4: #{tpu_custom_call.1} parent=1 // loop_header_branch
      %29 = sbr.rel (%p27) target = $region8
    $region5: #{tpu_custom_call.1} parent=1 // loop_body
      %s31 = ssub.s32 %s26, 1
      %s32 = ssub.s32 %s26, 2
      %s39 = sadd.s32 1, %s34
      %p40 = scmp.ge.s32.totalorder %s39, 3
      %s41 = scalar_select %p40, 0, %s39
      %s42 = sadd.s32 1, %s33
      %s43 = scalar_select %p40, %s42, %s33
      %p44 = scmp.ge.s32.totalorder %s43, 1
      %s45 = scalar_select %p44, 0, %s43
      %s46 = ssub.s32 %s33, %s45
      %p47 = scmp.eq.s32.totalorder %s46, 0
      %s49 = sadd.s32 %s48, 1
      %s50 = scalar_select %p47, %s48, %s49
      %p53 = pneg %p47
      %p54 = scmp.eq.s32.totalorder %s26, 2
      %p55 = por %p53, %p54
      %p56 = scmp.ne.s32.totalorder %s48, %s51
      %p57 = scmp.eq.s32.totalorder %s26, 0
      %p58 = por %p56, %p57
      %p59 = scmp.ne.s32.totalorder %s48, %s51
      %p60 = scmp.eq.s32.totalorder %s31, 2
      %p61 = por %p59, %p60
      %p62 = scmp.ne.s32.totalorder %s51, %s52
      %p63 = scmp.eq.s32.totalorder %s31, 0
      %p64 = por %p62, %p63
      %p65 = scmp.ne.s32.totalorder %s51, %s52
      %p66 = scmp.eq.s32.totalorder %s32, 2
      %p67 = por %p65, %p66
      %p69 = scmp.ne.s32.totalorder %s52, %s68
      %p70 = scmp.eq.s32.totalorder %s32, 0
      %p71 = por %p69, %p70
      %s72 = ssub.s32 %s33, %s45
      %p73 = scmp.eq.s32.totalorder %s72, 0
      %s75 = sadd.s32 %s74, 1
      %s76 = scalar_select %p73, %s74, %s75
      %p79 = pneg %p73
      %p80 = scmp.eq.s32.totalorder %s26, 2
      %p81 = por %p79, %p80
      %p82 = scmp.ne.s32.totalorder %s74, %s77
      %p83 = scmp.eq.s32.totalorder %s26, 0
      %p84 = por %p82, %p83
      %p85 = scmp.ne.s32.totalorder %s74, %s77
      %p86 = scmp.eq.s32.totalorder %s31, 2
      %p87 = por %p85, %p86
      %p88 = scmp.ne.s32.totalorder %s77, %s78
      %p89 = scmp.eq.s32.totalorder %s31, 0
      %p90 = por %p88, %p89
      %p91 = scmp.ne.s32.totalorder %s77, %s78
      %p92 = scmp.eq.s32.totalorder %s32, 2
      %p93 = por %p91, %p92
      %p95 = scmp.ne.s32.totalorder %s78, %s94
      %p96 = scmp.eq.s32.totalorder %s32, 0
      %p97 = por %p95, %p96
      %s98 = ssub.s32 %s34, %s41
      %p99 = scmp.eq.s32.totalorder %s98, 0
      %s101 = sadd.s32 %s100, 1
      %s102 = scalar_select %p99, %s100, %s101
      %p105 = pneg %p99
      %p106 = scmp.eq.s32.totalorder %s26, 2
      %p107 = por %p105, %p106
      %p108 = scmp.ne.s32.totalorder %s100, %s103
      %p109 = scmp.eq.s32.totalorder %s26, 0
      %p110 = por %p108, %p109
      %p111 = scmp.ne.s32.totalorder %s100, %s103
      %p112 = scmp.eq.s32.totalorder %s31, 2
      %p113 = por %p111, %p112
      %p114 = scmp.ne.s32.totalorder %s103, %s104
      %p115 = scmp.eq.s32.totalorder %s31, 0
      %p116 = por %p114, %p115
      %p117 = scmp.ne.s32.totalorder %s103, %s104
      %p118 = scmp.eq.s32.totalorder %s32, 2
      %p119 = por %p117, %p118
      %p121 = scmp.ne.s32.totalorder %s104, %s120
      %p122 = scmp.eq.s32.totalorder %s32, 0
      %p123 = por %p121, %p122
      %s124 = ssub.s32 %s34, %s41
      %p125 = scmp.eq.s32.totalorder %s124, 0
      %s127 = sadd.s32 %s126, 1
      %s128 = scalar_select %p125, %s126, %s127
      %p131 = pneg %p125
      %p132 = scmp.eq.s32.totalorder %s26, 2
      %p133 = por %p131, %p132
      %p134 = scmp.ne.s32.totalorder %s126, %s129
      %p135 = scmp.eq.s32.totalorder %s26, 0
      %p136 = por %p134, %p135
      %p137 = scmp.ne.s32.totalorder %s126, %s129
      %p138 = scmp.eq.s32.totalorder %s31, 2
      %p139 = por %p137, %p138
      %p140 = scmp.ne.s32.totalorder %s129, %s130
      %p141 = scmp.eq.s32.totalorder %s31, 0
      %p142 = por %p140, %p141
      %p143 = scmp.ne.s32.totalorder %s129, %s130
      %p144 = scmp.eq.s32.totalorder %s32, 2
      %p145 = por %p143, %p144
      %p147 = scmp.ne.s32.totalorder %s130, %s146
      %p148 = scmp.eq.s32.totalorder %s32, 0
      %p149 = por %p147, %p148
      %s150 = ssub.s32 %s34, %s41
      %p151 = scmp.eq.s32.totalorder %s150, 0
      %s153 = sadd.s32 %s152, 1
      %s154 = scalar_select %p151, %s152, %s153
      %p157 = pneg %p151
      %p158 = scmp.eq.s32.totalorder %s26, 2
      %p159 = por %p157, %p158
      %p160 = scmp.ne.s32.totalorder %s152, %s155
      %p161 = scmp.eq.s32.totalorder %s26, 0
      %p162 = por %p160, %p161
      %p163 = scmp.ne.s32.totalorder %s152, %s155
      %p164 = scmp.eq.s32.totalorder %s31, 2
      %p165 = por %p163, %p164
      %p166 = scmp.ne.s32.totalorder %s155, %s156
      %p167 = scmp.eq.s32.totalorder %s31, 0
      %p168 = por %p166, %p167
      %p169 = scmp.ne.s32.totalorder %s155, %s156
      %p170 = scmp.eq.s32.totalorder %s32, 2
      %p171 = por %p169, %p170
      %p173 = scmp.ne.s32.totalorder %s156, %s172
      %p174 = scmp.eq.s32.totalorder %s32, 0
      %p175 = por %p173, %p174
      %s176 = ssub.s32 %s34, %s41
      %p177 = scmp.eq.s32.totalorder %s176, 0
      %s179 = sadd.s32 %s178, 1
      %s180 = scalar_select %p177, %s178, %s179
      %p183 = pneg %p177
      %p184 = scmp.eq.s32.totalorder %s26, 2
      %p185 = por %p183, %p184
      %p186 = scmp.ne.s32.totalorder %s178, %s181
      %p187 = scmp.eq.s32.totalorder %s26, 0
      %p188 = por %p186, %p187
      %p189 = scmp.ne.s32.totalorder %s178, %s181
      %p190 = scmp.eq.s32.totalorder %s31, 2
      %p191 = por %p189, %p190
      %p192 = scmp.ne.s32.totalorder %s181, %s182
      %p193 = scmp.eq.s32.totalorder %s31, 0
      %p194 = por %p192, %p193
      %p195 = scmp.ne.s32.totalorder %s181, %s182
      %p196 = scmp.eq.s32.totalorder %s32, 2
      %p197 = por %p195, %p196
      %p199 = scmp.ne.s32.totalorder %s182, %s198
      %p200 = scmp.eq.s32.totalorder %s32, 0
      %p201 = por %p199, %p200
      %s202 = ssub.s32 %s34, %s41
      %p203 = scmp.eq.s32.totalorder %s202, 0
      %s205 = sadd.s32 %s204, 1
      %s206 = scalar_select %p203, %s204, %s205
      %p209 = pneg %p203
      %p210 = scmp.eq.s32.totalorder %s26, 2
      %p211 = por %p209, %p210
      %p212 = scmp.ne.s32.totalorder %s204, %s207
      %p213 = scmp.eq.s32.totalorder %s26, 0
      %p214 = por %p212, %p213
      %p215 = scmp.ne.s32.totalorder %s204, %s207
      %p216 = scmp.eq.s32.totalorder %s31, 2
      %p217 = por %p215, %p216
      %p218 = scmp.ne.s32.totalorder %s207, %s208
      %p219 = scmp.eq.s32.totalorder %s31, 0
      %p220 = por %p218, %p219
      %p221 = scmp.ne.s32.totalorder %s207, %s208
      %p222 = scmp.eq.s32.totalorder %s32, 2
      %p223 = por %p221, %p222
      %p225 = scmp.ne.s32.totalorder %s208, %s224
      %p226 = scmp.eq.s32.totalorder %s32, 0
      %p227 = por %p225, %p226
      %s228 = ssub.s32 %s34, %s41
      %p229 = scmp.eq.s32.totalorder %s228, 0
      %s231 = sadd.s32 %s230, 1
      %s232 = scalar_select %p229, %s230, %s231
      %p235 = pneg %p229
      %p236 = scmp.eq.s32.totalorder %s26, 2
      %p237 = por %p235, %p236
      %p238 = scmp.ne.s32.totalorder %s230, %s233
      %p239 = scmp.eq.s32.totalorder %s26, 0
      %p240 = por %p238, %p239
      %p241 = scmp.ne.s32.totalorder %s230, %s233
      %p242 = scmp.eq.s32.totalorder %s31, 2
      %p243 = por %p241, %p242
      %p244 = scmp.ne.s32.totalorder %s233, %s234
      %p245 = scmp.eq.s32.totalorder %s31, 0
      %p246 = por %p244, %p245
      %p247 = scmp.ne.s32.totalorder %s233, %s234
      %p248 = scmp.eq.s32.totalorder %s32, 2
      %p249 = por %p247, %p248
      %p251 = scmp.ne.s32.totalorder %s234, %s250
      %p252 = scmp.eq.s32.totalorder %s32, 0
      %p253 = por %p251, %p252
      %s254 = ssub.s32 %s34, %s41
      %p255 = scmp.eq.s32.totalorder %s254, 0
      %s257 = sadd.s32 %s256, 1
      %s258 = scalar_select %p255, %s256, %s257
      %p261 = pneg %p255
      %p262 = scmp.eq.s32.totalorder %s26, 2
      %p263 = por %p261, %p262
      %p264 = scmp.ne.s32.totalorder %s256, %s259
      %p265 = scmp.eq.s32.totalorder %s26, 0
      %p266 = por %p264, %p265
      %p267 = scmp.ne.s32.totalorder %s256, %s259
      %p268 = scmp.eq.s32.totalorder %s31, 2
      %p269 = por %p267, %p268
      %p270 = scmp.ne.s32.totalorder %s259, %s260
      %p271 = scmp.eq.s32.totalorder %s31, 0
      %p272 = por %p270, %p271
      %p273 = scmp.ne.s32.totalorder %s259, %s260
      %p274 = scmp.eq.s32.totalorder %s32, 2
      %p275 = por %p273, %p274
      %p277 = scmp.ne.s32.totalorder %s260, %s276
      %p278 = scmp.eq.s32.totalorder %s32, 0
      %p279 = por %p277, %p278
      %s280 = ssub.s32 %s34, %s41
      %p281 = scmp.eq.s32.totalorder %s280, 0
      %s283 = sadd.s32 %s282, 1
      %s284 = scalar_select %p281, %s282, %s283
      %p287 = pneg %p281
      %p288 = scmp.eq.s32.totalorder %s26, 2
      %p289 = por %p287, %p288
      %p290 = scmp.ne.s32.totalorder %s282, %s285
      %p291 = scmp.eq.s32.totalorder %s26, 0
      %p292 = por %p290, %p291
      %p293 = scmp.ne.s32.totalorder %s282, %s285
      %p294 = scmp.eq.s32.totalorder %s31, 2
      %p295 = por %p293, %p294
      %p296 = scmp.ne.s32.totalorder %s285, %s286
      %p297 = scmp.eq.s32.totalorder %s31, 0
      %p298 = por %p296, %p297
      %p299 = scmp.ne.s32.totalorder %s285, %s286
      %p300 = scmp.eq.s32.totalorder %s32, 2
      %p301 = por %p299, %p300
      %p303 = scmp.ne.s32.totalorder %s286, %s302
      %p304 = scmp.eq.s32.totalorder %s32, 0
      %p305 = por %p303, %p304
      %s306 = ssub.s32 %s34, %s41
      %p307 = scmp.eq.s32.totalorder %s306, 0
      %s309 = sadd.s32 %s308, 1
      %s310 = scalar_select %p307, %s308, %s309
      %p313 = pneg %p307
      %p314 = scmp.eq.s32.totalorder %s26, 2
      %p315 = por %p313, %p314
      %p316 = scmp.ne.s32.totalorder %s308, %s311
      %p317 = scmp.eq.s32.totalorder %s26, 0
      %p318 = por %p316, %p317
      %p319 = scmp.ne.s32.totalorder %s308, %s311
      %p320 = scmp.eq.s32.totalorder %s31, 2
      %p321 = por %p319, %p320
      %p322 = scmp.ne.s32.totalorder %s311, %s312
      %p323 = scmp.eq.s32.totalorder %s31, 0
      %p324 = por %p322, %p323
      %p325 = scmp.ne.s32.totalorder %s311, %s312
      %p326 = scmp.eq.s32.totalorder %s32, 2
      %p327 = por %p325, %p326
      %p329 = scmp.ne.s32.totalorder %s312, %s328
      %p330 = scmp.eq.s32.totalorder %s32, 0
      %p331 = por %p329, %p330
      %s332 = ssub.s32 %s34, %s41
      %p333 = scmp.eq.s32.totalorder %s332, 0
      %s335 = sadd.s32 %s334, 1
      %s336 = scalar_select %p333, %s334, %s335
      %p339 = pneg %p333
      %p340 = scmp.eq.s32.totalorder %s26, 2
      %p341 = por %p339, %p340
      %p342 = scmp.ne.s32.totalorder %s334, %s337
      %p343 = scmp.eq.s32.totalorder %s26, 0
      %p344 = por %p342, %p343
      %p345 = scmp.ne.s32.totalorder %s334, %s337
      %p346 = scmp.eq.s32.totalorder %s31, 2
      %p347 = por %p345, %p346
      %p348 = scmp.ne.s32.totalorder %s337, %s338
      %p349 = scmp.eq.s32.totalorder %s31, 0
      %p350 = por %p348, %p349
      %p351 = scmp.ne.s32.totalorder %s337, %s338
      %p352 = scmp.eq.s32.totalorder %s32, 2
      %p353 = por %p351, %p352
      %p355 = scmp.ne.s32.totalorder %s338, %s354
      %p356 = scmp.eq.s32.totalorder %s32, 0
      %p357 = por %p355, %p356
      %s358 = ssub.s32 %s34, %s41
      %p359 = scmp.eq.s32.totalorder %s358, 0
      %s361 = sadd.s32 %s360, 1
      %s362 = scalar_select %p359, %s360, %s361
      %p365 = pneg %p359
      %p366 = scmp.eq.s32.totalorder %s26, 2
      %p367 = por %p365, %p366
      %p368 = scmp.ne.s32.totalorder %s360, %s363
      %p369 = scmp.eq.s32.totalorder %s26, 0
      %p370 = por %p368, %p369
      %p371 = scmp.ne.s32.totalorder %s360, %s363
      %p372 = scmp.eq.s32.totalorder %s31, 2
      %p373 = por %p371, %p372
      %p374 = scmp.ne.s32.totalorder %s363, %s364
      %p375 = scmp.eq.s32.totalorder %s31, 0
      %p376 = por %p374, %p375
      %p377 = scmp.ne.s32.totalorder %s363, %s364
      %p378 = scmp.eq.s32.totalorder %s32, 2
      %p379 = por %p377, %p378
      %p381 = scmp.ne.s32.totalorder %s364, %s380
      %p382 = scmp.eq.s32.totalorder %s32, 0
      %p383 = por %p381, %p382
      %s384 = ssub.s32 %s34, %s41
      %p385 = scmp.eq.s32.totalorder %s384, 0
      %s387 = sadd.s32 %s386, 1
      %s388 = scalar_select %p385, %s386, %s387
      %p391 = pneg %p385
      %p392 = scmp.eq.s32.totalorder %s26, 2
      %p393 = por %p391, %p392
      %p394 = scmp.ne.s32.totalorder %s386, %s389
      %p395 = scmp.eq.s32.totalorder %s26, 0
      %p396 = por %p394, %p395
      %p397 = scmp.ne.s32.totalorder %s386, %s389
      %p398 = scmp.eq.s32.totalorder %s31, 2
      %p399 = por %p397, %p398
      %p400 = scmp.ne.s32.totalorder %s389, %s390
      %p401 = scmp.eq.s32.totalorder %s31, 0
      %p402 = por %p400, %p401
      %p403 = scmp.ne.s32.totalorder %s389, %s390
      %p404 = scmp.eq.s32.totalorder %s32, 2
      %p405 = por %p403, %p404
      %p407 = scmp.ne.s32.totalorder %s390, %s406
      %p408 = scmp.eq.s32.totalorder %s32, 0
      %p409 = por %p407, %p408
      %s410 = ssub.s32 %s33, %s45
      %p411 = scmp.eq.s32.totalorder %s410, 0
      %s413 = sadd.s32 %s412, 1
      %s414 = scalar_select %p411, %s412, %s413
      %p417 = pneg %p411
      %p418 = scmp.eq.s32.totalorder %s26, 2
      %p419 = por %p417, %p418
      %p420 = scmp.ne.s32.totalorder %s412, %s415
      %p421 = scmp.eq.s32.totalorder %s26, 0
      %p422 = por %p420, %p421
      %p423 = scmp.ne.s32.totalorder %s412, %s415
      %p424 = scmp.eq.s32.totalorder %s31, 2
      %p425 = por %p423, %p424
      %p426 = scmp.ne.s32.totalorder %s415, %s416
      %p427 = scmp.eq.s32.totalorder %s31, 0
      %p428 = por %p426, %p427
      %p429 = scmp.ne.s32.totalorder %s415, %s416
      %p430 = scmp.eq.s32.totalorder %s32, 2
      %p431 = por %p429, %p430
      %p433 = scmp.ne.s32.totalorder %s416, %s432
      %p434 = scmp.eq.s32.totalorder %s32, 0
      %p435 = por %p433, %p434
      %s436 = ssub.s32 %s33, %s45
      %p437 = scmp.eq.s32.totalorder %s436, 0
      %s439 = sadd.s32 %s438, 1
      %s440 = scalar_select %p437, %s438, %s439
      %p443 = pneg %p437
      %p444 = scmp.eq.s32.totalorder %s26, 2
      %p445 = por %p443, %p444
      %p446 = scmp.ne.s32.totalorder %s438, %s441
      %p447 = scmp.eq.s32.totalorder %s26, 0
      %p448 = por %p446, %p447
      %p449 = scmp.ne.s32.totalorder %s438, %s441
      %p450 = scmp.eq.s32.totalorder %s31, 2
      %p451 = por %p449, %p450
      %p452 = scmp.ne.s32.totalorder %s441, %s442
      %p453 = scmp.eq.s32.totalorder %s31, 0
      %p454 = por %p452, %p453
      %p455 = scmp.ne.s32.totalorder %s441, %s442
      %p456 = scmp.eq.s32.totalorder %s32, 2
      %p457 = por %p455, %p456
      %p459 = scmp.ne.s32.totalorder %s442, %s458
      %p460 = scmp.eq.s32.totalorder %s32, 0
      %p461 = por %p459, %p460
      %p462 = scmp.le.s32.totalorder 1, %s26
      %p463 = scmp.lt.s32.totalorder %s26, 4
      %p464 = pnand %p462, %p463
      %p465 = pneg %p464
      // Predicated region
      $region9: #{tpu_custom_call.1} parent=5 // pred_check
        _
      $region10: #{tpu_custom_call.1} parent=5 // pred_check_branch
        %467 = sbr.rel (%p464) target = $region12
      $region11: #{tpu_custom_call.1} parent=5 // pred_region
        %s468 = ssub.s32 %s26, 1
        // Predicated region
        $region13: #{tpu_custom_call.1} parent=11 // pred_check
          %p469 = pneg %p64
        $region14: #{tpu_custom_call.1} parent=11 // pred_check_branch
          %471 = sbr.rel (%p469) target = $region16
        $region15: #{tpu_custom_call.1} parent=11 // pred_region
          %s472 = smul.u32 2, %s35
          %s474 = ssub.s32 512, 512
          %475 = vsyncadd [#allocation4], %s474
          %s476 = smul.addr %s472, 2
          %s477 = smul.addr %s476, 128
          %s478 = scalar_lea.hbm %s0, %s477
          %s479 = sshll.u32 [#allocation3], 4
          %s480 = int_to_ptr.vmem [resolvable:$true] %s479
          %485 = dma.hbm_to_vmem [thread:$0]  %s478, 512, %s480, [#allocation4], 128, 128, 8
        $region16: #{tpu_custom_call.1} parent=11 // pred_fallthru
          _
        // Predicated region
        $region17: #{tpu_custom_call.1} parent=11 // pred_check
          %p486 = pneg %p90
        $region18: #{tpu_custom_call.1} parent=11 // pred_check_branch
          %488 = sbr.rel (%p486) target = $region20
        $region19: #{tpu_custom_call.1} parent=11 // pred_region
          %s489 = smul.u32 2, %s35
          %s491 = ssub.s32 256, 256
          %492 = vsyncadd [#allocation7], %s491
          %s493 = smul.addr %s489, 128
          %s494 = scalar_lea.hbm %s1, %s493
          %s495 = sshll.u32 [#allocation6], 4
          %s496 = int_to_ptr.vmem [resolvable:$true] %s495
          %501 = dma.hbm_to_vmem [thread:$0]  %s494, 256, %s496, [#allocation7], 128, 128, 8
        $region20: #{tpu_custom_call.1} parent=11 // pred_fallthru
          _
      $region12: #{tpu_custom_call.1} parent=5 // pred_fallthru
        _
      %p502 = scmp.lt.s32.totalorder %s26, 3
      // Predicated region
      $region21: #{tpu_custom_call.1} parent=5 // pred_check
        %p503 = pneg %p502
      $region22: #{tpu_custom_call.1} parent=5 // pred_check_branch
        %505 = sbr.rel (%p503) target = $region24
      $region23: #{tpu_custom_call.1} parent=5 // pred_region
        // Predicated region
        $region25: #{tpu_custom_call.1} parent=23 // pred_check
          %p506 = pneg %p110
        $region26: #{tpu_custom_call.1} parent=23 // pred_check_branch
          %508 = sbr.rel (%p506) target = $region28
        $region27: #{tpu_custom_call.1} parent=23 // pred_region
          %s509 = sand.u32 %s26, 1
          %s510 = scalar_lea.sflag [#allocation4], %s509
          %s511 = sand.u32 %s100, 1
          %s512 = smul.addr %s511, 192
          %s513 = scalar_lea.vmem [#allocation8], %s512
          %s515 = ssub.s32 3072, 3072
          %516 = vsyncadd %s510, %s515
          %s517 = smul.addr %s34, 48
          %s518 = smul.addr %s517, 64
          %s519 = scalar_lea.hbm %s2, %s518
          %s520 = sshll.u32 %s513, 4
          %s521 = int_to_ptr.vmem [resolvable:$true] %s520
          %526 = dma.hbm_to_vmem [thread:$0]  %s519, 3072, %s521, %s510, 192, 192, 12
        $region28: #{tpu_custom_call.1} parent=23 // pred_fallthru
          _
        // Predicated region
        $region29: #{tpu_custom_call.1} parent=23 // pred_check
          %p527 = pneg %p136
        $region30: #{tpu_custom_call.1} parent=23 // pred_check_branch
          %529 = sbr.rel (%p527) target = $region32
        $region31: #{tpu_custom_call.1} parent=23 // pred_region
          %p530 = scmp.lt.s32.totalorder %s34, 2
          %s531 = scalar_select %p530, %s34, 2
          %s532 = smul.addr %s531, 3
          %s533 = scalar_lea.vmem %s3, %s532
        $region32: #{tpu_custom_call.1} parent=23 // pred_fallthru
          _
        // Predicated region
        $region33: #{tpu_custom_call.1} parent=23 // pred_check
          %p534 = pneg %p162
        $region34: #{tpu_custom_call.1} parent=23 // pred_check_branch
          %536 = sbr.rel (%p534) target = $region36
        $region35: #{tpu_custom_call.1} parent=23 // pred_region
          %s537 = sand.u32 %s26, 1
          %s538 = scalar_lea.sflag [#allocation4], %s537
          %s539 = sand.u32 %s152, 1
          %s540 = smul.addr %s539, 64
          %s541 = scalar_lea.vmem [#allocation9], %s540
          %s543 = ssub.s32 1024, 1024
          %544 = vsyncadd %s538, %s543
          %s545 = smul.addr %s34, 16
          %s546 = smul.addr %s545, 64
          %s547 = scalar_lea.hbm %s4, %s546
          %s548 = sshll.u32 %s541, 4
          %s549 = int_to_ptr.vmem [resolvable:$true] %s548
          %554 = dma.hbm_to_vmem [thread:$0]  %s547, 1024, %s549, %s538, 64, 64, 4
        $region36: #{tpu_custom_call.1} parent=23 // pred_fallthru
          _
        // Predicated region
        $region37: #{tpu_custom_call.1} parent=23 // pred_check
          %p555 = pneg %p188
        $region38: #{tpu_custom_call.1} parent=23 // pred_check_branch
          %557 = sbr.rel (%p555) target = $region40
        $region39: #{tpu_custom_call.1} parent=23 // pred_region
          %s558 = sand.u32 %s26, 1
          %s559 = scalar_lea.sflag [#allocation4], %s558
          %s560 = sand.u32 %s178, 1
          %s561 = scalar_lea.vmem [#allocation10], %s560
          %s563 = ssub.s32 16, 16
          %564 = vsyncadd %s559, %s563
          %s565 = smul.addr %s34, 16
          %s566 = scalar_lea.hbm %s5, %s565
          %s568 = sshll.u32 %s561, 4
          %s569 = int_to_ptr.vmem [resolvable:$true] %s568
          %571 = dma.hbm_to_vmem [thread:$0]  %s566, 16, %s569, %s559
        $region40: #{tpu_custom_call.1} parent=23 // pred_fallthru
          _
        // Predicated region
        $region41: #{tpu_custom_call.1} parent=23 // pred_check
          %p572 = pneg %p214
        $region42: #{tpu_custom_call.1} parent=23 // pred_check_branch
          %574 = sbr.rel (%p572) target = $region44
        $region43: #{tpu_custom_call.1} parent=23 // pred_region
          %s575 = sand.u32 %s26, 1
          %s576 = scalar_lea.sflag [#allocation4], %s575
          %s577 = sand.u32 %s204, 1
          %s578 = scalar_lea.vmem [#allocation11], %s577
          %s580 = ssub.s32 16, 16
          %581 = vsyncadd %s576, %s580
          %s582 = smul.addr %s34, 16
          %s583 = scalar_lea.hbm %s6, %s582
          %s585 = sshll.u32 %s578, 4
          %s586 = int_to_ptr.vmem [resolvable:$true] %s585
          %588 = dma.hbm_to_vmem [thread:$0]  %s583, 16, %s586, %s576
        $region44: #{tpu_custom_call.1} parent=23 // pred_fallthru
          _
        // Predicated region
        $region45: #{tpu_custom_call.1} parent=23 // pred_check
          %p589 = pneg %p240
        $region46: #{tpu_custom_call.1} parent=23 // pred_check_branch
          %591 = sbr.rel (%p589) target = $region48
        $region47: #{tpu_custom_call.1} parent=23 // pred_region
          %p592 = scmp.lt.s32.totalorder %s34, 2
          %s593 = scalar_select %p592, %s34, 2
          %s594 = scalar_lea.vmem %s7, %s593
        $region48: #{tpu_custom_call.1} parent=23 // pred_fallthru
          _
        // Predicated region
        $region49: #{tpu_custom_call.1} parent=23 // pred_check
          %p595 = pneg %p266
        $region50: #{tpu_custom_call.1} parent=23 // pred_check_branch
          %597 = sbr.rel (%p595) target = $region52
        $region51: #{tpu_custom_call.1} parent=23 // pred_region
          %s598 = sand.u32 %s26, 1
          %s599 = scalar_lea.sflag [#allocation4], %s598
          %s600 = sand.u32 %s256, 1
          %s601 = smul.addr %s600, 256
          %s602 = scalar_lea.vmem [#allocation12], %s601
          %s604 = ssub.s32 4096, 4096
          %605 = vsyncadd %s599, %s604
          %s606 = smul.addr %s34, 64
          %s607 = smul.addr %s606, 64
          %s608 = scalar_lea.hbm %s8, %s607
          %s609 = sshll.u32 %s602, 4
          %s610 = int_to_ptr.vmem [resolvable:$true] %s609
          %615 = dma.hbm_to_vmem [thread:$0]  %s608, 4096, %s610, %s599, 256, 256, 16
        $region52: #{tpu_custom_call.1} parent=23 // pred_fallthru
          _
        // Predicated region
        $region53: #{tpu_custom_call.1} parent=23 // pred_check
          %p616 = pneg %p292
        $region54: #{tpu_custom_call.1} parent=23 // pred_check_branch
          %618 = sbr.rel (%p616) target = $region56
        $region55: #{tpu_custom_call.1} parent=23 // pred_region
          %p619 = scmp.lt.s32.totalorder %s34, 2
          %s620 = scalar_select %p619, %s34, 2
          %s621 = smul.addr %s620, 4
          %s622 = scalar_lea.vmem %s9, %s621
        $region56: #{tpu_custom_call.1} parent=23 // pred_fallthru
          _
        // Predicated region
        $region57: #{tpu_custom_call.1} parent=23 // pred_check
          %p623 = pneg %p318
        $region58: #{tpu_custom_call.1} parent=23 // pred_check_branch
          %625 = sbr.rel (%p623) target = $region60
        $region59: #{tpu_custom_call.1} parent=23 // pred_region
          %s626 = sand.u32 %s26, 1
          %s627 = scalar_lea.sflag [#allocation4], %s626
          %s628 = sand.u32 %s308, 1
          %s629 = smul.addr %s628, 256
          %s630 = scalar_lea.vmem [#allocation13], %s629
          %s632 = ssub.s32 4096, 4096
          %633 = vsyncadd %s627, %s632
          %s634 = smul.addr %s34, 64
          %s635 = smul.addr %s634, 64
          %s636 = scalar_lea.hbm %s10, %s635
          %s637 = sshll.u32 %s630, 4
          %s638 = int_to_ptr.vmem [resolvable:$true] %s637
          %643 = dma.hbm_to_vmem [thread:$0]  %s636, 4096, %s638, %s627, 64, 64, 4
        $region60: #{tpu_custom_call.1} parent=23 // pred_fallthru
          _
        // Predicated region
        $region61: #{tpu_custom_call.1} parent=23 // pred_check
          %p644 = pneg %p344
        $region62: #{tpu_custom_call.1} parent=23 // pred_check_branch
          %646 = sbr.rel (%p644) target = $region64
        $region63: #{tpu_custom_call.1} parent=23 // pred_region
          %p647 = scmp.lt.s32.totalorder %s34, 2
          %s648 = scalar_select %p647, %s34, 2
          %s649 = scalar_lea.vmem %s11, %s648
        $region64: #{tpu_custom_call.1} parent=23 // pred_fallthru
          _
        // Predicated region
        $region65: #{tpu_custom_call.1} parent=23 // pred_check
          %p650 = pneg %p370
        $region66: #{tpu_custom_call.1} parent=23 // pred_check_branch
          %652 = sbr.rel (%p650) target = $region68
        $region67: #{tpu_custom_call.1} parent=23 // pred_region
          %p653 = scmp.lt.s32.totalorder %s34, 2
          %s654 = scalar_select %p653, %s34, 2
          %s655 = scalar_lea.vmem %s12, %s654
        $region68: #{tpu_custom_call.1} parent=23 // pred_fallthru
          _
        // Predicated region
        $region69: #{tpu_custom_call.1} parent=23 // pred_check
          %p656 = pneg %p396
        $region70: #{tpu_custom_call.1} parent=23 // pred_check_branch
          %658 = sbr.rel (%p656) target = $region72
        $region71: #{tpu_custom_call.1} parent=23 // pred_region
          %p659 = scmp.lt.s32.totalorder %s34, 2
          %s660 = scalar_select %p659, %s34, 2
          %s661 = scalar_lea.vmem %s13, %s660
        $region72: #{tpu_custom_call.1} parent=23 // pred_fallthru
          _
      $region24: #{tpu_custom_call.1} parent=5 // pred_fallthru
        _
      %p662 = scmp.le.s32.totalorder 1, %s26
      %p663 = scmp.lt.s32.totalorder %s26, 4
      %p664 = pnand %p662, %p663
      %p665 = pneg %p664
      // Predicated region
      $region73: #{tpu_custom_call.1} parent=5 // pred_check
        _
      $region74: #{tpu_custom_call.1} parent=5 // pred_check_branch
        %667 = sbr.rel (%p664) target = $region76
      $region75: #{tpu_custom_call.1} parent=5 // pred_region
        %s668 = ssub.s32 %s26, 1
        // Predicated region
        $region77: #{tpu_custom_call.1} parent=75 // pred_check
          %p669 = pneg %p64
        $region78: #{tpu_custom_call.1} parent=75 // pred_check_branch
          %671 = sbr.rel (%p669) target = $region80
        $region79: #{tpu_custom_call.1} parent=75 // pred_region
          %672 = dma.done [#allocation4], 512
        $region80: #{tpu_custom_call.1} parent=75 // pred_fallthru
          _
        // Predicated region
        $region81: #{tpu_custom_call.1} parent=75 // pred_check
          %p673 = pneg %p90
        $region82: #{tpu_custom_call.1} parent=75 // pred_check_branch
          %675 = sbr.rel (%p673) target = $region84
        $region83: #{tpu_custom_call.1} parent=75 // pred_region
          %676 = dma.done [#allocation7], 256
        $region84: #{tpu_custom_call.1} parent=75 // pred_fallthru
          _
        %s677 = sand.u32 %s31, 1
        %s678 = scalar_lea.sflag [#allocation4], %s677
        %s679 = sand.u32 %s103, 1
        %s680 = smul.addr %s679, 192
        %s681 = scalar_lea.vmem [#allocation8], %s680
        // Predicated region
        $region85: #{tpu_custom_call.1} parent=75 // pred_check
          %p682 = pneg %p116
        $region86: #{tpu_custom_call.1} parent=75 // pred_check_branch
          %684 = sbr.rel (%p682) target = $region88
        $region87: #{tpu_custom_call.1} parent=75 // pred_region
          %685 = dma.done %s678, 3072
        $region88: #{tpu_custom_call.1} parent=75 // pred_fallthru
          _
        %s686 = sand.u32 %s31, 1
        %s687 = scalar_lea.sflag [#allocation4], %s686
        %s688 = sand.u32 %s155, 1
        %s689 = smul.addr %s688, 64
        %s690 = scalar_lea.vmem [#allocation9], %s689
        // Predicated region
        $region89: #{tpu_custom_call.1} parent=75 // pred_check
          %p691 = pneg %p168
        $region90: #{tpu_custom_call.1} parent=75 // pred_check_branch
          %693 = sbr.rel (%p691) target = $region92
        $region91: #{tpu_custom_call.1} parent=75 // pred_region
          %694 = dma.done %s687, 1024
        $region92: #{tpu_custom_call.1} parent=75 // pred_fallthru
          _
        %s695 = sand.u32 %s31, 1
        %s696 = scalar_lea.sflag [#allocation4], %s695
        %s697 = sand.u32 %s181, 1
        %s698 = scalar_lea.vmem [#allocation10], %s697
        // Predicated region
        $region93: #{tpu_custom_call.1} parent=75 // pred_check
          %p699 = pneg %p194
        $region94: #{tpu_custom_call.1} parent=75 // pred_check_branch
          %701 = sbr.rel (%p699) target = $region96
        $region95: #{tpu_custom_call.1} parent=75 // pred_region
          %702 = dma.done %s696, 16
        $region96: #{tpu_custom_call.1} parent=75 // pred_fallthru
          _
        %s703 = sand.u32 %s31, 1
        %s704 = scalar_lea.sflag [#allocation4], %s703
        %s705 = sand.u32 %s207, 1
        %s706 = scalar_lea.vmem [#allocation11], %s705
        // Predicated region
        $region97: #{tpu_custom_call.1} parent=75 // pred_check
          %p707 = pneg %p220
        $region98: #{tpu_custom_call.1} parent=75 // pred_check_branch
          %709 = sbr.rel (%p707) target = $region100
        $region99: #{tpu_custom_call.1} parent=75 // pred_region
          %710 = dma.done %s704, 16
        $region100: #{tpu_custom_call.1} parent=75 // pred_fallthru
          _
        %s711 = sand.u32 %s31, 1
        %s712 = scalar_lea.sflag [#allocation4], %s711
        %s713 = sand.u32 %s259, 1
        %s714 = smul.addr %s713, 256
        %s715 = scalar_lea.vmem [#allocation12], %s714
        // Predicated region
        $region101: #{tpu_custom_call.1} parent=75 // pred_check
          %p716 = pneg %p272
        $region102: #{tpu_custom_call.1} parent=75 // pred_check_branch
          %718 = sbr.rel (%p716) target = $region104
        $region103: #{tpu_custom_call.1} parent=75 // pred_region
          %719 = dma.done %s712, 4096
        $region104: #{tpu_custom_call.1} parent=75 // pred_fallthru
          _
        %s720 = sand.u32 %s31, 1
        %s721 = scalar_lea.sflag [#allocation4], %s720
        %s722 = sand.u32 %s311, 1
        %s723 = smul.addr %s722, 256
        %s724 = scalar_lea.vmem [#allocation13], %s723
        // Predicated region
        $region105: #{tpu_custom_call.1} parent=75 // pred_check
          %p725 = pneg %p324
        $region106: #{tpu_custom_call.1} parent=75 // pred_check_branch
          %727 = sbr.rel (%p725) target = $region108
        $region107: #{tpu_custom_call.1} parent=75 // pred_region
          %728 = dma.done %s721, 4096
        $region108: #{tpu_custom_call.1} parent=75 // pred_fallthru
          _
        %p729 = pneg %p64
        %p730 = pneg %p61
        %p731 = pneg %p90
        %p732 = pneg %p87
        %s733 = sand.u32 %s31, 1
        %s734 = scalar_lea.sflag [#allocation4], %s733
        %s735 = sand.u32 %s103, 1
        %s736 = smul.addr %s735, 192
        %s737 = scalar_lea.vmem [#allocation8], %s736
        %p738 = pneg %p116
        %p739 = pneg %p113
        %p740 = scmp.lt.s32.totalorder %s36, 2
        %s741 = scalar_select %p740, %s36, 2
        %s742 = smul.addr %s741, 3
        %s743 = scalar_lea.vmem %s3, %s742
        %p744 = pneg %p142
        %p745 = pneg %p139
        %s746 = sand.u32 %s31, 1
        %s747 = scalar_lea.sflag [#allocation4], %s746
        %s748 = sand.u32 %s155, 1
        %s749 = smul.addr %s748, 64
        %s750 = scalar_lea.vmem [#allocation9], %s749
        %p751 = pneg %p168
        %p752 = pneg %p165
        %s753 = sand.u32 %s31, 1
        %s754 = scalar_lea.sflag [#allocation4], %s753
        %s755 = sand.u32 %s181, 1
        %s756 = scalar_lea.vmem [#allocation10], %s755
        %p757 = pneg %p194
        %p758 = pneg %p191
        %s759 = sand.u32 %s31, 1
        %s760 = scalar_lea.sflag [#allocation4], %s759
        %s761 = sand.u32 %s207, 1
        %s762 = scalar_lea.vmem [#allocation11], %s761
        %p763 = pneg %p220
        %p764 = pneg %p217
        %p765 = scmp.lt.s32.totalorder %s36, 2
        %s766 = scalar_select %p765, %s36, 2
        %s767 = scalar_lea.vmem %s7, %s766
        %p768 = pneg %p246
        %p769 = pneg %p243
        %s770 = sand.u32 %s31, 1
        %s771 = scalar_lea.sflag [#allocation4], %s770
        %s772 = sand.u32 %s259, 1
        %s773 = smul.addr %s772, 256
        %s774 = scalar_lea.vmem [#allocation12], %s773
        %p775 = pneg %p272
        %p776 = pneg %p269
        %p777 = scmp.lt.s32.totalorder %s36, 2
        %s778 = scalar_select %p777, %s36, 2
        %s779 = smul.addr %s778, 4
        %s780 = scalar_lea.vmem %s9, %s779
        %p781 = pneg %p298
        %p782 = pneg %p295
        %s783 = sand.u32 %s31, 1
        %s784 = scalar_lea.sflag [#allocation4], %s783
        %s785 = sand.u32 %s311, 1
        %s786 = smul.addr %s785, 256
        %s787 = scalar_lea.vmem [#allocation13], %s786
        %p788 = pneg %p324
        %p789 = pneg %p321
        %p790 = scmp.lt.s32.totalorder %s36, 2
        %s791 = scalar_select %p790, %s36, 2
        %s792 = scalar_lea.vmem %s11, %s791
        %p793 = pneg %p350
        %p794 = pneg %p347
        %p795 = scmp.lt.s32.totalorder %s36, 2
        %s796 = scalar_select %p795, %s36, 2
        %s797 = scalar_lea.vmem %s12, %s796
        %p798 = pneg %p376
        %p799 = pneg %p373
        %p800 = scmp.lt.s32.totalorder %s36, 2
        %s801 = scalar_select %p800, %s36, 2
        %s802 = scalar_lea.vmem %s13, %s801
        %p803 = pneg %p402
        %p804 = pneg %p399
        %p805 = pneg %p428
        %p806 = pneg %p425
        %p807 = pneg %p454
        %p808 = pneg %p451
        %s809 = smul.u32 2, %s35
        %s810 = smul.u32 2, %s35
        %p811 = scmp.lt.s32.totalorder %s36, 2
        %s812 = scalar_select %p811, %s36, 2
        %s813 = smul.addr %s812, 3
        %s814 = scalar_lea.vmem %s3, %s813
        %p815 = scmp.lt.s32.totalorder %s36, 2
        %s816 = scalar_select %p815, %s36, 2
        %s817 = scalar_lea.vmem %s7, %s816
        %p818 = scmp.lt.s32.totalorder %s36, 2
        %s819 = scalar_select %p818, %s36, 2
        %s820 = smul.addr %s819, 4
        %s821 = scalar_lea.vmem %s9, %s820
        %p822 = scmp.lt.s32.totalorder %s36, 2
        %s823 = scalar_select %p822, %s36, 2
        %s824 = scalar_lea.vmem %s11, %s823
        %p825 = scmp.lt.s32.totalorder %s36, 2
        %s826 = scalar_select %p825, %s36, 2
        %s827 = scalar_lea.vmem %s12, %s826
        %p828 = scmp.lt.s32.totalorder %s36, 2
        %s829 = scalar_select %p828, %s36, 2
        %s830 = scalar_lea.vmem %s13, %s829
        %s831 = smul.u32 2, %s35
        %s832 = smul.u32 2, %s35
        %p834 = scmp.eq.s32.totalorder %s36, 0
        // Predicated region
        $region109: #{tpu_custom_call.1} parent=75 // pred_check
          %p835 = pneg %p834
        $region110: #{tpu_custom_call.1} parent=75 // pred_check_branch
          %837 = sbr.rel (%p835) target = $region112
        $region111: #{tpu_custom_call.1} parent=75 // pred_region
          %v838 = vld [vmem:[#allocation3] sm:$0xff]
          %v839 = vld [vmem:[#allocation3 + $0x8] sm:$0xff]
          %v840 = vld [vmem:[#allocation3 + $0x10] sm:$0xff]
          %v841 = vld [vmem:[#allocation3 + $0x18] sm:$0xff]
          %842 = vst [vmem:[#allocation2] sm:$0xff] %v838
          %843 = vst [vmem:[#allocation2 + $0x8] sm:$0xff] %v839
          %844 = vst [vmem:[#allocation2 + $0x10] sm:$0xff] %v840
          %845 = vst [vmem:[#allocation2 + $0x18] sm:$0xff] %v841
        $region112: #{tpu_custom_call.1} parent=75 // pred_fallthru
          _
        %v846 = vld [vmem:[#allocation2] sm:$0xff]
        %v847 = vld [vmem:[#allocation2 + $0x8] sm:$0xff]
        %v848 = vld [vmem:[#allocation2 + $0x10] sm:$0xff]
        %v849 = vld [vmem:[#allocation2 + $0x18] sm:$0xff]
        %v850 = vpack.c.bf16 %v847, %v846
        %v851 = vpack.c.bf16 %v849, %v848
        %v852 = vld [vmem:[%s681] sm:$0xff]
        %v853 = vld [vmem:[%s681 + $0x8] sm:$0xf]
        %v854 = vld [vmem:[%s681 + $0xc] sm:$0xff]
        %v855 = vld [vmem:[%s681 + $0x14] sm:$0xf]
        %v856 = vld [vmem:[%s681 + $0x18] sm:$0xff]
        %v857 = vld [vmem:[%s681 + $0x20] sm:$0xf]
        %v858 = vld [vmem:[%s681 + $0x24] sm:$0xff]
        %v859 = vld [vmem:[%s681 + $0x2c] sm:$0xf]
        %v860 = vld [vmem:[%s681 + $0x30] sm:$0xff]
        %v861 = vld [vmem:[%s681 + $0x38] sm:$0xf]
        %v862 = vld [vmem:[%s681 + $0x3c] sm:$0xff]
        %v863 = vld [vmem:[%s681 + $0x44] sm:$0xf]
        %v864 = vld [vmem:[%s681 + $0x48] sm:$0xff]
        %v865 = vld [vmem:[%s681 + $0x50] sm:$0xf]
        %v866 = vld [vmem:[%s681 + $0x54] sm:$0xff]
        %v867 = vld [vmem:[%s681 + $0x5c] sm:$0xf]
        %v868 = vld [vmem:[%s681 + $0x60] sm:$0xff]
        %v869 = vld [vmem:[%s681 + $0x68] sm:$0xf]
        %v870 = vld [vmem:[%s681 + $0x6c] sm:$0xff]
        %v871 = vld [vmem:[%s681 + $0x74] sm:$0xf]
        %v872 = vld [vmem:[%s681 + $0x78] sm:$0xff]
        %v873 = vld [vmem:[%s681 + $0x80] sm:$0xf]
        %v874 = vld [vmem:[%s681 + $0x84] sm:$0xff]
        %v875 = vld [vmem:[%s681 + $0x8c] sm:$0xf]
        %v876 = vld [vmem:[%s681 + $0x90] sm:$0xff]
        %v877 = vld [vmem:[%s681 + $0x98] sm:$0xf]
        %v878 = vld [vmem:[%s681 + $0x9c] sm:$0xff]
        %v879 = vld [vmem:[%s681 + $0xa4] sm:$0xf]
        %v880 = vld [vmem:[%s681 + $0xa8] sm:$0xff]
        %v881 = vld [vmem:[%s681 + $0xb0] sm:$0xf]
        %v882 = vld [vmem:[%s681 + $0xb4] sm:$0xff]
        %v883 = vld [vmem:[%s681 + $0xbc] sm:$0xf]
        %v884 = vld [vmem:[%s814] sm:$0x7]
        %v886 = vlaneseq
        %v887 = vshrl.u32 %v886, 7
        %v888 = vsub.s32 0, %v887
        %v889 = vrot.slane %v884, %v888
        %v890 = vlaneseq
        %v891 = vshrl.u32 %v890, 7
        %v892 = vsub.s32 1, %v891
        %v893 = vrot.slane %v884, %v892
        %v894 = vlaneseq
        %v895 = vshrl.u32 %v894, 7
        %v896 = vsub.s32 2, %v895
        %v897 = vrot.slane %v884, %v896
        %v933 = vunpack.c.l.b16 %v852
        %v934 = vunpack.c.h.b16 %v852
        %v935 = vunpack.c.l.b16 %v853
        %v936 = vunpack.c.l.b16 %v854
        %v937 = vunpack.c.h.b16 %v854
        %v938 = vunpack.c.l.b16 %v855
        %v939 = vunpack.c.l.b16 %v856
        %v940 = vunpack.c.h.b16 %v856
        %v941 = vunpack.c.l.b16 %v857
        %v942 = vunpack.c.l.b16 %v858
        %v943 = vunpack.c.h.b16 %v858
        %v944 = vunpack.c.l.b16 %v859
        %v945 = vunpack.c.l.b16 %v860
        %v946 = vunpack.c.h.b16 %v860
        %v947 = vunpack.c.l.b16 %v861
        %v948 = vunpack.c.l.b16 %v862
        %v949 = vunpack.c.h.b16 %v862
        %v950 = vunpack.c.l.b16 %v863
        %v951 = vunpack.c.l.b16 %v864
        %v952 = vunpack.c.h.b16 %v864
        %v953 = vunpack.c.l.b16 %v865
        %v954 = vunpack.c.l.b16 %v866
        %v955 = vunpack.c.h.b16 %v866
        %v956 = vunpack.c.l.b16 %v867
        %v957 = vunpack.c.l.b16 %v868
        %v958 = vunpack.c.h.b16 %v868
        %v959 = vunpack.c.l.b16 %v869
        %v960 = vunpack.c.l.b16 %v870
        %v961 = vunpack.c.h.b16 %v870
        %v962 = vunpack.c.l.b16 %v871
        %v963 = vunpack.c.l.b16 %v872
        %v964 = vunpack.c.h.b16 %v872
        %v965 = vunpack.c.l.b16 %v873
        %v966 = vunpack.c.l.b16 %v874
        %v967 = vunpack.c.h.b16 %v874
        %v968 = vunpack.c.l.b16 %v875
        %v969 = vunpack.c.l.b16 %v876
        %v970 = vunpack.c.h.b16 %v876
        %v971 = vunpack.c.l.b16 %v877
        %v972 = vunpack.c.l.b16 %v878
        %v973 = vunpack.c.h.b16 %v878
        %v974 = vunpack.c.l.b16 %v879
        %v975 = vunpack.c.l.b16 %v880
        %v976 = vunpack.c.h.b16 %v880
        %v977 = vunpack.c.l.b16 %v881
        %v978 = vunpack.c.l.b16 %v882
        %v979 = vunpack.c.h.b16 %v882
        %v980 = vunpack.c.l.b16 %v883
        %v981 = vpack.c.b16 %v936, %v933
        %v982 = vpack.c.b16 %v937, %v934
        %v983 = vpack.c.b16 %v938, %v935
        %v984 = vpack.c.b16 %v942, %v939
        %v985 = vpack.c.b16 %v943, %v940
        %v986 = vpack.c.b16 %v944, %v941
        %v987 = vpack.c.b16 %v948, %v945
        %v988 = vpack.c.b16 %v949, %v946
        %v989 = vpack.c.b16 %v950, %v947
        %v990 = vpack.c.b16 %v954, %v951
        %v991 = vpack.c.b16 %v955, %v952
        %v992 = vpack.c.b16 %v956, %v953
        %v993 = vpack.c.b16 %v960, %v957
        %v994 = vpack.c.b16 %v961, %v958
        %v995 = vpack.c.b16 %v962, %v959
        %v996 = vpack.c.b16 %v966, %v963
        %v997 = vpack.c.b16 %v967, %v964
        %v998 = vpack.c.b16 %v968, %v965
        %v999 = vpack.c.b16 %v972, %v969
        %v1000 = vpack.c.b16 %v973, %v970
        %v1001 = vpack.c.b16 %v974, %v971
        %v1002 = vpack.c.b16 %v978, %v975
        %v1003 = vpack.c.b16 %v979, %v976
        %v1004 = vpack.c.b16 %v980, %v977
        %1029 = vmatprep.subr.bf16.mxu0 %v982
        %1030 = vmatpush1.bf16.msra.mxu0 %v981
        %1031 = vmatprep.subr.bf16.mxu0 %v985
        %1032 = vmatpush1.bf16.msra.mxu0 %v984
        %1033 = vmatprep.subr.bf16.mxu0 %v988
        %1034 = vmatpush1.bf16.msra.mxu0 %v987
        %1035 = vmatprep.subr.bf16.mxu0 %v991
        %1036 = vmatpush1.bf16.msra.mxu0 %v990
        %1037 = vmatprep.subr.bf16.mxu0 %v994
        %1038 = vmatpush1.bf16.msra.mxu0 %v993
        %1039 = vmatprep.subr.bf16.mxu0 %v997
        %1040 = vmatpush1.bf16.msra.mxu0 %v996
        %1041 = vmatprep.subr.bf16.mxu0 %v1000
        %1042 = vmatpush1.bf16.msra.mxu0 %v999
        %1043 = vmatprep.subr.bf16.mxu0 %v1003
        %1044 = vmatpush1.bf16.msra.mxu0 %v1002
        %1045 = vmatprep.subr.bf16.mxu0 0
        %1046 = vmatpush1.bf16.msra.mxu0 0
        %1047 = vmatprep.subr.bf16.mxu0 0
        %1048 = vmatpush1.bf16.msra.mxu0 0
        %1049 = vmatprep.subr.bf16.mxu0 0
        %1050 = vmatpush1.bf16.msra.mxu0 0
        %1051 = vmatprep.subr.bf16.mxu0 0
        %1052 = vmatpush1.bf16.msra.mxu0 0
        %1053 = vmatprep.subr.bf16.mxu0 0
        %1054 = vmatpush1.bf16.msra.mxu0 0
        %1055 = vmatprep.subr.bf16.mxu0 0
        %1056 = vmatpush1.bf16.msra.mxu0 0
        %1057 = vmatprep.subr.bf16.mxu0 0
        %1058 = vmatpush1.bf16.msra.mxu0 0
        %1059 = vmatprep.subr.bf16.mxu0 0
        %1060 = vmatpush1.bf16.msra.mxu0 0
        %1061 = vmatprep.mubr.bf16.mxu0 0
        %1062 = vmatmul.mubr.bf16.gmra.mrb[0].mxu0 %v850
        %v1063 = vpop.f32.mrb[0].mxu0
        %v1064 = vadd.f32 %v889, %v1063
        %v1065 = vpop.f32.mrb[0].mxu0
        %v1066 = vadd.f32 %v893, %v1065
        %v1067 = vpop.f32.mrb[0].mxu0
        %v1068 = vadd.f32 %v889, %v1067
        %v1069 = vpop.f32.mrb[0].mxu0
        %v1070 = vadd.f32 %v893, %v1069
        %1071 = vmatprep.mubr.bf16.mxu0 0
        %1072 = vmatmul.mubr.bf16.gmra.mrb[0].mxu0 %v851
        %v1073 = vpop.f32.mrb[0].mxu0
        %v1074 = vadd.f32 %v889, %v1073
        %v1075 = vpop.f32.mrb[0].mxu0
        %v1076 = vadd.f32 %v893, %v1075
        %v1077 = vpop.f32.mrb[0].mxu0
        %v1078 = vadd.f32 %v889, %v1077
        %v1079 = vpop.f32.mrb[0].mxu0
        %v1080 = vadd.f32 %v893, %v1079
        %1081 = vdwg.mxu0
        %1082 = vmatprep.subr.bf16.mxu0 0
        %1083 = vmatpush1.bf16.msra.mxu0 %v983
        %1084 = vmatprep.subr.bf16.mxu0 0
        %1085 = vmatpush1.bf16.msra.mxu0 %v986
        %1086 = vmatprep.subr.bf16.mxu0 0
        %1087 = vmatpush1.bf16.msra.mxu0 %v989
        %1088 = vmatprep.subr.bf16.mxu0 0
        %1089 = vmatpush1.bf16.msra.mxu0 %v992
        %1090 = vmatprep.subr.bf16.mxu0 0
        %1091 = vmatpush1.bf16.msra.mxu0 %v995
        %1092 = vmatprep.subr.bf16.mxu0 0
        %1093 = vmatpush1.bf16.msra.mxu0 %v998
        %1094 = vmatprep.subr.bf16.mxu0 0
        %1095 = vmatpush1.bf16.msra.mxu0 %v1001
        %1096 = vmatprep.subr.bf16.mxu0 0
        %1097 = vmatpush1.bf16.msra.mxu0 %v1004
        %1098 = vmatprep.subr.bf16.mxu0 0
        %1099 = vmatpush1.bf16.msra.mxu0 0
        %1100 = vmatprep.subr.bf16.mxu0 0
        %1101 = vmatpush1.bf16.msra.mxu0 0
        %1102 = vmatprep.subr.bf16.mxu0 0
        %1103 = vmatpush1.bf16.msra.mxu0 0
        %1104 = vmatprep.subr.bf16.mxu0 0
        %1105 = vmatpush1.bf16.msra.mxu0 0
        %1106 = vmatprep.subr.bf16.mxu0 0
        %1107 = vmatpush1.bf16.msra.mxu0 0
        %1108 = vmatprep.subr.bf16.mxu0 0
        %1109 = vmatpush1.bf16.msra.mxu0 0
        %1110 = vmatprep.subr.bf16.mxu0 0
        %1111 = vmatpush1.bf16.msra.mxu0 0
        %1112 = vmatprep.subr.bf16.mxu0 0
        %1113 = vmatpush1.bf16.msra.mxu0 0
        %1114 = vmatprep.mubr.bf16.mxu0 0
        %1115 = vmatmul.mubr.bf16.gmra.mrb[0].mxu0 %v850
        %v1116 = vpop.f32.mrb[0].mxu0
        %v1117 = vadd.f32 %v897, %v1116
        %v1118 = vpop.f32.mrb[0].mxu0
        %v1119 = vpop.f32.mrb[0].mxu0
        %v1120 = vadd.f32 %v897, %v1119
        %v1121 = vpop.f32.mrb[0].mxu0
        %1122 = vmatprep.mubr.bf16.mxu0 0
        %1123 = vmatmul.mubr.bf16.gmra.mrb[0].mxu0 %v851
        %v1124 = vpop.f32.mrb[0].mxu0
        %v1125 = vadd.f32 %v897, %v1124
        %v1126 = vpop.f32.mrb[0].mxu0
        %v1127 = vpop.f32.mrb[0].mxu0
        %v1128 = vadd.f32 %v897, %v1127
        %v1129 = vpop.f32.mrb[0].mxu0
        %1130 = vdwg.mxu0
        %1135 = vrot.lane.b32.xlu0 %v1064, 112
        %v1136 = vpop.permute.xlu0 %1135
        %1137 = vrot.lane.b32.xlu0 %v1068, 112
        %v1138 = vpop.permute.xlu0 %1137
        %1139 = vrot.lane.b32.xlu0 %v1074, 112
        %v1140 = vpop.permute.xlu0 %1139
        %1141 = vrot.lane.b32.xlu0 %v1078, 112
        %v1142 = vpop.permute.xlu0 %1141
        %1147 = vrot.lane.b32.xlu0 %v1064, 96
        %v1148 = vpop.permute.xlu0 %1147
        %1149 = vrot.lane.b32.xlu0 %v1068, 96
        %v1150 = vpop.permute.xlu0 %1149
        %1151 = vrot.lane.b32.xlu0 %v1074, 96
        %v1152 = vpop.permute.xlu0 %1151
        %1153 = vrot.lane.b32.xlu0 %v1078, 96
        %v1154 = vpop.permute.xlu0 %1153
        %1159 = vrot.lane.b32.xlu0 %v1064, 80
        %v1160 = vpop.permute.xlu0 %1159
        %1161 = vrot.lane.b32.xlu0 %v1068, 80
        %v1162 = vpop.permute.xlu0 %1161
        %1163 = vrot.lane.b32.xlu0 %v1074, 80
        %v1164 = vpop.permute.xlu0 %1163
        %1165 = vrot.lane.b32.xlu0 %v1078, 80
        %v1166 = vpop.permute.xlu0 %1165
        %1171 = vrot.lane.b32.xlu0 %v1064, 64
        %v1172 = vpop.permute.xlu0 %1171
        %1173 = vrot.lane.b32.xlu0 %v1068, 64
        %v1174 = vpop.permute.xlu0 %1173
        %1175 = vrot.lane.b32.xlu0 %v1074, 64
        %v1176 = vpop.permute.xlu0 %1175
        %1177 = vrot.lane.b32.xlu0 %v1078, 64
        %v1178 = vpop.permute.xlu0 %1177
        %1183 = vrot.lane.b32.xlu0 %v1064, 48
        %v1184 = vpop.permute.xlu0 %1183
        %1185 = vrot.lane.b32.xlu0 %v1068, 48
        %v1186 = vpop.permute.xlu0 %1185
        %1187 = vrot.lane.b32.xlu0 %v1074, 48
        %v1188 = vpop.permute.xlu0 %1187
        %1189 = vrot.lane.b32.xlu0 %v1078, 48
        %v1190 = vpop.permute.xlu0 %1189
        %1195 = vrot.lane.b32.xlu0 %v1064, 32
        %v1196 = vpop.permute.xlu0 %1195
        %1197 = vrot.lane.b32.xlu0 %v1068, 32
        %v1198 = vpop.permute.xlu0 %1197
        %1199 = vrot.lane.b32.xlu0 %v1074, 32
        %v1200 = vpop.permute.xlu0 %1199
        %1201 = vrot.lane.b32.xlu0 %v1078, 32
        %v1202 = vpop.permute.xlu0 %1201
        %1207 = vrot.lane.b32.xlu0 %v1064, 16
        %v1208 = vpop.permute.xlu0 %1207
        %1209 = vrot.lane.b32.xlu0 %v1068, 16
        %v1210 = vpop.permute.xlu0 %1209
        %1211 = vrot.lane.b32.xlu0 %v1074, 16
        %v1212 = vpop.permute.xlu0 %1211
        %1213 = vrot.lane.b32.xlu0 %v1078, 16
        %v1214 = vpop.permute.xlu0 %1213
        %v1219 = vcombine.low %v1064, %v1148
        %v1220 = vcombine.high %v1064, %v1148
        %v1222 = vunpack.c.l.s4 1983009808
        %v1223 = vunpack.c.0.s8 %v1222
        %v1224 = vlaneseq
        %v1225 = vshrl.u32 %v1224, 7
        %v1226 = vsub.s32 %v1223, %v1225
        %v1227 = vrot.slane %v1219, %v1226
        %v1229 = vunpack.c.l.s4 1983009808
        %v1230 = vunpack.c.0.s8 %v1229
        %v1231 = vlaneseq
        %v1232 = vshrl.u32 %v1231, 7
        %v1233 = vsub.s32 %v1230, %v1232
        %v1234 = vrot.slane %v1220, %v1233
        %v1235 = vcombine.low %v1136, %v1160
        %v1236 = vcombine.high %v1136, %v1160
        %v1238 = vunpack.c.l.s4 1983009808
        %v1239 = vunpack.c.0.s8 %v1238
        %v1240 = vlaneseq
        %v1241 = vshrl.u32 %v1240, 7
        %v1242 = vsub.s32 %v1239, %v1241
        %v1243 = vrot.slane %v1235, %v1242
        %v1245 = vunpack.c.l.s4 1983009808
        %v1246 = vunpack.c.0.s8 %v1245
        %v1247 = vlaneseq
        %v1248 = vshrl.u32 %v1247, 7
        %v1249 = vsub.s32 %v1246, %v1248
        %v1250 = vrot.slane %v1236, %v1249
        %v1251 = vcombine.low %v1172, %v1196
        %v1252 = vcombine.high %v1172, %v1196
        %v1254 = vunpack.c.l.s4 1983009808
        %v1255 = vunpack.c.0.s8 %v1254
        %v1256 = vlaneseq
        %v1257 = vshrl.u32 %v1256, 7
        %v1258 = vsub.s32 %v1255, %v1257
        %v1259 = vrot.slane %v1251, %v1258
        %v1261 = vunpack.c.l.s4 1983009808
        %v1262 = vunpack.c.0.s8 %v1261
        %v1263 = vlaneseq
        %v1264 = vshrl.u32 %v1263, 7
        %v1265 = vsub.s32 %v1262, %v1264
        %v1266 = vrot.slane %v1252, %v1265
        %v1267 = vcombine.low %v1184, %v1208
        %v1268 = vcombine.high %v1184, %v1208
        %v1270 = vunpack.c.l.s4 1983009808
        %v1271 = vunpack.c.0.s8 %v1270
        %v1272 = vlaneseq
        %v1273 = vshrl.u32 %v1272, 7
        %v1274 = vsub.s32 %v1271, %v1273
        %v1275 = vrot.slane %v1267, %v1274
        %v1277 = vunpack.c.l.s4 1983009808
        %v1278 = vunpack.c.0.s8 %v1277
        %v1279 = vlaneseq
        %v1280 = vshrl.u32 %v1279, 7
        %v1281 = vsub.s32 %v1278, %v1280
        %v1282 = vrot.slane %v1268, %v1281
        %v1283 = vcombine.low %v1227, %v1243
        %v1284 = vcombine.high %v1227, %v1243
        %v1286 = vunpack.c.l.s4 1934713408
        %v1287 = vunpack.c.0.s8 %v1286
        %v1288 = vlaneseq
        %v1289 = vshrl.u32 %v1288, 7
        %v1290 = vsub.s32 %v1287, %v1289
        %v1291 = vrot.slane %v1283, %v1290
        %v1293 = vunpack.c.l.s4 1934713408
        %v1294 = vunpack.c.0.s8 %v1293
        %v1295 = vlaneseq
        %v1296 = vshrl.u32 %v1295, 7
        %v1297 = vsub.s32 %v1294, %v1296
        %v1298 = vrot.slane %v1284, %v1297
        %v1299 = vcombine.low %v1234, %v1250
        %v1300 = vcombine.high %v1234, %v1250
        %v1302 = vunpack.c.l.s4 1934713408
        %v1303 = vunpack.c.0.s8 %v1302
        %v1304 = vlaneseq
        %v1305 = vshrl.u32 %v1304, 7
        %v1306 = vsub.s32 %v1303, %v1305
        %v1307 = vrot.slane %v1299, %v1306
        %v1309 = vunpack.c.l.s4 1934713408
        %v1310 = vunpack.c.0.s8 %v1309
        %v1311 = vlaneseq
        %v1312 = vshrl.u32 %v1311, 7
        %v1313 = vsub.s32 %v1310, %v1312
        %v1314 = vrot.slane %v1300, %v1313
        %v1315 = vcombine.low %v1259, %v1275
        %v1316 = vcombine.high %v1259, %v1275
        %v1318 = vunpack.c.l.s4 1934713408
        %v1319 = vunpack.c.0.s8 %v1318
        %v1320 = vlaneseq
        %v1321 = vshrl.u32 %v1320, 7
        %v1322 = vsub.s32 %v1319, %v1321
        %v1323 = vrot.slane %v1315, %v1322
        %v1325 = vunpack.c.l.s4 1934713408
        %v1326 = vunpack.c.0.s8 %v1325
        %v1327 = vlaneseq
        %v1328 = vshrl.u32 %v1327, 7
        %v1329 = vsub.s32 %v1326, %v1328
        %v1330 = vrot.slane %v1316, %v1329
        %v1331 = vcombine.low %v1266, %v1282
        %v1332 = vcombine.high %v1266, %v1282
        %v1334 = vunpack.c.l.s4 1934713408
        %v1335 = vunpack.c.0.s8 %v1334
        %v1336 = vlaneseq
        %v1337 = vshrl.u32 %v1336, 7
        %v1338 = vsub.s32 %v1335, %v1337
        %v1339 = vrot.slane %v1331, %v1338
        %v1341 = vunpack.c.l.s4 1934713408
        %v1342 = vunpack.c.0.s8 %v1341
        %v1343 = vlaneseq
        %v1344 = vshrl.u32 %v1343, 7
        %v1345 = vsub.s32 %v1342, %v1344
        %v1346 = vrot.slane %v1332, %v1345
        %v1347 = vcombine.low %v1291, %v1323
        %v1348 = vcombine.high %v1291, %v1323
        %v1349 = vcombine.low %v1298, %v1330
        %v1350 = vcombine.high %v1298, %v1330
        %v1351 = vcombine.low %v1307, %v1339
        %v1352 = vcombine.high %v1307, %v1339
        %v1353 = vcombine.low %v1314, %v1346
        %v1354 = vcombine.high %v1314, %v1346
        %v1355 = vcombine.low %v1068, %v1150
        %v1356 = vcombine.high %v1068, %v1150
        %v1358 = vunpack.c.l.s4 1983009808
        %v1359 = vunpack.c.0.s8 %v1358
        %v1360 = vlaneseq
        %v1361 = vshrl.u32 %v1360, 7
        %v1362 = vsub.s32 %v1359, %v1361
        %v1363 = vrot.slane %v1355, %v1362
        %v1365 = vunpack.c.l.s4 1983009808
        %v1366 = vunpack.c.0.s8 %v1365
        %v1367 = vlaneseq
        %v1368 = vshrl.u32 %v1367, 7
        %v1369 = vsub.s32 %v1366, %v1368
        %v1370 = vrot.slane %v1356, %v1369
        %v1371 = vcombine.low %v1138, %v1162
        %v1372 = vcombine.high %v1138, %v1162
        %v1374 = vunpack.c.l.s4 1983009808
        %v1375 = vunpack.c.0.s8 %v1374
        %v1376 = vlaneseq
        %v1377 = vshrl.u32 %v1376, 7
        %v1378 = vsub.s32 %v1375, %v1377
        %v1379 = vrot.slane %v1371, %v1378
        %v1381 = vunpack.c.l.s4 1983009808
        %v1382 = vunpack.c.0.s8 %v1381
        %v1383 = vlaneseq
        %v1384 = vshrl.u32 %v1383, 7
        %v1385 = vsub.s32 %v1382, %v1384
        %v1386 = vrot.slane %v1372, %v1385
        %v1387 = vcombine.low %v1174, %v1198
        %v1388 = vcombine.high %v1174, %v1198
        %v1390 = vunpack.c.l.s4 1983009808
        %v1391 = vunpack.c.0.s8 %v1390
        %v1392 = vlaneseq
        %v1393 = vshrl.u32 %v1392, 7
        %v1394 = vsub.s32 %v1391, %v1393
        %v1395 = vrot.slane %v1387, %v1394
        %v1397 = vunpack.c.l.s4 1983009808
        %v1398 = vunpack.c.0.s8 %v1397
        %v1399 = vlaneseq
        %v1400 = vshrl.u32 %v1399, 7
        %v1401 = vsub.s32 %v1398, %v1400
        %v1402 = vrot.slane %v1388, %v1401
        %v1403 = vcombine.low %v1186, %v1210
        %v1404 = vcombine.high %v1186, %v1210
        %v1406 = vunpack.c.l.s4 1983009808
        %v1407 = vunpack.c.0.s8 %v1406
        %v1408 = vlaneseq
        %v1409 = vshrl.u32 %v1408, 7
        %v1410 = vsub.s32 %v1407, %v1409
        %v1411 = vrot.slane %v1403, %v1410
        %v1413 = vunpack.c.l.s4 1983009808
        %v1414 = vunpack.c.0.s8 %v1413
        %v1415 = vlaneseq
        %v1416 = vshrl.u32 %v1415, 7
        %v1417 = vsub.s32 %v1414, %v1416
        %v1418 = vrot.slane %v1404, %v1417
        %v1419 = vcombine.low %v1363, %v1379
        %v1420 = vcombine.high %v1363, %v1379
        %v1422 = vunpack.c.l.s4 1934713408
        %v1423 = vunpack.c.0.s8 %v1422
        %v1424 = vlaneseq
        %v1425 = vshrl.u32 %v1424, 7
        %v1426 = vsub.s32 %v1423, %v1425
        %v1427 = vrot.slane %v1419, %v1426
        %v1429 = vunpack.c.l.s4 1934713408
        %v1430 = vunpack.c.0.s8 %v1429
        %v1431 = vlaneseq
        %v1432 = vshrl.u32 %v1431, 7
        %v1433 = vsub.s32 %v1430, %v1432
        %v1434 = vrot.slane %v1420, %v1433
        %v1435 = vcombine.low %v1370, %v1386
        %v1436 = vcombine.high %v1370, %v1386
        %v1438 = vunpack.c.l.s4 1934713408
        %v1439 = vunpack.c.0.s8 %v1438
        %v1440 = vlaneseq
        %v1441 = vshrl.u32 %v1440, 7
        %v1442 = vsub.s32 %v1439, %v1441
        %v1443 = vrot.slane %v1435, %v1442
        %v1445 = vunpack.c.l.s4 1934713408
        %v1446 = vunpack.c.0.s8 %v1445
        %v1447 = vlaneseq
        %v1448 = vshrl.u32 %v1447, 7
        %v1449 = vsub.s32 %v1446, %v1448
        %v1450 = vrot.slane %v1436, %v1449
        %v1451 = vcombine.low %v1395, %v1411
        %v1452 = vcombine.high %v1395, %v1411
        %v1454 = vunpack.c.l.s4 1934713408
        %v1455 = vunpack.c.0.s8 %v1454
        %v1456 = vlaneseq
        %v1457 = vshrl.u32 %v1456, 7
        %v1458 = vsub.s32 %v1455, %v1457
        %v1459 = vrot.slane %v1451, %v1458
        %v1461 = vunpack.c.l.s4 1934713408
        %v1462 = vunpack.c.0.s8 %v1461
        %v1463 = vlaneseq
        %v1464 = vshrl.u32 %v1463, 7
        %v1465 = vsub.s32 %v1462, %v1464
        %v1466 = vrot.slane %v1452, %v1465
        %v1467 = vcombine.low %v1402, %v1418
        %v1468 = vcombine.high %v1402, %v1418
        %v1470 = vunpack.c.l.s4 1934713408
        %v1471 = vunpack.c.0.s8 %v1470
        %v1472 = vlaneseq
        %v1473 = vshrl.u32 %v1472, 7
        %v1474 = vsub.s32 %v1471, %v1473
        %v1475 = vrot.slane %v1467, %v1474
        %v1477 = vunpack.c.l.s4 1934713408
        %v1478 = vunpack.c.0.s8 %v1477
        %v1479 = vlaneseq
        %v1480 = vshrl.u32 %v1479, 7
        %v1481 = vsub.s32 %v1478, %v1480
        %v1482 = vrot.slane %v1468, %v1481
        %v1483 = vcombine.low %v1427, %v1459
        %v1484 = vcombine.high %v1427, %v1459
        %v1485 = vcombine.low %v1434, %v1466
        %v1486 = vcombine.high %v1434, %v1466
        %v1487 = vcombine.low %v1443, %v1475
        %v1488 = vcombine.high %v1443, %v1475
        %v1489 = vcombine.low %v1450, %v1482
        %v1490 = vcombine.high %v1450, %v1482
        %v1491 = vcombine.low %v1074, %v1152
        %v1492 = vcombine.high %v1074, %v1152
        %v1494 = vunpack.c.l.s4 1983009808
        %v1495 = vunpack.c.0.s8 %v1494
        %v1496 = vlaneseq
        %v1497 = vshrl.u32 %v1496, 7
        %v1498 = vsub.s32 %v1495, %v1497
        %v1499 = vrot.slane %v1491, %v1498
        %v1501 = vunpack.c.l.s4 1983009808
        %v1502 = vunpack.c.0.s8 %v1501
        %v1503 = vlaneseq
        %v1504 = vshrl.u32 %v1503, 7
        %v1505 = vsub.s32 %v1502, %v1504
        %v1506 = vrot.slane %v1492, %v1505
        %v1507 = vcombine.low %v1140, %v1164
        %v1508 = vcombine.high %v1140, %v1164
        %v1510 = vunpack.c.l.s4 1983009808
        %v1511 = vunpack.c.0.s8 %v1510
        %v1512 = vlaneseq
        %v1513 = vshrl.u32 %v1512, 7
        %v1514 = vsub.s32 %v1511, %v1513
        %v1515 = vrot.slane %v1507, %v1514
        %v1517 = vunpack.c.l.s4 1983009808
        %v1518 = vunpack.c.0.s8 %v1517
        %v1519 = vlaneseq
        %v1520 = vshrl.u32 %v1519, 7
        %v1521 = vsub.s32 %v1518, %v1520
        %v1522 = vrot.slane %v1508, %v1521
        %v1523 = vcombine.low %v1176, %v1200
        %v1524 = vcombine.high %v1176, %v1200
        %v1526 = vunpack.c.l.s4 1983009808
        %v1527 = vunpack.c.0.s8 %v1526
        %v1528 = vlaneseq
        %v1529 = vshrl.u32 %v1528, 7
        %v1530 = vsub.s32 %v1527, %v1529
        %v1531 = vrot.slane %v1523, %v1530
        %v1533 = vunpack.c.l.s4 1983009808
        %v1534 = vunpack.c.0.s8 %v1533
        %v1535 = vlaneseq
        %v1536 = vshrl.u32 %v1535, 7
        %v1537 = vsub.s32 %v1534, %v1536
        %v1538 = vrot.slane %v1524, %v1537
        %v1539 = vcombine.low %v1188, %v1212
        %v1540 = vcombine.high %v1188, %v1212
        %v1542 = vunpack.c.l.s4 1983009808
        %v1543 = vunpack.c.0.s8 %v1542
        %v1544 = vlaneseq
        %v1545 = vshrl.u32 %v1544, 7
        %v1546 = vsub.s32 %v1543, %v1545
        %v1547 = vrot.slane %v1539, %v1546
        %v1549 = vunpack.c.l.s4 1983009808
        %v1550 = vunpack.c.0.s8 %v1549
        %v1551 = vlaneseq
        %v1552 = vshrl.u32 %v1551, 7
        %v1553 = vsub.s32 %v1550, %v1552
        %v1554 = vrot.slane %v1540, %v1553
        %v1555 = vcombine.low %v1499, %v1515
        %v1556 = vcombine.high %v1499, %v1515
        %v1558 = vunpack.c.l.s4 1934713408
        %v1559 = vunpack.c.0.s8 %v1558
        %v1560 = vlaneseq
        %v1561 = vshrl.u32 %v1560, 7
        %v1562 = vsub.s32 %v1559, %v1561
        %v1563 = vrot.slane %v1555, %v1562
        %v1565 = vunpack.c.l.s4 1934713408
        %v1566 = vunpack.c.0.s8 %v1565
        %v1567 = vlaneseq
        %v1568 = vshrl.u32 %v1567, 7
        %v1569 = vsub.s32 %v1566, %v1568
        %v1570 = vrot.slane %v1556, %v1569
        %v1571 = vcombine.low %v1506, %v1522
        %v1572 = vcombine.high %v1506, %v1522
        %v1574 = vunpack.c.l.s4 1934713408
        %v1575 = vunpack.c.0.s8 %v1574
        %v1576 = vlaneseq
        %v1577 = vshrl.u32 %v1576, 7
        %v1578 = vsub.s32 %v1575, %v1577
        %v1579 = vrot.slane %v1571, %v1578
        %v1581 = vunpack.c.l.s4 1934713408
        %v1582 = vunpack.c.0.s8 %v1581
        %v1583 = vlaneseq
        %v1584 = vshrl.u32 %v1583, 7
        %v1585 = vsub.s32 %v1582, %v1584
        %v1586 = vrot.slane %v1572, %v1585
        %v1587 = vcombine.low %v1531, %v1547
        %v1588 = vcombine.high %v1531, %v1547
        %v1590 = vunpack.c.l.s4 1934713408
        %v1591 = vunpack.c.0.s8 %v1590
        %v1592 = vlaneseq
        %v1593 = vshrl.u32 %v1592, 7
        %v1594 = vsub.s32 %v1591, %v1593
        %v1595 = vrot.slane %v1587, %v1594
        %v1597 = vunpack.c.l.s4 1934713408
        %v1598 = vunpack.c.0.s8 %v1597
        %v1599 = vlaneseq
        %v1600 = vshrl.u32 %v1599, 7
        %v1601 = vsub.s32 %v1598, %v1600
        %v1602 = vrot.slane %v1588, %v1601
        %v1603 = vcombine.low %v1538, %v1554
        %v1604 = vcombine.high %v1538, %v1554
        %v1606 = vunpack.c.l.s4 1934713408
        %v1607 = vunpack.c.0.s8 %v1606
        %v1608 = vlaneseq
        %v1609 = vshrl.u32 %v1608, 7
        %v1610 = vsub.s32 %v1607, %v1609
        %v1611 = vrot.slane %v1603, %v1610
        %v1613 = vunpack.c.l.s4 1934713408
        %v1614 = vunpack.c.0.s8 %v1613
        %v1615 = vlaneseq
        %v1616 = vshrl.u32 %v1615, 7
        %v1617 = vsub.s32 %v1614, %v1616
        %v1618 = vrot.slane %v1604, %v1617
        %v1619 = vcombine.low %v1563, %v1595
        %v1620 = vcombine.high %v1563, %v1595
        %v1621 = vcombine.low %v1570, %v1602
        %v1622 = vcombine.high %v1570, %v1602
        %v1623 = vcombine.low %v1579, %v1611
        %v1624 = vcombine.high %v1579, %v1611
        %v1625 = vcombine.low %v1586, %v1618
        %v1626 = vcombine.high %v1586, %v1618
        %v1627 = vcombine.low %v1078, %v1154
        %v1628 = vcombine.high %v1078, %v1154
        %v1630 = vunpack.c.l.s4 1983009808
        %v1631 = vunpack.c.0.s8 %v1630
        %v1632 = vlaneseq
        %v1633 = vshrl.u32 %v1632, 7
        %v1634 = vsub.s32 %v1631, %v1633
        %v1635 = vrot.slane %v1627, %v1634
        %v1637 = vunpack.c.l.s4 1983009808
        %v1638 = vunpack.c.0.s8 %v1637
        %v1639 = vlaneseq
        %v1640 = vshrl.u32 %v1639, 7
        %v1641 = vsub.s32 %v1638, %v1640
        %v1642 = vrot.slane %v1628, %v1641
        %v1643 = vcombine.low %v1142, %v1166
        %v1644 = vcombine.high %v1142, %v1166
        %v1646 = vunpack.c.l.s4 1983009808
        %v1647 = vunpack.c.0.s8 %v1646
        %v1648 = vlaneseq
        %v1649 = vshrl.u32 %v1648, 7
        %v1650 = vsub.s32 %v1647, %v1649
        %v1651 = vrot.slane %v1643, %v1650
        %v1653 = vunpack.c.l.s4 1983009808
        %v1654 = vunpack.c.0.s8 %v1653
        %v1655 = vlaneseq
        %v1656 = vshrl.u32 %v1655, 7
        %v1657 = vsub.s32 %v1654, %v1656
        %v1658 = vrot.slane %v1644, %v1657
        %v1659 = vcombine.low %v1178, %v1202
        %v1660 = vcombine.high %v1178, %v1202
        %v1662 = vunpack.c.l.s4 1983009808
        %v1663 = vunpack.c.0.s8 %v1662
        %v1664 = vlaneseq
        %v1665 = vshrl.u32 %v1664, 7
        %v1666 = vsub.s32 %v1663, %v1665
        %v1667 = vrot.slane %v1659, %v1666
        %v1669 = vunpack.c.l.s4 1983009808
        %v1670 = vunpack.c.0.s8 %v1669
        %v1671 = vlaneseq
        %v1672 = vshrl.u32 %v1671, 7
        %v1673 = vsub.s32 %v1670, %v1672
        %v1674 = vrot.slane %v1660, %v1673
        %v1675 = vcombine.low %v1190, %v1214
        %v1676 = vcombine.high %v1190, %v1214
        %v1678 = vunpack.c.l.s4 1983009808
        %v1679 = vunpack.c.0.s8 %v1678
        %v1680 = vlaneseq
        %v1681 = vshrl.u32 %v1680, 7
        %v1682 = vsub.s32 %v1679, %v1681
        %v1683 = vrot.slane %v1675, %v1682
        %v1685 = vunpack.c.l.s4 1983009808
        %v1686 = vunpack.c.0.s8 %v1685
        %v1687 = vlaneseq
        %v1688 = vshrl.u32 %v1687, 7
        %v1689 = vsub.s32 %v1686, %v1688
        %v1690 = vrot.slane %v1676, %v1689
        %v1691 = vcombine.low %v1635, %v1651
        %v1692 = vcombine.high %v1635, %v1651
        %v1694 = vunpack.c.l.s4 1934713408
        %v1695 = vunpack.c.0.s8 %v1694
        %v1696 = vlaneseq
        %v1697 = vshrl.u32 %v1696, 7
        %v1698 = vsub.s32 %v1695, %v1697
        %v1699 = vrot.slane %v1691, %v1698
        %v1701 = vunpack.c.l.s4 1934713408
        %v1702 = vunpack.c.0.s8 %v1701
        %v1703 = vlaneseq
        %v1704 = vshrl.u32 %v1703, 7
        %v1705 = vsub.s32 %v1702, %v1704
        %v1706 = vrot.slane %v1692, %v1705
        %v1707 = vcombine.low %v1642, %v1658
        %v1708 = vcombine.high %v1642, %v1658
        %v1710 = vunpack.c.l.s4 1934713408
        %v1711 = vunpack.c.0.s8 %v1710
        %v1712 = vlaneseq
        %v1713 = vshrl.u32 %v1712, 7
        %v1714 = vsub.s32 %v1711, %v1713
        %v1715 = vrot.slane %v1707, %v1714
        %v1717 = vunpack.c.l.s4 1934713408
        %v1718 = vunpack.c.0.s8 %v1717
        %v1719 = vlaneseq
        %v1720 = vshrl.u32 %v1719, 7
        %v1721 = vsub.s32 %v1718, %v1720
        %v1722 = vrot.slane %v1708, %v1721
        %v1723 = vcombine.low %v1667, %v1683
        %v1724 = vcombine.high %v1667, %v1683
        %v1726 = vunpack.c.l.s4 1934713408
        %v1727 = vunpack.c.0.s8 %v1726
        %v1728 = vlaneseq
        %v1729 = vshrl.u32 %v1728, 7
        %v1730 = vsub.s32 %v1727, %v1729
        %v1731 = vrot.slane %v1723, %v1730
        %v1733 = vunpack.c.l.s4 1934713408
        %v1734 = vunpack.c.0.s8 %v1733
        %v1735 = vlaneseq
        %v1736 = vshrl.u32 %v1735, 7
        %v1737 = vsub.s32 %v1734, %v1736
        %v1738 = vrot.slane %v1724, %v1737
        %v1739 = vcombine.low %v1674, %v1690
        %v1740 = vcombine.high %v1674, %v1690
        %v1742 = vunpack.c.l.s4 1934713408
        %v1743 = vunpack.c.0.s8 %v1742
        %v1744 = vlaneseq
        %v1745 = vshrl.u32 %v1744, 7
        %v1746 = vsub.s32 %v1743, %v1745
        %v1747 = vrot.slane %v1739, %v1746
        %v1749 = vunpack.c.l.s4 1934713408
        %v1750 = vunpack.c.0.s8 %v1749
        %v1751 = vlaneseq
        %v1752 = vshrl.u32 %v1751, 7
        %v1753 = vsub.s32 %v1750, %v1752
        %v1754 = vrot.slane %v1740, %v1753
        %v1755 = vcombine.low %v1699, %v1731
        %v1756 = vcombine.high %v1699, %v1731
        %v1757 = vcombine.low %v1706, %v1738
        %v1758 = vcombine.high %v1706, %v1738
        %v1759 = vcombine.low %v1715, %v1747
        %v1760 = vcombine.high %v1715, %v1747
        %v1761 = vcombine.low %v1722, %v1754
        %v1762 = vcombine.high %v1722, %v1754
        %v1763 = vcombine.low %v1347, %v1349
        %v1764 = vcombine.high %v1347, %v1349
        %v1766 = vunpack.c.l.s4 1983009808
        %v1767 = vunpack.c.0.s8 %v1766
        %v1768 = vlaneseq
        %v1769 = vshrl.u32 %v1768, 7
        %v1770 = vsub.s32 %v1767, %v1769
        %v1771 = vrot.slane %v1763, %v1770
        %v1773 = vunpack.c.l.s4 1983009808
        %v1774 = vunpack.c.0.s8 %v1773
        %v1775 = vlaneseq
        %v1776 = vshrl.u32 %v1775, 7
        %v1777 = vsub.s32 %v1774, %v1776
        %v1778 = vrot.slane %v1764, %v1777
        %v1779 = vcombine.low %v1348, %v1350
        %v1780 = vcombine.high %v1348, %v1350
        %v1782 = vunpack.c.l.s4 1983009808
        %v1783 = vunpack.c.0.s8 %v1782
        %v1784 = vlaneseq
        %v1785 = vshrl.u32 %v1784, 7
        %v1786 = vsub.s32 %v1783, %v1785
        %v1787 = vrot.slane %v1779, %v1786
        %v1789 = vunpack.c.l.s4 1983009808
        %v1790 = vunpack.c.0.s8 %v1789
        %v1791 = vlaneseq
        %v1792 = vshrl.u32 %v1791, 7
        %v1793 = vsub.s32 %v1790, %v1792
        %v1794 = vrot.slane %v1780, %v1793
        %v1795 = vcombine.low %v1351, %v1353
        %v1796 = vcombine.high %v1351, %v1353
        %v1798 = vunpack.c.l.s4 1983009808
        %v1799 = vunpack.c.0.s8 %v1798
        %v1800 = vlaneseq
        %v1801 = vshrl.u32 %v1800, 7
        %v1802 = vsub.s32 %v1799, %v1801
        %v1803 = vrot.slane %v1795, %v1802
        %v1805 = vunpack.c.l.s4 1983009808
        %v1806 = vunpack.c.0.s8 %v1805
        %v1807 = vlaneseq
        %v1808 = vshrl.u32 %v1807, 7
        %v1809 = vsub.s32 %v1806, %v1808
        %v1810 = vrot.slane %v1796, %v1809
        %v1811 = vcombine.low %v1352, %v1354
        %v1812 = vcombine.high %v1352, %v1354
        %v1814 = vunpack.c.l.s4 1983009808
        %v1815 = vunpack.c.0.s8 %v1814
        %v1816 = vlaneseq
        %v1817 = vshrl.u32 %v1816, 7
        %v1818 = vsub.s32 %v1815, %v1817
        %v1819 = vrot.slane %v1811, %v1818
        %v1821 = vunpack.c.l.s4 1983009808
        %v1822 = vunpack.c.0.s8 %v1821
        %v1823 = vlaneseq
        %v1824 = vshrl.u32 %v1823, 7
        %v1825 = vsub.s32 %v1822, %v1824
        %v1826 = vrot.slane %v1812, %v1825
        %v1827 = vcombine.low %v1771, %v1787
        %v1828 = vcombine.high %v1771, %v1787
        %v1830 = vunpack.c.l.s4 1934713408
        %v1831 = vunpack.c.0.s8 %v1830
        %v1832 = vlaneseq
        %v1833 = vshrl.u32 %v1832, 7
        %v1834 = vsub.s32 %v1831, %v1833
        %v1835 = vrot.slane %v1827, %v1834
        %v1837 = vunpack.c.l.s4 1934713408
        %v1838 = vunpack.c.0.s8 %v1837
        %v1839 = vlaneseq
        %v1840 = vshrl.u32 %v1839, 7
        %v1841 = vsub.s32 %v1838, %v1840
        %v1842 = vrot.slane %v1828, %v1841
        %v1843 = vcombine.low %v1778, %v1794
        %v1844 = vcombine.high %v1778, %v1794
        %v1846 = vunpack.c.l.s4 1934713408
        %v1847 = vunpack.c.0.s8 %v1846
        %v1848 = vlaneseq
        %v1849 = vshrl.u32 %v1848, 7
        %v1850 = vsub.s32 %v1847, %v1849
        %v1851 = vrot.slane %v1843, %v1850
        %v1853 = vunpack.c.l.s4 1934713408
        %v1854 = vunpack.c.0.s8 %v1853
        %v1855 = vlaneseq
        %v1856 = vshrl.u32 %v1855, 7
        %v1857 = vsub.s32 %v1854, %v1856
        %v1858 = vrot.slane %v1844, %v1857
        %v1859 = vcombine.low %v1803, %v1819
        %v1860 = vcombine.high %v1803, %v1819
        %v1862 = vunpack.c.l.s4 1934713408
        %v1863 = vunpack.c.0.s8 %v1862
        %v1864 = vlaneseq
        %v1865 = vshrl.u32 %v1864, 7
        %v1866 = vsub.s32 %v1863, %v1865
        %v1867 = vrot.slane %v1859, %v1866
        %v1869 = vunpack.c.l.s4 1934713408
        %v1870 = vunpack.c.0.s8 %v1869
        %v1871 = vlaneseq
        %v1872 = vshrl.u32 %v1871, 7
        %v1873 = vsub.s32 %v1870, %v1872
        %v1874 = vrot.slane %v1860, %v1873
        %v1875 = vcombine.low %v1810, %v1826
        %v1876 = vcombine.high %v1810, %v1826
        %v1878 = vunpack.c.l.s4 1934713408
        %v1879 = vunpack.c.0.s8 %v1878
        %v1880 = vlaneseq
        %v1881 = vshrl.u32 %v1880, 7
        %v1882 = vsub.s32 %v1879, %v1881
        %v1883 = vrot.slane %v1875, %v1882
        %v1885 = vunpack.c.l.s4 1934713408
        %v1886 = vunpack.c.0.s8 %v1885
        %v1887 = vlaneseq
        %v1888 = vshrl.u32 %v1887, 7
        %v1889 = vsub.s32 %v1886, %v1888
        %v1890 = vrot.slane %v1876, %v1889
        %v1891 = vcombine.low %v1835, %v1867
        %v1892 = vcombine.high %v1835, %v1867
        %v1893 = vcombine.low %v1842, %v1874
        %v1894 = vcombine.high %v1842, %v1874
        %v1895 = vcombine.low %v1851, %v1883
        %v1896 = vcombine.high %v1851, %v1883
        %v1897 = vcombine.low %v1858, %v1890
        %v1898 = vcombine.high %v1858, %v1890
        %v1899 = vcombine.low %v1483, %v1485
        %v1900 = vcombine.high %v1483, %v1485
        %v1902 = vunpack.c.l.s4 1983009808
        %v1903 = vunpack.c.0.s8 %v1902
        %v1904 = vlaneseq
        %v1905 = vshrl.u32 %v1904, 7
        %v1906 = vsub.s32 %v1903, %v1905
        %v1907 = vrot.slane %v1899, %v1906
        %v1909 = vunpack.c.l.s4 1983009808
        %v1910 = vunpack.c.0.s8 %v1909
        %v1911 = vlaneseq
        %v1912 = vshrl.u32 %v1911, 7
        %v1913 = vsub.s32 %v1910, %v1912
        %v1914 = vrot.slane %v1900, %v1913
        %v1915 = vcombine.low %v1484, %v1486
        %v1916 = vcombine.high %v1484, %v1486
        %v1918 = vunpack.c.l.s4 1983009808
        %v1919 = vunpack.c.0.s8 %v1918
        %v1920 = vlaneseq
        %v1921 = vshrl.u32 %v1920, 7
        %v1922 = vsub.s32 %v1919, %v1921
        %v1923 = vrot.slane %v1915, %v1922
        %v1925 = vunpack.c.l.s4 1983009808
        %v1926 = vunpack.c.0.s8 %v1925
        %v1927 = vlaneseq
        %v1928 = vshrl.u32 %v1927, 7
        %v1929 = vsub.s32 %v1926, %v1928
        %v1930 = vrot.slane %v1916, %v1929
        %v1931 = vcombine.low %v1487, %v1489
        %v1932 = vcombine.high %v1487, %v1489
        %v1934 = vunpack.c.l.s4 1983009808
        %v1935 = vunpack.c.0.s8 %v1934
        %v1936 = vlaneseq
        %v1937 = vshrl.u32 %v1936, 7
        %v1938 = vsub.s32 %v1935, %v1937
        %v1939 = vrot.slane %v1931, %v1938
        %v1941 = vunpack.c.l.s4 1983009808
        %v1942 = vunpack.c.0.s8 %v1941
        %v1943 = vlaneseq
        %v1944 = vshrl.u32 %v1943, 7
        %v1945 = vsub.s32 %v1942, %v1944
        %v1946 = vrot.slane %v1932, %v1945
        %v1947 = vcombine.low %v1488, %v1490
        %v1948 = vcombine.high %v1488, %v1490
        %v1950 = vunpack.c.l.s4 1983009808
        %v1951 = vunpack.c.0.s8 %v1950
        %v1952 = vlaneseq
        %v1953 = vshrl.u32 %v1952, 7
        %v1954 = vsub.s32 %v1951, %v1953
        %v1955 = vrot.slane %v1947, %v1954
        %v1957 = vunpack.c.l.s4 1983009808
        %v1958 = vunpack.c.0.s8 %v1957
        %v1959 = vlaneseq
        %v1960 = vshrl.u32 %v1959, 7
        %v1961 = vsub.s32 %v1958, %v1960
        %v1962 = vrot.slane %v1948, %v1961
        %v1963 = vcombine.low %v1907, %v1923
        %v1964 = vcombine.high %v1907, %v1923
        %v1966 = vunpack.c.l.s4 1934713408
        %v1967 = vunpack.c.0.s8 %v1966
        %v1968 = vlaneseq
        %v1969 = vshrl.u32 %v1968, 7
        %v1970 = vsub.s32 %v1967, %v1969
        %v1971 = vrot.slane %v1963, %v1970
        %v1973 = vunpack.c.l.s4 1934713408
        %v1974 = vunpack.c.0.s8 %v1973
        %v1975 = vlaneseq
        %v1976 = vshrl.u32 %v1975, 7
        %v1977 = vsub.s32 %v1974, %v1976
        %v1978 = vrot.slane %v1964, %v1977
        %v1979 = vcombine.low %v1914, %v1930
        %v1980 = vcombine.high %v1914, %v1930
        %v1982 = vunpack.c.l.s4 1934713408
        %v1983 = vunpack.c.0.s8 %v1982
        %v1984 = vlaneseq
        %v1985 = vshrl.u32 %v1984, 7
        %v1986 = vsub.s32 %v1983, %v1985
        %v1987 = vrot.slane %v1979, %v1986
        %v1989 = vunpack.c.l.s4 1934713408
        %v1990 = vunpack.c.0.s8 %v1989
        %v1991 = vlaneseq
        %v1992 = vshrl.u32 %v1991, 7
        %v1993 = vsub.s32 %v1990, %v1992
        %v1994 = vrot.slane %v1980, %v1993
        %v1995 = vcombine.low %v1939, %v1955
        %v1996 = vcombine.high %v1939, %v1955
        %v1998 = vunpack.c.l.s4 1934713408
        %v1999 = vunpack.c.0.s8 %v1998
        %v2000 = vlaneseq
        %v2001 = vshrl.u32 %v2000, 7
        %v2002 = vsub.s32 %v1999, %v2001
        %v2003 = vrot.slane %v1995, %v2002
        %v2005 = vunpack.c.l.s4 1934713408
        %v2006 = vunpack.c.0.s8 %v2005
        %v2007 = vlaneseq
        %v2008 = vshrl.u32 %v2007, 7
        %v2009 = vsub.s32 %v2006, %v2008
        %v2010 = vrot.slane %v1996, %v2009
        %v2011 = vcombine.low %v1946, %v1962
        %v2012 = vcombine.high %v1946, %v1962
        %v2014 = vunpack.c.l.s4 1934713408
        %v2015 = vunpack.c.0.s8 %v2014
        %v2016 = vlaneseq
        %v2017 = vshrl.u32 %v2016, 7
        %v2018 = vsub.s32 %v2015, %v2017
        %v2019 = vrot.slane %v2011, %v2018
        %v2021 = vunpack.c.l.s4 1934713408
        %v2022 = vunpack.c.0.s8 %v2021
        %v2023 = vlaneseq
        %v2024 = vshrl.u32 %v2023, 7
        %v2025 = vsub.s32 %v2022, %v2024
        %v2026 = vrot.slane %v2012, %v2025
        %v2027 = vcombine.low %v1971, %v2003
        %v2028 = vcombine.high %v1971, %v2003
        %v2029 = vcombine.low %v1978, %v2010
        %v2030 = vcombine.high %v1978, %v2010
        %v2031 = vcombine.low %v1987, %v2019
        %v2032 = vcombine.high %v1987, %v2019
        %v2033 = vcombine.low %v1994, %v2026
        %v2034 = vcombine.high %v1994, %v2026
        %v2035 = vcombine.low %v1619, %v1621
        %v2036 = vcombine.high %v1619, %v1621
        %v2038 = vunpack.c.l.s4 1983009808
        %v2039 = vunpack.c.0.s8 %v2038
        %v2040 = vlaneseq
        %v2041 = vshrl.u32 %v2040, 7
        %v2042 = vsub.s32 %v2039, %v2041
        %v2043 = vrot.slane %v2035, %v2042
        %v2045 = vunpack.c.l.s4 1983009808
        %v2046 = vunpack.c.0.s8 %v2045
        %v2047 = vlaneseq
        %v2048 = vshrl.u32 %v2047, 7
        %v2049 = vsub.s32 %v2046, %v2048
        %v2050 = vrot.slane %v2036, %v2049
        %v2051 = vcombine.low %v1620, %v1622
        %v2052 = vcombine.high %v1620, %v1622
        %v2054 = vunpack.c.l.s4 1983009808
        %v2055 = vunpack.c.0.s8 %v2054
        %v2056 = vlaneseq
        %v2057 = vshrl.u32 %v2056, 7
        %v2058 = vsub.s32 %v2055, %v2057
        %v2059 = vrot.slane %v2051, %v2058
        %v2061 = vunpack.c.l.s4 1983009808
        %v2062 = vunpack.c.0.s8 %v2061
        %v2063 = vlaneseq
        %v2064 = vshrl.u32 %v2063, 7
        %v2065 = vsub.s32 %v2062, %v2064
        %v2066 = vrot.slane %v2052, %v2065
        %v2067 = vcombine.low %v1623, %v1625
        %v2068 = vcombine.high %v1623, %v1625
        %v2070 = vunpack.c.l.s4 1983009808
        %v2071 = vunpack.c.0.s8 %v2070
        %v2072 = vlaneseq
        %v2073 = vshrl.u32 %v2072, 7
        %v2074 = vsub.s32 %v2071, %v2073
        %v2075 = vrot.slane %v2067, %v2074
        %v2077 = vunpack.c.l.s4 1983009808
        %v2078 = vunpack.c.0.s8 %v2077
        %v2079 = vlaneseq
        %v2080 = vshrl.u32 %v2079, 7
        %v2081 = vsub.s32 %v2078, %v2080
        %v2082 = vrot.slane %v2068, %v2081
        %v2083 = vcombine.low %v1624, %v1626
        %v2084 = vcombine.high %v1624, %v1626
        %v2086 = vunpack.c.l.s4 1983009808
        %v2087 = vunpack.c.0.s8 %v2086
        %v2088 = vlaneseq
        %v2089 = vshrl.u32 %v2088, 7
        %v2090 = vsub.s32 %v2087, %v2089
        %v2091 = vrot.slane %v2083, %v2090
        %v2093 = vunpack.c.l.s4 1983009808
        %v2094 = vunpack.c.0.s8 %v2093
        %v2095 = vlaneseq
        %v2096 = vshrl.u32 %v2095, 7
        %v2097 = vsub.s32 %v2094, %v2096
        %v2098 = vrot.slane %v2084, %v2097
        %v2099 = vcombine.low %v2043, %v2059
        %v2100 = vcombine.high %v2043, %v2059
        %v2102 = vunpack.c.l.s4 1934713408
        %v2103 = vunpack.c.0.s8 %v2102
        %v2104 = vlaneseq
        %v2105 = vshrl.u32 %v2104, 7
        %v2106 = vsub.s32 %v2103, %v2105
        %v2107 = vrot.slane %v2099, %v2106
        %v2109 = vunpack.c.l.s4 1934713408
        %v2110 = vunpack.c.0.s8 %v2109
        %v2111 = vlaneseq
        %v2112 = vshrl.u32 %v2111, 7
        %v2113 = vsub.s32 %v2110, %v2112
        %v2114 = vrot.slane %v2100, %v2113
        %v2115 = vcombine.low %v2050, %v2066
        %v2116 = vcombine.high %v2050, %v2066
        %v2118 = vunpack.c.l.s4 1934713408
        %v2119 = vunpack.c.0.s8 %v2118
        %v2120 = vlaneseq
        %v2121 = vshrl.u32 %v2120, 7
        %v2122 = vsub.s32 %v2119, %v2121
        %v2123 = vrot.slane %v2115, %v2122
        %v2125 = vunpack.c.l.s4 1934713408
        %v2126 = vunpack.c.0.s8 %v2125
        %v2127 = vlaneseq
        %v2128 = vshrl.u32 %v2127, 7
        %v2129 = vsub.s32 %v2126, %v2128
        %v2130 = vrot.slane %v2116, %v2129
        %v2131 = vcombine.low %v2075, %v2091
        %v2132 = vcombine.high %v2075, %v2091
        %v2134 = vunpack.c.l.s4 1934713408
        %v2135 = vunpack.c.0.s8 %v2134
        %v2136 = vlaneseq
        %v2137 = vshrl.u32 %v2136, 7
        %v2138 = vsub.s32 %v2135, %v2137
        %v2139 = vrot.slane %v2131, %v2138
        %v2141 = vunpack.c.l.s4 1934713408
        %v2142 = vunpack.c.0.s8 %v2141
        %v2143 = vlaneseq
        %v2144 = vshrl.u32 %v2143, 7
        %v2145 = vsub.s32 %v2142, %v2144
        %v2146 = vrot.slane %v2132, %v2145
        %v2147 = vcombine.low %v2082, %v2098
        %v2148 = vcombine.high %v2082, %v2098
        %v2150 = vunpack.c.l.s4 1934713408
        %v2151 = vunpack.c.0.s8 %v2150
        %v2152 = vlaneseq
        %v2153 = vshrl.u32 %v2152, 7
        %v2154 = vsub.s32 %v2151, %v2153
        %v2155 = vrot.slane %v2147, %v2154
        %v2157 = vunpack.c.l.s4 1934713408
        %v2158 = vunpack.c.0.s8 %v2157
        %v2159 = vlaneseq
        %v2160 = vshrl.u32 %v2159, 7
        %v2161 = vsub.s32 %v2158, %v2160
        %v2162 = vrot.slane %v2148, %v2161
        %v2163 = vcombine.low %v2107, %v2139
        %v2164 = vcombine.high %v2107, %v2139
        %v2165 = vcombine.low %v2114, %v2146
        %v2166 = vcombine.high %v2114, %v2146
        %v2167 = vcombine.low %v2123, %v2155
        %v2168 = vcombine.high %v2123, %v2155
        %v2169 = vcombine.low %v2130, %v2162
        %v2170 = vcombine.high %v2130, %v2162
        %v2171 = vcombine.low %v1755, %v1757
        %v2172 = vcombine.high %v1755, %v1757
        %v2174 = vunpack.c.l.s4 1983009808
        %v2175 = vunpack.c.0.s8 %v2174
        %v2176 = vlaneseq
        %v2177 = vshrl.u32 %v2176, 7
        %v2178 = vsub.s32 %v2175, %v2177
        %v2179 = vrot.slane %v2171, %v2178
        %v2181 = vunpack.c.l.s4 1983009808
        %v2182 = vunpack.c.0.s8 %v2181
        %v2183 = vlaneseq
        %v2184 = vshrl.u32 %v2183, 7
        %v2185 = vsub.s32 %v2182, %v2184
        %v2186 = vrot.slane %v2172, %v2185
        %v2187 = vcombine.low %v1756, %v1758
        %v2188 = vcombine.high %v1756, %v1758
        %v2190 = vunpack.c.l.s4 1983009808
        %v2191 = vunpack.c.0.s8 %v2190
        %v2192 = vlaneseq
        %v2193 = vshrl.u32 %v2192, 7
        %v2194 = vsub.s32 %v2191, %v2193
        %v2195 = vrot.slane %v2187, %v2194
        %v2197 = vunpack.c.l.s4 1983009808
        %v2198 = vunpack.c.0.s8 %v2197
        %v2199 = vlaneseq
        %v2200 = vshrl.u32 %v2199, 7
        %v2201 = vsub.s32 %v2198, %v2200
        %v2202 = vrot.slane %v2188, %v2201
        %v2203 = vcombine.low %v1759, %v1761
        %v2204 = vcombine.high %v1759, %v1761
        %v2206 = vunpack.c.l.s4 1983009808
        %v2207 = vunpack.c.0.s8 %v2206
        %v2208 = vlaneseq
        %v2209 = vshrl.u32 %v2208, 7
        %v2210 = vsub.s32 %v2207, %v2209
        %v2211 = vrot.slane %v2203, %v2210
        %v2213 = vunpack.c.l.s4 1983009808
        %v2214 = vunpack.c.0.s8 %v2213
        %v2215 = vlaneseq
        %v2216 = vshrl.u32 %v2215, 7
        %v2217 = vsub.s32 %v2214, %v2216
        %v2218 = vrot.slane %v2204, %v2217
        %v2219 = vcombine.low %v1760, %v1762
        %v2220 = vcombine.high %v1760, %v1762
        %v2222 = vunpack.c.l.s4 1983009808
        %v2223 = vunpack.c.0.s8 %v2222
        %v2224 = vlaneseq
        %v2225 = vshrl.u32 %v2224, 7
        %v2226 = vsub.s32 %v2223, %v2225
        %v2227 = vrot.slane %v2219, %v2226
        %v2229 = vunpack.c.l.s4 1983009808
        %v2230 = vunpack.c.0.s8 %v2229
        %v2231 = vlaneseq
        %v2232 = vshrl.u32 %v2231, 7
        %v2233 = vsub.s32 %v2230, %v2232
        %v2234 = vrot.slane %v2220, %v2233
        %v2235 = vcombine.low %v2179, %v2195
        %v2236 = vcombine.high %v2179, %v2195
        %v2238 = vunpack.c.l.s4 1934713408
        %v2239 = vunpack.c.0.s8 %v2238
        %v2240 = vlaneseq
        %v2241 = vshrl.u32 %v2240, 7
        %v2242 = vsub.s32 %v2239, %v2241
        %v2243 = vrot.slane %v2235, %v2242
        %v2245 = vunpack.c.l.s4 1934713408
        %v2246 = vunpack.c.0.s8 %v2245
        %v2247 = vlaneseq
        %v2248 = vshrl.u32 %v2247, 7
        %v2249 = vsub.s32 %v2246, %v2248
        %v2250 = vrot.slane %v2236, %v2249
        %v2251 = vcombine.low %v2186, %v2202
        %v2252 = vcombine.high %v2186, %v2202
        %v2254 = vunpack.c.l.s4 1934713408
        %v2255 = vunpack.c.0.s8 %v2254
        %v2256 = vlaneseq
        %v2257 = vshrl.u32 %v2256, 7
        %v2258 = vsub.s32 %v2255, %v2257
        %v2259 = vrot.slane %v2251, %v2258
        %v2261 = vunpack.c.l.s4 1934713408
        %v2262 = vunpack.c.0.s8 %v2261
        %v2263 = vlaneseq
        %v2264 = vshrl.u32 %v2263, 7
        %v2265 = vsub.s32 %v2262, %v2264
        %v2266 = vrot.slane %v2252, %v2265
        %v2267 = vcombine.low %v2211, %v2227
        %v2268 = vcombine.high %v2211, %v2227
        %v2270 = vunpack.c.l.s4 1934713408
        %v2271 = vunpack.c.0.s8 %v2270
        %v2272 = vlaneseq
        %v2273 = vshrl.u32 %v2272, 7
        %v2274 = vsub.s32 %v2271, %v2273
        %v2275 = vrot.slane %v2267, %v2274
        %v2277 = vunpack.c.l.s4 1934713408
        %v2278 = vunpack.c.0.s8 %v2277
        %v2279 = vlaneseq
        %v2280 = vshrl.u32 %v2279, 7
        %v2281 = vsub.s32 %v2278, %v2280
        %v2282 = vrot.slane %v2268, %v2281
        %v2283 = vcombine.low %v2218, %v2234
        %v2284 = vcombine.high %v2218, %v2234
        %v2286 = vunpack.c.l.s4 1934713408
        %v2287 = vunpack.c.0.s8 %v2286
        %v2288 = vlaneseq
        %v2289 = vshrl.u32 %v2288, 7
        %v2290 = vsub.s32 %v2287, %v2289
        %v2291 = vrot.slane %v2283, %v2290
        %v2293 = vunpack.c.l.s4 1934713408
        %v2294 = vunpack.c.0.s8 %v2293
        %v2295 = vlaneseq
        %v2296 = vshrl.u32 %v2295, 7
        %v2297 = vsub.s32 %v2294, %v2296
        %v2298 = vrot.slane %v2284, %v2297
        %v2299 = vcombine.low %v2243, %v2275
        %v2300 = vcombine.high %v2243, %v2275
        %v2301 = vcombine.low %v2250, %v2282
        %v2302 = vcombine.high %v2250, %v2282
        %v2303 = vcombine.low %v2259, %v2291
        %v2304 = vcombine.high %v2259, %v2291
        %v2305 = vcombine.low %v2266, %v2298
        %v2306 = vcombine.high %v2266, %v2298
        %2311 = vrot.lane.b32.xlu0 %v1066, 112
        %v2312 = vpop.permute.xlu0 %2311
        %2313 = vrot.lane.b32.xlu0 %v1070, 112
        %v2314 = vpop.permute.xlu0 %2313
        %2315 = vrot.lane.b32.xlu0 %v1076, 112
        %v2316 = vpop.permute.xlu0 %2315
        %2317 = vrot.lane.b32.xlu0 %v1080, 112
        %v2318 = vpop.permute.xlu0 %2317
        %2323 = vrot.lane.b32.xlu0 %v1066, 96
        %v2324 = vpop.permute.xlu0 %2323
        %2325 = vrot.lane.b32.xlu0 %v1070, 96
        %v2326 = vpop.permute.xlu0 %2325
        %2327 = vrot.lane.b32.xlu0 %v1076, 96
        %v2328 = vpop.permute.xlu0 %2327
        %2329 = vrot.lane.b32.xlu0 %v1080, 96
        %v2330 = vpop.permute.xlu0 %2329
        %2335 = vrot.lane.b32.xlu0 %v1066, 80
        %v2336 = vpop.permute.xlu0 %2335
        %2337 = vrot.lane.b32.xlu0 %v1070, 80
        %v2338 = vpop.permute.xlu0 %2337
        %2339 = vrot.lane.b32.xlu0 %v1076, 80
        %v2340 = vpop.permute.xlu0 %2339
        %2341 = vrot.lane.b32.xlu0 %v1080, 80
        %v2342 = vpop.permute.xlu0 %2341
        %2347 = vrot.lane.b32.xlu0 %v1066, 64
        %v2348 = vpop.permute.xlu0 %2347
        %2349 = vrot.lane.b32.xlu0 %v1070, 64
        %v2350 = vpop.permute.xlu0 %2349
        %2351 = vrot.lane.b32.xlu0 %v1076, 64
        %v2352 = vpop.permute.xlu0 %2351
        %2353 = vrot.lane.b32.xlu0 %v1080, 64
        %v2354 = vpop.permute.xlu0 %2353
        %2359 = vrot.lane.b32.xlu0 %v1066, 48
        %v2360 = vpop.permute.xlu0 %2359
        %2361 = vrot.lane.b32.xlu0 %v1070, 48
        %v2362 = vpop.permute.xlu0 %2361
        %2363 = vrot.lane.b32.xlu0 %v1076, 48
        %v2364 = vpop.permute.xlu0 %2363
        %2365 = vrot.lane.b32.xlu0 %v1080, 48
        %v2366 = vpop.permute.xlu0 %2365
        %2371 = vrot.lane.b32.xlu0 %v1066, 32
        %v2372 = vpop.permute.xlu0 %2371
        %2373 = vrot.lane.b32.xlu0 %v1070, 32
        %v2374 = vpop.permute.xlu0 %2373
        %2375 = vrot.lane.b32.xlu0 %v1076, 32
        %v2376 = vpop.permute.xlu0 %2375
        %2377 = vrot.lane.b32.xlu0 %v1080, 32
        %v2378 = vpop.permute.xlu0 %2377
        %2383 = vrot.lane.b32.xlu0 %v1066, 16
        %v2384 = vpop.permute.xlu0 %2383
        %2385 = vrot.lane.b32.xlu0 %v1070, 16
        %v2386 = vpop.permute.xlu0 %2385
        %2387 = vrot.lane.b32.xlu0 %v1076, 16
        %v2388 = vpop.permute.xlu0 %2387
        %2389 = vrot.lane.b32.xlu0 %v1080, 16
        %v2390 = vpop.permute.xlu0 %2389
        %v2395 = vcombine.low %v1066, %v2324
        %v2396 = vcombine.high %v1066, %v2324
        %v2398 = vunpack.c.l.s4 1983009808
        %v2399 = vunpack.c.0.s8 %v2398
        %v2400 = vlaneseq
        %v2401 = vshrl.u32 %v2400, 7
        %v2402 = vsub.s32 %v2399, %v2401
        %v2403 = vrot.slane %v2395, %v2402
        %v2405 = vunpack.c.l.s4 1983009808
        %v2406 = vunpack.c.0.s8 %v2405
        %v2407 = vlaneseq
        %v2408 = vshrl.u32 %v2407, 7
        %v2409 = vsub.s32 %v2406, %v2408
        %v2410 = vrot.slane %v2396, %v2409
        %v2411 = vcombine.low %v2312, %v2336
        %v2412 = vcombine.high %v2312, %v2336
        %v2414 = vunpack.c.l.s4 1983009808
        %v2415 = vunpack.c.0.s8 %v2414
        %v2416 = vlaneseq
        %v2417 = vshrl.u32 %v2416, 7
        %v2418 = vsub.s32 %v2415, %v2417
        %v2419 = vrot.slane %v2411, %v2418
        %v2421 = vunpack.c.l.s4 1983009808
        %v2422 = vunpack.c.0.s8 %v2421
        %v2423 = vlaneseq
        %v2424 = vshrl.u32 %v2423, 7
        %v2425 = vsub.s32 %v2422, %v2424
        %v2426 = vrot.slane %v2412, %v2425
        %v2427 = vcombine.low %v2348, %v2372
        %v2428 = vcombine.high %v2348, %v2372
        %v2430 = vunpack.c.l.s4 1983009808
        %v2431 = vunpack.c.0.s8 %v2430
        %v2432 = vlaneseq
        %v2433 = vshrl.u32 %v2432, 7
        %v2434 = vsub.s32 %v2431, %v2433
        %v2435 = vrot.slane %v2427, %v2434
        %v2437 = vunpack.c.l.s4 1983009808
        %v2438 = vunpack.c.0.s8 %v2437
        %v2439 = vlaneseq
        %v2440 = vshrl.u32 %v2439, 7
        %v2441 = vsub.s32 %v2438, %v2440
        %v2442 = vrot.slane %v2428, %v2441
        %v2443 = vcombine.low %v2360, %v2384
        %v2444 = vcombine.high %v2360, %v2384
        %v2446 = vunpack.c.l.s4 1983009808
        %v2447 = vunpack.c.0.s8 %v2446
        %v2448 = vlaneseq
        %v2449 = vshrl.u32 %v2448, 7
        %v2450 = vsub.s32 %v2447, %v2449
        %v2451 = vrot.slane %v2443, %v2450
        %v2453 = vunpack.c.l.s4 1983009808
        %v2454 = vunpack.c.0.s8 %v2453
        %v2455 = vlaneseq
        %v2456 = vshrl.u32 %v2455, 7
        %v2457 = vsub.s32 %v2454, %v2456
        %v2458 = vrot.slane %v2444, %v2457
        %v2459 = vcombine.low %v2403, %v2419
        %v2460 = vcombine.high %v2403, %v2419
        %v2462 = vunpack.c.l.s4 1934713408
        %v2463 = vunpack.c.0.s8 %v2462
        %v2464 = vlaneseq
        %v2465 = vshrl.u32 %v2464, 7
        %v2466 = vsub.s32 %v2463, %v2465
        %v2467 = vrot.slane %v2459, %v2466
        %v2469 = vunpack.c.l.s4 1934713408
        %v2470 = vunpack.c.0.s8 %v2469
        %v2471 = vlaneseq
        %v2472 = vshrl.u32 %v2471, 7
        %v2473 = vsub.s32 %v2470, %v2472
        %v2474 = vrot.slane %v2460, %v2473
        %v2475 = vcombine.low %v2410, %v2426
        %v2476 = vcombine.high %v2410, %v2426
        %v2478 = vunpack.c.l.s4 1934713408
        %v2479 = vunpack.c.0.s8 %v2478
        %v2480 = vlaneseq
        %v2481 = vshrl.u32 %v2480, 7
        %v2482 = vsub.s32 %v2479, %v2481
        %v2483 = vrot.slane %v2475, %v2482
        %v2485 = vunpack.c.l.s4 1934713408
        %v2486 = vunpack.c.0.s8 %v2485
        %v2487 = vlaneseq
        %v2488 = vshrl.u32 %v2487, 7
        %v2489 = vsub.s32 %v2486, %v2488
        %v2490 = vrot.slane %v2476, %v2489
        %v2491 = vcombine.low %v2435, %v2451
        %v2492 = vcombine.high %v2435, %v2451
        %v2494 = vunpack.c.l.s4 1934713408
        %v2495 = vunpack.c.0.s8 %v2494
        %v2496 = vlaneseq
        %v2497 = vshrl.u32 %v2496, 7
        %v2498 = vsub.s32 %v2495, %v2497
        %v2499 = vrot.slane %v2491, %v2498
        %v2501 = vunpack.c.l.s4 1934713408
        %v2502 = vunpack.c.0.s8 %v2501
        %v2503 = vlaneseq
        %v2504 = vshrl.u32 %v2503, 7
        %v2505 = vsub.s32 %v2502, %v2504
        %v2506 = vrot.slane %v2492, %v2505
        %v2507 = vcombine.low %v2442, %v2458
        %v2508 = vcombine.high %v2442, %v2458
        %v2510 = vunpack.c.l.s4 1934713408
        %v2511 = vunpack.c.0.s8 %v2510
        %v2512 = vlaneseq
        %v2513 = vshrl.u32 %v2512, 7
        %v2514 = vsub.s32 %v2511, %v2513
        %v2515 = vrot.slane %v2507, %v2514
        %v2517 = vunpack.c.l.s4 1934713408
        %v2518 = vunpack.c.0.s8 %v2517
        %v2519 = vlaneseq
        %v2520 = vshrl.u32 %v2519, 7
        %v2521 = vsub.s32 %v2518, %v2520
        %v2522 = vrot.slane %v2508, %v2521
        %v2523 = vcombine.low %v2467, %v2499
        %v2524 = vcombine.high %v2467, %v2499
        %v2525 = vcombine.low %v2474, %v2506
        %v2526 = vcombine.high %v2474, %v2506
        %v2527 = vcombine.low %v2483, %v2515
        %v2528 = vcombine.high %v2483, %v2515
        %v2529 = vcombine.low %v2490, %v2522
        %v2530 = vcombine.high %v2490, %v2522
        %v2531 = vcombine.low %v1070, %v2326
        %v2532 = vcombine.high %v1070, %v2326
        %v2534 = vunpack.c.l.s4 1983009808
        %v2535 = vunpack.c.0.s8 %v2534
        %v2536 = vlaneseq
        %v2537 = vshrl.u32 %v2536, 7
        %v2538 = vsub.s32 %v2535, %v2537
        %v2539 = vrot.slane %v2531, %v2538
        %v2541 = vunpack.c.l.s4 1983009808
        %v2542 = vunpack.c.0.s8 %v2541
        %v2543 = vlaneseq
        %v2544 = vshrl.u32 %v2543, 7
        %v2545 = vsub.s32 %v2542, %v2544
        %v2546 = vrot.slane %v2532, %v2545
        %v2547 = vcombine.low %v2314, %v2338
        %v2548 = vcombine.high %v2314, %v2338
        %v2550 = vunpack.c.l.s4 1983009808
        %v2551 = vunpack.c.0.s8 %v2550
        %v2552 = vlaneseq
        %v2553 = vshrl.u32 %v2552, 7
        %v2554 = vsub.s32 %v2551, %v2553
        %v2555 = vrot.slane %v2547, %v2554
        %v2557 = vunpack.c.l.s4 1983009808
        %v2558 = vunpack.c.0.s8 %v2557
        %v2559 = vlaneseq
        %v2560 = vshrl.u32 %v2559, 7
        %v2561 = vsub.s32 %v2558, %v2560
        %v2562 = vrot.slane %v2548, %v2561
        %v2563 = vcombine.low %v2350, %v2374
        %v2564 = vcombine.high %v2350, %v2374
        %v2566 = vunpack.c.l.s4 1983009808
        %v2567 = vunpack.c.0.s8 %v2566
        %v2568 = vlaneseq
        %v2569 = vshrl.u32 %v2568, 7
        %v2570 = vsub.s32 %v2567, %v2569
        %v2571 = vrot.slane %v2563, %v2570
        %v2573 = vunpack.c.l.s4 1983009808
        %v2574 = vunpack.c.0.s8 %v2573
        %v2575 = vlaneseq
        %v2576 = vshrl.u32 %v2575, 7
        %v2577 = vsub.s32 %v2574, %v2576
        %v2578 = vrot.slane %v2564, %v2577
        %v2579 = vcombine.low %v2362, %v2386
        %v2580 = vcombine.high %v2362, %v2386
        %v2582 = vunpack.c.l.s4 1983009808
        %v2583 = vunpack.c.0.s8 %v2582
        %v2584 = vlaneseq
        %v2585 = vshrl.u32 %v2584, 7
        %v2586 = vsub.s32 %v2583, %v2585
        %v2587 = vrot.slane %v2579, %v2586
        %v2589 = vunpack.c.l.s4 1983009808
        %v2590 = vunpack.c.0.s8 %v2589
        %v2591 = vlaneseq
        %v2592 = vshrl.u32 %v2591, 7
        %v2593 = vsub.s32 %v2590, %v2592
        %v2594 = vrot.slane %v2580, %v2593
        %v2595 = vcombine.low %v2539, %v2555
        %v2596 = vcombine.high %v2539, %v2555
        %v2598 = vunpack.c.l.s4 1934713408
        %v2599 = vunpack.c.0.s8 %v2598
        %v2600 = vlaneseq
        %v2601 = vshrl.u32 %v2600, 7
        %v2602 = vsub.s32 %v2599, %v2601
        %v2603 = vrot.slane %v2595, %v2602
        %v2605 = vunpack.c.l.s4 1934713408
        %v2606 = vunpack.c.0.s8 %v2605
        %v2607 = vlaneseq
        %v2608 = vshrl.u32 %v2607, 7
        %v2609 = vsub.s32 %v2606, %v2608
        %v2610 = vrot.slane %v2596, %v2609
        %v2611 = vcombine.low %v2546, %v2562
        %v2612 = vcombine.high %v2546, %v2562
        %v2614 = vunpack.c.l.s4 1934713408
        %v2615 = vunpack.c.0.s8 %v2614
        %v2616 = vlaneseq
        %v2617 = vshrl.u32 %v2616, 7
        %v2618 = vsub.s32 %v2615, %v2617
        %v2619 = vrot.slane %v2611, %v2618
        %v2621 = vunpack.c.l.s4 1934713408
        %v2622 = vunpack.c.0.s8 %v2621
        %v2623 = vlaneseq
        %v2624 = vshrl.u32 %v2623, 7
        %v2625 = vsub.s32 %v2622, %v2624
        %v2626 = vrot.slane %v2612, %v2625
        %v2627 = vcombine.low %v2571, %v2587
        %v2628 = vcombine.high %v2571, %v2587
        %v2630 = vunpack.c.l.s4 1934713408
        %v2631 = vunpack.c.0.s8 %v2630
        %v2632 = vlaneseq
        %v2633 = vshrl.u32 %v2632, 7
        %v2634 = vsub.s32 %v2631, %v2633
        %v2635 = vrot.slane %v2627, %v2634
        %v2637 = vunpack.c.l.s4 1934713408
        %v2638 = vunpack.c.0.s8 %v2637
        %v2639 = vlaneseq
        %v2640 = vshrl.u32 %v2639, 7
        %v2641 = vsub.s32 %v2638, %v2640
        %v2642 = vrot.slane %v2628, %v2641
        %v2643 = vcombine.low %v2578, %v2594
        %v2644 = vcombine.high %v2578, %v2594
        %v2646 = vunpack.c.l.s4 1934713408
        %v2647 = vunpack.c.0.s8 %v2646
        %v2648 = vlaneseq
        %v2649 = vshrl.u32 %v2648, 7
        %v2650 = vsub.s32 %v2647, %v2649
        %v2651 = vrot.slane %v2643, %v2650
        %v2653 = vunpack.c.l.s4 1934713408
        %v2654 = vunpack.c.0.s8 %v2653
        %v2655 = vlaneseq
        %v2656 = vshrl.u32 %v2655, 7
        %v2657 = vsub.s32 %v2654, %v2656
        %v2658 = vrot.slane %v2644, %v2657
        %v2659 = vcombine.low %v2603, %v2635
        %v2660 = vcombine.high %v2603, %v2635
        %v2661 = vcombine.low %v2610, %v2642
        %v2662 = vcombine.high %v2610, %v2642
        %v2663 = vcombine.low %v2619, %v2651
        %v2664 = vcombine.high %v2619, %v2651
        %v2665 = vcombine.low %v2626, %v2658
        %v2666 = vcombine.high %v2626, %v2658
        %v2667 = vcombine.low %v1076, %v2328
        %v2668 = vcombine.high %v1076, %v2328
        %v2670 = vunpack.c.l.s4 1983009808
        %v2671 = vunpack.c.0.s8 %v2670
        %v2672 = vlaneseq
        %v2673 = vshrl.u32 %v2672, 7
        %v2674 = vsub.s32 %v2671, %v2673
        %v2675 = vrot.slane %v2667, %v2674
        %v2677 = vunpack.c.l.s4 1983009808
        %v2678 = vunpack.c.0.s8 %v2677
        %v2679 = vlaneseq
        %v2680 = vshrl.u32 %v2679, 7
        %v2681 = vsub.s32 %v2678, %v2680
        %v2682 = vrot.slane %v2668, %v2681
        %v2683 = vcombine.low %v2316, %v2340
        %v2684 = vcombine.high %v2316, %v2340
        %v2686 = vunpack.c.l.s4 1983009808
        %v2687 = vunpack.c.0.s8 %v2686
        %v2688 = vlaneseq
        %v2689 = vshrl.u32 %v2688, 7
        %v2690 = vsub.s32 %v2687, %v2689
        %v2691 = vrot.slane %v2683, %v2690
        %v2693 = vunpack.c.l.s4 1983009808
        %v2694 = vunpack.c.0.s8 %v2693
        %v2695 = vlaneseq
        %v2696 = vshrl.u32 %v2695, 7
        %v2697 = vsub.s32 %v2694, %v2696
        %v2698 = vrot.slane %v2684, %v2697
        %v2699 = vcombine.low %v2352, %v2376
        %v2700 = vcombine.high %v2352, %v2376
        %v2702 = vunpack.c.l.s4 1983009808
        %v2703 = vunpack.c.0.s8 %v2702
        %v2704 = vlaneseq
        %v2705 = vshrl.u32 %v2704, 7
        %v2706 = vsub.s32 %v2703, %v2705
        %v2707 = vrot.slane %v2699, %v2706
        %v2709 = vunpack.c.l.s4 1983009808
        %v2710 = vunpack.c.0.s8 %v2709
        %v2711 = vlaneseq
        %v2712 = vshrl.u32 %v2711, 7
        %v2713 = vsub.s32 %v2710, %v2712
        %v2714 = vrot.slane %v2700, %v2713
        %v2715 = vcombine.low %v2364, %v2388
        %v2716 = vcombine.high %v2364, %v2388
        %v2718 = vunpack.c.l.s4 1983009808
        %v2719 = vunpack.c.0.s8 %v2718
        %v2720 = vlaneseq
        %v2721 = vshrl.u32 %v2720, 7
        %v2722 = vsub.s32 %v2719, %v2721
        %v2723 = vrot.slane %v2715, %v2722
        %v2725 = vunpack.c.l.s4 1983009808
        %v2726 = vunpack.c.0.s8 %v2725
        %v2727 = vlaneseq
        %v2728 = vshrl.u32 %v2727, 7
        %v2729 = vsub.s32 %v2726, %v2728
        %v2730 = vrot.slane %v2716, %v2729
        %v2731 = vcombine.low %v2675, %v2691
        %v2732 = vcombine.high %v2675, %v2691
        %v2734 = vunpack.c.l.s4 1934713408
        %v2735 = vunpack.c.0.s8 %v2734
        %v2736 = vlaneseq
        %v2737 = vshrl.u32 %v2736, 7
        %v2738 = vsub.s32 %v2735, %v2737
        %v2739 = vrot.slane %v2731, %v2738
        %v2741 = vunpack.c.l.s4 1934713408
        %v2742 = vunpack.c.0.s8 %v2741
        %v2743 = vlaneseq
        %v2744 = vshrl.u32 %v2743, 7
        %v2745 = vsub.s32 %v2742, %v2744
        %v2746 = vrot.slane %v2732, %v2745
        %v2747 = vcombine.low %v2682, %v2698
        %v2748 = vcombine.high %v2682, %v2698
        %v2750 = vunpack.c.l.s4 1934713408
        %v2751 = vunpack.c.0.s8 %v2750
        %v2752 = vlaneseq
        %v2753 = vshrl.u32 %v2752, 7
        %v2754 = vsub.s32 %v2751, %v2753
        %v2755 = vrot.slane %v2747, %v2754
        %v2757 = vunpack.c.l.s4 1934713408
        %v2758 = vunpack.c.0.s8 %v2757
        %v2759 = vlaneseq
        %v2760 = vshrl.u32 %v2759, 7
        %v2761 = vsub.s32 %v2758, %v2760
        %v2762 = vrot.slane %v2748, %v2761
        %v2763 = vcombine.low %v2707, %v2723
        %v2764 = vcombine.high %v2707, %v2723
        %v2766 = vunpack.c.l.s4 1934713408
        %v2767 = vunpack.c.0.s8 %v2766
        %v2768 = vlaneseq
        %v2769 = vshrl.u32 %v2768, 7
        %v2770 = vsub.s32 %v2767, %v2769
        %v2771 = vrot.slane %v2763, %v2770
        %v2773 = vunpack.c.l.s4 1934713408
        %v2774 = vunpack.c.0.s8 %v2773
        %v2775 = vlaneseq
        %v2776 = vshrl.u32 %v2775, 7
        %v2777 = vsub.s32 %v2774, %v2776
        %v2778 = vrot.slane %v2764, %v2777
        %v2779 = vcombine.low %v2714, %v2730
        %v2780 = vcombine.high %v2714, %v2730
        %v2782 = vunpack.c.l.s4 1934713408
        %v2783 = vunpack.c.0.s8 %v2782
        %v2784 = vlaneseq
        %v2785 = vshrl.u32 %v2784, 7
        %v2786 = vsub.s32 %v2783, %v2785
        %v2787 = vrot.slane %v2779, %v2786
        %v2789 = vunpack.c.l.s4 1934713408
        %v2790 = vunpack.c.0.s8 %v2789
        %v2791 = vlaneseq
        %v2792 = vshrl.u32 %v2791, 7
        %v2793 = vsub.s32 %v2790, %v2792
        %v2794 = vrot.slane %v2780, %v2793
        %v2795 = vcombine.low %v2739, %v2771
        %v2796 = vcombine.high %v2739, %v2771
        %v2797 = vcombine.low %v2746, %v2778
        %v2798 = vcombine.high %v2746, %v2778
        %v2799 = vcombine.low %v2755, %v2787
        %v2800 = vcombine.high %v2755, %v2787
        %v2801 = vcombine.low %v2762, %v2794
        %v2802 = vcombine.high %v2762, %v2794
        %v2803 = vcombine.low %v1080, %v2330
        %v2804 = vcombine.high %v1080, %v2330
        %v2806 = vunpack.c.l.s4 1983009808
        %v2807 = vunpack.c.0.s8 %v2806
        %v2808 = vlaneseq
        %v2809 = vshrl.u32 %v2808, 7
        %v2810 = vsub.s32 %v2807, %v2809
        %v2811 = vrot.slane %v2803, %v2810
        %v2813 = vunpack.c.l.s4 1983009808
        %v2814 = vunpack.c.0.s8 %v2813
        %v2815 = vlaneseq
        %v2816 = vshrl.u32 %v2815, 7
        %v2817 = vsub.s32 %v2814, %v2816
        %v2818 = vrot.slane %v2804, %v2817
        %v2819 = vcombine.low %v2318, %v2342
        %v2820 = vcombine.high %v2318, %v2342
        %v2822 = vunpack.c.l.s4 1983009808
        %v2823 = vunpack.c.0.s8 %v2822
        %v2824 = vlaneseq
        %v2825 = vshrl.u32 %v2824, 7
        %v2826 = vsub.s32 %v2823, %v2825
        %v2827 = vrot.slane %v2819, %v2826
        %v2829 = vunpack.c.l.s4 1983009808
        %v2830 = vunpack.c.0.s8 %v2829
        %v2831 = vlaneseq
        %v2832 = vshrl.u32 %v2831, 7
        %v2833 = vsub.s32 %v2830, %v2832
        %v2834 = vrot.slane %v2820, %v2833
        %v2835 = vcombine.low %v2354, %v2378
        %v2836 = vcombine.high %v2354, %v2378
        %v2838 = vunpack.c.l.s4 1983009808
        %v2839 = vunpack.c.0.s8 %v2838
        %v2840 = vlaneseq
        %v2841 = vshrl.u32 %v2840, 7
        %v2842 = vsub.s32 %v2839, %v2841
        %v2843 = vrot.slane %v2835, %v2842
        %v2845 = vunpack.c.l.s4 1983009808
        %v2846 = vunpack.c.0.s8 %v2845
        %v2847 = vlaneseq
        %v2848 = vshrl.u32 %v2847, 7
        %v2849 = vsub.s32 %v2846, %v2848
        %v2850 = vrot.slane %v2836, %v2849
        %v2851 = vcombine.low %v2366, %v2390
        %v2852 = vcombine.high %v2366, %v2390
        %v2854 = vunpack.c.l.s4 1983009808
        %v2855 = vunpack.c.0.s8 %v2854
        %v2856 = vlaneseq
        %v2857 = vshrl.u32 %v2856, 7
        %v2858 = vsub.s32 %v2855, %v2857
        %v2859 = vrot.slane %v2851, %v2858
        %v2861 = vunpack.c.l.s4 1983009808
        %v2862 = vunpack.c.0.s8 %v2861
        %v2863 = vlaneseq
        %v2864 = vshrl.u32 %v2863, 7
        %v2865 = vsub.s32 %v2862, %v2864
        %v2866 = vrot.slane %v2852, %v2865
        %v2867 = vcombine.low %v2811, %v2827
        %v2868 = vcombine.high %v2811, %v2827
        %v2870 = vunpack.c.l.s4 1934713408
        %v2871 = vunpack.c.0.s8 %v2870
        %v2872 = vlaneseq
        %v2873 = vshrl.u32 %v2872, 7
        %v2874 = vsub.s32 %v2871, %v2873
        %v2875 = vrot.slane %v2867, %v2874
        %v2877 = vunpack.c.l.s4 1934713408
        %v2878 = vunpack.c.0.s8 %v2877
        %v2879 = vlaneseq
        %v2880 = vshrl.u32 %v2879, 7
        %v2881 = vsub.s32 %v2878, %v2880
        %v2882 = vrot.slane %v2868, %v2881
        %v2883 = vcombine.low %v2818, %v2834
        %v2884 = vcombine.high %v2818, %v2834
        %v2886 = vunpack.c.l.s4 1934713408
        %v2887 = vunpack.c.0.s8 %v2886
        %v2888 = vlaneseq
        %v2889 = vshrl.u32 %v2888, 7
        %v2890 = vsub.s32 %v2887, %v2889
        %v2891 = vrot.slane %v2883, %v2890
        %v2893 = vunpack.c.l.s4 1934713408
        %v2894 = vunpack.c.0.s8 %v2893
        %v2895 = vlaneseq
        %v2896 = vshrl.u32 %v2895, 7
        %v2897 = vsub.s32 %v2894, %v2896
        %v2898 = vrot.slane %v2884, %v2897
        %v2899 = vcombine.low %v2843, %v2859
        %v2900 = vcombine.high %v2843, %v2859
        %v2902 = vunpack.c.l.s4 1934713408
        %v2903 = vunpack.c.0.s8 %v2902
        %v2904 = vlaneseq
        %v2905 = vshrl.u32 %v2904, 7
        %v2906 = vsub.s32 %v2903, %v2905
        %v2907 = vrot.slane %v2899, %v2906
        %v2909 = vunpack.c.l.s4 1934713408
        %v2910 = vunpack.c.0.s8 %v2909
        %v2911 = vlaneseq
        %v2912 = vshrl.u32 %v2911, 7
        %v2913 = vsub.s32 %v2910, %v2912
        %v2914 = vrot.slane %v2900, %v2913
        %v2915 = vcombine.low %v2850, %v2866
        %v2916 = vcombine.high %v2850, %v2866
        %v2918 = vunpack.c.l.s4 1934713408
        %v2919 = vunpack.c.0.s8 %v2918
        %v2920 = vlaneseq
        %v2921 = vshrl.u32 %v2920, 7
        %v2922 = vsub.s32 %v2919, %v2921
        %v2923 = vrot.slane %v2915, %v2922
        %v2925 = vunpack.c.l.s4 1934713408
        %v2926 = vunpack.c.0.s8 %v2925
        %v2927 = vlaneseq
        %v2928 = vshrl.u32 %v2927, 7
        %v2929 = vsub.s32 %v2926, %v2928
        %v2930 = vrot.slane %v2916, %v2929
        %v2931 = vcombine.low %v2875, %v2907
        %v2932 = vcombine.high %v2875, %v2907
        %v2933 = vcombine.low %v2882, %v2914
        %v2934 = vcombine.high %v2882, %v2914
        %v2935 = vcombine.low %v2891, %v2923
        %v2936 = vcombine.high %v2891, %v2923
        %v2937 = vcombine.low %v2898, %v2930
        %v2938 = vcombine.high %v2898, %v2930
        %v2939 = vcombine.low %v2523, %v2525
        %v2940 = vcombine.high %v2523, %v2525
        %v2942 = vunpack.c.l.s4 1983009808
        %v2943 = vunpack.c.0.s8 %v2942
        %v2944 = vlaneseq
        %v2945 = vshrl.u32 %v2944, 7
        %v2946 = vsub.s32 %v2943, %v2945
        %v2947 = vrot.slane %v2939, %v2946
        %v2949 = vunpack.c.l.s4 1983009808
        %v2950 = vunpack.c.0.s8 %v2949
        %v2951 = vlaneseq
        %v2952 = vshrl.u32 %v2951, 7
        %v2953 = vsub.s32 %v2950, %v2952
        %v2954 = vrot.slane %v2940, %v2953
        %v2955 = vcombine.low %v2524, %v2526
        %v2956 = vcombine.high %v2524, %v2526
        %v2958 = vunpack.c.l.s4 1983009808
        %v2959 = vunpack.c.0.s8 %v2958
        %v2960 = vlaneseq
        %v2961 = vshrl.u32 %v2960, 7
        %v2962 = vsub.s32 %v2959, %v2961
        %v2963 = vrot.slane %v2955, %v2962
        %v2965 = vunpack.c.l.s4 1983009808
        %v2966 = vunpack.c.0.s8 %v2965
        %v2967 = vlaneseq
        %v2968 = vshrl.u32 %v2967, 7
        %v2969 = vsub.s32 %v2966, %v2968
        %v2970 = vrot.slane %v2956, %v2969
        %v2971 = vcombine.low %v2527, %v2529
        %v2972 = vcombine.high %v2527, %v2529
        %v2974 = vunpack.c.l.s4 1983009808
        %v2975 = vunpack.c.0.s8 %v2974
        %v2976 = vlaneseq
        %v2977 = vshrl.u32 %v2976, 7
        %v2978 = vsub.s32 %v2975, %v2977
        %v2979 = vrot.slane %v2971, %v2978
        %v2981 = vunpack.c.l.s4 1983009808
        %v2982 = vunpack.c.0.s8 %v2981
        %v2983 = vlaneseq
        %v2984 = vshrl.u32 %v2983, 7
        %v2985 = vsub.s32 %v2982, %v2984
        %v2986 = vrot.slane %v2972, %v2985
        %v2987 = vcombine.low %v2528, %v2530
        %v2988 = vcombine.high %v2528, %v2530
        %v2990 = vunpack.c.l.s4 1983009808
        %v2991 = vunpack.c.0.s8 %v2990
        %v2992 = vlaneseq
        %v2993 = vshrl.u32 %v2992, 7
        %v2994 = vsub.s32 %v2991, %v2993
        %v2995 = vrot.slane %v2987, %v2994
        %v2997 = vunpack.c.l.s4 1983009808
        %v2998 = vunpack.c.0.s8 %v2997
        %v2999 = vlaneseq
        %v3000 = vshrl.u32 %v2999, 7
        %v3001 = vsub.s32 %v2998, %v3000
        %v3002 = vrot.slane %v2988, %v3001
        %v3003 = vcombine.low %v2947, %v2963
        %v3004 = vcombine.high %v2947, %v2963
        %v3006 = vunpack.c.l.s4 1934713408
        %v3007 = vunpack.c.0.s8 %v3006
        %v3008 = vlaneseq
        %v3009 = vshrl.u32 %v3008, 7
        %v3010 = vsub.s32 %v3007, %v3009
        %v3011 = vrot.slane %v3003, %v3010
        %v3013 = vunpack.c.l.s4 1934713408
        %v3014 = vunpack.c.0.s8 %v3013
        %v3015 = vlaneseq
        %v3016 = vshrl.u32 %v3015, 7
        %v3017 = vsub.s32 %v3014, %v3016
        %v3018 = vrot.slane %v3004, %v3017
        %v3019 = vcombine.low %v2954, %v2970
        %v3020 = vcombine.high %v2954, %v2970
        %v3022 = vunpack.c.l.s4 1934713408
        %v3023 = vunpack.c.0.s8 %v3022
        %v3024 = vlaneseq
        %v3025 = vshrl.u32 %v3024, 7
        %v3026 = vsub.s32 %v3023, %v3025
        %v3027 = vrot.slane %v3019, %v3026
        %v3029 = vunpack.c.l.s4 1934713408
        %v3030 = vunpack.c.0.s8 %v3029
        %v3031 = vlaneseq
        %v3032 = vshrl.u32 %v3031, 7
        %v3033 = vsub.s32 %v3030, %v3032
        %v3034 = vrot.slane %v3020, %v3033
        %v3035 = vcombine.low %v2979, %v2995
        %v3036 = vcombine.high %v2979, %v2995
        %v3038 = vunpack.c.l.s4 1934713408
        %v3039 = vunpack.c.0.s8 %v3038
        %v3040 = vlaneseq
        %v3041 = vshrl.u32 %v3040, 7
        %v3042 = vsub.s32 %v3039, %v3041
        %v3043 = vrot.slane %v3035, %v3042
        %v3045 = vunpack.c.l.s4 1934713408
        %v3046 = vunpack.c.0.s8 %v3045
        %v3047 = vlaneseq
        %v3048 = vshrl.u32 %v3047, 7
        %v3049 = vsub.s32 %v3046, %v3048
        %v3050 = vrot.slane %v3036, %v3049
        %v3051 = vcombine.low %v2986, %v3002
        %v3052 = vcombine.high %v2986, %v3002
        %v3054 = vunpack.c.l.s4 1934713408
        %v3055 = vunpack.c.0.s8 %v3054
        %v3056 = vlaneseq
        %v3057 = vshrl.u32 %v3056, 7
        %v3058 = vsub.s32 %v3055, %v3057
        %v3059 = vrot.slane %v3051, %v3058
        %v3061 = vunpack.c.l.s4 1934713408
        %v3062 = vunpack.c.0.s8 %v3061
        %v3063 = vlaneseq
        %v3064 = vshrl.u32 %v3063, 7
        %v3065 = vsub.s32 %v3062, %v3064
        %v3066 = vrot.slane %v3052, %v3065
        %v3067 = vcombine.low %v3011, %v3043
        %v3068 = vcombine.high %v3011, %v3043
        %v3069 = vcombine.low %v3018, %v3050
        %v3070 = vcombine.high %v3018, %v3050
        %v3071 = vcombine.low %v3027, %v3059
        %v3072 = vcombine.high %v3027, %v3059
        %v3073 = vcombine.low %v3034, %v3066
        %v3074 = vcombine.high %v3034, %v3066
        %v3075 = vcombine.low %v2659, %v2661
        %v3076 = vcombine.high %v2659, %v2661
        %v3078 = vunpack.c.l.s4 1983009808
        %v3079 = vunpack.c.0.s8 %v3078
        %v3080 = vlaneseq
        %v3081 = vshrl.u32 %v3080, 7
        %v3082 = vsub.s32 %v3079, %v3081
        %v3083 = vrot.slane %v3075, %v3082
        %v3085 = vunpack.c.l.s4 1983009808
        %v3086 = vunpack.c.0.s8 %v3085
        %v3087 = vlaneseq
        %v3088 = vshrl.u32 %v3087, 7
        %v3089 = vsub.s32 %v3086, %v3088
        %v3090 = vrot.slane %v3076, %v3089
        %v3091 = vcombine.low %v2660, %v2662
        %v3092 = vcombine.high %v2660, %v2662
        %v3094 = vunpack.c.l.s4 1983009808
        %v3095 = vunpack.c.0.s8 %v3094
        %v3096 = vlaneseq
        %v3097 = vshrl.u32 %v3096, 7
        %v3098 = vsub.s32 %v3095, %v3097
        %v3099 = vrot.slane %v3091, %v3098
        %v3101 = vunpack.c.l.s4 1983009808
        %v3102 = vunpack.c.0.s8 %v3101
        %v3103 = vlaneseq
        %v3104 = vshrl.u32 %v3103, 7
        %v3105 = vsub.s32 %v3102, %v3104
        %v3106 = vrot.slane %v3092, %v3105
        %v3107 = vcombine.low %v2663, %v2665
        %v3108 = vcombine.high %v2663, %v2665
        %v3110 = vunpack.c.l.s4 1983009808
        %v3111 = vunpack.c.0.s8 %v3110
        %v3112 = vlaneseq
        %v3113 = vshrl.u32 %v3112, 7
        %v3114 = vsub.s32 %v3111, %v3113
        %v3115 = vrot.slane %v3107, %v3114
        %v3117 = vunpack.c.l.s4 1983009808
        %v3118 = vunpack.c.0.s8 %v3117
        %v3119 = vlaneseq
        %v3120 = vshrl.u32 %v3119, 7
        %v3121 = vsub.s32 %v3118, %v3120
        %v3122 = vrot.slane %v3108, %v3121
        %v3123 = vcombine.low %v2664, %v2666
        %v3124 = vcombine.high %v2664, %v2666
        %v3126 = vunpack.c.l.s4 1983009808
        %v3127 = vunpack.c.0.s8 %v3126
        %v3128 = vlaneseq
        %v3129 = vshrl.u32 %v3128, 7
        %v3130 = vsub.s32 %v3127, %v3129
        %v3131 = vrot.slane %v3123, %v3130
        %v3133 = vunpack.c.l.s4 1983009808
        %v3134 = vunpack.c.0.s8 %v3133
        %v3135 = vlaneseq
        %v3136 = vshrl.u32 %v3135, 7
        %v3137 = vsub.s32 %v3134, %v3136
        %v3138 = vrot.slane %v3124, %v3137
        %v3139 = vcombine.low %v3083, %v3099
        %v3140 = vcombine.high %v3083, %v3099
        %v3142 = vunpack.c.l.s4 1934713408
        %v3143 = vunpack.c.0.s8 %v3142
        %v3144 = vlaneseq
        %v3145 = vshrl.u32 %v3144, 7
        %v3146 = vsub.s32 %v3143, %v3145
        %v3147 = vrot.slane %v3139, %v3146
        %v3149 = vunpack.c.l.s4 1934713408
        %v3150 = vunpack.c.0.s8 %v3149
        %v3151 = vlaneseq
        %v3152 = vshrl.u32 %v3151, 7
        %v3153 = vsub.s32 %v3150, %v3152
        %v3154 = vrot.slane %v3140, %v3153
        %v3155 = vcombine.low %v3090, %v3106
        %v3156 = vcombine.high %v3090, %v3106
        %v3158 = vunpack.c.l.s4 1934713408
        %v3159 = vunpack.c.0.s8 %v3158
        %v3160 = vlaneseq
        %v3161 = vshrl.u32 %v3160, 7
        %v3162 = vsub.s32 %v3159, %v3161
        %v3163 = vrot.slane %v3155, %v3162
        %v3165 = vunpack.c.l.s4 1934713408
        %v3166 = vunpack.c.0.s8 %v3165
        %v3167 = vlaneseq
        %v3168 = vshrl.u32 %v3167, 7
        %v3169 = vsub.s32 %v3166, %v3168
        %v3170 = vrot.slane %v3156, %v3169
        %v3171 = vcombine.low %v3115, %v3131
        %v3172 = vcombine.high %v3115, %v3131
        %v3174 = vunpack.c.l.s4 1934713408
        %v3175 = vunpack.c.0.s8 %v3174
        %v3176 = vlaneseq
        %v3177 = vshrl.u32 %v3176, 7
        %v3178 = vsub.s32 %v3175, %v3177
        %v3179 = vrot.slane %v3171, %v3178
        %v3181 = vunpack.c.l.s4 1934713408
        %v3182 = vunpack.c.0.s8 %v3181
        %v3183 = vlaneseq
        %v3184 = vshrl.u32 %v3183, 7
        %v3185 = vsub.s32 %v3182, %v3184
        %v3186 = vrot.slane %v3172, %v3185
        %v3187 = vcombine.low %v3122, %v3138
        %v3188 = vcombine.high %v3122, %v3138
        %v3190 = vunpack.c.l.s4 1934713408
        %v3191 = vunpack.c.0.s8 %v3190
        %v3192 = vlaneseq
        %v3193 = vshrl.u32 %v3192, 7
        %v3194 = vsub.s32 %v3191, %v3193
        %v3195 = vrot.slane %v3187, %v3194
        %v3197 = vunpack.c.l.s4 1934713408
        %v3198 = vunpack.c.0.s8 %v3197
        %v3199 = vlaneseq
        %v3200 = vshrl.u32 %v3199, 7
        %v3201 = vsub.s32 %v3198, %v3200
        %v3202 = vrot.slane %v3188, %v3201
        %v3203 = vcombine.low %v3147, %v3179
        %v3204 = vcombine.high %v3147, %v3179
        %v3205 = vcombine.low %v3154, %v3186
        %v3206 = vcombine.high %v3154, %v3186
        %v3207 = vcombine.low %v3163, %v3195
        %v3208 = vcombine.high %v3163, %v3195
        %v3209 = vcombine.low %v3170, %v3202
        %v3210 = vcombine.high %v3170, %v3202
        %v3211 = vcombine.low %v2795, %v2797
        %v3212 = vcombine.high %v2795, %v2797
        %v3214 = vunpack.c.l.s4 1983009808
        %v3215 = vunpack.c.0.s8 %v3214
        %v3216 = vlaneseq
        %v3217 = vshrl.u32 %v3216, 7
        %v3218 = vsub.s32 %v3215, %v3217
        %v3219 = vrot.slane %v3211, %v3218
        %v3221 = vunpack.c.l.s4 1983009808
        %v3222 = vunpack.c.0.s8 %v3221
        %v3223 = vlaneseq
        %v3224 = vshrl.u32 %v3223, 7
        %v3225 = vsub.s32 %v3222, %v3224
        %v3226 = vrot.slane %v3212, %v3225
        %v3227 = vcombine.low %v2796, %v2798
        %v3228 = vcombine.high %v2796, %v2798
        %v3230 = vunpack.c.l.s4 1983009808
        %v3231 = vunpack.c.0.s8 %v3230
        %v3232 = vlaneseq
        %v3233 = vshrl.u32 %v3232, 7
        %v3234 = vsub.s32 %v3231, %v3233
        %v3235 = vrot.slane %v3227, %v3234
        %v3237 = vunpack.c.l.s4 1983009808
        %v3238 = vunpack.c.0.s8 %v3237
        %v3239 = vlaneseq
        %v3240 = vshrl.u32 %v3239, 7
        %v3241 = vsub.s32 %v3238, %v3240
        %v3242 = vrot.slane %v3228, %v3241
        %v3243 = vcombine.low %v2799, %v2801
        %v3244 = vcombine.high %v2799, %v2801
        %v3246 = vunpack.c.l.s4 1983009808
        %v3247 = vunpack.c.0.s8 %v3246
        %v3248 = vlaneseq
        %v3249 = vshrl.u32 %v3248, 7
        %v3250 = vsub.s32 %v3247, %v3249
        %v3251 = vrot.slane %v3243, %v3250
        %v3253 = vunpack.c.l.s4 1983009808
        %v3254 = vunpack.c.0.s8 %v3253
        %v3255 = vlaneseq
        %v3256 = vshrl.u32 %v3255, 7
        %v3257 = vsub.s32 %v3254, %v3256
        %v3258 = vrot.slane %v3244, %v3257
        %v3259 = vcombine.low %v2800, %v2802
        %v3260 = vcombine.high %v2800, %v2802
        %v3262 = vunpack.c.l.s4 1983009808
        %v3263 = vunpack.c.0.s8 %v3262
        %v3264 = vlaneseq
        %v3265 = vshrl.u32 %v3264, 7
        %v3266 = vsub.s32 %v3263, %v3265
        %v3267 = vrot.slane %v3259, %v3266
        %v3269 = vunpack.c.l.s4 1983009808
        %v3270 = vunpack.c.0.s8 %v3269
        %v3271 = vlaneseq
        %v3272 = vshrl.u32 %v3271, 7
        %v3273 = vsub.s32 %v3270, %v3272
        %v3274 = vrot.slane %v3260, %v3273
        %v3275 = vcombine.low %v3219, %v3235
        %v3276 = vcombine.high %v3219, %v3235
        %v3278 = vunpack.c.l.s4 1934713408
        %v3279 = vunpack.c.0.s8 %v3278
        %v3280 = vlaneseq
        %v3281 = vshrl.u32 %v3280, 7
        %v3282 = vsub.s32 %v3279, %v3281
        %v3283 = vrot.slane %v3275, %v3282
        %v3285 = vunpack.c.l.s4 1934713408
        %v3286 = vunpack.c.0.s8 %v3285
        %v3287 = vlaneseq
        %v3288 = vshrl.u32 %v3287, 7
        %v3289 = vsub.s32 %v3286, %v3288
        %v3290 = vrot.slane %v3276, %v3289
        %v3291 = vcombine.low %v3226, %v3242
        %v3292 = vcombine.high %v3226, %v3242
        %v3294 = vunpack.c.l.s4 1934713408
        %v3295 = vunpack.c.0.s8 %v3294
        %v3296 = vlaneseq
        %v3297 = vshrl.u32 %v3296, 7
        %v3298 = vsub.s32 %v3295, %v3297
        %v3299 = vrot.slane %v3291, %v3298
        %v3301 = vunpack.c.l.s4 1934713408
        %v3302 = vunpack.c.0.s8 %v3301
        %v3303 = vlaneseq
        %v3304 = vshrl.u32 %v3303, 7
        %v3305 = vsub.s32 %v3302, %v3304
        %v3306 = vrot.slane %v3292, %v3305
        %v3307 = vcombine.low %v3251, %v3267
        %v3308 = vcombine.high %v3251, %v3267
        %v3310 = vunpack.c.l.s4 1934713408
        %v3311 = vunpack.c.0.s8 %v3310
        %v3312 = vlaneseq
        %v3313 = vshrl.u32 %v3312, 7
        %v3314 = vsub.s32 %v3311, %v3313
        %v3315 = vrot.slane %v3307, %v3314
        %v3317 = vunpack.c.l.s4 1934713408
        %v3318 = vunpack.c.0.s8 %v3317
        %v3319 = vlaneseq
        %v3320 = vshrl.u32 %v3319, 7
        %v3321 = vsub.s32 %v3318, %v3320
        %v3322 = vrot.slane %v3308, %v3321
        %v3323 = vcombine.low %v3258, %v3274
        %v3324 = vcombine.high %v3258, %v3274
        %v3326 = vunpack.c.l.s4 1934713408
        %v3327 = vunpack.c.0.s8 %v3326
        %v3328 = vlaneseq
        %v3329 = vshrl.u32 %v3328, 7
        %v3330 = vsub.s32 %v3327, %v3329
        %v3331 = vrot.slane %v3323, %v3330
        %v3333 = vunpack.c.l.s4 1934713408
        %v3334 = vunpack.c.0.s8 %v3333
        %v3335 = vlaneseq
        %v3336 = vshrl.u32 %v3335, 7
        %v3337 = vsub.s32 %v3334, %v3336
        %v3338 = vrot.slane %v3324, %v3337
        %v3339 = vcombine.low %v3283, %v3315
        %v3340 = vcombine.high %v3283, %v3315
        %v3341 = vcombine.low %v3290, %v3322
        %v3342 = vcombine.high %v3290, %v3322
        %v3343 = vcombine.low %v3299, %v3331
        %v3344 = vcombine.high %v3299, %v3331
        %v3345 = vcombine.low %v3306, %v3338
        %v3346 = vcombine.high %v3306, %v3338
        %v3347 = vcombine.low %v2931, %v2933
        %v3348 = vcombine.high %v2931, %v2933
        %v3350 = vunpack.c.l.s4 1983009808
        %v3351 = vunpack.c.0.s8 %v3350
        %v3352 = vlaneseq
        %v3353 = vshrl.u32 %v3352, 7
        %v3354 = vsub.s32 %v3351, %v3353
        %v3355 = vrot.slane %v3347, %v3354
        %v3357 = vunpack.c.l.s4 1983009808
        %v3358 = vunpack.c.0.s8 %v3357
        %v3359 = vlaneseq
        %v3360 = vshrl.u32 %v3359, 7
        %v3361 = vsub.s32 %v3358, %v3360
        %v3362 = vrot.slane %v3348, %v3361
        %v3363 = vcombine.low %v2932, %v2934
        %v3364 = vcombine.high %v2932, %v2934
        %v3366 = vunpack.c.l.s4 1983009808
        %v3367 = vunpack.c.0.s8 %v3366
        %v3368 = vlaneseq
        %v3369 = vshrl.u32 %v3368, 7
        %v3370 = vsub.s32 %v3367, %v3369
        %v3371 = vrot.slane %v3363, %v3370
        %v3373 = vunpack.c.l.s4 1983009808
        %v3374 = vunpack.c.0.s8 %v3373
        %v3375 = vlaneseq
        %v3376 = vshrl.u32 %v3375, 7
        %v3377 = vsub.s32 %v3374, %v3376
        %v3378 = vrot.slane %v3364, %v3377
        %v3379 = vcombine.low %v2935, %v2937
        %v3380 = vcombine.high %v2935, %v2937
        %v3382 = vunpack.c.l.s4 1983009808
        %v3383 = vunpack.c.0.s8 %v3382
        %v3384 = vlaneseq
        %v3385 = vshrl.u32 %v3384, 7
        %v3386 = vsub.s32 %v3383, %v3385
        %v3387 = vrot.slane %v3379, %v3386
        %v3389 = vunpack.c.l.s4 1983009808
        %v3390 = vunpack.c.0.s8 %v3389
        %v3391 = vlaneseq
        %v3392 = vshrl.u32 %v3391, 7
        %v3393 = vsub.s32 %v3390, %v3392
        %v3394 = vrot.slane %v3380, %v3393
        %v3395 = vcombine.low %v2936, %v2938
        %v3396 = vcombine.high %v2936, %v2938
        %v3398 = vunpack.c.l.s4 1983009808
        %v3399 = vunpack.c.0.s8 %v3398
        %v3400 = vlaneseq
        %v3401 = vshrl.u32 %v3400, 7
        %v3402 = vsub.s32 %v3399, %v3401
        %v3403 = vrot.slane %v3395, %v3402
        %v3405 = vunpack.c.l.s4 1983009808
        %v3406 = vunpack.c.0.s8 %v3405
        %v3407 = vlaneseq
        %v3408 = vshrl.u32 %v3407, 7
        %v3409 = vsub.s32 %v3406, %v3408
        %v3410 = vrot.slane %v3396, %v3409
        %v3411 = vcombine.low %v3355, %v3371
        %v3412 = vcombine.high %v3355, %v3371
        %v3414 = vunpack.c.l.s4 1934713408
        %v3415 = vunpack.c.0.s8 %v3414
        %v3416 = vlaneseq
        %v3417 = vshrl.u32 %v3416, 7
        %v3418 = vsub.s32 %v3415, %v3417
        %v3419 = vrot.slane %v3411, %v3418
        %v3421 = vunpack.c.l.s4 1934713408
        %v3422 = vunpack.c.0.s8 %v3421
        %v3423 = vlaneseq
        %v3424 = vshrl.u32 %v3423, 7
        %v3425 = vsub.s32 %v3422, %v3424
        %v3426 = vrot.slane %v3412, %v3425
        %v3427 = vcombine.low %v3362, %v3378
        %v3428 = vcombine.high %v3362, %v3378
        %v3430 = vunpack.c.l.s4 1934713408
        %v3431 = vunpack.c.0.s8 %v3430
        %v3432 = vlaneseq
        %v3433 = vshrl.u32 %v3432, 7
        %v3434 = vsub.s32 %v3431, %v3433
        %v3435 = vrot.slane %v3427, %v3434
        %v3437 = vunpack.c.l.s4 1934713408
        %v3438 = vunpack.c.0.s8 %v3437
        %v3439 = vlaneseq
        %v3440 = vshrl.u32 %v3439, 7
        %v3441 = vsub.s32 %v3438, %v3440
        %v3442 = vrot.slane %v3428, %v3441
        %v3443 = vcombine.low %v3387, %v3403
        %v3444 = vcombine.high %v3387, %v3403
        %v3446 = vunpack.c.l.s4 1934713408
        %v3447 = vunpack.c.0.s8 %v3446
        %v3448 = vlaneseq
        %v3449 = vshrl.u32 %v3448, 7
        %v3450 = vsub.s32 %v3447, %v3449
        %v3451 = vrot.slane %v3443, %v3450
        %v3453 = vunpack.c.l.s4 1934713408
        %v3454 = vunpack.c.0.s8 %v3453
        %v3455 = vlaneseq
        %v3456 = vshrl.u32 %v3455, 7
        %v3457 = vsub.s32 %v3454, %v3456
        %v3458 = vrot.slane %v3444, %v3457
        %v3459 = vcombine.low %v3394, %v3410
        %v3460 = vcombine.high %v3394, %v3410
        %v3462 = vunpack.c.l.s4 1934713408
        %v3463 = vunpack.c.0.s8 %v3462
        %v3464 = vlaneseq
        %v3465 = vshrl.u32 %v3464, 7
        %v3466 = vsub.s32 %v3463, %v3465
        %v3467 = vrot.slane %v3459, %v3466
        %v3469 = vunpack.c.l.s4 1934713408
        %v3470 = vunpack.c.0.s8 %v3469
        %v3471 = vlaneseq
        %v3472 = vshrl.u32 %v3471, 7
        %v3473 = vsub.s32 %v3470, %v3472
        %v3474 = vrot.slane %v3460, %v3473
        %v3475 = vcombine.low %v3419, %v3451
        %v3476 = vcombine.high %v3419, %v3451
        %v3477 = vcombine.low %v3426, %v3458
        %v3478 = vcombine.high %v3426, %v3458
        %v3479 = vcombine.low %v3435, %v3467
        %v3480 = vcombine.high %v3435, %v3467
        %v3481 = vcombine.low %v3442, %v3474
        %v3482 = vcombine.high %v3442, %v3474
        %3487 = vrot.lane.b32.xlu0 %v1117, 112
        %v3488 = vpop.permute.xlu0 %3487
        %3489 = vrot.lane.b32.xlu0 %v1120, 112
        %v3490 = vpop.permute.xlu0 %3489
        %3491 = vrot.lane.b32.xlu0 %v1125, 112
        %v3492 = vpop.permute.xlu0 %3491
        %3493 = vrot.lane.b32.xlu0 %v1128, 112
        %v3494 = vpop.permute.xlu0 %3493
        %3499 = vrot.lane.b32.xlu0 %v1117, 96
        %v3500 = vpop.permute.xlu0 %3499
        %3501 = vrot.lane.b32.xlu0 %v1120, 96
        %v3502 = vpop.permute.xlu0 %3501
        %3503 = vrot.lane.b32.xlu0 %v1125, 96
        %v3504 = vpop.permute.xlu0 %3503
        %3505 = vrot.lane.b32.xlu0 %v1128, 96
        %v3506 = vpop.permute.xlu0 %3505
        %3511 = vrot.lane.b32.xlu0 %v1117, 80
        %v3512 = vpop.permute.xlu0 %3511
        %3513 = vrot.lane.b32.xlu0 %v1120, 80
        %v3514 = vpop.permute.xlu0 %3513
        %3515 = vrot.lane.b32.xlu0 %v1125, 80
        %v3516 = vpop.permute.xlu0 %3515
        %3517 = vrot.lane.b32.xlu0 %v1128, 80
        %v3518 = vpop.permute.xlu0 %3517
        %3523 = vrot.lane.b32.xlu0 %v1117, 64
        %v3524 = vpop.permute.xlu0 %3523
        %3525 = vrot.lane.b32.xlu0 %v1120, 64
        %v3526 = vpop.permute.xlu0 %3525
        %3527 = vrot.lane.b32.xlu0 %v1125, 64
        %v3528 = vpop.permute.xlu0 %3527
        %3529 = vrot.lane.b32.xlu0 %v1128, 64
        %v3530 = vpop.permute.xlu0 %3529
        %3535 = vrot.lane.b32.xlu0 %v1117, 48
        %v3536 = vpop.permute.xlu0 %3535
        %3537 = vrot.lane.b32.xlu0 %v1120, 48
        %v3538 = vpop.permute.xlu0 %3537
        %3539 = vrot.lane.b32.xlu0 %v1125, 48
        %v3540 = vpop.permute.xlu0 %3539
        %3541 = vrot.lane.b32.xlu0 %v1128, 48
        %v3542 = vpop.permute.xlu0 %3541
        %3547 = vrot.lane.b32.xlu0 %v1117, 32
        %v3548 = vpop.permute.xlu0 %3547
        %3549 = vrot.lane.b32.xlu0 %v1120, 32
        %v3550 = vpop.permute.xlu0 %3549
        %3551 = vrot.lane.b32.xlu0 %v1125, 32
        %v3552 = vpop.permute.xlu0 %3551
        %3553 = vrot.lane.b32.xlu0 %v1128, 32
        %v3554 = vpop.permute.xlu0 %3553
        %3559 = vrot.lane.b32.xlu0 %v1117, 16
        %v3560 = vpop.permute.xlu0 %3559
        %3561 = vrot.lane.b32.xlu0 %v1120, 16
        %v3562 = vpop.permute.xlu0 %3561
        %3563 = vrot.lane.b32.xlu0 %v1125, 16
        %v3564 = vpop.permute.xlu0 %3563
        %3565 = vrot.lane.b32.xlu0 %v1128, 16
        %v3566 = vpop.permute.xlu0 %3565
        %v3571 = vcombine.low %v1117, %v3500
        %v3572 = vcombine.high %v1117, %v3500
        %v3574 = vunpack.c.l.s4 1983009808
        %v3575 = vunpack.c.0.s8 %v3574
        %v3576 = vlaneseq
        %v3577 = vshrl.u32 %v3576, 7
        %v3578 = vsub.s32 %v3575, %v3577
        %v3579 = vrot.slane %v3571, %v3578
        %v3581 = vunpack.c.l.s4 1983009808
        %v3582 = vunpack.c.0.s8 %v3581
        %v3583 = vlaneseq
        %v3584 = vshrl.u32 %v3583, 7
        %v3585 = vsub.s32 %v3582, %v3584
        %v3586 = vrot.slane %v3572, %v3585
        %v3587 = vcombine.low %v3488, %v3512
        %v3588 = vcombine.high %v3488, %v3512
        %v3590 = vunpack.c.l.s4 1983009808
        %v3591 = vunpack.c.0.s8 %v3590
        %v3592 = vlaneseq
        %v3593 = vshrl.u32 %v3592, 7
        %v3594 = vsub.s32 %v3591, %v3593
        %v3595 = vrot.slane %v3587, %v3594
        %v3597 = vunpack.c.l.s4 1983009808
        %v3598 = vunpack.c.0.s8 %v3597
        %v3599 = vlaneseq
        %v3600 = vshrl.u32 %v3599, 7
        %v3601 = vsub.s32 %v3598, %v3600
        %v3602 = vrot.slane %v3588, %v3601
        %v3603 = vcombine.low %v3524, %v3548
        %v3604 = vcombine.high %v3524, %v3548
        %v3606 = vunpack.c.l.s4 1983009808
        %v3607 = vunpack.c.0.s8 %v3606
        %v3608 = vlaneseq
        %v3609 = vshrl.u32 %v3608, 7
        %v3610 = vsub.s32 %v3607, %v3609
        %v3611 = vrot.slane %v3603, %v3610
        %v3613 = vunpack.c.l.s4 1983009808
        %v3614 = vunpack.c.0.s8 %v3613
        %v3615 = vlaneseq
        %v3616 = vshrl.u32 %v3615, 7
        %v3617 = vsub.s32 %v3614, %v3616
        %v3618 = vrot.slane %v3604, %v3617
        %v3619 = vcombine.low %v3536, %v3560
        %v3620 = vcombine.high %v3536, %v3560
        %v3622 = vunpack.c.l.s4 1983009808
        %v3623 = vunpack.c.0.s8 %v3622
        %v3624 = vlaneseq
        %v3625 = vshrl.u32 %v3624, 7
        %v3626 = vsub.s32 %v3623, %v3625
        %v3627 = vrot.slane %v3619, %v3626
        %v3629 = vunpack.c.l.s4 1983009808
        %v3630 = vunpack.c.0.s8 %v3629
        %v3631 = vlaneseq
        %v3632 = vshrl.u32 %v3631, 7
        %v3633 = vsub.s32 %v3630, %v3632
        %v3634 = vrot.slane %v3620, %v3633
        %v3635 = vcombine.low %v3579, %v3595
        %v3636 = vcombine.high %v3579, %v3595
        %v3638 = vunpack.c.l.s4 1934713408
        %v3639 = vunpack.c.0.s8 %v3638
        %v3640 = vlaneseq
        %v3641 = vshrl.u32 %v3640, 7
        %v3642 = vsub.s32 %v3639, %v3641
        %v3643 = vrot.slane %v3635, %v3642
        %v3645 = vunpack.c.l.s4 1934713408
        %v3646 = vunpack.c.0.s8 %v3645
        %v3647 = vlaneseq
        %v3648 = vshrl.u32 %v3647, 7
        %v3649 = vsub.s32 %v3646, %v3648
        %v3650 = vrot.slane %v3636, %v3649
        %v3651 = vcombine.low %v3586, %v3602
        %v3652 = vcombine.high %v3586, %v3602
        %v3654 = vunpack.c.l.s4 1934713408
        %v3655 = vunpack.c.0.s8 %v3654
        %v3656 = vlaneseq
        %v3657 = vshrl.u32 %v3656, 7
        %v3658 = vsub.s32 %v3655, %v3657
        %v3659 = vrot.slane %v3651, %v3658
        %v3661 = vunpack.c.l.s4 1934713408
        %v3662 = vunpack.c.0.s8 %v3661
        %v3663 = vlaneseq
        %v3664 = vshrl.u32 %v3663, 7
        %v3665 = vsub.s32 %v3662, %v3664
        %v3666 = vrot.slane %v3652, %v3665
        %v3667 = vcombine.low %v3611, %v3627
        %v3668 = vcombine.high %v3611, %v3627
        %v3670 = vunpack.c.l.s4 1934713408
        %v3671 = vunpack.c.0.s8 %v3670
        %v3672 = vlaneseq
        %v3673 = vshrl.u32 %v3672, 7
        %v3674 = vsub.s32 %v3671, %v3673
        %v3675 = vrot.slane %v3667, %v3674
        %v3677 = vunpack.c.l.s4 1934713408
        %v3678 = vunpack.c.0.s8 %v3677
        %v3679 = vlaneseq
        %v3680 = vshrl.u32 %v3679, 7
        %v3681 = vsub.s32 %v3678, %v3680
        %v3682 = vrot.slane %v3668, %v3681
        %v3683 = vcombine.low %v3618, %v3634
        %v3684 = vcombine.high %v3618, %v3634
        %v3686 = vunpack.c.l.s4 1934713408
        %v3687 = vunpack.c.0.s8 %v3686
        %v3688 = vlaneseq
        %v3689 = vshrl.u32 %v3688, 7
        %v3690 = vsub.s32 %v3687, %v3689
        %v3691 = vrot.slane %v3683, %v3690
        %v3693 = vunpack.c.l.s4 1934713408
        %v3694 = vunpack.c.0.s8 %v3693
        %v3695 = vlaneseq
        %v3696 = vshrl.u32 %v3695, 7
        %v3697 = vsub.s32 %v3694, %v3696
        %v3698 = vrot.slane %v3684, %v3697
        %v3699 = vcombine.low %v3643, %v3675
        %v3700 = vcombine.high %v3643, %v3675
        %v3701 = vcombine.low %v3650, %v3682
        %v3702 = vcombine.high %v3650, %v3682
        %v3703 = vcombine.low %v3659, %v3691
        %v3704 = vcombine.high %v3659, %v3691
        %v3705 = vcombine.low %v3666, %v3698
        %v3706 = vcombine.high %v3666, %v3698
        %v3707 = vcombine.low %v1120, %v3502
        %v3708 = vcombine.high %v1120, %v3502
        %v3710 = vunpack.c.l.s4 1983009808
        %v3711 = vunpack.c.0.s8 %v3710
        %v3712 = vlaneseq
        %v3713 = vshrl.u32 %v3712, 7
        %v3714 = vsub.s32 %v3711, %v3713
        %v3715 = vrot.slane %v3707, %v3714
        %v3717 = vunpack.c.l.s4 1983009808
        %v3718 = vunpack.c.0.s8 %v3717
        %v3719 = vlaneseq
        %v3720 = vshrl.u32 %v3719, 7
        %v3721 = vsub.s32 %v3718, %v3720
        %v3722 = vrot.slane %v3708, %v3721
        %v3723 = vcombine.low %v3490, %v3514
        %v3724 = vcombine.high %v3490, %v3514
        %v3726 = vunpack.c.l.s4 1983009808
        %v3727 = vunpack.c.0.s8 %v3726
        %v3728 = vlaneseq
        %v3729 = vshrl.u32 %v3728, 7
        %v3730 = vsub.s32 %v3727, %v3729
        %v3731 = vrot.slane %v3723, %v3730
        %v3733 = vunpack.c.l.s4 1983009808
        %v3734 = vunpack.c.0.s8 %v3733
        %v3735 = vlaneseq
        %v3736 = vshrl.u32 %v3735, 7
        %v3737 = vsub.s32 %v3734, %v3736
        %v3738 = vrot.slane %v3724, %v3737
        %v3739 = vcombine.low %v3526, %v3550
        %v3740 = vcombine.high %v3526, %v3550
        %v3742 = vunpack.c.l.s4 1983009808
        %v3743 = vunpack.c.0.s8 %v3742
        %v3744 = vlaneseq
        %v3745 = vshrl.u32 %v3744, 7
        %v3746 = vsub.s32 %v3743, %v3745
        %v3747 = vrot.slane %v3739, %v3746
        %v3749 = vunpack.c.l.s4 1983009808
        %v3750 = vunpack.c.0.s8 %v3749
        %v3751 = vlaneseq
        %v3752 = vshrl.u32 %v3751, 7
        %v3753 = vsub.s32 %v3750, %v3752
        %v3754 = vrot.slane %v3740, %v3753
        %v3755 = vcombine.low %v3538, %v3562
        %v3756 = vcombine.high %v3538, %v3562
        %v3758 = vunpack.c.l.s4 1983009808
        %v3759 = vunpack.c.0.s8 %v3758
        %v3760 = vlaneseq
        %v3761 = vshrl.u32 %v3760, 7
        %v3762 = vsub.s32 %v3759, %v3761
        %v3763 = vrot.slane %v3755, %v3762
        %v3765 = vunpack.c.l.s4 1983009808
        %v3766 = vunpack.c.0.s8 %v3765
        %v3767 = vlaneseq
        %v3768 = vshrl.u32 %v3767, 7
        %v3769 = vsub.s32 %v3766, %v3768
        %v3770 = vrot.slane %v3756, %v3769
        %v3771 = vcombine.low %v3715, %v3731
        %v3772 = vcombine.high %v3715, %v3731
        %v3774 = vunpack.c.l.s4 1934713408
        %v3775 = vunpack.c.0.s8 %v3774
        %v3776 = vlaneseq
        %v3777 = vshrl.u32 %v3776, 7
        %v3778 = vsub.s32 %v3775, %v3777
        %v3779 = vrot.slane %v3771, %v3778
        %v3781 = vunpack.c.l.s4 1934713408
        %v3782 = vunpack.c.0.s8 %v3781
        %v3783 = vlaneseq
        %v3784 = vshrl.u32 %v3783, 7
        %v3785 = vsub.s32 %v3782, %v3784
        %v3786 = vrot.slane %v3772, %v3785
        %v3787 = vcombine.low %v3722, %v3738
        %v3788 = vcombine.high %v3722, %v3738
        %v3790 = vunpack.c.l.s4 1934713408
        %v3791 = vunpack.c.0.s8 %v3790
        %v3792 = vlaneseq
        %v3793 = vshrl.u32 %v3792, 7
        %v3794 = vsub.s32 %v3791, %v3793
        %v3795 = vrot.slane %v3787, %v3794
        %v3797 = vunpack.c.l.s4 1934713408
        %v3798 = vunpack.c.0.s8 %v3797
        %v3799 = vlaneseq
        %v3800 = vshrl.u32 %v3799, 7
        %v3801 = vsub.s32 %v3798, %v3800
        %v3802 = vrot.slane %v3788, %v3801
        %v3803 = vcombine.low %v3747, %v3763
        %v3804 = vcombine.high %v3747, %v3763
        %v3806 = vunpack.c.l.s4 1934713408
        %v3807 = vunpack.c.0.s8 %v3806
        %v3808 = vlaneseq
        %v3809 = vshrl.u32 %v3808, 7
        %v3810 = vsub.s32 %v3807, %v3809
        %v3811 = vrot.slane %v3803, %v3810
        %v3813 = vunpack.c.l.s4 1934713408
        %v3814 = vunpack.c.0.s8 %v3813
        %v3815 = vlaneseq
        %v3816 = vshrl.u32 %v3815, 7
        %v3817 = vsub.s32 %v3814, %v3816
        %v3818 = vrot.slane %v3804, %v3817
        %v3819 = vcombine.low %v3754, %v3770
        %v3820 = vcombine.high %v3754, %v3770
        %v3822 = vunpack.c.l.s4 1934713408
        %v3823 = vunpack.c.0.s8 %v3822
        %v3824 = vlaneseq
        %v3825 = vshrl.u32 %v3824, 7
        %v3826 = vsub.s32 %v3823, %v3825
        %v3827 = vrot.slane %v3819, %v3826
        %v3829 = vunpack.c.l.s4 1934713408
        %v3830 = vunpack.c.0.s8 %v3829
        %v3831 = vlaneseq
        %v3832 = vshrl.u32 %v3831, 7
        %v3833 = vsub.s32 %v3830, %v3832
        %v3834 = vrot.slane %v3820, %v3833
        %v3835 = vcombine.low %v3779, %v3811
        %v3836 = vcombine.high %v3779, %v3811
        %v3837 = vcombine.low %v3786, %v3818
        %v3838 = vcombine.high %v3786, %v3818
        %v3839 = vcombine.low %v3795, %v3827
        %v3840 = vcombine.high %v3795, %v3827
        %v3841 = vcombine.low %v3802, %v3834
        %v3842 = vcombine.high %v3802, %v3834
        %v3843 = vcombine.low %v1125, %v3504
        %v3844 = vcombine.high %v1125, %v3504
        %v3846 = vunpack.c.l.s4 1983009808
        %v3847 = vunpack.c.0.s8 %v3846
        %v3848 = vlaneseq
        %v3849 = vshrl.u32 %v3848, 7
        %v3850 = vsub.s32 %v3847, %v3849
        %v3851 = vrot.slane %v3843, %v3850
        %v3853 = vunpack.c.l.s4 1983009808
        %v3854 = vunpack.c.0.s8 %v3853
        %v3855 = vlaneseq
        %v3856 = vshrl.u32 %v3855, 7
        %v3857 = vsub.s32 %v3854, %v3856
        %v3858 = vrot.slane %v3844, %v3857
        %v3859 = vcombine.low %v3492, %v3516
        %v3860 = vcombine.high %v3492, %v3516
        %v3862 = vunpack.c.l.s4 1983009808
        %v3863 = vunpack.c.0.s8 %v3862
        %v3864 = vlaneseq
        %v3865 = vshrl.u32 %v3864, 7
        %v3866 = vsub.s32 %v3863, %v3865
        %v3867 = vrot.slane %v3859, %v3866
        %v3869 = vunpack.c.l.s4 1983009808
        %v3870 = vunpack.c.0.s8 %v3869
        %v3871 = vlaneseq
        %v3872 = vshrl.u32 %v3871, 7
        %v3873 = vsub.s32 %v3870, %v3872
        %v3874 = vrot.slane %v3860, %v3873
        %v3875 = vcombine.low %v3528, %v3552
        %v3876 = vcombine.high %v3528, %v3552
        %v3878 = vunpack.c.l.s4 1983009808
        %v3879 = vunpack.c.0.s8 %v3878
        %v3880 = vlaneseq
        %v3881 = vshrl.u32 %v3880, 7
        %v3882 = vsub.s32 %v3879, %v3881
        %v3883 = vrot.slane %v3875, %v3882
        %v3885 = vunpack.c.l.s4 1983009808
        %v3886 = vunpack.c.0.s8 %v3885
        %v3887 = vlaneseq
        %v3888 = vshrl.u32 %v3887, 7
        %v3889 = vsub.s32 %v3886, %v3888
        %v3890 = vrot.slane %v3876, %v3889
        %v3891 = vcombine.low %v3540, %v3564
        %v3892 = vcombine.high %v3540, %v3564
        %v3894 = vunpack.c.l.s4 1983009808
        %v3895 = vunpack.c.0.s8 %v3894
        %v3896 = vlaneseq
        %v3897 = vshrl.u32 %v3896, 7
        %v3898 = vsub.s32 %v3895, %v3897
        %v3899 = vrot.slane %v3891, %v3898
        %v3901 = vunpack.c.l.s4 1983009808
        %v3902 = vunpack.c.0.s8 %v3901
        %v3903 = vlaneseq
        %v3904 = vshrl.u32 %v3903, 7
        %v3905 = vsub.s32 %v3902, %v3904
        %v3906 = vrot.slane %v3892, %v3905
        %v3907 = vcombine.low %v3851, %v3867
        %v3908 = vcombine.high %v3851, %v3867
        %v3910 = vunpack.c.l.s4 1934713408
        %v3911 = vunpack.c.0.s8 %v3910
        %v3912 = vlaneseq
        %v3913 = vshrl.u32 %v3912, 7
        %v3914 = vsub.s32 %v3911, %v3913
        %v3915 = vrot.slane %v3907, %v3914
        %v3917 = vunpack.c.l.s4 1934713408
        %v3918 = vunpack.c.0.s8 %v3917
        %v3919 = vlaneseq
        %v3920 = vshrl.u32 %v3919, 7
        %v3921 = vsub.s32 %v3918, %v3920
        %v3922 = vrot.slane %v3908, %v3921
        %v3923 = vcombine.low %v3858, %v3874
        %v3924 = vcombine.high %v3858, %v3874
        %v3926 = vunpack.c.l.s4 1934713408
        %v3927 = vunpack.c.0.s8 %v3926
        %v3928 = vlaneseq
        %v3929 = vshrl.u32 %v3928, 7
        %v3930 = vsub.s32 %v3927, %v3929
        %v3931 = vrot.slane %v3923, %v3930
        %v3933 = vunpack.c.l.s4 1934713408
        %v3934 = vunpack.c.0.s8 %v3933
        %v3935 = vlaneseq
        %v3936 = vshrl.u32 %v3935, 7
        %v3937 = vsub.s32 %v3934, %v3936
        %v3938 = vrot.slane %v3924, %v3937
        %v3939 = vcombine.low %v3883, %v3899
        %v3940 = vcombine.high %v3883, %v3899
        %v3942 = vunpack.c.l.s4 1934713408
        %v3943 = vunpack.c.0.s8 %v3942
        %v3944 = vlaneseq
        %v3945 = vshrl.u32 %v3944, 7
        %v3946 = vsub.s32 %v3943, %v3945
        %v3947 = vrot.slane %v3939, %v3946
        %v3949 = vunpack.c.l.s4 1934713408
        %v3950 = vunpack.c.0.s8 %v3949
        %v3951 = vlaneseq
        %v3952 = vshrl.u32 %v3951, 7
        %v3953 = vsub.s32 %v3950, %v3952
        %v3954 = vrot.slane %v3940, %v3953
        %v3955 = vcombine.low %v3890, %v3906
        %v3956 = vcombine.high %v3890, %v3906
        %v3958 = vunpack.c.l.s4 1934713408
        %v3959 = vunpack.c.0.s8 %v3958
        %v3960 = vlaneseq
        %v3961 = vshrl.u32 %v3960, 7
        %v3962 = vsub.s32 %v3959, %v3961
        %v3963 = vrot.slane %v3955, %v3962
        %v3965 = vunpack.c.l.s4 1934713408
        %v3966 = vunpack.c.0.s8 %v3965
        %v3967 = vlaneseq
        %v3968 = vshrl.u32 %v3967, 7
        %v3969 = vsub.s32 %v3966, %v3968
        %v3970 = vrot.slane %v3956, %v3969
        %v3971 = vcombine.low %v3915, %v3947
        %v3972 = vcombine.high %v3915, %v3947
        %v3973 = vcombine.low %v3922, %v3954
        %v3974 = vcombine.high %v3922, %v3954
        %v3975 = vcombine.low %v3931, %v3963
        %v3976 = vcombine.high %v3931, %v3963
        %v3977 = vcombine.low %v3938, %v3970
        %v3978 = vcombine.high %v3938, %v3970
        %v3979 = vcombine.low %v1128, %v3506
        %v3980 = vcombine.high %v1128, %v3506
        %v3982 = vunpack.c.l.s4 1983009808
        %v3983 = vunpack.c.0.s8 %v3982
        %v3984 = vlaneseq
        %v3985 = vshrl.u32 %v3984, 7
        %v3986 = vsub.s32 %v3983, %v3985
        %v3987 = vrot.slane %v3979, %v3986
        %v3989 = vunpack.c.l.s4 1983009808
        %v3990 = vunpack.c.0.s8 %v3989
        %v3991 = vlaneseq
        %v3992 = vshrl.u32 %v3991, 7
        %v3993 = vsub.s32 %v3990, %v3992
        %v3994 = vrot.slane %v3980, %v3993
        %v3995 = vcombine.low %v3494, %v3518
        %v3996 = vcombine.high %v3494, %v3518
        %v3998 = vunpack.c.l.s4 1983009808
        %v3999 = vunpack.c.0.s8 %v3998
        %v4000 = vlaneseq
        %v4001 = vshrl.u32 %v4000, 7
        %v4002 = vsub.s32 %v3999, %v4001
        %v4003 = vrot.slane %v3995, %v4002
        %v4005 = vunpack.c.l.s4 1983009808
        %v4006 = vunpack.c.0.s8 %v4005
        %v4007 = vlaneseq
        %v4008 = vshrl.u32 %v4007, 7
        %v4009 = vsub.s32 %v4006, %v4008
        %v4010 = vrot.slane %v3996, %v4009
        %v4011 = vcombine.low %v3530, %v3554
        %v4012 = vcombine.high %v3530, %v3554
        %v4014 = vunpack.c.l.s4 1983009808
        %v4015 = vunpack.c.0.s8 %v4014
        %v4016 = vlaneseq
        %v4017 = vshrl.u32 %v4016, 7
        %v4018 = vsub.s32 %v4015, %v4017
        %v4019 = vrot.slane %v4011, %v4018
        %v4021 = vunpack.c.l.s4 1983009808
        %v4022 = vunpack.c.0.s8 %v4021
        %v4023 = vlaneseq
        %v4024 = vshrl.u32 %v4023, 7
        %v4025 = vsub.s32 %v4022, %v4024
        %v4026 = vrot.slane %v4012, %v4025
        %v4027 = vcombine.low %v3542, %v3566
        %v4028 = vcombine.high %v3542, %v3566
        %v4030 = vunpack.c.l.s4 1983009808
        %v4031 = vunpack.c.0.s8 %v4030
        %v4032 = vlaneseq
        %v4033 = vshrl.u32 %v4032, 7
        %v4034 = vsub.s32 %v4031, %v4033
        %v4035 = vrot.slane %v4027, %v4034
        %v4037 = vunpack.c.l.s4 1983009808
        %v4038 = vunpack.c.0.s8 %v4037
        %v4039 = vlaneseq
        %v4040 = vshrl.u32 %v4039, 7
        %v4041 = vsub.s32 %v4038, %v4040
        %v4042 = vrot.slane %v4028, %v4041
        %v4043 = vcombine.low %v3987, %v4003
        %v4044 = vcombine.high %v3987, %v4003
        %v4046 = vunpack.c.l.s4 1934713408
        %v4047 = vunpack.c.0.s8 %v4046
        %v4048 = vlaneseq
        %v4049 = vshrl.u32 %v4048, 7
        %v4050 = vsub.s32 %v4047, %v4049
        %v4051 = vrot.slane %v4043, %v4050
        %v4053 = vunpack.c.l.s4 1934713408
        %v4054 = vunpack.c.0.s8 %v4053
        %v4055 = vlaneseq
        %v4056 = vshrl.u32 %v4055, 7
        %v4057 = vsub.s32 %v4054, %v4056
        %v4058 = vrot.slane %v4044, %v4057
        %v4059 = vcombine.low %v3994, %v4010
        %v4060 = vcombine.high %v3994, %v4010
        %v4062 = vunpack.c.l.s4 1934713408
        %v4063 = vunpack.c.0.s8 %v4062
        %v4064 = vlaneseq
        %v4065 = vshrl.u32 %v4064, 7
        %v4066 = vsub.s32 %v4063, %v4065
        %v4067 = vrot.slane %v4059, %v4066
        %v4069 = vunpack.c.l.s4 1934713408
        %v4070 = vunpack.c.0.s8 %v4069
        %v4071 = vlaneseq
        %v4072 = vshrl.u32 %v4071, 7
        %v4073 = vsub.s32 %v4070, %v4072
        %v4074 = vrot.slane %v4060, %v4073
        %v4075 = vcombine.low %v4019, %v4035
        %v4076 = vcombine.high %v4019, %v4035
        %v4078 = vunpack.c.l.s4 1934713408
        %v4079 = vunpack.c.0.s8 %v4078
        %v4080 = vlaneseq
        %v4081 = vshrl.u32 %v4080, 7
        %v4082 = vsub.s32 %v4079, %v4081
        %v4083 = vrot.slane %v4075, %v4082
        %v4085 = vunpack.c.l.s4 1934713408
        %v4086 = vunpack.c.0.s8 %v4085
        %v4087 = vlaneseq
        %v4088 = vshrl.u32 %v4087, 7
        %v4089 = vsub.s32 %v4086, %v4088
        %v4090 = vrot.slane %v4076, %v4089
        %v4091 = vcombine.low %v4026, %v4042
        %v4092 = vcombine.high %v4026, %v4042
        %v4094 = vunpack.c.l.s4 1934713408
        %v4095 = vunpack.c.0.s8 %v4094
        %v4096 = vlaneseq
        %v4097 = vshrl.u32 %v4096, 7
        %v4098 = vsub.s32 %v4095, %v4097
        %v4099 = vrot.slane %v4091, %v4098
        %v4101 = vunpack.c.l.s4 1934713408
        %v4102 = vunpack.c.0.s8 %v4101
        %v4103 = vlaneseq
        %v4104 = vshrl.u32 %v4103, 7
        %v4105 = vsub.s32 %v4102, %v4104
        %v4106 = vrot.slane %v4092, %v4105
        %v4107 = vcombine.low %v4051, %v4083
        %v4108 = vcombine.high %v4051, %v4083
        %v4109 = vcombine.low %v4058, %v4090
        %v4110 = vcombine.high %v4058, %v4090
        %v4111 = vcombine.low %v4067, %v4099
        %v4112 = vcombine.high %v4067, %v4099
        %v4113 = vcombine.low %v4074, %v4106
        %v4114 = vcombine.high %v4074, %v4106
        %v4115 = vcombine.low %v3699, %v3701
        %v4116 = vcombine.high %v3699, %v3701
        %v4118 = vunpack.c.l.s4 1983009808
        %v4119 = vunpack.c.0.s8 %v4118
        %v4120 = vlaneseq
        %v4121 = vshrl.u32 %v4120, 7
        %v4122 = vsub.s32 %v4119, %v4121
        %v4123 = vrot.slane %v4115, %v4122
        %v4125 = vunpack.c.l.s4 1983009808
        %v4126 = vunpack.c.0.s8 %v4125
        %v4127 = vlaneseq
        %v4128 = vshrl.u32 %v4127, 7
        %v4129 = vsub.s32 %v4126, %v4128
        %v4130 = vrot.slane %v4116, %v4129
        %v4131 = vcombine.low %v3700, %v3702
        %v4132 = vcombine.high %v3700, %v3702
        %v4134 = vunpack.c.l.s4 1983009808
        %v4135 = vunpack.c.0.s8 %v4134
        %v4136 = vlaneseq
        %v4137 = vshrl.u32 %v4136, 7
        %v4138 = vsub.s32 %v4135, %v4137
        %v4139 = vrot.slane %v4131, %v4138
        %v4141 = vunpack.c.l.s4 1983009808
        %v4142 = vunpack.c.0.s8 %v4141
        %v4143 = vlaneseq
        %v4144 = vshrl.u32 %v4143, 7
        %v4145 = vsub.s32 %v4142, %v4144
        %v4146 = vrot.slane %v4132, %v4145
        %v4147 = vcombine.low %v3703, %v3705
        %v4148 = vcombine.high %v3703, %v3705
        %v4150 = vunpack.c.l.s4 1983009808
        %v4151 = vunpack.c.0.s8 %v4150
        %v4152 = vlaneseq
        %v4153 = vshrl.u32 %v4152, 7
        %v4154 = vsub.s32 %v4151, %v4153
        %v4155 = vrot.slane %v4147, %v4154
        %v4157 = vunpack.c.l.s4 1983009808
        %v4158 = vunpack.c.0.s8 %v4157
        %v4159 = vlaneseq
        %v4160 = vshrl.u32 %v4159, 7
        %v4161 = vsub.s32 %v4158, %v4160
        %v4162 = vrot.slane %v4148, %v4161
        %v4163 = vcombine.low %v3704, %v3706
        %v4164 = vcombine.high %v3704, %v3706
        %v4166 = vunpack.c.l.s4 1983009808
        %v4167 = vunpack.c.0.s8 %v4166
        %v4168 = vlaneseq
        %v4169 = vshrl.u32 %v4168, 7
        %v4170 = vsub.s32 %v4167, %v4169
        %v4171 = vrot.slane %v4163, %v4170
        %v4173 = vunpack.c.l.s4 1983009808
        %v4174 = vunpack.c.0.s8 %v4173
        %v4175 = vlaneseq
        %v4176 = vshrl.u32 %v4175, 7
        %v4177 = vsub.s32 %v4174, %v4176
        %v4178 = vrot.slane %v4164, %v4177
        %v4179 = vcombine.low %v4123, %v4139
        %v4180 = vcombine.high %v4123, %v4139
        %v4182 = vunpack.c.l.s4 1934713408
        %v4183 = vunpack.c.0.s8 %v4182
        %v4184 = vlaneseq
        %v4185 = vshrl.u32 %v4184, 7
        %v4186 = vsub.s32 %v4183, %v4185
        %v4187 = vrot.slane %v4179, %v4186
        %v4189 = vunpack.c.l.s4 1934713408
        %v4190 = vunpack.c.0.s8 %v4189
        %v4191 = vlaneseq
        %v4192 = vshrl.u32 %v4191, 7
        %v4193 = vsub.s32 %v4190, %v4192
        %v4194 = vrot.slane %v4180, %v4193
        %v4195 = vcombine.low %v4130, %v4146
        %v4196 = vcombine.high %v4130, %v4146
        %v4198 = vunpack.c.l.s4 1934713408
        %v4199 = vunpack.c.0.s8 %v4198
        %v4200 = vlaneseq
        %v4201 = vshrl.u32 %v4200, 7
        %v4202 = vsub.s32 %v4199, %v4201
        %v4203 = vrot.slane %v4195, %v4202
        %v4205 = vunpack.c.l.s4 1934713408
        %v4206 = vunpack.c.0.s8 %v4205
        %v4207 = vlaneseq
        %v4208 = vshrl.u32 %v4207, 7
        %v4209 = vsub.s32 %v4206, %v4208
        %v4210 = vrot.slane %v4196, %v4209
        %v4211 = vcombine.low %v4155, %v4171
        %v4212 = vcombine.high %v4155, %v4171
        %v4214 = vunpack.c.l.s4 1934713408
        %v4215 = vunpack.c.0.s8 %v4214
        %v4216 = vlaneseq
        %v4217 = vshrl.u32 %v4216, 7
        %v4218 = vsub.s32 %v4215, %v4217
        %v4219 = vrot.slane %v4211, %v4218
        %v4221 = vunpack.c.l.s4 1934713408
        %v4222 = vunpack.c.0.s8 %v4221
        %v4223 = vlaneseq
        %v4224 = vshrl.u32 %v4223, 7
        %v4225 = vsub.s32 %v4222, %v4224
        %v4226 = vrot.slane %v4212, %v4225
        %v4227 = vcombine.low %v4162, %v4178
        %v4228 = vcombine.high %v4162, %v4178
        %v4230 = vunpack.c.l.s4 1934713408
        %v4231 = vunpack.c.0.s8 %v4230
        %v4232 = vlaneseq
        %v4233 = vshrl.u32 %v4232, 7
        %v4234 = vsub.s32 %v4231, %v4233
        %v4235 = vrot.slane %v4227, %v4234
        %v4237 = vunpack.c.l.s4 1934713408
        %v4238 = vunpack.c.0.s8 %v4237
        %v4239 = vlaneseq
        %v4240 = vshrl.u32 %v4239, 7
        %v4241 = vsub.s32 %v4238, %v4240
        %v4242 = vrot.slane %v4228, %v4241
        %v4243 = vcombine.low %v4187, %v4219
        %v4244 = vcombine.high %v4187, %v4219
        %v4245 = vcombine.low %v4194, %v4226
        %v4246 = vcombine.high %v4194, %v4226
        %v4247 = vcombine.low %v4203, %v4235
        %v4248 = vcombine.high %v4203, %v4235
        %v4249 = vcombine.low %v4210, %v4242
        %v4250 = vcombine.high %v4210, %v4242
        %v4251 = vcombine.low %v3835, %v3837
        %v4252 = vcombine.high %v3835, %v3837
        %v4254 = vunpack.c.l.s4 1983009808
        %v4255 = vunpack.c.0.s8 %v4254
        %v4256 = vlaneseq
        %v4257 = vshrl.u32 %v4256, 7
        %v4258 = vsub.s32 %v4255, %v4257
        %v4259 = vrot.slane %v4251, %v4258
        %v4261 = vunpack.c.l.s4 1983009808
        %v4262 = vunpack.c.0.s8 %v4261
        %v4263 = vlaneseq
        %v4264 = vshrl.u32 %v4263, 7
        %v4265 = vsub.s32 %v4262, %v4264
        %v4266 = vrot.slane %v4252, %v4265
        %v4267 = vcombine.low %v3836, %v3838
        %v4268 = vcombine.high %v3836, %v3838
        %v4270 = vunpack.c.l.s4 1983009808
        %v4271 = vunpack.c.0.s8 %v4270
        %v4272 = vlaneseq
        %v4273 = vshrl.u32 %v4272, 7
        %v4274 = vsub.s32 %v4271, %v4273
        %v4275 = vrot.slane %v4267, %v4274
        %v4277 = vunpack.c.l.s4 1983009808
        %v4278 = vunpack.c.0.s8 %v4277
        %v4279 = vlaneseq
        %v4280 = vshrl.u32 %v4279, 7
        %v4281 = vsub.s32 %v4278, %v4280
        %v4282 = vrot.slane %v4268, %v4281
        %v4283 = vcombine.low %v3839, %v3841
        %v4284 = vcombine.high %v3839, %v3841
        %v4286 = vunpack.c.l.s4 1983009808
        %v4287 = vunpack.c.0.s8 %v4286
        %v4288 = vlaneseq
        %v4289 = vshrl.u32 %v4288, 7
        %v4290 = vsub.s32 %v4287, %v4289
        %v4291 = vrot.slane %v4283, %v4290
        %v4293 = vunpack.c.l.s4 1983009808
        %v4294 = vunpack.c.0.s8 %v4293
        %v4295 = vlaneseq
        %v4296 = vshrl.u32 %v4295, 7
        %v4297 = vsub.s32 %v4294, %v4296
        %v4298 = vrot.slane %v4284, %v4297
        %v4299 = vcombine.low %v3840, %v3842
        %v4300 = vcombine.high %v3840, %v3842
        %v4302 = vunpack.c.l.s4 1983009808
        %v4303 = vunpack.c.0.s8 %v4302
        %v4304 = vlaneseq
        %v4305 = vshrl.u32 %v4304, 7
        %v4306 = vsub.s32 %v4303, %v4305
        %v4307 = vrot.slane %v4299, %v4306
        %v4309 = vunpack.c.l.s4 1983009808
        %v4310 = vunpack.c.0.s8 %v4309
        %v4311 = vlaneseq
        %v4312 = vshrl.u32 %v4311, 7
        %v4313 = vsub.s32 %v4310, %v4312
        %v4314 = vrot.slane %v4300, %v4313
        %v4315 = vcombine.low %v4259, %v4275
        %v4316 = vcombine.high %v4259, %v4275
        %v4318 = vunpack.c.l.s4 1934713408
        %v4319 = vunpack.c.0.s8 %v4318
        %v4320 = vlaneseq
        %v4321 = vshrl.u32 %v4320, 7
        %v4322 = vsub.s32 %v4319, %v4321
        %v4323 = vrot.slane %v4315, %v4322
        %v4325 = vunpack.c.l.s4 1934713408
        %v4326 = vunpack.c.0.s8 %v4325
        %v4327 = vlaneseq
        %v4328 = vshrl.u32 %v4327, 7
        %v4329 = vsub.s32 %v4326, %v4328
        %v4330 = vrot.slane %v4316, %v4329
        %v4331 = vcombine.low %v4266, %v4282
        %v4332 = vcombine.high %v4266, %v4282
        %v4334 = vunpack.c.l.s4 1934713408
        %v4335 = vunpack.c.0.s8 %v4334
        %v4336 = vlaneseq
        %v4337 = vshrl.u32 %v4336, 7
        %v4338 = vsub.s32 %v4335, %v4337
        %v4339 = vrot.slane %v4331, %v4338
        %v4341 = vunpack.c.l.s4 1934713408
        %v4342 = vunpack.c.0.s8 %v4341
        %v4343 = vlaneseq
        %v4344 = vshrl.u32 %v4343, 7
        %v4345 = vsub.s32 %v4342, %v4344
        %v4346 = vrot.slane %v4332, %v4345
        %v4347 = vcombine.low %v4291, %v4307
        %v4348 = vcombine.high %v4291, %v4307
        %v4350 = vunpack.c.l.s4 1934713408
        %v4351 = vunpack.c.0.s8 %v4350
        %v4352 = vlaneseq
        %v4353 = vshrl.u32 %v4352, 7
        %v4354 = vsub.s32 %v4351, %v4353
        %v4355 = vrot.slane %v4347, %v4354
        %v4357 = vunpack.c.l.s4 1934713408
        %v4358 = vunpack.c.0.s8 %v4357
        %v4359 = vlaneseq
        %v4360 = vshrl.u32 %v4359, 7
        %v4361 = vsub.s32 %v4358, %v4360
        %v4362 = vrot.slane %v4348, %v4361
        %v4363 = vcombine.low %v4298, %v4314
        %v4364 = vcombine.high %v4298, %v4314
        %v4366 = vunpack.c.l.s4 1934713408
        %v4367 = vunpack.c.0.s8 %v4366
        %v4368 = vlaneseq
        %v4369 = vshrl.u32 %v4368, 7
        %v4370 = vsub.s32 %v4367, %v4369
        %v4371 = vrot.slane %v4363, %v4370
        %v4373 = vunpack.c.l.s4 1934713408
        %v4374 = vunpack.c.0.s8 %v4373
        %v4375 = vlaneseq
        %v4376 = vshrl.u32 %v4375, 7
        %v4377 = vsub.s32 %v4374, %v4376
        %v4378 = vrot.slane %v4364, %v4377
        %v4379 = vcombine.low %v4323, %v4355
        %v4380 = vcombine.high %v4323, %v4355
        %v4381 = vcombine.low %v4330, %v4362
        %v4382 = vcombine.high %v4330, %v4362
        %v4383 = vcombine.low %v4339, %v4371
        %v4384 = vcombine.high %v4339, %v4371
        %v4385 = vcombine.low %v4346, %v4378
        %v4386 = vcombine.high %v4346, %v4378
        %v4387 = vcombine.low %v3971, %v3973
        %v4388 = vcombine.high %v3971, %v3973
        %v4390 = vunpack.c.l.s4 1983009808
        %v4391 = vunpack.c.0.s8 %v4390
        %v4392 = vlaneseq
        %v4393 = vshrl.u32 %v4392, 7
        %v4394 = vsub.s32 %v4391, %v4393
        %v4395 = vrot.slane %v4387, %v4394
        %v4397 = vunpack.c.l.s4 1983009808
        %v4398 = vunpack.c.0.s8 %v4397
        %v4399 = vlaneseq
        %v4400 = vshrl.u32 %v4399, 7
        %v4401 = vsub.s32 %v4398, %v4400
        %v4402 = vrot.slane %v4388, %v4401
        %v4403 = vcombine.low %v3972, %v3974
        %v4404 = vcombine.high %v3972, %v3974
        %v4406 = vunpack.c.l.s4 1983009808
        %v4407 = vunpack.c.0.s8 %v4406
        %v4408 = vlaneseq
        %v4409 = vshrl.u32 %v4408, 7
        %v4410 = vsub.s32 %v4407, %v4409
        %v4411 = vrot.slane %v4403, %v4410
        %v4413 = vunpack.c.l.s4 1983009808
        %v4414 = vunpack.c.0.s8 %v4413
        %v4415 = vlaneseq
        %v4416 = vshrl.u32 %v4415, 7
        %v4417 = vsub.s32 %v4414, %v4416
        %v4418 = vrot.slane %v4404, %v4417
        %v4419 = vcombine.low %v3975, %v3977
        %v4420 = vcombine.high %v3975, %v3977
        %v4422 = vunpack.c.l.s4 1983009808
        %v4423 = vunpack.c.0.s8 %v4422
        %v4424 = vlaneseq
        %v4425 = vshrl.u32 %v4424, 7
        %v4426 = vsub.s32 %v4423, %v4425
        %v4427 = vrot.slane %v4419, %v4426
        %v4429 = vunpack.c.l.s4 1983009808
        %v4430 = vunpack.c.0.s8 %v4429
        %v4431 = vlaneseq
        %v4432 = vshrl.u32 %v4431, 7
        %v4433 = vsub.s32 %v4430, %v4432
        %v4434 = vrot.slane %v4420, %v4433
        %v4435 = vcombine.low %v3976, %v3978
        %v4436 = vcombine.high %v3976, %v3978
        %v4438 = vunpack.c.l.s4 1983009808
        %v4439 = vunpack.c.0.s8 %v4438
        %v4440 = vlaneseq
        %v4441 = vshrl.u32 %v4440, 7
        %v4442 = vsub.s32 %v4439, %v4441
        %v4443 = vrot.slane %v4435, %v4442
        %v4445 = vunpack.c.l.s4 1983009808
        %v4446 = vunpack.c.0.s8 %v4445
        %v4447 = vlaneseq
        %v4448 = vshrl.u32 %v4447, 7
        %v4449 = vsub.s32 %v4446, %v4448
        %v4450 = vrot.slane %v4436, %v4449
        %v4451 = vcombine.low %v4395, %v4411
        %v4452 = vcombine.high %v4395, %v4411
        %v4454 = vunpack.c.l.s4 1934713408
        %v4455 = vunpack.c.0.s8 %v4454
        %v4456 = vlaneseq
        %v4457 = vshrl.u32 %v4456, 7
        %v4458 = vsub.s32 %v4455, %v4457
        %v4459 = vrot.slane %v4451, %v4458
        %v4461 = vunpack.c.l.s4 1934713408
        %v4462 = vunpack.c.0.s8 %v4461
        %v4463 = vlaneseq
        %v4464 = vshrl.u32 %v4463, 7
        %v4465 = vsub.s32 %v4462, %v4464
        %v4466 = vrot.slane %v4452, %v4465
        %v4467 = vcombine.low %v4402, %v4418
        %v4468 = vcombine.high %v4402, %v4418
        %v4470 = vunpack.c.l.s4 1934713408
        %v4471 = vunpack.c.0.s8 %v4470
        %v4472 = vlaneseq
        %v4473 = vshrl.u32 %v4472, 7
        %v4474 = vsub.s32 %v4471, %v4473
        %v4475 = vrot.slane %v4467, %v4474
        %v4477 = vunpack.c.l.s4 1934713408
        %v4478 = vunpack.c.0.s8 %v4477
        %v4479 = vlaneseq
        %v4480 = vshrl.u32 %v4479, 7
        %v4481 = vsub.s32 %v4478, %v4480
        %v4482 = vrot.slane %v4468, %v4481
        %v4483 = vcombine.low %v4427, %v4443
        %v4484 = vcombine.high %v4427, %v4443
        %v4486 = vunpack.c.l.s4 1934713408
        %v4487 = vunpack.c.0.s8 %v4486
        %v4488 = vlaneseq
        %v4489 = vshrl.u32 %v4488, 7
        %v4490 = vsub.s32 %v4487, %v4489
        %v4491 = vrot.slane %v4483, %v4490
        %v4493 = vunpack.c.l.s4 1934713408
        %v4494 = vunpack.c.0.s8 %v4493
        %v4495 = vlaneseq
        %v4496 = vshrl.u32 %v4495, 7
        %v4497 = vsub.s32 %v4494, %v4496
        %v4498 = vrot.slane %v4484, %v4497
        %v4499 = vcombine.low %v4434, %v4450
        %v4500 = vcombine.high %v4434, %v4450
        %v4502 = vunpack.c.l.s4 1934713408
        %v4503 = vunpack.c.0.s8 %v4502
        %v4504 = vlaneseq
        %v4505 = vshrl.u32 %v4504, 7
        %v4506 = vsub.s32 %v4503, %v4505
        %v4507 = vrot.slane %v4499, %v4506
        %v4509 = vunpack.c.l.s4 1934713408
        %v4510 = vunpack.c.0.s8 %v4509
        %v4511 = vlaneseq
        %v4512 = vshrl.u32 %v4511, 7
        %v4513 = vsub.s32 %v4510, %v4512
        %v4514 = vrot.slane %v4500, %v4513
        %v4515 = vcombine.low %v4459, %v4491
        %v4516 = vcombine.high %v4459, %v4491
        %v4517 = vcombine.low %v4466, %v4498
        %v4518 = vcombine.high %v4466, %v4498
        %v4519 = vcombine.low %v4475, %v4507
        %v4520 = vcombine.high %v4475, %v4507
        %v4521 = vcombine.low %v4482, %v4514
        %v4522 = vcombine.high %v4482, %v4514
        %v4523 = vcombine.low %v4107, %v4109
        %v4524 = vcombine.high %v4107, %v4109
        %v4526 = vunpack.c.l.s4 1983009808
        %v4527 = vunpack.c.0.s8 %v4526
        %v4528 = vlaneseq
        %v4529 = vshrl.u32 %v4528, 7
        %v4530 = vsub.s32 %v4527, %v4529
        %v4531 = vrot.slane %v4523, %v4530
        %v4533 = vunpack.c.l.s4 1983009808
        %v4534 = vunpack.c.0.s8 %v4533
        %v4535 = vlaneseq
        %v4536 = vshrl.u32 %v4535, 7
        %v4537 = vsub.s32 %v4534, %v4536
        %v4538 = vrot.slane %v4524, %v4537
        %v4539 = vcombine.low %v4108, %v4110
        %v4540 = vcombine.high %v4108, %v4110
        %v4542 = vunpack.c.l.s4 1983009808
        %v4543 = vunpack.c.0.s8 %v4542
        %v4544 = vlaneseq
        %v4545 = vshrl.u32 %v4544, 7
        %v4546 = vsub.s32 %v4543, %v4545
        %v4547 = vrot.slane %v4539, %v4546
        %v4549 = vunpack.c.l.s4 1983009808
        %v4550 = vunpack.c.0.s8 %v4549
        %v4551 = vlaneseq
        %v4552 = vshrl.u32 %v4551, 7
        %v4553 = vsub.s32 %v4550, %v4552
        %v4554 = vrot.slane %v4540, %v4553
        %v4555 = vcombine.low %v4111, %v4113
        %v4556 = vcombine.high %v4111, %v4113
        %v4558 = vunpack.c.l.s4 1983009808
        %v4559 = vunpack.c.0.s8 %v4558
        %v4560 = vlaneseq
        %v4561 = vshrl.u32 %v4560, 7
        %v4562 = vsub.s32 %v4559, %v4561
        %v4563 = vrot.slane %v4555, %v4562
        %v4565 = vunpack.c.l.s4 1983009808
        %v4566 = vunpack.c.0.s8 %v4565
        %v4567 = vlaneseq
        %v4568 = vshrl.u32 %v4567, 7
        %v4569 = vsub.s32 %v4566, %v4568
        %v4570 = vrot.slane %v4556, %v4569
        %v4571 = vcombine.low %v4112, %v4114
        %v4572 = vcombine.high %v4112, %v4114
        %v4574 = vunpack.c.l.s4 1983009808
        %v4575 = vunpack.c.0.s8 %v4574
        %v4576 = vlaneseq
        %v4577 = vshrl.u32 %v4576, 7
        %v4578 = vsub.s32 %v4575, %v4577
        %v4579 = vrot.slane %v4571, %v4578
        %v4581 = vunpack.c.l.s4 1983009808
        %v4582 = vunpack.c.0.s8 %v4581
        %v4583 = vlaneseq
        %v4584 = vshrl.u32 %v4583, 7
        %v4585 = vsub.s32 %v4582, %v4584
        %v4586 = vrot.slane %v4572, %v4585
        %v4587 = vcombine.low %v4531, %v4547
        %v4588 = vcombine.high %v4531, %v4547
        %v4590 = vunpack.c.l.s4 1934713408
        %v4591 = vunpack.c.0.s8 %v4590
        %v4592 = vlaneseq
        %v4593 = vshrl.u32 %v4592, 7
        %v4594 = vsub.s32 %v4591, %v4593
        %v4595 = vrot.slane %v4587, %v4594
        %v4597 = vunpack.c.l.s4 1934713408
        %v4598 = vunpack.c.0.s8 %v4597
        %v4599 = vlaneseq
        %v4600 = vshrl.u32 %v4599, 7
        %v4601 = vsub.s32 %v4598, %v4600
        %v4602 = vrot.slane %v4588, %v4601
        %v4603 = vcombine.low %v4538, %v4554
        %v4604 = vcombine.high %v4538, %v4554
        %v4606 = vunpack.c.l.s4 1934713408
        %v4607 = vunpack.c.0.s8 %v4606
        %v4608 = vlaneseq
        %v4609 = vshrl.u32 %v4608, 7
        %v4610 = vsub.s32 %v4607, %v4609
        %v4611 = vrot.slane %v4603, %v4610
        %v4613 = vunpack.c.l.s4 1934713408
        %v4614 = vunpack.c.0.s8 %v4613
        %v4615 = vlaneseq
        %v4616 = vshrl.u32 %v4615, 7
        %v4617 = vsub.s32 %v4614, %v4616
        %v4618 = vrot.slane %v4604, %v4617
        %v4619 = vcombine.low %v4563, %v4579
        %v4620 = vcombine.high %v4563, %v4579
        %v4622 = vunpack.c.l.s4 1934713408
        %v4623 = vunpack.c.0.s8 %v4622
        %v4624 = vlaneseq
        %v4625 = vshrl.u32 %v4624, 7
        %v4626 = vsub.s32 %v4623, %v4625
        %v4627 = vrot.slane %v4619, %v4626
        %v4629 = vunpack.c.l.s4 1934713408
        %v4630 = vunpack.c.0.s8 %v4629
        %v4631 = vlaneseq
        %v4632 = vshrl.u32 %v4631, 7
        %v4633 = vsub.s32 %v4630, %v4632
        %v4634 = vrot.slane %v4620, %v4633
        %v4635 = vcombine.low %v4570, %v4586
        %v4636 = vcombine.high %v4570, %v4586
        %v4638 = vunpack.c.l.s4 1934713408
        %v4639 = vunpack.c.0.s8 %v4638
        %v4640 = vlaneseq
        %v4641 = vshrl.u32 %v4640, 7
        %v4642 = vsub.s32 %v4639, %v4641
        %v4643 = vrot.slane %v4635, %v4642
        %v4645 = vunpack.c.l.s4 1934713408
        %v4646 = vunpack.c.0.s8 %v4645
        %v4647 = vlaneseq
        %v4648 = vshrl.u32 %v4647, 7
        %v4649 = vsub.s32 %v4646, %v4648
        %v4650 = vrot.slane %v4636, %v4649
        %v4651 = vcombine.low %v4595, %v4627
        %v4652 = vcombine.high %v4595, %v4627
        %v4653 = vcombine.low %v4602, %v4634
        %v4654 = vcombine.high %v4602, %v4634
        %v4655 = vcombine.low %v4611, %v4643
        %v4656 = vcombine.high %v4611, %v4643
        %v4657 = vcombine.low %v4618, %v4650
        %v4658 = vcombine.high %v4618, %v4650
        %vm4659 = vcmask 130048
        %v4661 = vsel %vm4659, %v1891, 0
        %v4664 = vsel %vm4659, %v2027, 0
        %v4667 = vsel %vm4659, %v3067, 0
        %v4670 = vsel %vm4659, %v3203, 0
        %4672 = vmatprep.subr.mxu0 0.0
        %4673 = vmatpush1.xpose.msra.mxu0 %v4667
        %4674 = vmatprep.subr.mxu0 0.0
        %4675 = vmatpush1.xpose.msra.mxu0 %v4670
        %4676 = vmatprep.subr.mxu0 0.0
        %4677 = vmatpush1.xpose.msra.mxu0 0.0
        %4678 = vmatprep.subr.mxu0 0.0
        %4679 = vmatpush1.xpose.msra.mxu0 0.0
        %4680 = vmatprep.subr.mxu0 0.0
        %4681 = vmatpush1.xpose.msra.mxu0 0.0
        %4682 = vmatprep.subr.mxu0 0.0
        %4683 = vmatpush1.xpose.msra.mxu0 0.0
        %4684 = vmatprep.subr.mxu0 0.0
        %4685 = vmatpush1.xpose.msra.mxu0 0.0
        %4686 = vmatprep.subr.mxu0 0.0
        %4687 = vmatpush1.xpose.msra.mxu0 0.0
        %4688 = vmatprep.subr.mxu0 0.0
        %4689 = vmatpush1.xpose.msra.mxu0 0.0
        %4690 = vmatprep.subr.mxu0 0.0
        %4691 = vmatpush1.xpose.msra.mxu0 0.0
        %4692 = vmatprep.subr.mxu0 0.0
        %4693 = vmatpush1.xpose.msra.mxu0 0.0
        %4694 = vmatprep.subr.mxu0 0.0
        %4695 = vmatpush1.xpose.msra.mxu0 0.0
        %4696 = vmatprep.subr.mxu0 0.0
        %4697 = vmatpush1.xpose.msra.mxu0 0.0
        %4698 = vmatprep.subr.mxu0 0.0
        %4699 = vmatpush1.xpose.msra.mxu0 0.0
        %4700 = vmatprep.subr.mxu0 0.0
        %4701 = vmatpush1.xpose.msra.mxu0 0.0
        %4702 = vmatprep.subr.mxu0 0.0
        %4703 = vmatpush1.xpose.msra.mxu0 0.0
        %4704 = vmatprep.subr.mxu0 0.0
        %4705 = vmatpush1.xpose.msra.mxu0 0.0
        %4706 = vmatprep.subr.mxu0 0.0
        %4707 = vmatpush1.xpose.msra.mxu0 0.0
        %4708 = vmatprep.subr.mxu0 0.0
        %4709 = vmatpush1.xpose.msra.mxu0 0.0
        %4710 = vmatprep.subr.mxu0 0.0
        %4711 = vmatpush1.xpose.msra.mxu0 0.0
        %4712 = vmatprep.subr.mxu0 0.0
        %4713 = vmatpush1.xpose.msra.mxu0 0.0
        %4714 = vmatprep.subr.mxu0 0.0
        %4715 = vmatpush1.xpose.msra.mxu0 0.0
        %4716 = vmatprep.subr.mxu0 0.0
        %4717 = vmatpush1.xpose.msra.mxu0 0.0
        %4718 = vmatprep.subr.mxu0 0.0
        %4719 = vmatpush1.xpose.msra.mxu0 0.0
        %4720 = vmatprep.subr.mxu0 0.0
        %4721 = vmatpush1.xpose.msra.mxu0 0.0
        %4722 = vmatprep.subr.mxu0 0.0
        %4723 = vmatpush1.xpose.msra.mxu0 0.0
        %4724 = vmatprep.subr.mxu0 0.0
        %4725 = vmatpush1.xpose.msra.mxu0 0.0
        %4726 = vmatprep.subr.mxu0 0.0
        %4727 = vmatpush1.xpose.msra.mxu0 0.0
        %4728 = vmatprep.subr.mxu0 0.0
        %4729 = vmatpush1.xpose.msra.mxu0 0.0
        %4730 = vmatprep.subr.mxu0 0.0
        %4731 = vmatpush1.xpose.msra.mxu0 0.0
        %4732 = vmatprep.subr.mxu0 0.0
        %4733 = vmatpush1.xpose.msra.mxu0 0.0
        %4734 = vmatprep.subr.mxu0 0.0
        %4735 = vmatpush1.xpose.msra.mxu0 0.0
        %4736 = vmatprep.mubr.f32.mxu0 0.0
        %4737 = vmatmul.mubr.f32.gmra.mrb[0].mxu0 %v4661
        %v4738 = vpop.f32.mrb[0].mxu0
        %v4739 = vadd.f32 0.0, %v4738
        %v4740 = vpop.f32.mrb[0].mxu0
        %4741 = vmatprep.mubr.f32.mxu0 0.0
        %4742 = vmatmul.mubr.f32.gmra.mrb[0].mxu0 %v4664
        %v4743 = vpop.f32.mrb[0].mxu0
        %v4744 = vadd.f32 0.0, %v4743
        %v4745 = vpop.f32.mrb[0].mxu0
        %4746 = vdwg.mxu0
        %v4748 = vsel %vm4659, %v1892, 0
        %v4751 = vsel %vm4659, %v2028, 0
        %v4754 = vsel %vm4659, %v3068, 0
        %v4757 = vsel %vm4659, %v3204, 0
        %4759 = vmatprep.subr.mxu0 0.0
        %4760 = vmatpush1.xpose.msra.mxu0 %v4754
        %4761 = vmatprep.subr.mxu0 0.0
        %4762 = vmatpush1.xpose.msra.mxu0 %v4757
        %4763 = vmatprep.subr.mxu0 0.0
        %4764 = vmatpush1.xpose.msra.mxu0 0.0
        %4765 = vmatprep.subr.mxu0 0.0
        %4766 = vmatpush1.xpose.msra.mxu0 0.0
        %4767 = vmatprep.subr.mxu0 0.0
        %4768 = vmatpush1.xpose.msra.mxu0 0.0
        %4769 = vmatprep.subr.mxu0 0.0
        %4770 = vmatpush1.xpose.msra.mxu0 0.0
        %4771 = vmatprep.subr.mxu0 0.0
        %4772 = vmatpush1.xpose.msra.mxu0 0.0
        %4773 = vmatprep.subr.mxu0 0.0
        %4774 = vmatpush1.xpose.msra.mxu0 0.0
        %4775 = vmatprep.subr.mxu0 0.0
        %4776 = vmatpush1.xpose.msra.mxu0 0.0
        %4777 = vmatprep.subr.mxu0 0.0
        %4778 = vmatpush1.xpose.msra.mxu0 0.0
        %4779 = vmatprep.subr.mxu0 0.0
        %4780 = vmatpush1.xpose.msra.mxu0 0.0
        %4781 = vmatprep.subr.mxu0 0.0
        %4782 = vmatpush1.xpose.msra.mxu0 0.0
        %4783 = vmatprep.subr.mxu0 0.0
        %4784 = vmatpush1.xpose.msra.mxu0 0.0
        %4785 = vmatprep.subr.mxu0 0.0
        %4786 = vmatpush1.xpose.msra.mxu0 0.0
        %4787 = vmatprep.subr.mxu0 0.0
        %4788 = vmatpush1.xpose.msra.mxu0 0.0
        %4789 = vmatprep.subr.mxu0 0.0
        %4790 = vmatpush1.xpose.msra.mxu0 0.0
        %4791 = vmatprep.subr.mxu0 0.0
        %4792 = vmatpush1.xpose.msra.mxu0 0.0
        %4793 = vmatprep.subr.mxu0 0.0
        %4794 = vmatpush1.xpose.msra.mxu0 0.0
        %4795 = vmatprep.subr.mxu0 0.0
        %4796 = vmatpush1.xpose.msra.mxu0 0.0
        %4797 = vmatprep.subr.mxu0 0.0
        %4798 = vmatpush1.xpose.msra.mxu0 0.0
        %4799 = vmatprep.subr.mxu0 0.0
        %4800 = vmatpush1.xpose.msra.mxu0 0.0
        %4801 = vmatprep.subr.mxu0 0.0
        %4802 = vmatpush1.xpose.msra.mxu0 0.0
        %4803 = vmatprep.subr.mxu0 0.0
        %4804 = vmatpush1.xpose.msra.mxu0 0.0
        %4805 = vmatprep.subr.mxu0 0.0
        %4806 = vmatpush1.xpose.msra.mxu0 0.0
        %4807 = vmatprep.subr.mxu0 0.0
        %4808 = vmatpush1.xpose.msra.mxu0 0.0
        %4809 = vmatprep.subr.mxu0 0.0
        %4810 = vmatpush1.xpose.msra.mxu0 0.0
        %4811 = vmatprep.subr.mxu0 0.0
        %4812 = vmatpush1.xpose.msra.mxu0 0.0
        %4813 = vmatprep.subr.mxu0 0.0
        %4814 = vmatpush1.xpose.msra.mxu0 0.0
        %4815 = vmatprep.subr.mxu0 0.0
        %4816 = vmatpush1.xpose.msra.mxu0 0.0
        %4817 = vmatprep.subr.mxu0 0.0
        %4818 = vmatpush1.xpose.msra.mxu0 0.0
        %4819 = vmatprep.subr.mxu0 0.0
        %4820 = vmatpush1.xpose.msra.mxu0 0.0
        %4821 = vmatprep.subr.mxu0 0.0
        %4822 = vmatpush1.xpose.msra.mxu0 0.0
        %4823 = vmatprep.mubr.f32.mxu0 0.0
        %4824 = vmatmul.mubr.f32.gmra.mrb[0].mxu0 %v4748
        %v4825 = vpop.f32.mrb[0].mxu0
        %v4826 = vadd.f32 0.0, %v4825
        %v4827 = vpop.f32.mrb[0].mxu0
        %4828 = vmatprep.mubr.f32.mxu0 0.0
        %4829 = vmatmul.mubr.f32.gmra.mrb[0].mxu0 %v4751
        %v4830 = vpop.f32.mrb[0].mxu0
        %v4831 = vadd.f32 0.0, %v4830
        %v4832 = vpop.f32.mrb[0].mxu0
        %4833 = vdwg.mxu0
        %v4835 = vsel %vm4659, %v1893, 0
        %v4838 = vsel %vm4659, %v2029, 0
        %v4841 = vsel %vm4659, %v3069, 0
        %v4844 = vsel %vm4659, %v3205, 0
        %4846 = vmatprep.subr.mxu0 0.0
        %4847 = vmatpush1.xpose.msra.mxu0 %v4841
        %4848 = vmatprep.subr.mxu0 0.0
        %4849 = vmatpush1.xpose.msra.mxu0 %v4844
        %4850 = vmatprep.subr.mxu0 0.0
        %4851 = vmatpush1.xpose.msra.mxu0 0.0
        %4852 = vmatprep.subr.mxu0 0.0
        %4853 = vmatpush1.xpose.msra.mxu0 0.0
        %4854 = vmatprep.subr.mxu0 0.0
        %4855 = vmatpush1.xpose.msra.mxu0 0.0
        %4856 = vmatprep.subr.mxu0 0.0
        %4857 = vmatpush1.xpose.msra.mxu0 0.0
        %4858 = vmatprep.subr.mxu0 0.0
        %4859 = vmatpush1.xpose.msra.mxu0 0.0
        %4860 = vmatprep.subr.mxu0 0.0
        %4861 = vmatpush1.xpose.msra.mxu0 0.0
        %4862 = vmatprep.subr.mxu0 0.0
        %4863 = vmatpush1.xpose.msra.mxu0 0.0
        %4864 = vmatprep.subr.mxu0 0.0
        %4865 = vmatpush1.xpose.msra.mxu0 0.0
        %4866 = vmatprep.subr.mxu0 0.0
        %4867 = vmatpush1.xpose.msra.mxu0 0.0
        %4868 = vmatprep.subr.mxu0 0.0
        %4869 = vmatpush1.xpose.msra.mxu0 0.0
        %4870 = vmatprep.subr.mxu0 0.0
        %4871 = vmatpush1.xpose.msra.mxu0 0.0
        %4872 = vmatprep.subr.mxu0 0.0
        %4873 = vmatpush1.xpose.msra.mxu0 0.0
        %4874 = vmatprep.subr.mxu0 0.0
        %4875 = vmatpush1.xpose.msra.mxu0 0.0
        %4876 = vmatprep.subr.mxu0 0.0
        %4877 = vmatpush1.xpose.msra.mxu0 0.0
        %4878 = vmatprep.subr.mxu0 0.0
        %4879 = vmatpush1.xpose.msra.mxu0 0.0
        %4880 = vmatprep.subr.mxu0 0.0
        %4881 = vmatpush1.xpose.msra.mxu0 0.0
        %4882 = vmatprep.subr.mxu0 0.0
        %4883 = vmatpush1.xpose.msra.mxu0 0.0
        %4884 = vmatprep.subr.mxu0 0.0
        %4885 = vmatpush1.xpose.msra.mxu0 0.0
        %4886 = vmatprep.subr.mxu0 0.0
        %4887 = vmatpush1.xpose.msra.mxu0 0.0
        %4888 = vmatprep.subr.mxu0 0.0
        %4889 = vmatpush1.xpose.msra.mxu0 0.0
        %4890 = vmatprep.subr.mxu0 0.0
        %4891 = vmatpush1.xpose.msra.mxu0 0.0
        %4892 = vmatprep.subr.mxu0 0.0
        %4893 = vmatpush1.xpose.msra.mxu0 0.0
        %4894 = vmatprep.subr.mxu0 0.0
        %4895 = vmatpush1.xpose.msra.mxu0 0.0
        %4896 = vmatprep.subr.mxu0 0.0
        %4897 = vmatpush1.xpose.msra.mxu0 0.0
        %4898 = vmatprep.subr.mxu0 0.0
        %4899 = vmatpush1.xpose.msra.mxu0 0.0
        %4900 = vmatprep.subr.mxu0 0.0
        %4901 = vmatpush1.xpose.msra.mxu0 0.0
        %4902 = vmatprep.subr.mxu0 0.0
        %4903 = vmatpush1.xpose.msra.mxu0 0.0
        %4904 = vmatprep.subr.mxu0 0.0
        %4905 = vmatpush1.xpose.msra.mxu0 0.0
        %4906 = vmatprep.subr.mxu0 0.0
        %4907 = vmatpush1.xpose.msra.mxu0 0.0
        %4908 = vmatprep.subr.mxu0 0.0
        %4909 = vmatpush1.xpose.msra.mxu0 0.0
        %4910 = vmatprep.mubr.f32.mxu0 0.0
        %4911 = vmatmul.mubr.f32.gmra.mrb[0].mxu0 %v4835
        %v4912 = vpop.f32.mrb[0].mxu0
        %v4913 = vadd.f32 0.0, %v4912
        %v4914 = vpop.f32.mrb[0].mxu0
        %4915 = vmatprep.mubr.f32.mxu0 0.0
        %4916 = vmatmul.mubr.f32.gmra.mrb[0].mxu0 %v4838
        %v4917 = vpop.f32.mrb[0].mxu0
        %v4918 = vadd.f32 0.0, %v4917
        %v4919 = vpop.f32.mrb[0].mxu0
        %4920 = vdwg.mxu0
        %v4922 = vsel %vm4659, %v1894, 0
        %v4925 = vsel %vm4659, %v2030, 0
        %v4928 = vsel %vm4659, %v3070, 0
        %v4931 = vsel %vm4659, %v3206, 0
        %4933 = vmatprep.subr.mxu0 0.0
        %4934 = vmatpush1.xpose.msra.mxu0 %v4928
        %4935 = vmatprep.subr.mxu0 0.0
        %4936 = vmatpush1.xpose.msra.mxu0 %v4931
        %4937 = vmatprep.subr.mxu0 0.0
        %4938 = vmatpush1.xpose.msra.mxu0 0.0
        %4939 = vmatprep.subr.mxu0 0.0
        %4940 = vmatpush1.xpose.msra.mxu0 0.0
        %4941 = vmatprep.subr.mxu0 0.0
        %4942 = vmatpush1.xpose.msra.mxu0 0.0
        %4943 = vmatprep.subr.mxu0 0.0
        %4944 = vmatpush1.xpose.msra.mxu0 0.0
        %4945 = vmatprep.subr.mxu0 0.0
        %4946 = vmatpush1.xpose.msra.mxu0 0.0
        %4947 = vmatprep.subr.mxu0 0.0
        %4948 = vmatpush1.xpose.msra.mxu0 0.0
        %4949 = vmatprep.subr.mxu0 0.0
        %4950 = vmatpush1.xpose.msra.mxu0 0.0
        %4951 = vmatprep.subr.mxu0 0.0
        %4952 = vmatpush1.xpose.msra.mxu0 0.0
        %4953 = vmatprep.subr.mxu0 0.0
        %4954 = vmatpush1.xpose.msra.mxu0 0.0
        %4955 = vmatprep.subr.mxu0 0.0
        %4956 = vmatpush1.xpose.msra.mxu0 0.0
        %4957 = vmatprep.subr.mxu0 0.0
        %4958 = vmatpush1.xpose.msra.mxu0 0.0
        %4959 = vmatprep.subr.mxu0 0.0
        %4960 = vmatpush1.xpose.msra.mxu0 0.0
        %4961 = vmatprep.subr.mxu0 0.0
        %4962 = vmatpush1.xpose.msra.mxu0 0.0
        %4963 = vmatprep.subr.mxu0 0.0
        %4964 = vmatpush1.xpose.msra.mxu0 0.0
        %4965 = vmatprep.subr.mxu0 0.0
        %4966 = vmatpush1.xpose.msra.mxu0 0.0
        %4967 = vmatprep.subr.mxu0 0.0
        %4968 = vmatpush1.xpose.msra.mxu0 0.0
        %4969 = vmatprep.subr.mxu0 0.0
        %4970 = vmatpush1.xpose.msra.mxu0 0.0
        %4971 = vmatprep.subr.mxu0 0.0
        %4972 = vmatpush1.xpose.msra.mxu0 0.0
        %4973 = vmatprep.subr.mxu0 0.0
        %4974 = vmatpush1.xpose.msra.mxu0 0.0
        %4975 = vmatprep.subr.mxu0 0.0
        %4976 = vmatpush1.xpose.msra.mxu0 0.0
        %4977 = vmatprep.subr.mxu0 0.0
        %4978 = vmatpush1.xpose.msra.mxu0 0.0
        %4979 = vmatprep.subr.mxu0 0.0
        %4980 = vmatpush1.xpose.msra.mxu0 0.0
        %4981 = vmatprep.subr.mxu0 0.0
        %4982 = vmatpush1.xpose.msra.mxu0 0.0
        %4983 = vmatprep.subr.mxu0 0.0
        %4984 = vmatpush1.xpose.msra.mxu0 0.0
        %4985 = vmatprep.subr.mxu0 0.0
        %4986 = vmatpush1.xpose.msra.mxu0 0.0
        %4987 = vmatprep.subr.mxu0 0.0
        %4988 = vmatpush1.xpose.msra.mxu0 0.0
        %4989 = vmatprep.subr.mxu0 0.0
        %4990 = vmatpush1.xpose.msra.mxu0 0.0
        %4991 = vmatprep.subr.mxu0 0.0
        %4992 = vmatpush1.xpose.msra.mxu0 0.0
        %4993 = vmatprep.subr.mxu0 0.0
        %4994 = vmatpush1.xpose.msra.mxu0 0.0
        %4995 = vmatprep.subr.mxu0 0.0
        %4996 = vmatpush1.xpose.msra.mxu0 0.0
        %4997 = vmatprep.mubr.f32.mxu0 0.0
        %4998 = vmatmul.mubr.f32.gmra.mrb[0].mxu0 %v4922
        %v4999 = vpop.f32.mrb[0].mxu0
        %v5000 = vadd.f32 0.0, %v4999
        %v5001 = vpop.f32.mrb[0].mxu0
        %5002 = vmatprep.mubr.f32.mxu0 0.0
        %5003 = vmatmul.mubr.f32.gmra.mrb[0].mxu0 %v4925
        %v5004 = vpop.f32.mrb[0].mxu0
        %v5005 = vadd.f32 0.0, %v5004
        %v5006 = vpop.f32.mrb[0].mxu0
        %5007 = vdwg.mxu0
        %v5009 = vsel %vm4659, %v1895, 0
        %v5012 = vsel %vm4659, %v2031, 0
        %v5015 = vsel %vm4659, %v3071, 0
        %v5018 = vsel %vm4659, %v3207, 0
        %5020 = vmatprep.subr.mxu0 0.0
        %5021 = vmatpush1.xpose.msra.mxu0 %v5015
        %5022 = vmatprep.subr.mxu0 0.0
        %5023 = vmatpush1.xpose.msra.mxu0 %v5018
        %5024 = vmatprep.subr.mxu0 0.0
        %5025 = vmatpush1.xpose.msra.mxu0 0.0
        %5026 = vmatprep.subr.mxu0 0.0
        %5027 = vmatpush1.xpose.msra.mxu0 0.0
        %5028 = vmatprep.subr.mxu0 0.0
        %5029 = vmatpush1.xpose.msra.mxu0 0.0
        %5030 = vmatprep.subr.mxu0 0.0
        %5031 = vmatpush1.xpose.msra.mxu0 0.0
        %5032 = vmatprep.subr.mxu0 0.0
        %5033 = vmatpush1.xpose.msra.mxu0 0.0
        %5034 = vmatprep.subr.mxu0 0.0
        %5035 = vmatpush1.xpose.msra.mxu0 0.0
        %5036 = vmatprep.subr.mxu0 0.0
        %5037 = vmatpush1.xpose.msra.mxu0 0.0
        %5038 = vmatprep.subr.mxu0 0.0
        %5039 = vmatpush1.xpose.msra.mxu0 0.0
        %5040 = vmatprep.subr.mxu0 0.0
        %5041 = vmatpush1.xpose.msra.mxu0 0.0
        %5042 = vmatprep.subr.mxu0 0.0
        %5043 = vmatpush1.xpose.msra.mxu0 0.0
        %5044 = vmatprep.subr.mxu0 0.0
        %5045 = vmatpush1.xpose.msra.mxu0 0.0
        %5046 = vmatprep.subr.mxu0 0.0
        %5047 = vmatpush1.xpose.msra.mxu0 0.0
        %5048 = vmatprep.subr.mxu0 0.0
        %5049 = vmatpush1.xpose.msra.mxu0 0.0
        %5050 = vmatprep.subr.mxu0 0.0
        %5051 = vmatpush1.xpose.msra.mxu0 0.0
        %5052 = vmatprep.subr.mxu0 0.0
        %5053 = vmatpush1.xpose.msra.mxu0 0.0
        %5054 = vmatprep.subr.mxu0 0.0
        %5055 = vmatpush1.xpose.msra.mxu0 0.0
        %5056 = vmatprep.subr.mxu0 0.0
        %5057 = vmatpush1.xpose.msra.mxu0 0.0
        %5058 = vmatprep.subr.mxu0 0.0
        %5059 = vmatpush1.xpose.msra.mxu0 0.0
        %5060 = vmatprep.subr.mxu0 0.0
        %5061 = vmatpush1.xpose.msra.mxu0 0.0
        %5062 = vmatprep.subr.mxu0 0.0
        %5063 = vmatpush1.xpose.msra.mxu0 0.0
        %5064 = vmatprep.subr.mxu0 0.0
        %5065 = vmatpush1.xpose.msra.mxu0 0.0
        %5066 = vmatprep.subr.mxu0 0.0
        %5067 = vmatpush1.xpose.msra.mxu0 0.0
        %5068 = vmatprep.subr.mxu0 0.0
        %5069 = vmatpush1.xpose.msra.mxu0 0.0
        %5070 = vmatprep.subr.mxu0 0.0
        %5071 = vmatpush1.xpose.msra.mxu0 0.0
        %5072 = vmatprep.subr.mxu0 0.0
        %5073 = vmatpush1.xpose.msra.mxu0 0.0
        %5074 = vmatprep.subr.mxu0 0.0
        %5075 = vmatpush1.xpose.msra.mxu0 0.0
        %5076 = vmatprep.subr.mxu0 0.0
        %5077 = vmatpush1.xpose.msra.mxu0 0.0
        %5078 = vmatprep.subr.mxu0 0.0
        %5079 = vmatpush1.xpose.msra.mxu0 0.0
        %5080 = vmatprep.subr.mxu0 0.0
        %5081 = vmatpush1.xpose.msra.mxu0 0.0
        %5082 = vmatprep.subr.mxu0 0.0
        %5083 = vmatpush1.xpose.msra.mxu0 0.0
        %5084 = vmatprep.mubr.f32.mxu0 0.0
        %5085 = vmatmul.mubr.f32.gmra.mrb[0].mxu0 %v5009
        %v5086 = vpop.f32.mrb[0].mxu0
        %v5087 = vadd.f32 0.0, %v5086
        %v5088 = vpop.f32.mrb[0].mxu0
        %5089 = vmatprep.mubr.f32.mxu0 0.0
        %5090 = vmatmul.mubr.f32.gmra.mrb[0].mxu0 %v5012
        %v5091 = vpop.f32.mrb[0].mxu0
        %v5092 = vadd.f32 0.0, %v5091
        %v5093 = vpop.f32.mrb[0].mxu0
        %5094 = vdwg.mxu0
        %v5096 = vsel %vm4659, %v1896, 0
        %v5099 = vsel %vm4659, %v2032, 0
        %v5102 = vsel %vm4659, %v3072, 0
        %v5105 = vsel %vm4659, %v3208, 0
        %5107 = vmatprep.subr.mxu0 0.0
        %5108 = vmatpush1.xpose.msra.mxu0 %v5102
        %5109 = vmatprep.subr.mxu0 0.0
        %5110 = vmatpush1.xpose.msra.mxu0 %v5105
        %5111 = vmatprep.subr.mxu0 0.0
        %5112 = vmatpush1.xpose.msra.mxu0 0.0
        %5113 = vmatprep.subr.mxu0 0.0
        %5114 = vmatpush1.xpose.msra.mxu0 0.0
        %5115 = vmatprep.subr.mxu0 0.0
        %5116 = vmatpush1.xpose.msra.mxu0 0.0
        %5117 = vmatprep.subr.mxu0 0.0
        %5118 = vmatpush1.xpose.msra.mxu0 0.0
        %5119 = vmatprep.subr.mxu0 0.0
        %5120 = vmatpush1.xpose.msra.mxu0 0.0
        %5121 = vmatprep.subr.mxu0 0.0
        %5122 = vmatpush1.xpose.msra.mxu0 0.0
        %5123 = vmatprep.subr.mxu0 0.0
        %5124 = vmatpush1.xpose.msra.mxu0 0.0
        %5125 = vmatprep.subr.mxu0 0.0
        %5126 = vmatpush1.xpose.msra.mxu0 0.0
        %5127 = vmatprep.subr.mxu0 0.0
        %5128 = vmatpush1.xpose.msra.mxu0 0.0
        %5129 = vmatprep.subr.mxu0 0.0
        %5130 = vmatpush1.xpose.msra.mxu0 0.0
        %5131 = vmatprep.subr.mxu0 0.0
        %5132 = vmatpush1.xpose.msra.mxu0 0.0
        %5133 = vmatprep.subr.mxu0 0.0
        %5134 = vmatpush1.xpose.msra.mxu0 0.0
        %5135 = vmatprep.subr.mxu0 0.0
        %5136 = vmatpush1.xpose.msra.mxu0 0.0
        %5137 = vmatprep.subr.mxu0 0.0
        %5138 = vmatpush1.xpose.msra.mxu0 0.0
        %5139 = vmatprep.subr.mxu0 0.0
        %5140 = vmatpush1.xpose.msra.mxu0 0.0
        %5141 = vmatprep.subr.mxu0 0.0
        %5142 = vmatpush1.xpose.msra.mxu0 0.0
        %5143 = vmatprep.subr.mxu0 0.0
        %5144 = vmatpush1.xpose.msra.mxu0 0.0
        %5145 = vmatprep.subr.mxu0 0.0
        %5146 = vmatpush1.xpose.msra.mxu0 0.0
        %5147 = vmatprep.subr.mxu0 0.0
        %5148 = vmatpush1.xpose.msra.mxu0 0.0
        %5149 = vmatprep.subr.mxu0 0.0
        %5150 = vmatpush1.xpose.msra.mxu0 0.0
        %5151 = vmatprep.subr.mxu0 0.0
        %5152 = vmatpush1.xpose.msra.mxu0 0.0
        %5153 = vmatprep.subr.mxu0 0.0
        %5154 = vmatpush1.xpose.msra.mxu0 0.0
        %5155 = vmatprep.subr.mxu0 0.0
        %5156 = vmatpush1.xpose.msra.mxu0 0.0
        %5157 = vmatprep.subr.mxu0 0.0
        %5158 = vmatpush1.xpose.msra.mxu0 0.0
        %5159 = vmatprep.subr.mxu0 0.0
        %5160 = vmatpush1.xpose.msra.mxu0 0.0
        %5161 = vmatprep.subr.mxu0 0.0
        %5162 = vmatpush1.xpose.msra.mxu0 0.0
        %5163 = vmatprep.subr.mxu0 0.0
        %5164 = vmatpush1.xpose.msra.mxu0 0.0
        %5165 = vmatprep.subr.mxu0 0.0
        %5166 = vmatpush1.xpose.msra.mxu0 0.0
        %5167 = vmatprep.subr.mxu0 0.0
        %5168 = vmatpush1.xpose.msra.mxu0 0.0
        %5169 = vmatprep.subr.mxu0 0.0
        %5170 = vmatpush1.xpose.msra.mxu0 0.0
        %5171 = vmatprep.mubr.f32.mxu0 0.0
        %5172 = vmatmul.mubr.f32.gmra.mrb[0].mxu0 %v5096
        %v5173 = vpop.f32.mrb[0].mxu0
        %v5174 = vadd.f32 0.0, %v5173
        %v5175 = vpop.f32.mrb[0].mxu0
        %5176 = vmatprep.mubr.f32.mxu0 0.0
        %5177 = vmatmul.mubr.f32.gmra.mrb[0].mxu0 %v5099
        %v5178 = vpop.f32.mrb[0].mxu0
        %v5179 = vadd.f32 0.0, %v5178
        %v5180 = vpop.f32.mrb[0].mxu0
        %5181 = vdwg.mxu0
        %v5183 = vsel %vm4659, %v1897, 0
        %v5186 = vsel %vm4659, %v2033, 0
        %v5189 = vsel %vm4659, %v3073, 0
        %v5192 = vsel %vm4659, %v3209, 0
        %5194 = vmatprep.subr.mxu0 0.0
        %5195 = vmatpush1.xpose.msra.mxu0 %v5189
        %5196 = vmatprep.subr.mxu0 0.0
        %5197 = vmatpush1.xpose.msra.mxu0 %v5192
        %5198 = vmatprep.subr.mxu0 0.0
        %5199 = vmatpush1.xpose.msra.mxu0 0.0
        %5200 = vmatprep.subr.mxu0 0.0
        %5201 = vmatpush1.xpose.msra.mxu0 0.0
        %5202 = vmatprep.subr.mxu0 0.0
        %5203 = vmatpush1.xpose.msra.mxu0 0.0
        %5204 = vmatprep.subr.mxu0 0.0
        %5205 = vmatpush1.xpose.msra.mxu0 0.0
        %5206 = vmatprep.subr.mxu0 0.0
        %5207 = vmatpush1.xpose.msra.mxu0 0.0
        %5208 = vmatprep.subr.mxu0 0.0
        %5209 = vmatpush1.xpose.msra.mxu0 0.0
        %5210 = vmatprep.subr.mxu0 0.0
        %5211 = vmatpush1.xpose.msra.mxu0 0.0
        %5212 = vmatprep.subr.mxu0 0.0
        %5213 = vmatpush1.xpose.msra.mxu0 0.0
        %5214 = vmatprep.subr.mxu0 0.0
        %5215 = vmatpush1.xpose.msra.mxu0 0.0
        %5216 = vmatprep.subr.mxu0 0.0
        %5217 = vmatpush1.xpose.msra.mxu0 0.0
        %5218 = vmatprep.subr.mxu0 0.0
        %5219 = vmatpush1.xpose.msra.mxu0 0.0
        %5220 = vmatprep.subr.mxu0 0.0
        %5221 = vmatpush1.xpose.msra.mxu0 0.0
        %5222 = vmatprep.subr.mxu0 0.0
        %5223 = vmatpush1.xpose.msra.mxu0 0.0
        %5224 = vmatprep.subr.mxu0 0.0
        %5225 = vmatpush1.xpose.msra.mxu0 0.0
        %5226 = vmatprep.subr.mxu0 0.0
        %5227 = vmatpush1.xpose.msra.mxu0 0.0
        %5228 = vmatprep.subr.mxu0 0.0
        %5229 = vmatpush1.xpose.msra.mxu0 0.0
        %5230 = vmatprep.subr.mxu0 0.0
        %5231 = vmatpush1.xpose.msra.mxu0 0.0
        %5232 = vmatprep.subr.mxu0 0.0
        %5233 = vmatpush1.xpose.msra.mxu0 0.0
        %5234 = vmatprep.subr.mxu0 0.0
        %5235 = vmatpush1.xpose.msra.mxu0 0.0
        %5236 = vmatprep.subr.mxu0 0.0
        %5237 = vmatpush1.xpose.msra.mxu0 0.0
        %5238 = vmatprep.subr.mxu0 0.0
        %5239 = vmatpush1.xpose.msra.mxu0 0.0
        %5240 = vmatprep.subr.mxu0 0.0
        %5241 = vmatpush1.xpose.msra.mxu0 0.0
        %5242 = vmatprep.subr.mxu0 0.0
        %5243 = vmatpush1.xpose.msra.mxu0 0.0
        %5244 = vmatprep.subr.mxu0 0.0
        %5245 = vmatpush1.xpose.msra.mxu0 0.0
        %5246 = vmatprep.subr.mxu0 0.0
        %5247 = vmatpush1.xpose.msra.mxu0 0.0
        %5248 = vmatprep.subr.mxu0 0.0
        %5249 = vmatpush1.xpose.msra.mxu0 0.0
        %5250 = vmatprep.subr.mxu0 0.0
        %5251 = vmatpush1.xpose.msra.mxu0 0.0
        %5252 = vmatprep.subr.mxu0 0.0
        %5253 = vmatpush1.xpose.msra.mxu0 0.0
        %5254 = vmatprep.subr.mxu0 0.0
        %5255 = vmatpush1.xpose.msra.mxu0 0.0
        %5256 = vmatprep.subr.mxu0 0.0
        %5257 = vmatpush1.xpose.msra.mxu0 0.0
        %5258 = vmatprep.mubr.f32.mxu0 0.0
        %5259 = vmatmul.mubr.f32.gmra.mrb[0].mxu0 %v5183
        %v5260 = vpop.f32.mrb[0].mxu0
        %v5261 = vadd.f32 0.0, %v5260
        %v5262 = vpop.f32.mrb[0].mxu0
        %5263 = vmatprep.mubr.f32.mxu0 0.0
        %5264 = vmatmul.mubr.f32.gmra.mrb[0].mxu0 %v5186
        %v5265 = vpop.f32.mrb[0].mxu0
        %v5266 = vadd.f32 0.0, %v5265
        %v5267 = vpop.f32.mrb[0].mxu0
        %5268 = vdwg.mxu0
        %v5270 = vsel %vm4659, %v1898, 0
        %v5273 = vsel %vm4659, %v2034, 0
        %v5276 = vsel %vm4659, %v3074, 0
        %v5279 = vsel %vm4659, %v3210, 0
        %5281 = vmatprep.subr.mxu0 0.0
        %5282 = vmatpush1.xpose.msra.mxu0 %v5276
        %5283 = vmatprep.subr.mxu0 0.0
        %5284 = vmatpush1.xpose.msra.mxu0 %v5279
        %5285 = vmatprep.subr.mxu0 0.0
        %5286 = vmatpush1.xpose.msra.mxu0 0.0
        %5287 = vmatprep.subr.mxu0 0.0
        %5288 = vmatpush1.xpose.msra.mxu0 0.0
        %5289 = vmatprep.subr.mxu0 0.0
        %5290 = vmatpush1.xpose.msra.mxu0 0.0
        %5291 = vmatprep.subr.mxu0 0.0
        %5292 = vmatpush1.xpose.msra.mxu0 0.0
        %5293 = vmatprep.subr.mxu0 0.0
        %5294 = vmatpush1.xpose.msra.mxu0 0.0
        %5295 = vmatprep.subr.mxu0 0.0
        %5296 = vmatpush1.xpose.msra.mxu0 0.0
        %5297 = vmatprep.subr.mxu0 0.0
        %5298 = vmatpush1.xpose.msra.mxu0 0.0
        %5299 = vmatprep.subr.mxu0 0.0
        %5300 = vmatpush1.xpose.msra.mxu0 0.0
        %5301 = vmatprep.subr.mxu0 0.0
        %5302 = vmatpush1.xpose.msra.mxu0 0.0
        %5303 = vmatprep.subr.mxu0 0.0
        %5304 = vmatpush1.xpose.msra.mxu0 0.0
        %5305 = vmatprep.subr.mxu0 0.0
        %5306 = vmatpush1.xpose.msra.mxu0 0.0
        %5307 = vmatprep.subr.mxu0 0.0
        %5308 = vmatpush1.xpose.msra.mxu0 0.0
        %5309 = vmatprep.subr.mxu0 0.0
        %5310 = vmatpush1.xpose.msra.mxu0 0.0
        %5311 = vmatprep.subr.mxu0 0.0
        %5312 = vmatpush1.xpose.msra.mxu0 0.0
        %5313 = vmatprep.subr.mxu0 0.0
        %5314 = vmatpush1.xpose.msra.mxu0 0.0
        %5315 = vmatprep.subr.mxu0 0.0
        %5316 = vmatpush1.xpose.msra.mxu0 0.0
        %5317 = vmatprep.subr.mxu0 0.0
        %5318 = vmatpush1.xpose.msra.mxu0 0.0
        %5319 = vmatprep.subr.mxu0 0.0
        %5320 = vmatpush1.xpose.msra.mxu0 0.0
        %5321 = vmatprep.subr.mxu0 0.0
        %5322 = vmatpush1.xpose.msra.mxu0 0.0
        %5323 = vmatprep.subr.mxu0 0.0
        %5324 = vmatpush1.xpose.msra.mxu0 0.0
        %5325 = vmatprep.subr.mxu0 0.0
        %5326 = vmatpush1.xpose.msra.mxu0 0.0
        %5327 = vmatprep.subr.mxu0 0.0
        %5328 = vmatpush1.xpose.msra.mxu0 0.0
        %5329 = vmatprep.subr.mxu0 0.0
        %5330 = vmatpush1.xpose.msra.mxu0 0.0
        %5331 = vmatprep.subr.mxu0 0.0
        %5332 = vmatpush1.xpose.msra.mxu0 0.0
        %5333 = vmatprep.subr.mxu0 0.0
        %5334 = vmatpush1.xpose.msra.mxu0 0.0
        %5335 = vmatprep.subr.mxu0 0.0
        %5336 = vmatpush1.xpose.msra.mxu0 0.0
        %5337 = vmatprep.subr.mxu0 0.0
        %5338 = vmatpush1.xpose.msra.mxu0 0.0
        %5339 = vmatprep.subr.mxu0 0.0
        %5340 = vmatpush1.xpose.msra.mxu0 0.0
        %5341 = vmatprep.subr.mxu0 0.0
        %5342 = vmatpush1.xpose.msra.mxu0 0.0
        %5343 = vmatprep.subr.mxu0 0.0
        %5344 = vmatpush1.xpose.msra.mxu0 0.0
        %5345 = vmatprep.mubr.f32.mxu0 0.0
        %5346 = vmatmul.mubr.f32.gmra.mrb[0].mxu0 %v5270
        %v5347 = vpop.f32.mrb[0].mxu0
        %v5348 = vadd.f32 0.0, %v5347
        %v5349 = vpop.f32.mrb[0].mxu0
        %5350 = vmatprep.mubr.f32.mxu0 0.0
        %5351 = vmatmul.mubr.f32.gmra.mrb[0].mxu0 %v5273
        %v5352 = vpop.f32.mrb[0].mxu0
        %v5353 = vadd.f32 0.0, %v5352
        %v5354 = vpop.f32.mrb[0].mxu0
        %5355 = vdwg.mxu0
        %v5357 = vsel %vm4659, %v2163, 0
        %v5360 = vsel %vm4659, %v2299, 0
        %v5363 = vsel %vm4659, %v3339, 0
        %v5366 = vsel %vm4659, %v3475, 0
        %5368 = vmatprep.subr.mxu0 0.0
        %5369 = vmatpush1.xpose.msra.mxu0 %v5363
        %5370 = vmatprep.subr.mxu0 0.0
        %5371 = vmatpush1.xpose.msra.mxu0 %v5366
        %5372 = vmatprep.subr.mxu0 0.0
        %5373 = vmatpush1.xpose.msra.mxu0 0.0
        %5374 = vmatprep.subr.mxu0 0.0
        %5375 = vmatpush1.xpose.msra.mxu0 0.0
        %5376 = vmatprep.subr.mxu0 0.0
        %5377 = vmatpush1.xpose.msra.mxu0 0.0
        %5378 = vmatprep.subr.mxu0 0.0
        %5379 = vmatpush1.xpose.msra.mxu0 0.0
        %5380 = vmatprep.subr.mxu0 0.0
        %5381 = vmatpush1.xpose.msra.mxu0 0.0
        %5382 = vmatprep.subr.mxu0 0.0
        %5383 = vmatpush1.xpose.msra.mxu0 0.0
        %5384 = vmatprep.subr.mxu0 0.0
        %5385 = vmatpush1.xpose.msra.mxu0 0.0
        %5386 = vmatprep.subr.mxu0 0.0
        %5387 = vmatpush1.xpose.msra.mxu0 0.0
        %5388 = vmatprep.subr.mxu0 0.0
        %5389 = vmatpush1.xpose.msra.mxu0 0.0
        %5390 = vmatprep.subr.mxu0 0.0
        %5391 = vmatpush1.xpose.msra.mxu0 0.0
        %5392 = vmatprep.subr.mxu0 0.0
        %5393 = vmatpush1.xpose.msra.mxu0 0.0
        %5394 = vmatprep.subr.mxu0 0.0
        %5395 = vmatpush1.xpose.msra.mxu0 0.0
        %5396 = vmatprep.subr.mxu0 0.0
        %5397 = vmatpush1.xpose.msra.mxu0 0.0
        %5398 = vmatprep.subr.mxu0 0.0
        %5399 = vmatpush1.xpose.msra.mxu0 0.0
        %5400 = vmatprep.subr.mxu0 0.0
        %5401 = vmatpush1.xpose.msra.mxu0 0.0
        %5402 = vmatprep.subr.mxu0 0.0
        %5403 = vmatpush1.xpose.msra.mxu0 0.0
        %5404 = vmatprep.subr.mxu0 0.0
        %5405 = vmatpush1.xpose.msra.mxu0 0.0
        %5406 = vmatprep.subr.mxu0 0.0
        %5407 = vmatpush1.xpose.msra.mxu0 0.0
        %5408 = vmatprep.subr.mxu0 0.0
        %5409 = vmatpush1.xpose.msra.mxu0 0.0
        %5410 = vmatprep.subr.mxu0 0.0
        %5411 = vmatpush1.xpose.msra.mxu0 0.0
        %5412 = vmatprep.subr.mxu0 0.0
        %5413 = vmatpush1.xpose.msra.mxu0 0.0
        %5414 = vmatprep.subr.mxu0 0.0
        %5415 = vmatpush1.xpose.msra.mxu0 0.0
        %5416 = vmatprep.subr.mxu0 0.0
        %5417 = vmatpush1.xpose.msra.mxu0 0.0
        %5418 = vmatprep.subr.mxu0 0.0
        %5419 = vmatpush1.xpose.msra.mxu0 0.0
        %5420 = vmatprep.subr.mxu0 0.0
        %5421 = vmatpush1.xpose.msra.mxu0 0.0
        %5422 = vmatprep.subr.mxu0 0.0
        %5423 = vmatpush1.xpose.msra.mxu0 0.0
        %5424 = vmatprep.subr.mxu0 0.0
        %5425 = vmatpush1.xpose.msra.mxu0 0.0
        %5426 = vmatprep.subr.mxu0 0.0
        %5427 = vmatpush1.xpose.msra.mxu0 0.0
        %5428 = vmatprep.subr.mxu0 0.0
        %5429 = vmatpush1.xpose.msra.mxu0 0.0
        %5430 = vmatprep.subr.mxu0 0.0
        %5431 = vmatpush1.xpose.msra.mxu0 0.0
        %5432 = vmatprep.mubr.f32.mxu0 0.0
        %5433 = vmatmul.mubr.f32.gmra.mrb[0].mxu0 %v5357
        %v5434 = vpop.f32.mrb[0].mxu0
        %v5435 = vadd.f32 0.0, %v5434
        %v5436 = vpop.f32.mrb[0].mxu0
        %5437 = vmatprep.mubr.f32.mxu0 0.0
        %5438 = vmatmul.mubr.f32.gmra.mrb[0].mxu0 %v5360
        %v5439 = vpop.f32.mrb[0].mxu0
        %v5440 = vadd.f32 0.0, %v5439
        %v5441 = vpop.f32.mrb[0].mxu0
        %5442 = vdwg.mxu0
        %v5444 = vsel %vm4659, %v2164, 0
        %v5447 = vsel %vm4659, %v2300, 0
        %v5450 = vsel %vm4659, %v3340, 0
        %v5453 = vsel %vm4659, %v3476, 0
        %5455 = vmatprep.subr.mxu0 0.0
        %5456 = vmatpush1.xpose.msra.mxu0 %v5450
        %5457 = vmatprep.subr.mxu0 0.0
        %5458 = vmatpush1.xpose.msra.mxu0 %v5453
        %5459 = vmatprep.subr.mxu0 0.0
        %5460 = vmatpush1.xpose.msra.mxu0 0.0
        %5461 = vmatprep.subr.mxu0 0.0
        %5462 = vmatpush1.xpose.msra.mxu0 0.0
        %5463 = vmatprep.subr.mxu0 0.0
        %5464 = vmatpush1.xpose.msra.mxu0 0.0
        %5465 = vmatprep.subr.mxu0 0.0
        %5466 = vmatpush1.xpose.msra.mxu0 0.0
        %5467 = vmatprep.subr.mxu0 0.0
        %5468 = vmatpush1.xpose.msra.mxu0 0.0
        %5469 = vmatprep.subr.mxu0 0.0
        %5470 = vmatpush1.xpose.msra.mxu0 0.0
        %5471 = vmatprep.subr.mxu0 0.0
        %5472 = vmatpush1.xpose.msra.mxu0 0.0
        %5473 = vmatprep.subr.mxu0 0.0
        %5474 = vmatpush1.xpose.msra.mxu0 0.0
        %5475 = vmatprep.subr.mxu0 0.0
        %5476 = vmatpush1.xpose.msra.mxu0 0.0
        %5477 = vmatprep.subr.mxu0 0.0
        %5478 = vmatpush1.xpose.msra.mxu0 0.0
        %5479 = vmatprep.subr.mxu0 0.0
        %5480 = vmatpush1.xpose.msra.mxu0 0.0
        %5481 = vmatprep.subr.mxu0 0.0
        %5482 = vmatpush1.xpose.msra.mxu0 0.0
        %5483 = vmatprep.subr.mxu0 0.0
        %5484 = vmatpush1.xpose.msra.mxu0 0.0
        %5485 = vmatprep.subr.mxu0 0.0
        %5486 = vmatpush1.xpose.msra.mxu0 0.0
        %5487 = vmatprep.subr.mxu0 0.0
        %5488 = vmatpush1.xpose.msra.mxu0 0.0
        %5489 = vmatprep.subr.mxu0 0.0
        %5490 = vmatpush1.xpose.msra.mxu0 0.0
        %5491 = vmatprep.subr.mxu0 0.0
        %5492 = vmatpush1.xpose.msra.mxu0 0.0
        %5493 = vmatprep.subr.mxu0 0.0
        %5494 = vmatpush1.xpose.msra.mxu0 0.0
        %5495 = vmatprep.subr.mxu0 0.0
        %5496 = vmatpush1.xpose.msra.mxu0 0.0
        %5497 = vmatprep.subr.mxu0 0.0
        %5498 = vmatpush1.xpose.msra.mxu0 0.0
        %5499 = vmatprep.subr.mxu0 0.0
        %5500 = vmatpush1.xpose.msra.mxu0 0.0
        %5501 = vmatprep.subr.mxu0 0.0
        %5502 = vmatpush1.xpose.msra.mxu0 0.0
        %5503 = vmatprep.subr.mxu0 0.0
        %5504 = vmatpush1.xpose.msra.mxu0 0.0
        %5505 = vmatprep.subr.mxu0 0.0
        %5506 = vmatpush1.xpose.msra.mxu0 0.0
        %5507 = vmatprep.subr.mxu0 0.0
        %5508 = vmatpush1.xpose.msra.mxu0 0.0
        %5509 = vmatprep.subr.mxu0 0.0
        %5510 = vmatpush1.xpose.msra.mxu0 0.0
        %5511 = vmatprep.subr.mxu0 0.0
        %5512 = vmatpush1.xpose.msra.mxu0 0.0
        %5513 = vmatprep.subr.mxu0 0.0
        %5514 = vmatpush1.xpose.msra.mxu0 0.0
        %5515 = vmatprep.subr.mxu0 0.0
        %5516 = vmatpush1.xpose.msra.mxu0 0.0
        %5517 = vmatprep.subr.mxu0 0.0
        %5518 = vmatpush1.xpose.msra.mxu0 0.0
        %5519 = vmatprep.mubr.f32.mxu0 0.0
        %5520 = vmatmul.mubr.f32.gmra.mrb[0].mxu0 %v5444
        %v5521 = vpop.f32.mrb[0].mxu0
        %v5522 = vadd.f32 0.0, %v5521
        %v5523 = vpop.f32.mrb[0].mxu0
        %5524 = vmatprep.mubr.f32.mxu0 0.0
        %5525 = vmatmul.mubr.f32.gmra.mrb[0].mxu0 %v5447
        %v5526 = vpop.f32.mrb[0].mxu0
        %v5527 = vadd.f32 0.0, %v5526
        %v5528 = vpop.f32.mrb[0].mxu0
        %5529 = vdwg.mxu0
        %v5531 = vsel %vm4659, %v2165, 0
        %v5534 = vsel %vm4659, %v2301, 0
        %v5537 = vsel %vm4659, %v3341, 0
        %v5540 = vsel %vm4659, %v3477, 0
        %5542 = vmatprep.subr.mxu0 0.0
        %5543 = vmatpush1.xpose.msra.mxu0 %v5537
        %5544 = vmatprep.subr.mxu0 0.0
        %5545 = vmatpush1.xpose.msra.mxu0 %v5540
        %5546 = vmatprep.subr.mxu0 0.0
        %5547 = vmatpush1.xpose.msra.mxu0 0.0
        %5548 = vmatprep.subr.mxu0 0.0
        %5549 = vmatpush1.xpose.msra.mxu0 0.0
        %5550 = vmatprep.subr.mxu0 0.0
        %5551 = vmatpush1.xpose.msra.mxu0 0.0
        %5552 = vmatprep.subr.mxu0 0.0
        %5553 = vmatpush1.xpose.msra.mxu0 0.0
        %5554 = vmatprep.subr.mxu0 0.0
        %5555 = vmatpush1.xpose.msra.mxu0 0.0
        %5556 = vmatprep.subr.mxu0 0.0
        %5557 = vmatpush1.xpose.msra.mxu0 0.0
        %5558 = vmatprep.subr.mxu0 0.0
        %5559 = vmatpush1.xpose.msra.mxu0 0.0
        %5560 = vmatprep.subr.mxu0 0.0
        %5561 = vmatpush1.xpose.msra.mxu0 0.0
        %5562 = vmatprep.subr.mxu0 0.0
        %5563 = vmatpush1.xpose.msra.mxu0 0.0
        %5564 = vmatprep.subr.mxu0 0.0
        %5565 = vmatpush1.xpose.msra.mxu0 0.0
        %5566 = vmatprep.subr.mxu0 0.0
        %5567 = vmatpush1.xpose.msra.mxu0 0.0
        %5568 = vmatprep.subr.mxu0 0.0
        %5569 = vmatpush1.xpose.msra.mxu0 0.0
        %5570 = vmatprep.subr.mxu0 0.0
        %5571 = vmatpush1.xpose.msra.mxu0 0.0
        %5572 = vmatprep.subr.mxu0 0.0
        %5573 = vmatpush1.xpose.msra.mxu0 0.0
        %5574 = vmatprep.subr.mxu0 0.0
        %5575 = vmatpush1.xpose.msra.mxu0 0.0
        %5576 = vmatprep.subr.mxu0 0.0
        %5577 = vmatpush1.xpose.msra.mxu0 0.0
        %5578 = vmatprep.subr.mxu0 0.0
        %5579 = vmatpush1.xpose.msra.mxu0 0.0
        %5580 = vmatprep.subr.mxu0 0.0
        %5581 = vmatpush1.xpose.msra.mxu0 0.0
        %5582 = vmatprep.subr.mxu0 0.0
        %5583 = vmatpush1.xpose.msra.mxu0 0.0
        %5584 = vmatprep.subr.mxu0 0.0
        %5585 = vmatpush1.xpose.msra.mxu0 0.0
        %5586 = vmatprep.subr.mxu0 0.0
        %5587 = vmatpush1.xpose.msra.mxu0 0.0
        %5588 = vmatprep.subr.mxu0 0.0
        %5589 = vmatpush1.xpose.msra.mxu0 0.0
        %5590 = vmatprep.subr.mxu0 0.0
        %5591 = vmatpush1.xpose.msra.mxu0 0.0
        %5592 = vmatprep.subr.mxu0 0.0
        %5593 = vmatpush1.xpose.msra.mxu0 0.0
        %5594 = vmatprep.subr.mxu0 0.0
        %5595 = vmatpush1.xpose.msra.mxu0 0.0
        %5596 = vmatprep.subr.mxu0 0.0
        %5597 = vmatpush1.xpose.msra.mxu0 0.0
        %5598 = vmatprep.subr.mxu0 0.0
        %5599 = vmatpush1.xpose.msra.mxu0 0.0
        %5600 = vmatprep.subr.mxu0 0.0
        %5601 = vmatpush1.xpose.msra.mxu0 0.0
        %5602 = vmatprep.subr.mxu0 0.0
        %5603 = vmatpush1.xpose.msra.mxu0 0.0
        %5604 = vmatprep.subr.mxu0 0.0
        %5605 = vmatpush1.xpose.msra.mxu0 0.0
        %5606 = vmatprep.mubr.f32.mxu0 0.0
        %5607 = vmatmul.mubr.f32.gmra.mrb[0].mxu0 %v5531
        %v5608 = vpop.f32.mrb[0].mxu0
        %v5609 = vadd.f32 0.0, %v5608
        %v5610 = vpop.f32.mrb[0].mxu0
        %5611 = vmatprep.mubr.f32.mxu0 0.0
        %5612 = vmatmul.mubr.f32.gmra.mrb[0].mxu0 %v5534
        %v5613 = vpop.f32.mrb[0].mxu0
        %v5614 = vadd.f32 0.0, %v5613
        %v5615 = vpop.f32.mrb[0].mxu0
        %5616 = vdwg.mxu0
        %v5618 = vsel %vm4659, %v2166, 0
        %v5621 = vsel %vm4659, %v2302, 0
        %v5624 = vsel %vm4659, %v3342, 0
        %v5627 = vsel %vm4659, %v3478, 0
        %5629 = vmatprep.subr.mxu0 0.0
        %5630 = vmatpush1.xpose.msra.mxu0 %v5624
        %5631 = vmatprep.subr.mxu0 0.0
        %5632 = vmatpush1.xpose.msra.mxu0 %v5627
        %5633 = vmatprep.subr.mxu0 0.0
        %5634 = vmatpush1.xpose.msra.mxu0 0.0
        %5635 = vmatprep.subr.mxu0 0.0
        %5636 = vmatpush1.xpose.msra.mxu0 0.0
        %5637 = vmatprep.subr.mxu0 0.0
        %5638 = vmatpush1.xpose.msra.mxu0 0.0
        %5639 = vmatprep.subr.mxu0 0.0
        %5640 = vmatpush1.xpose.msra.mxu0 0.0
        %5641 = vmatprep.subr.mxu0 0.0
        %5642 = vmatpush1.xpose.msra.mxu0 0.0
        %5643 = vmatprep.subr.mxu0 0.0
        %5644 = vmatpush1.xpose.msra.mxu0 0.0
        %5645 = vmatprep.subr.mxu0 0.0
        %5646 = vmatpush1.xpose.msra.mxu0 0.0
        %5647 = vmatprep.subr.mxu0 0.0
        %5648 = vmatpush1.xpose.msra.mxu0 0.0
        %5649 = vmatprep.subr.mxu0 0.0
        %5650 = vmatpush1.xpose.msra.mxu0 0.0
        %5651 = vmatprep.subr.mxu0 0.0
        %5652 = vmatpush1.xpose.msra.mxu0 0.0
        %5653 = vmatprep.subr.mxu0 0.0
        %5654 = vmatpush1.xpose.msra.mxu0 0.0
        %5655 = vmatprep.subr.mxu0 0.0
        %5656 = vmatpush1.xpose.msra.mxu0 0.0
        %5657 = vmatprep.subr.mxu0 0.0
        %5658 = vmatpush1.xpose.msra.mxu0 0.0
        %5659 = vmatprep.subr.mxu0 0.0
        %5660 = vmatpush1.xpose.msra.mxu0 0.0
        %5661 = vmatprep.subr.mxu0 0.0
        %5662 = vmatpush1.xpose.msra.mxu0 0.0
        %5663 = vmatprep.subr.mxu0 0.0
        %5664 = vmatpush1.xpose.msra.mxu0 0.0
        %5665 = vmatprep.subr.mxu0 0.0
        %5666 = vmatpush1.xpose.msra.mxu0 0.0
        %5667 = vmatprep.subr.mxu0 0.0
        %5668 = vmatpush1.xpose.msra.mxu0 0.0
        %5669 = vmatprep.subr.mxu0 0.0
        %5670 = vmatpush1.xpose.msra.mxu0 0.0
        %5671 = vmatprep.subr.mxu0 0.0
        %5672 = vmatpush1.xpose.msra.mxu0 0.0
        %5673 = vmatprep.subr.mxu0 0.0
        %5674 = vmatpush1.xpose.msra.mxu0 0.0
        %5675 = vmatprep.subr.mxu0 0.0
        %5676 = vmatpush1.xpose.msra.mxu0 0.0
        %5677 = vmatprep.subr.mxu0 0.0
        %5678 = vmatpush1.xpose.msra.mxu0 0.0
        %5679 = vmatprep.subr.mxu0 0.0
        %5680 = vmatpush1.xpose.msra.mxu0 0.0
        %5681 = vmatprep.subr.mxu0 0.0
        %5682 = vmatpush1.xpose.msra.mxu0 0.0
        %5683 = vmatprep.subr.mxu0 0.0
        %5684 = vmatpush1.xpose.msra.mxu0 0.0
        %5685 = vmatprep.subr.mxu0 0.0
        %5686 = vmatpush1.xpose.msra.mxu0 0.0
        %5687 = vmatprep.subr.mxu0 0.0
        %5688 = vmatpush1.xpose.msra.mxu0 0.0
        %5689 = vmatprep.subr.mxu0 0.0
        %5690 = vmatpush1.xpose.msra.mxu0 0.0
        %5691 = vmatprep.subr.mxu0 0.0
        %5692 = vmatpush1.xpose.msra.mxu0 0.0
        %5693 = vmatprep.mubr.f32.mxu0 0.0
        %5694 = vmatmul.mubr.f32.gmra.mrb[0].mxu0 %v5618
        %v5695 = vpop.f32.mrb[0].mxu0
        %v5696 = vadd.f32 0.0, %v5695
        %v5697 = vpop.f32.mrb[0].mxu0
        %5698 = vmatprep.mubr.f32.mxu0 0.0
        %5699 = vmatmul.mubr.f32.gmra.mrb[0].mxu0 %v5621
        %v5700 = vpop.f32.mrb[0].mxu0
        %v5701 = vadd.f32 0.0, %v5700
        %v5702 = vpop.f32.mrb[0].mxu0
        %5703 = vdwg.mxu0
        %v5705 = vsel %vm4659, %v2167, 0
        %v5708 = vsel %vm4659, %v2303, 0
        %v5711 = vsel %vm4659, %v3343, 0
        %v5714 = vsel %vm4659, %v3479, 0
        %5716 = vmatprep.subr.mxu0 0.0
        %5717 = vmatpush1.xpose.msra.mxu0 %v5711
        %5718 = vmatprep.subr.mxu0 0.0
        %5719 = vmatpush1.xpose.msra.mxu0 %v5714
        %5720 = vmatprep.subr.mxu0 0.0
        %5721 = vmatpush1.xpose.msra.mxu0 0.0
        %5722 = vmatprep.subr.mxu0 0.0
        %5723 = vmatpush1.xpose.msra.mxu0 0.0
        %5724 = vmatprep.subr.mxu0 0.0
        %5725 = vmatpush1.xpose.msra.mxu0 0.0
        %5726 = vmatprep.subr.mxu0 0.0
        %5727 = vmatpush1.xpose.msra.mxu0 0.0
        %5728 = vmatprep.subr.mxu0 0.0
        %5729 = vmatpush1.xpose.msra.mxu0 0.0
        %5730 = vmatprep.subr.mxu0 0.0
        %5731 = vmatpush1.xpose.msra.mxu0 0.0
        %5732 = vmatprep.subr.mxu0 0.0
        %5733 = vmatpush1.xpose.msra.mxu0 0.0
        %5734 = vmatprep.subr.mxu0 0.0
        %5735 = vmatpush1.xpose.msra.mxu0 0.0
        %5736 = vmatprep.subr.mxu0 0.0
        %5737 = vmatpush1.xpose.msra.mxu0 0.0
        %5738 = vmatprep.subr.mxu0 0.0
        %5739 = vmatpush1.xpose.msra.mxu0 0.0
        %5740 = vmatprep.subr.mxu0 0.0
        %5741 = vmatpush1.xpose.msra.mxu0 0.0
        %5742 = vmatprep.subr.mxu0 0.0
        %5743 = vmatpush1.xpose.msra.mxu0 0.0
        %5744 = vmatprep.subr.mxu0 0.0
        %5745 = vmatpush1.xpose.msra.mxu0 0.0
        %5746 = vmatprep.subr.mxu0 0.0
        %5747 = vmatpush1.xpose.msra.mxu0 0.0
        %5748 = vmatprep.subr.mxu0 0.0
        %5749 = vmatpush1.xpose.msra.mxu0 0.0
        %5750 = vmatprep.subr.mxu0 0.0
        %5751 = vmatpush1.xpose.msra.mxu0 0.0
        %5752 = vmatprep.subr.mxu0 0.0
        %5753 = vmatpush1.xpose.msra.mxu0 0.0
        %5754 = vmatprep.subr.mxu0 0.0
        %5755 = vmatpush1.xpose.msra.mxu0 0.0
        %5756 = vmatprep.subr.mxu0 0.0
        %5757 = vmatpush1.xpose.msra.mxu0 0.0
        %5758 = vmatprep.subr.mxu0 0.0
        %5759 = vmatpush1.xpose.msra.mxu0 0.0
        %5760 = vmatprep.subr.mxu0 0.0
        %5761 = vmatpush1.xpose.msra.mxu0 0.0
        %5762 = vmatprep.subr.mxu0 0.0
        %5763 = vmatpush1.xpose.msra.mxu0 0.0
        %5764 = vmatprep.subr.mxu0 0.0
        %5765 = vmatpush1.xpose.msra.mxu0 0.0
        %5766 = vmatprep.subr.mxu0 0.0
        %5767 = vmatpush1.xpose.msra.mxu0 0.0
        %5768 = vmatprep.subr.mxu0 0.0
        %5769 = vmatpush1.xpose.msra.mxu0 0.0
        %5770 = vmatprep.subr.mxu0 0.0
        %5771 = vmatpush1.xpose.msra.mxu0 0.0
        %5772 = vmatprep.subr.mxu0 0.0
        %5773 = vmatpush1.xpose.msra.mxu0 0.0
        %5774 = vmatprep.subr.mxu0 0.0
        %5775 = vmatpush1.xpose.msra.mxu0 0.0
        %5776 = vmatprep.subr.mxu0 0.0
        %5777 = vmatpush1.xpose.msra.mxu0 0.0
        %5778 = vmatprep.subr.mxu0 0.0
        %5779 = vmatpush1.xpose.msra.mxu0 0.0
        %5780 = vmatprep.mubr.f32.mxu0 0.0
        %5781 = vmatmul.mubr.f32.gmra.mrb[0].mxu0 %v5705
        %v5782 = vpop.f32.mrb[0].mxu0
        %v5783 = vadd.f32 0.0, %v5782
        %v5784 = vpop.f32.mrb[0].mxu0
        %5785 = vmatprep.mubr.f32.mxu0 0.0
        %5786 = vmatmul.mubr.f32.gmra.mrb[0].mxu0 %v5708
        %v5787 = vpop.f32.mrb[0].mxu0
        %v5788 = vadd.f32 0.0, %v5787
        %v5789 = vpop.f32.mrb[0].mxu0
        %5790 = vdwg.mxu0
        %v5792 = vsel %vm4659, %v2168, 0
        %v5795 = vsel %vm4659, %v2304, 0
        %v5798 = vsel %vm4659, %v3344, 0
        %v5801 = vsel %vm4659, %v3480, 0
        %5803 = vmatprep.subr.mxu0 0.0
        %5804 = vmatpush1.xpose.msra.mxu0 %v5798
        %5805 = vmatprep.subr.mxu0 0.0
        %5806 = vmatpush1.xpose.msra.mxu0 %v5801
        %5807 = vmatprep.subr.mxu0 0.0
        %5808 = vmatpush1.xpose.msra.mxu0 0.0
        %5809 = vmatprep.subr.mxu0 0.0
        %5810 = vmatpush1.xpose.msra.mxu0 0.0
        %5811 = vmatprep.subr.mxu0 0.0
        %5812 = vmatpush1.xpose.msra.mxu0 0.0
        %5813 = vmatprep.subr.mxu0 0.0
        %5814 = vmatpush1.xpose.msra.mxu0 0.0
        %5815 = vmatprep.subr.mxu0 0.0
        %5816 = vmatpush1.xpose.msra.mxu0 0.0
        %5817 = vmatprep.subr.mxu0 0.0
        %5818 = vmatpush1.xpose.msra.mxu0 0.0
        %5819 = vmatprep.subr.mxu0 0.0
        %5820 = vmatpush1.xpose.msra.mxu0 0.0
        %5821 = vmatprep.subr.mxu0 0.0
        %5822 = vmatpush1.xpose.msra.mxu0 0.0
        %5823 = vmatprep.subr.mxu0 0.0
        %5824 = vmatpush1.xpose.msra.mxu0 0.0
        %5825 = vmatprep.subr.mxu0 0.0
        %5826 = vmatpush1.xpose.msra.mxu0 0.0
        %5827 = vmatprep.subr.mxu0 0.0
        %5828 = vmatpush1.xpose.msra.mxu0 0.0
        %5829 = vmatprep.subr.mxu0 0.0
        %5830 = vmatpush1.xpose.msra.mxu0 0.0
        %5831 = vmatprep.subr.mxu0 0.0
        %5832 = vmatpush1.xpose.msra.mxu0 0.0
        %5833 = vmatprep.subr.mxu0 0.0
        %5834 = vmatpush1.xpose.msra.mxu0 0.0
        %5835 = vmatprep.subr.mxu0 0.0
        %5836 = vmatpush1.xpose.msra.mxu0 0.0
        %5837 = vmatprep.subr.mxu0 0.0
        %5838 = vmatpush1.xpose.msra.mxu0 0.0
        %5839 = vmatprep.subr.mxu0 0.0
        %5840 = vmatpush1.xpose.msra.mxu0 0.0
        %5841 = vmatprep.subr.mxu0 0.0
        %5842 = vmatpush1.xpose.msra.mxu0 0.0
        %5843 = vmatprep.subr.mxu0 0.0
        %5844 = vmatpush1.xpose.msra.mxu0 0.0
        %5845 = vmatprep.subr.mxu0 0.0
        %5846 = vmatpush1.xpose.msra.mxu0 0.0
        %5847 = vmatprep.subr.mxu0 0.0
        %5848 = vmatpush1.xpose.msra.mxu0 0.0
        %5849 = vmatprep.subr.mxu0 0.0
        %5850 = vmatpush1.xpose.msra.mxu0 0.0
        %5851 = vmatprep.subr.mxu0 0.0
        %5852 = vmatpush1.xpose.msra.mxu0 0.0
        %5853 = vmatprep.subr.mxu0 0.0
        %5854 = vmatpush1.xpose.msra.mxu0 0.0
        %5855 = vmatprep.subr.mxu0 0.0
        %5856 = vmatpush1.xpose.msra.mxu0 0.0
        %5857 = vmatprep.subr.mxu0 0.0
        %5858 = vmatpush1.xpose.msra.mxu0 0.0
        %5859 = vmatprep.subr.mxu0 0.0
        %5860 = vmatpush1.xpose.msra.mxu0 0.0
        %5861 = vmatprep.subr.mxu0 0.0
        %5862 = vmatpush1.xpose.msra.mxu0 0.0
        %5863 = vmatprep.subr.mxu0 0.0
        %5864 = vmatpush1.xpose.msra.mxu0 0.0
        %5865 = vmatprep.subr.mxu0 0.0
        %5866 = vmatpush1.xpose.msra.mxu0 0.0
        %5867 = vmatprep.mubr.f32.mxu0 0.0
        %5868 = vmatmul.mubr.f32.gmra.mrb[0].mxu0 %v5792
        %v5869 = vpop.f32.mrb[0].mxu0
        %v5870 = vadd.f32 0.0, %v5869
        %v5871 = vpop.f32.mrb[0].mxu0
        %5872 = vmatprep.mubr.f32.mxu0 0.0
        %5873 = vmatmul.mubr.f32.gmra.mrb[0].mxu0 %v5795
        %v5874 = vpop.f32.mrb[0].mxu0
        %v5875 = vadd.f32 0.0, %v5874
        %v5876 = vpop.f32.mrb[0].mxu0
        %5877 = vdwg.mxu0
        %v5879 = vsel %vm4659, %v2169, 0
        %v5882 = vsel %vm4659, %v2305, 0
        %v5885 = vsel %vm4659, %v3345, 0
        %v5888 = vsel %vm4659, %v3481, 0
        %5890 = vmatprep.subr.mxu0 0.0
        %5891 = vmatpush1.xpose.msra.mxu0 %v5885
        %5892 = vmatprep.subr.mxu0 0.0
        %5893 = vmatpush1.xpose.msra.mxu0 %v5888
        %5894 = vmatprep.subr.mxu0 0.0
        %5895 = vmatpush1.xpose.msra.mxu0 0.0
        %5896 = vmatprep.subr.mxu0 0.0
        %5897 = vmatpush1.xpose.msra.mxu0 0.0
        %5898 = vmatprep.subr.mxu0 0.0
        %5899 = vmatpush1.xpose.msra.mxu0 0.0
        %5900 = vmatprep.subr.mxu0 0.0
        %5901 = vmatpush1.xpose.msra.mxu0 0.0
        %5902 = vmatprep.subr.mxu0 0.0
        %5903 = vmatpush1.xpose.msra.mxu0 0.0
        %5904 = vmatprep.subr.mxu0 0.0
        %5905 = vmatpush1.xpose.msra.mxu0 0.0
        %5906 = vmatprep.subr.mxu0 0.0
        %5907 = vmatpush1.xpose.msra.mxu0 0.0
        %5908 = vmatprep.subr.mxu0 0.0
        %5909 = vmatpush1.xpose.msra.mxu0 0.0
        %5910 = vmatprep.subr.mxu0 0.0
        %5911 = vmatpush1.xpose.msra.mxu0 0.0
        %5912 = vmatprep.subr.mxu0 0.0
        %5913 = vmatpush1.xpose.msra.mxu0 0.0
        %5914 = vmatprep.subr.mxu0 0.0
        %5915 = vmatpush1.xpose.msra.mxu0 0.0
        %5916 = vmatprep.subr.mxu0 0.0
        %5917 = vmatpush1.xpose.msra.mxu0 0.0
        %5918 = vmatprep.subr.mxu0 0.0
        %5919 = vmatpush1.xpose.msra.mxu0 0.0
        %5920 = vmatprep.subr.mxu0 0.0
        %5921 = vmatpush1.xpose.msra.mxu0 0.0
        %5922 = vmatprep.subr.mxu0 0.0
        %5923 = vmatpush1.xpose.msra.mxu0 0.0
        %5924 = vmatprep.subr.mxu0 0.0
        %5925 = vmatpush1.xpose.msra.mxu0 0.0
        %5926 = vmatprep.subr.mxu0 0.0
        %5927 = vmatpush1.xpose.msra.mxu0 0.0
        %5928 = vmatprep.subr.mxu0 0.0
        %5929 = vmatpush1.xpose.msra.mxu0 0.0
        %5930 = vmatprep.subr.mxu0 0.0
        %5931 = vmatpush1.xpose.msra.mxu0 0.0
        %5932 = vmatprep.subr.mxu0 0.0
        %5933 = vmatpush1.xpose.msra.mxu0 0.0
        %5934 = vmatprep.subr.mxu0 0.0
        %5935 = vmatpush1.xpose.msra.mxu0 0.0
        %5936 = vmatprep.subr.mxu0 0.0
        %5937 = vmatpush1.xpose.msra.mxu0 0.0
        %5938 = vmatprep.subr.mxu0 0.0
        %5939 = vmatpush1.xpose.msra.mxu0 0.0
        %5940 = vmatprep.subr.mxu0 0.0
        %5941 = vmatpush1.xpose.msra.mxu0 0.0
        %5942 = vmatprep.subr.mxu0 0.0
        %5943 = vmatpush1.xpose.msra.mxu0 0.0
        %5944 = vmatprep.subr.mxu0 0.0
        %5945 = vmatpush1.xpose.msra.mxu0 0.0
        %5946 = vmatprep.subr.mxu0 0.0
        %5947 = vmatpush1.xpose.msra.mxu0 0.0
        %5948 = vmatprep.subr.mxu0 0.0
        %5949 = vmatpush1.xpose.msra.mxu0 0.0
        %5950 = vmatprep.subr.mxu0 0.0
        %5951 = vmatpush1.xpose.msra.mxu0 0.0
        %5952 = vmatprep.subr.mxu0 0.0
        %5953 = vmatpush1.xpose.msra.mxu0 0.0
        %5954 = vmatprep.mubr.f32.mxu0 0.0
        %5955 = vmatmul.mubr.f32.gmra.mrb[0].mxu0 %v5879
        %v5956 = vpop.f32.mrb[0].mxu0
        %v5957 = vadd.f32 0.0, %v5956
        %v5958 = vpop.f32.mrb[0].mxu0
        %5959 = vmatprep.mubr.f32.mxu0 0.0
        %5960 = vmatmul.mubr.f32.gmra.mrb[0].mxu0 %v5882
        %v5961 = vpop.f32.mrb[0].mxu0
        %v5962 = vadd.f32 0.0, %v5961
        %v5963 = vpop.f32.mrb[0].mxu0
        %5964 = vdwg.mxu0
        %v5966 = vsel %vm4659, %v2170, 0
        %v5969 = vsel %vm4659, %v2306, 0
        %v5972 = vsel %vm4659, %v3346, 0
        %v5975 = vsel %vm4659, %v3482, 0
        %5977 = vmatprep.subr.mxu0 0.0
        %5978 = vmatpush1.xpose.msra.mxu0 %v5972
        %5979 = vmatprep.subr.mxu0 0.0
        %5980 = vmatpush1.xpose.msra.mxu0 %v5975
        %5981 = vmatprep.subr.mxu0 0.0
        %5982 = vmatpush1.xpose.msra.mxu0 0.0
        %5983 = vmatprep.subr.mxu0 0.0
        %5984 = vmatpush1.xpose.msra.mxu0 0.0
        %5985 = vmatprep.subr.mxu0 0.0
        %5986 = vmatpush1.xpose.msra.mxu0 0.0
        %5987 = vmatprep.subr.mxu0 0.0
        %5988 = vmatpush1.xpose.msra.mxu0 0.0
        %5989 = vmatprep.subr.mxu0 0.0
        %5990 = vmatpush1.xpose.msra.mxu0 0.0
        %5991 = vmatprep.subr.mxu0 0.0
        %5992 = vmatpush1.xpose.msra.mxu0 0.0
        %5993 = vmatprep.subr.mxu0 0.0
        %5994 = vmatpush1.xpose.msra.mxu0 0.0
        %5995 = vmatprep.subr.mxu0 0.0
        %5996 = vmatpush1.xpose.msra.mxu0 0.0
        %5997 = vmatprep.subr.mxu0 0.0
        %5998 = vmatpush1.xpose.msra.mxu0 0.0
        %5999 = vmatprep.subr.mxu0 0.0
        %6000 = vmatpush1.xpose.msra.mxu0 0.0
        %6001 = vmatprep.subr.mxu0 0.0
        %6002 = vmatpush1.xpose.msra.mxu0 0.0
        %6003 = vmatprep.subr.mxu0 0.0
        %6004 = vmatpush1.xpose.msra.mxu0 0.0
        %6005 = vmatprep.subr.mxu0 0.0
        %6006 = vmatpush1.xpose.msra.mxu0 0.0
        %6007 = vmatprep.subr.mxu0 0.0
        %6008 = vmatpush1.xpose.msra.mxu0 0.0
        %6009 = vmatprep.subr.mxu0 0.0
        %6010 = vmatpush1.xpose.msra.mxu0 0.0
        %6011 = vmatprep.subr.mxu0 0.0
        %6012 = vmatpush1.xpose.msra.mxu0 0.0
        %6013 = vmatprep.subr.mxu0 0.0
        %6014 = vmatpush1.xpose.msra.mxu0 0.0
        %6015 = vmatprep.subr.mxu0 0.0
        %6016 = vmatpush1.xpose.msra.mxu0 0.0
        %6017 = vmatprep.subr.mxu0 0.0
        %6018 = vmatpush1.xpose.msra.mxu0 0.0
        %6019 = vmatprep.subr.mxu0 0.0
        %6020 = vmatpush1.xpose.msra.mxu0 0.0
        %6021 = vmatprep.subr.mxu0 0.0
        %6022 = vmatpush1.xpose.msra.mxu0 0.0
        %6023 = vmatprep.subr.mxu0 0.0
        %6024 = vmatpush1.xpose.msra.mxu0 0.0
        %6025 = vmatprep.subr.mxu0 0.0
        %6026 = vmatpush1.xpose.msra.mxu0 0.0
        %6027 = vmatprep.subr.mxu0 0.0
        %6028 = vmatpush1.xpose.msra.mxu0 0.0
        %6029 = vmatprep.subr.mxu0 0.0
        %6030 = vmatpush1.xpose.msra.mxu0 0.0
        %6031 = vmatprep.subr.mxu0 0.0
        %6032 = vmatpush1.xpose.msra.mxu0 0.0
        %6033 = vmatprep.subr.mxu0 0.0
        %6034 = vmatpush1.xpose.msra.mxu0 0.0
        %6035 = vmatprep.subr.mxu0 0.0
        %6036 = vmatpush1.xpose.msra.mxu0 0.0
        %6037 = vmatprep.subr.mxu0 0.0
        %6038 = vmatpush1.xpose.msra.mxu0 0.0
        %6039 = vmatprep.subr.mxu0 0.0
        %6040 = vmatpush1.xpose.msra.mxu0 0.0
        %6041 = vmatprep.mubr.f32.mxu0 0.0
        %6042 = vmatmul.mubr.f32.gmra.mrb[0].mxu0 %v5966
        %v6043 = vpop.f32.mrb[0].mxu0
        %v6044 = vadd.f32 0.0, %v6043
        %v6045 = vpop.f32.mrb[0].mxu0
        %6046 = vmatprep.mubr.f32.mxu0 0.0
        %6047 = vmatmul.mubr.f32.gmra.mrb[0].mxu0 %v5969
        %v6048 = vpop.f32.mrb[0].mxu0
        %v6049 = vadd.f32 0.0, %v6048
        %v6050 = vpop.f32.mrb[0].mxu0
        %6051 = vdwg.mxu0
        %v6052 = vld [vmem:[#allocation6] sm:$0xff]
        %v6053 = vld [vmem:[#allocation6 + $0x8] sm:$0xff]
        %v6056 = vcombine.high %v6052, %v6052
        %v6058 = vunpack.c.l.s4 1966171168
        %v6059 = vunpack.c.0.s8 %v6058
        %v6060 = vlaneseq
        %v6061 = vshrl.u32 %v6060, 7
        %v6062 = vsub.s32 %v6059, %v6061
        %v6063 = vrot.slane %v6052, %v6062
        %v6065 = vunpack.c.l.s4 1966171168
        %v6066 = vunpack.c.0.s8 %v6065
        %v6067 = vlaneseq
        %v6068 = vshrl.u32 %v6067, 7
        %v6069 = vsub.s32 %v6066, %v6068
        %v6070 = vrot.slane %v6056, %v6069
        %v6071 = vcombine.high %v6063, %v6063
        %v6072 = vcombine.high %v6070, %v6070
        %v6074 = vunpack.c.l.s4 1966171168
        %v6075 = vunpack.c.0.s8 %v6074
        %v6076 = vlaneseq
        %v6077 = vshrl.u32 %v6076, 7
        %v6078 = vsub.s32 %v6075, %v6077
        %v6079 = vrot.slane %v6063, %v6078
        %v6081 = vunpack.c.l.s4 1966171168
        %v6082 = vunpack.c.0.s8 %v6081
        %v6083 = vlaneseq
        %v6084 = vshrl.u32 %v6083, 7
        %v6085 = vsub.s32 %v6082, %v6084
        %v6086 = vrot.slane %v6070, %v6085
        %v6088 = vunpack.c.l.s4 1966171168
        %v6089 = vunpack.c.0.s8 %v6088
        %v6090 = vlaneseq
        %v6091 = vshrl.u32 %v6090, 7
        %v6092 = vsub.s32 %v6089, %v6091
        %v6093 = vrot.slane %v6071, %v6092
        %v6095 = vunpack.c.l.s4 1966171168
        %v6096 = vunpack.c.0.s8 %v6095
        %v6097 = vlaneseq
        %v6098 = vshrl.u32 %v6097, 7
        %v6099 = vsub.s32 %v6096, %v6098
        %v6100 = vrot.slane %v6072, %v6099
        %v6101 = vcombine.high %v6079, %v6079
        %v6102 = vcombine.high %v6086, %v6086
        %v6103 = vcombine.high %v6093, %v6093
        %v6104 = vcombine.high %v6100, %v6100
        %v6105 = vcombine.high %v6053, %v6053
        %v6107 = vunpack.c.l.s4 1966171168
        %v6108 = vunpack.c.0.s8 %v6107
        %v6109 = vlaneseq
        %v6110 = vshrl.u32 %v6109, 7
        %v6111 = vsub.s32 %v6108, %v6110
        %v6112 = vrot.slane %v6053, %v6111
        %v6114 = vunpack.c.l.s4 1966171168
        %v6115 = vunpack.c.0.s8 %v6114
        %v6116 = vlaneseq
        %v6117 = vshrl.u32 %v6116, 7
        %v6118 = vsub.s32 %v6115, %v6117
        %v6119 = vrot.slane %v6105, %v6118
        %v6120 = vcombine.high %v6112, %v6112
        %v6121 = vcombine.high %v6119, %v6119
        %v6123 = vunpack.c.l.s4 1966171168
        %v6124 = vunpack.c.0.s8 %v6123
        %v6125 = vlaneseq
        %v6126 = vshrl.u32 %v6125, 7
        %v6127 = vsub.s32 %v6124, %v6126
        %v6128 = vrot.slane %v6112, %v6127
        %v6130 = vunpack.c.l.s4 1966171168
        %v6131 = vunpack.c.0.s8 %v6130
        %v6132 = vlaneseq
        %v6133 = vshrl.u32 %v6132, 7
        %v6134 = vsub.s32 %v6131, %v6133
        %v6135 = vrot.slane %v6119, %v6134
        %v6137 = vunpack.c.l.s4 1966171168
        %v6138 = vunpack.c.0.s8 %v6137
        %v6139 = vlaneseq
        %v6140 = vshrl.u32 %v6139, 7
        %v6141 = vsub.s32 %v6138, %v6140
        %v6142 = vrot.slane %v6120, %v6141
        %v6144 = vunpack.c.l.s4 1966171168
        %v6145 = vunpack.c.0.s8 %v6144
        %v6146 = vlaneseq
        %v6147 = vshrl.u32 %v6146, 7
        %v6148 = vsub.s32 %v6145, %v6147
        %v6149 = vrot.slane %v6121, %v6148
        %v6150 = vcombine.high %v6128, %v6128
        %v6151 = vcombine.high %v6135, %v6135
        %v6152 = vcombine.high %v6142, %v6142
        %v6153 = vcombine.high %v6149, %v6149
        %v6154 = vmul.f32 %v4739, 0.25
        %v6155 = vmul.f32 %v4744, 0.25
        %v6156 = vmul.f32 %v4826, 0.25
        %v6157 = vmul.f32 %v4831, 0.25
        %v6158 = vmul.f32 %v4913, 0.25
        %v6159 = vmul.f32 %v4918, 0.25
        %v6160 = vmul.f32 %v5000, 0.25
        %v6161 = vmul.f32 %v5005, 0.25
        %v6162 = vmul.f32 %v5087, 0.25
        %v6163 = vmul.f32 %v5092, 0.25
        %v6164 = vmul.f32 %v5174, 0.25
        %v6165 = vmul.f32 %v5179, 0.25
        %v6166 = vmul.f32 %v5261, 0.25
        %v6167 = vmul.f32 %v5266, 0.25
        %v6168 = vmul.f32 %v5348, 0.25
        %v6169 = vmul.f32 %v5353, 0.25
        %v6170 = vmul.f32 %v5435, 0.25
        %v6171 = vmul.f32 %v5440, 0.25
        %v6172 = vmul.f32 %v5522, 0.25
        %v6173 = vmul.f32 %v5527, 0.25
        %v6174 = vmul.f32 %v5609, 0.25
        %v6175 = vmul.f32 %v5614, 0.25
        %v6176 = vmul.f32 %v5696, 0.25
        %v6177 = vmul.f32 %v5701, 0.25
        %v6178 = vmul.f32 %v5783, 0.25
        %v6179 = vmul.f32 %v5788, 0.25
        %v6180 = vmul.f32 %v5870, 0.25
        %v6181 = vmul.f32 %v5875, 0.25
        %v6182 = vmul.f32 %v5957, 0.25
        %v6183 = vmul.f32 %v5962, 0.25
        %v6184 = vmul.f32 %v6044, 0.25
        %v6185 = vmul.f32 %v6049, 0.25
        %v6186 = vlaneseq
        %v6187 = vshrl.u32 %v6186, 7
        %v6188 = vsub.s32 0, %v6187
        %v6189 = vrot.slane %v6079, %v6188
        %v6190 = vlaneseq
        %v6191 = vshrl.u32 %v6190, 7
        %v6192 = vsub.s32 0, %v6191
        %v6193 = vrot.slane %v6093, %v6192
        %v6194 = vlaneseq
        %v6195 = vshrl.u32 %v6194, 7
        %v6196 = vsub.s32 0, %v6195
        %v6197 = vrot.slane %v6101, %v6196
        %v6198 = vlaneseq
        %v6199 = vshrl.u32 %v6198, 7
        %v6200 = vsub.s32 0, %v6199
        %v6201 = vrot.slane %v6103, %v6200
        %v6202 = vlaneseq
        %v6203 = vshrl.u32 %v6202, 7
        %v6204 = vsub.s32 0, %v6203
        %v6205 = vrot.slane %v6086, %v6204
        %v6206 = vlaneseq
        %v6207 = vshrl.u32 %v6206, 7
        %v6208 = vsub.s32 0, %v6207
        %v6209 = vrot.slane %v6100, %v6208
        %v6210 = vlaneseq
        %v6211 = vshrl.u32 %v6210, 7
        %v6212 = vsub.s32 0, %v6211
        %v6213 = vrot.slane %v6102, %v6212
        %v6214 = vlaneseq
        %v6215 = vshrl.u32 %v6214, 7
        %v6216 = vsub.s32 0, %v6215
        %v6217 = vrot.slane %v6104, %v6216
        %v6218 = vlaneseq
        %v6219 = vshrl.u32 %v6218, 7
        %v6220 = vsub.s32 0, %v6219
        %v6221 = vrot.slane %v6128, %v6220
        %v6222 = vlaneseq
        %v6223 = vshrl.u32 %v6222, 7
        %v6224 = vsub.s32 0, %v6223
        %v6225 = vrot.slane %v6142, %v6224
        %v6226 = vlaneseq
        %v6227 = vshrl.u32 %v6226, 7
        %v6228 = vsub.s32 0, %v6227
        %v6229 = vrot.slane %v6150, %v6228
        %v6230 = vlaneseq
        %v6231 = vshrl.u32 %v6230, 7
        %v6232 = vsub.s32 0, %v6231
        %v6233 = vrot.slane %v6152, %v6232
        %v6234 = vlaneseq
        %v6235 = vshrl.u32 %v6234, 7
        %v6236 = vsub.s32 0, %v6235
        %v6237 = vrot.slane %v6135, %v6236
        %v6238 = vlaneseq
        %v6239 = vshrl.u32 %v6238, 7
        %v6240 = vsub.s32 0, %v6239
        %v6241 = vrot.slane %v6149, %v6240
        %v6242 = vlaneseq
        %v6243 = vshrl.u32 %v6242, 7
        %v6244 = vsub.s32 0, %v6243
        %v6245 = vrot.slane %v6151, %v6244
        %v6246 = vlaneseq
        %v6247 = vshrl.u32 %v6246, 7
        %v6248 = vsub.s32 0, %v6247
        %v6249 = vrot.slane %v6153, %v6248
        %v6266 = vadd.f32 %v6154, %v6189
        %v6267 = vadd.f32 %v6155, %v6189
        %v6268 = vadd.f32 %v6156, %v6193
        %v6269 = vadd.f32 %v6157, %v6193
        %v6270 = vadd.f32 %v6158, %v6197
        %v6271 = vadd.f32 %v6159, %v6197
        %v6272 = vadd.f32 %v6160, %v6201
        %v6273 = vadd.f32 %v6161, %v6201
        %v6274 = vadd.f32 %v6162, %v6205
        %v6275 = vadd.f32 %v6163, %v6205
        %v6276 = vadd.f32 %v6164, %v6209
        %v6277 = vadd.f32 %v6165, %v6209
        %v6278 = vadd.f32 %v6166, %v6213
        %v6279 = vadd.f32 %v6167, %v6213
        %v6280 = vadd.f32 %v6168, %v6217
        %v6281 = vadd.f32 %v6169, %v6217
        %v6282 = vadd.f32 %v6170, %v6221
        %v6283 = vadd.f32 %v6171, %v6221
        %v6284 = vadd.f32 %v6172, %v6225
        %v6285 = vadd.f32 %v6173, %v6225
        %v6286 = vadd.f32 %v6174, %v6229
        %v6287 = vadd.f32 %v6175, %v6229
        %v6288 = vadd.f32 %v6176, %v6233
        %v6289 = vadd.f32 %v6177, %v6233
        %v6290 = vadd.f32 %v6178, %v6237
        %v6291 = vadd.f32 %v6179, %v6237
        %v6292 = vadd.f32 %v6180, %v6241
        %v6293 = vadd.f32 %v6181, %v6241
        %v6294 = vadd.f32 %v6182, %v6245
        %v6295 = vadd.f32 %v6183, %v6245
        %v6296 = vadd.f32 %v6184, %v6249
        %v6297 = vadd.f32 %v6185, %v6249
        %v6298 = vsel %vm4659, %v6266, -inf
        %6299 = vmax.xlane.f32.xlu0 %v6298
        %v6300 = vpop.xlane.xlu0 %6299
        %v6301 = vsel %vm4659, %v6267, -inf
        %6302 = vmax.xlane.f32.xlu0 %v6301
        %v6303 = vpop.xlane.xlu0 %6302
        %v6304 = vsel %vm4659, %v6268, -inf
        %6305 = vmax.xlane.f32.xlu0 %v6304
        %v6306 = vpop.xlane.xlu0 %6305
        %v6307 = vsel %vm4659, %v6269, -inf
        %6308 = vmax.xlane.f32.xlu0 %v6307
        %v6309 = vpop.xlane.xlu0 %6308
        %v6310 = vsel %vm4659, %v6270, -inf
        %6311 = vmax.xlane.f32.xlu0 %v6310
        %v6312 = vpop.xlane.xlu0 %6311
        %v6313 = vsel %vm4659, %v6271, -inf
        %6314 = vmax.xlane.f32.xlu0 %v6313
        %v6315 = vpop.xlane.xlu0 %6314
        %v6316 = vsel %vm4659, %v6272, -inf
        %6317 = vmax.xlane.f32.xlu0 %v6316
        %v6318 = vpop.xlane.xlu0 %6317
        %v6319 = vsel %vm4659, %v6273, -inf
        %6320 = vmax.xlane.f32.xlu0 %v6319
        %v6321 = vpop.xlane.xlu0 %6320
        %v6322 = vsel %vm4659, %v6274, -inf
        %6323 = vmax.xlane.f32.xlu0 %v6322
        %v6324 = vpop.xlane.xlu0 %6323
        %v6325 = vsel %vm4659, %v6275, -inf
        %6326 = vmax.xlane.f32.xlu0 %v6325
        %v6327 = vpop.xlane.xlu0 %6326
        %v6328 = vsel %vm4659, %v6276, -inf
        %6329 = vmax.xlane.f32.xlu0 %v6328
        %v6330 = vpop.xlane.xlu0 %6329
        %v6331 = vsel %vm4659, %v6277, -inf
        %6332 = vmax.xlane.f32.xlu0 %v6331
        %v6333 = vpop.xlane.xlu0 %6332
        %v6334 = vsel %vm4659, %v6278, -inf
        %6335 = vmax.xlane.f32.xlu0 %v6334
        %v6336 = vpop.xlane.xlu0 %6335
        %v6337 = vsel %vm4659, %v6279, -inf
        %6338 = vmax.xlane.f32.xlu0 %v6337
        %v6339 = vpop.xlane.xlu0 %6338
        %v6340 = vsel %vm4659, %v6280, -inf
        %6341 = vmax.xlane.f32.xlu0 %v6340
        %v6342 = vpop.xlane.xlu0 %6341
        %v6343 = vsel %vm4659, %v6281, -inf
        %6344 = vmax.xlane.f32.xlu0 %v6343
        %v6345 = vpop.xlane.xlu0 %6344
        %v6346 = vsel %vm4659, %v6282, -inf
        %6347 = vmax.xlane.f32.xlu0 %v6346
        %v6348 = vpop.xlane.xlu0 %6347
        %v6349 = vsel %vm4659, %v6283, -inf
        %6350 = vmax.xlane.f32.xlu0 %v6349
        %v6351 = vpop.xlane.xlu0 %6350
        %v6352 = vsel %vm4659, %v6284, -inf
        %6353 = vmax.xlane.f32.xlu0 %v6352
        %v6354 = vpop.xlane.xlu0 %6353
        %v6355 = vsel %vm4659, %v6285, -inf
        %6356 = vmax.xlane.f32.xlu0 %v6355
        %v6357 = vpop.xlane.xlu0 %6356
        %v6358 = vsel %vm4659, %v6286, -inf
        %6359 = vmax.xlane.f32.xlu0 %v6358
        %v6360 = vpop.xlane.xlu0 %6359
        %v6361 = vsel %vm4659, %v6287, -inf
        %6362 = vmax.xlane.f32.xlu0 %v6361
        %v6363 = vpop.xlane.xlu0 %6362
        %v6364 = vsel %vm4659, %v6288, -inf
        %6365 = vmax.xlane.f32.xlu0 %v6364
        %v6366 = vpop.xlane.xlu0 %6365
        %v6367 = vsel %vm4659, %v6289, -inf
        %6368 = vmax.xlane.f32.xlu0 %v6367
        %v6369 = vpop.xlane.xlu0 %6368
        %v6370 = vsel %vm4659, %v6290, -inf
        %6371 = vmax.xlane.f32.xlu0 %v6370
        %v6372 = vpop.xlane.xlu0 %6371
        %v6373 = vsel %vm4659, %v6291, -inf
        %6374 = vmax.xlane.f32.xlu0 %v6373
        %v6375 = vpop.xlane.xlu0 %6374
        %v6376 = vsel %vm4659, %v6292, -inf
        %6377 = vmax.xlane.f32.xlu0 %v6376
        %v6378 = vpop.xlane.xlu0 %6377
        %v6379 = vsel %vm4659, %v6293, -inf
        %6380 = vmax.xlane.f32.xlu0 %v6379
        %v6381 = vpop.xlane.xlu0 %6380
        %v6382 = vsel %vm4659, %v6294, -inf
        %6383 = vmax.xlane.f32.xlu0 %v6382
        %v6384 = vpop.xlane.xlu0 %6383
        %v6385 = vsel %vm4659, %v6295, -inf
        %6386 = vmax.xlane.f32.xlu0 %v6385
        %v6387 = vpop.xlane.xlu0 %6386
        %v6388 = vsel %vm4659, %v6296, -inf
        %6389 = vmax.xlane.f32.xlu0 %v6388
        %v6390 = vpop.xlane.xlu0 %6389
        %v6391 = vsel %vm4659, %v6297, -inf
        %6392 = vmax.xlane.f32.xlu0 %v6391
        %v6393 = vpop.xlane.xlu0 %6392
        %v6394 = vsub.f32 %v6266, %v6300
        %v6395 = vsub.f32 %v6267, %v6303
        %v6396 = vsub.f32 %v6268, %v6306
        %v6397 = vsub.f32 %v6269, %v6309
        %v6398 = vsub.f32 %v6270, %v6312
        %v6399 = vsub.f32 %v6271, %v6315
        %v6400 = vsub.f32 %v6272, %v6318
        %v6401 = vsub.f32 %v6273, %v6321
        %v6402 = vsub.f32 %v6274, %v6324
        %v6403 = vsub.f32 %v6275, %v6327
        %v6404 = vsub.f32 %v6276, %v6330
        %v6405 = vsub.f32 %v6277, %v6333
        %v6406 = vsub.f32 %v6278, %v6336
        %v6407 = vsub.f32 %v6279, %v6339
        %v6408 = vsub.f32 %v6280, %v6342
        %v6409 = vsub.f32 %v6281, %v6345
        %v6410 = vsub.f32 %v6282, %v6348
        %v6411 = vsub.f32 %v6283, %v6351
        %v6412 = vsub.f32 %v6284, %v6354
        %v6413 = vsub.f32 %v6285, %v6357
        %v6414 = vsub.f32 %v6286, %v6360
        %v6415 = vsub.f32 %v6287, %v6363
        %v6416 = vsub.f32 %v6288, %v6366
        %v6417 = vsub.f32 %v6289, %v6369
        %v6418 = vsub.f32 %v6290, %v6372
        %v6419 = vsub.f32 %v6291, %v6375
        %v6420 = vsub.f32 %v6292, %v6378
        %v6421 = vsub.f32 %v6293, %v6381
        %v6422 = vsub.f32 %v6294, %v6384
        %v6423 = vsub.f32 %v6295, %v6387
        %v6424 = vsub.f32 %v6296, %v6390
        %v6425 = vsub.f32 %v6297, %v6393
        %v6426 = vmul.f32 %v6394, 1.442695
        %v6427 = vpow.pop %v6426
        %v6428 = vmul.f32 %v6395, 1.442695
        %v6429 = vpow.pop %v6428
        %v6430 = vmul.f32 %v6396, 1.442695
        %v6431 = vpow.pop %v6430
        %v6432 = vmul.f32 %v6397, 1.442695
        %v6433 = vpow.pop %v6432
        %v6434 = vmul.f32 %v6398, 1.442695
        %v6435 = vpow.pop %v6434
        %v6436 = vmul.f32 %v6399, 1.442695
        %v6437 = vpow.pop %v6436
        %v6438 = vmul.f32 %v6400, 1.442695
        %v6439 = vpow.pop %v6438
        %v6440 = vmul.f32 %v6401, 1.442695
        %v6441 = vpow.pop %v6440
        %v6442 = vmul.f32 %v6402, 1.442695
        %v6443 = vpow.pop %v6442
        %v6444 = vmul.f32 %v6403, 1.442695
        %v6445 = vpow.pop %v6444
        %v6446 = vmul.f32 %v6404, 1.442695
        %v6447 = vpow.pop %v6446
        %v6448 = vmul.f32 %v6405, 1.442695
        %v6449 = vpow.pop %v6448
        %v6450 = vmul.f32 %v6406, 1.442695
        %v6451 = vpow.pop %v6450
        %v6452 = vmul.f32 %v6407, 1.442695
        %v6453 = vpow.pop %v6452
        %v6454 = vmul.f32 %v6408, 1.442695
        %v6455 = vpow.pop %v6454
        %v6456 = vmul.f32 %v6409, 1.442695
        %v6457 = vpow.pop %v6456
        %v6458 = vmul.f32 %v6410, 1.442695
        %v6459 = vpow.pop %v6458
        %v6460 = vmul.f32 %v6411, 1.442695
        %v6461 = vpow.pop %v6460
        %v6462 = vmul.f32 %v6412, 1.442695
        %v6463 = vpow.pop %v6462
        %v6464 = vmul.f32 %v6413, 1.442695
        %v6465 = vpow.pop %v6464
        %v6466 = vmul.f32 %v6414, 1.442695
        %v6467 = vpow.pop %v6466
        %v6468 = vmul.f32 %v6415, 1.442695
        %v6469 = vpow.pop %v6468
        %v6470 = vmul.f32 %v6416, 1.442695
        %v6471 = vpow.pop %v6470
        %v6472 = vmul.f32 %v6417, 1.442695
        %v6473 = vpow.pop %v6472
        %v6474 = vmul.f32 %v6418, 1.442695
        %v6475 = vpow.pop %v6474
        %v6476 = vmul.f32 %v6419, 1.442695
        %v6477 = vpow.pop %v6476
        %v6478 = vmul.f32 %v6420, 1.442695
        %v6479 = vpow.pop %v6478
        %v6480 = vmul.f32 %v6421, 1.442695
        %v6481 = vpow.pop %v6480
        %v6482 = vmul.f32 %v6422, 1.442695
        %v6483 = vpow.pop %v6482
        %v6484 = vmul.f32 %v6423, 1.442695
        %v6485 = vpow.pop %v6484
        %v6486 = vmul.f32 %v6424, 1.442695
        %v6487 = vpow.pop %v6486
        %v6488 = vmul.f32 %v6425, 1.442695
        %v6489 = vpow.pop %v6488
        %v6490 = vsel %vm4659, %v6427, 0.0
        %6491 = vadd.xlane.f32.xlu0 %v6490
        %v6492 = vpop.xlane.xlu0 %6491
        %v6493 = vsel %vm4659, %v6429, 0.0
        %6494 = vadd.xlane.f32.xlu0 %v6493
        %v6495 = vpop.xlane.xlu0 %6494
        %v6496 = vsel %vm4659, %v6431, 0.0
        %6497 = vadd.xlane.f32.xlu0 %v6496
        %v6498 = vpop.xlane.xlu0 %6497
        %v6499 = vsel %vm4659, %v6433, 0.0
        %6500 = vadd.xlane.f32.xlu0 %v6499
        %v6501 = vpop.xlane.xlu0 %6500
        %v6502 = vsel %vm4659, %v6435, 0.0
        %6503 = vadd.xlane.f32.xlu0 %v6502
        %v6504 = vpop.xlane.xlu0 %6503
        %v6505 = vsel %vm4659, %v6437, 0.0
        %6506 = vadd.xlane.f32.xlu0 %v6505
        %v6507 = vpop.xlane.xlu0 %6506
        %v6508 = vsel %vm4659, %v6439, 0.0
        %6509 = vadd.xlane.f32.xlu0 %v6508
        %v6510 = vpop.xlane.xlu0 %6509
        %v6511 = vsel %vm4659, %v6441, 0.0
        %6512 = vadd.xlane.f32.xlu0 %v6511
        %v6513 = vpop.xlane.xlu0 %6512
        %v6514 = vsel %vm4659, %v6443, 0.0
        %6515 = vadd.xlane.f32.xlu0 %v6514
        %v6516 = vpop.xlane.xlu0 %6515
        %v6517 = vsel %vm4659, %v6445, 0.0
        %6518 = vadd.xlane.f32.xlu0 %v6517
        %v6519 = vpop.xlane.xlu0 %6518
        %v6520 = vsel %vm4659, %v6447, 0.0
        %6521 = vadd.xlane.f32.xlu0 %v6520
        %v6522 = vpop.xlane.xlu0 %6521
        %v6523 = vsel %vm4659, %v6449, 0.0
        %6524 = vadd.xlane.f32.xlu0 %v6523
        %v6525 = vpop.xlane.xlu0 %6524
        %v6526 = vsel %vm4659, %v6451, 0.0
        %6527 = vadd.xlane.f32.xlu0 %v6526
        %v6528 = vpop.xlane.xlu0 %6527
        %v6529 = vsel %vm4659, %v6453, 0.0
        %6530 = vadd.xlane.f32.xlu0 %v6529
        %v6531 = vpop.xlane.xlu0 %6530
        %v6532 = vsel %vm4659, %v6455, 0.0
        %6533 = vadd.xlane.f32.xlu0 %v6532
        %v6534 = vpop.xlane.xlu0 %6533
        %v6535 = vsel %vm4659, %v6457, 0.0
        %6536 = vadd.xlane.f32.xlu0 %v6535
        %v6537 = vpop.xlane.xlu0 %6536
        %v6538 = vsel %vm4659, %v6459, 0.0
        %6539 = vadd.xlane.f32.xlu0 %v6538
        %v6540 = vpop.xlane.xlu0 %6539
        %v6541 = vsel %vm4659, %v6461, 0.0
        %6542 = vadd.xlane.f32.xlu0 %v6541
        %v6543 = vpop.xlane.xlu0 %6542
        %v6544 = vsel %vm4659, %v6463, 0.0
        %6545 = vadd.xlane.f32.xlu0 %v6544
        %v6546 = vpop.xlane.xlu0 %6545
        %v6547 = vsel %vm4659, %v6465, 0.0
        %6548 = vadd.xlane.f32.xlu0 %v6547
        %v6549 = vpop.xlane.xlu0 %6548
        %v6550 = vsel %vm4659, %v6467, 0.0
        %6551 = vadd.xlane.f32.xlu0 %v6550
        %v6552 = vpop.xlane.xlu0 %6551
        %v6553 = vsel %vm4659, %v6469, 0.0
        %6554 = vadd.xlane.f32.xlu0 %v6553
        %v6555 = vpop.xlane.xlu0 %6554
        %v6556 = vsel %vm4659, %v6471, 0.0
        %6557 = vadd.xlane.f32.xlu0 %v6556
        %v6558 = vpop.xlane.xlu0 %6557
        %v6559 = vsel %vm4659, %v6473, 0.0
        %6560 = vadd.xlane.f32.xlu0 %v6559
        %v6561 = vpop.xlane.xlu0 %6560
        %v6562 = vsel %vm4659, %v6475, 0.0
        %6563 = vadd.xlane.f32.xlu0 %v6562
        %v6564 = vpop.xlane.xlu0 %6563
        %v6565 = vsel %vm4659, %v6477, 0.0
        %6566 = vadd.xlane.f32.xlu0 %v6565
        %v6567 = vpop.xlane.xlu0 %6566
        %v6568 = vsel %vm4659, %v6479, 0.0
        %6569 = vadd.xlane.f32.xlu0 %v6568
        %v6570 = vpop.xlane.xlu0 %6569
        %v6571 = vsel %vm4659, %v6481, 0.0
        %6572 = vadd.xlane.f32.xlu0 %v6571
        %v6573 = vpop.xlane.xlu0 %6572
        %v6574 = vsel %vm4659, %v6483, 0.0
        %6575 = vadd.xlane.f32.xlu0 %v6574
        %v6576 = vpop.xlane.xlu0 %6575
        %v6577 = vsel %vm4659, %v6485, 0.0
        %6578 = vadd.xlane.f32.xlu0 %v6577
        %v6579 = vpop.xlane.xlu0 %6578
        %v6580 = vsel %vm4659, %v6487, 0.0
        %6581 = vadd.xlane.f32.xlu0 %v6580
        %v6582 = vpop.xlane.xlu0 %6581
        %v6583 = vsel %vm4659, %v6489, 0.0
        %6584 = vadd.xlane.f32.xlu0 %v6583
        %v6585 = vpop.xlane.xlu0 %6584
        %v6586 = vrcp.pop %v6492
        %v6587 = vrcp.pop %v6495
        %v6588 = vrcp.pop %v6498
        %v6589 = vrcp.pop %v6501
        %v6590 = vrcp.pop %v6504
        %v6591 = vrcp.pop %v6507
        %v6592 = vrcp.pop %v6510
        %v6593 = vrcp.pop %v6513
        %v6594 = vrcp.pop %v6516
        %v6595 = vrcp.pop %v6519
        %v6596 = vrcp.pop %v6522
        %v6597 = vrcp.pop %v6525
        %v6598 = vrcp.pop %v6528
        %v6599 = vrcp.pop %v6531
        %v6600 = vrcp.pop %v6534
        %v6601 = vrcp.pop %v6537
        %v6602 = vrcp.pop %v6540
        %v6603 = vrcp.pop %v6543
        %v6604 = vrcp.pop %v6546
        %v6605 = vrcp.pop %v6549
        %v6606 = vrcp.pop %v6552
        %v6607 = vrcp.pop %v6555
        %v6608 = vrcp.pop %v6558
        %v6609 = vrcp.pop %v6561
        %v6610 = vrcp.pop %v6564
        %v6611 = vrcp.pop %v6567
        %v6612 = vrcp.pop %v6570
        %v6613 = vrcp.pop %v6573
        %v6614 = vrcp.pop %v6576
        %v6615 = vrcp.pop %v6579
        %v6616 = vrcp.pop %v6582
        %v6617 = vrcp.pop %v6585
        %v6618 = vmul.f32 %v6427, %v6586
        %v6619 = vmul.f32 %v6429, %v6587
        %v6620 = vmul.f32 %v6431, %v6588
        %v6621 = vmul.f32 %v6433, %v6589
        %v6622 = vmul.f32 %v6435, %v6590
        %v6623 = vmul.f32 %v6437, %v6591
        %v6624 = vmul.f32 %v6439, %v6592
        %v6625 = vmul.f32 %v6441, %v6593
        %v6626 = vmul.f32 %v6443, %v6594
        %v6627 = vmul.f32 %v6445, %v6595
        %v6628 = vmul.f32 %v6447, %v6596
        %v6629 = vmul.f32 %v6449, %v6597
        %v6630 = vmul.f32 %v6451, %v6598
        %v6631 = vmul.f32 %v6453, %v6599
        %v6632 = vmul.f32 %v6455, %v6600
        %v6633 = vmul.f32 %v6457, %v6601
        %v6634 = vmul.f32 %v6459, %v6602
        %v6635 = vmul.f32 %v6461, %v6603
        %v6636 = vmul.f32 %v6463, %v6604
        %v6637 = vmul.f32 %v6465, %v6605
        %v6638 = vmul.f32 %v6467, %v6606
        %v6639 = vmul.f32 %v6469, %v6607
        %v6640 = vmul.f32 %v6471, %v6608
        %v6641 = vmul.f32 %v6473, %v6609
        %v6642 = vmul.f32 %v6475, %v6610
        %v6643 = vmul.f32 %v6477, %v6611
        %v6644 = vmul.f32 %v6479, %v6612
        %v6645 = vmul.f32 %v6481, %v6613
        %v6646 = vmul.f32 %v6483, %v6614
        %v6647 = vmul.f32 %v6485, %v6615
        %v6648 = vmul.f32 %v6487, %v6616
        %v6649 = vmul.f32 %v6489, %v6617
        %v6651 = vsel %vm4659, %v6618, 0
        %v6654 = vsel %vm4659, %v6619, 0
        %6656 = vmatprep.subr.mxu0 0.0
        %6657 = vmatpush1.msra.mxu0 %v4243
        %6658 = vmatprep.subr.mxu0 0.0
        %6659 = vmatpush1.msra.mxu0 %v4379
        %6660 = vmatprep.subr.mxu0 0.0
        %6661 = vmatpush1.msra.mxu0 0.0
        %6662 = vmatprep.subr.mxu0 0.0
        %6663 = vmatpush1.msra.mxu0 0.0
        %6664 = vmatprep.subr.mxu0 0.0
        %6665 = vmatpush1.msra.mxu0 0.0
        %6666 = vmatprep.subr.mxu0 0.0
        %6667 = vmatpush1.msra.mxu0 0.0
        %6668 = vmatprep.subr.mxu0 0.0
        %6669 = vmatpush1.msra.mxu0 0.0
        %6670 = vmatprep.subr.mxu0 0.0
        %6671 = vmatpush1.msra.mxu0 0.0
        %6672 = vmatprep.subr.mxu0 0.0
        %6673 = vmatpush1.msra.mxu0 0.0
        %6674 = vmatprep.subr.mxu0 0.0
        %6675 = vmatpush1.msra.mxu0 0.0
        %6676 = vmatprep.subr.mxu0 0.0
        %6677 = vmatpush1.msra.mxu0 0.0
        %6678 = vmatprep.subr.mxu0 0.0
        %6679 = vmatpush1.msra.mxu0 0.0
        %6680 = vmatprep.subr.mxu0 0.0
        %6681 = vmatpush1.msra.mxu0 0.0
        %6682 = vmatprep.subr.mxu0 0.0
        %6683 = vmatpush1.msra.mxu0 0.0
        %6684 = vmatprep.subr.mxu0 0.0
        %6685 = vmatpush1.msra.mxu0 0.0
        %6686 = vmatprep.subr.mxu0 0.0
        %6687 = vmatpush1.msra.mxu0 0.0
        %6688 = vmatprep.subr.mxu0 0.0
        %6689 = vmatpush1.msra.mxu0 0.0
        %6690 = vmatprep.subr.mxu0 0.0
        %6691 = vmatpush1.msra.mxu0 0.0
        %6692 = vmatprep.subr.mxu0 0.0
        %6693 = vmatpush1.msra.mxu0 0.0
        %6694 = vmatprep.subr.mxu0 0.0
        %6695 = vmatpush1.msra.mxu0 0.0
        %6696 = vmatprep.subr.mxu0 0.0
        %6697 = vmatpush1.msra.mxu0 0.0
        %6698 = vmatprep.subr.mxu0 0.0
        %6699 = vmatpush1.msra.mxu0 0.0
        %6700 = vmatprep.subr.mxu0 0.0
        %6701 = vmatpush1.msra.mxu0 0.0
        %6702 = vmatprep.subr.mxu0 0.0
        %6703 = vmatpush1.msra.mxu0 0.0
        %6704 = vmatprep.subr.mxu0 0.0
        %6705 = vmatpush1.msra.mxu0 0.0
        %6706 = vmatprep.subr.mxu0 0.0
        %6707 = vmatpush1.msra.mxu0 0.0
        %6708 = vmatprep.subr.mxu0 0.0
        %6709 = vmatpush1.msra.mxu0 0.0
        %6710 = vmatprep.subr.mxu0 0.0
        %6711 = vmatpush1.msra.mxu0 0.0
        %6712 = vmatprep.subr.mxu0 0.0
        %6713 = vmatpush1.msra.mxu0 0.0
        %6714 = vmatprep.subr.mxu0 0.0
        %6715 = vmatpush1.msra.mxu0 0.0
        %6716 = vmatprep.subr.mxu0 0.0
        %6717 = vmatpush1.msra.mxu0 0.0
        %6718 = vmatprep.subr.mxu0 0.0
        %6719 = vmatpush1.msra.mxu0 0.0
        %6720 = vmatprep.mubr.f32.mxu0 0.0
        %6721 = vmatmul.mubr.f32.gmra.mrb[0].mxu0 %v6651
        %v6722 = vpop.f32.mrb[0].mxu0
        %v6723 = vadd.f32 0.0, %v6722
        %v6724 = vpop.f32.mrb[0].mxu0
        %6725 = vmatprep.mubr.f32.mxu0 0.0
        %6726 = vmatmul.mubr.f32.gmra.mrb[0].mxu0 %v6654
        %v6727 = vpop.f32.mrb[0].mxu0
        %v6728 = vadd.f32 0.0, %v6727
        %v6729 = vpop.f32.mrb[0].mxu0
        %6730 = vdwg.mxu0
        %v6732 = vsel %vm4659, %v6620, 0
        %v6735 = vsel %vm4659, %v6621, 0
        %6737 = vmatprep.subr.mxu0 0.0
        %6738 = vmatpush1.msra.mxu0 %v4244
        %6739 = vmatprep.subr.mxu0 0.0
        %6740 = vmatpush1.msra.mxu0 %v4380
        %6741 = vmatprep.subr.mxu0 0.0
        %6742 = vmatpush1.msra.mxu0 0.0
        %6743 = vmatprep.subr.mxu0 0.0
        %6744 = vmatpush1.msra.mxu0 0.0
        %6745 = vmatprep.subr.mxu0 0.0
        %6746 = vmatpush1.msra.mxu0 0.0
        %6747 = vmatprep.subr.mxu0 0.0
        %6748 = vmatpush1.msra.mxu0 0.0
        %6749 = vmatprep.subr.mxu0 0.0
        %6750 = vmatpush1.msra.mxu0 0.0
        %6751 = vmatprep.subr.mxu0 0.0
        %6752 = vmatpush1.msra.mxu0 0.0
        %6753 = vmatprep.subr.mxu0 0.0
        %6754 = vmatpush1.msra.mxu0 0.0
        %6755 = vmatprep.subr.mxu0 0.0
        %6756 = vmatpush1.msra.mxu0 0.0
        %6757 = vmatprep.subr.mxu0 0.0
        %6758 = vmatpush1.msra.mxu0 0.0
        %6759 = vmatprep.subr.mxu0 0.0
        %6760 = vmatpush1.msra.mxu0 0.0
        %6761 = vmatprep.subr.mxu0 0.0
        %6762 = vmatpush1.msra.mxu0 0.0
        %6763 = vmatprep.subr.mxu0 0.0
        %6764 = vmatpush1.msra.mxu0 0.0
        %6765 = vmatprep.subr.mxu0 0.0
        %6766 = vmatpush1.msra.mxu0 0.0
        %6767 = vmatprep.subr.mxu0 0.0
        %6768 = vmatpush1.msra.mxu0 0.0
        %6769 = vmatprep.subr.mxu0 0.0
        %6770 = vmatpush1.msra.mxu0 0.0
        %6771 = vmatprep.subr.mxu0 0.0
        %6772 = vmatpush1.msra.mxu0 0.0
        %6773 = vmatprep.subr.mxu0 0.0
        %6774 = vmatpush1.msra.mxu0 0.0
        %6775 = vmatprep.subr.mxu0 0.0
        %6776 = vmatpush1.msra.mxu0 0.0
        %6777 = vmatprep.subr.mxu0 0.0
        %6778 = vmatpush1.msra.mxu0 0.0
        %6779 = vmatprep.subr.mxu0 0.0
        %6780 = vmatpush1.msra.mxu0 0.0
        %6781 = vmatprep.subr.mxu0 0.0
        %6782 = vmatpush1.msra.mxu0 0.0
        %6783 = vmatprep.subr.mxu0 0.0
        %6784 = vmatpush1.msra.mxu0 0.0
        %6785 = vmatprep.subr.mxu0 0.0
        %6786 = vmatpush1.msra.mxu0 0.0
        %6787 = vmatprep.subr.mxu0 0.0
        %6788 = vmatpush1.msra.mxu0 0.0
        %6789 = vmatprep.subr.mxu0 0.0
        %6790 = vmatpush1.msra.mxu0 0.0
        %6791 = vmatprep.subr.mxu0 0.0
        %6792 = vmatpush1.msra.mxu0 0.0
        %6793 = vmatprep.subr.mxu0 0.0
        %6794 = vmatpush1.msra.mxu0 0.0
        %6795 = vmatprep.subr.mxu0 0.0
        %6796 = vmatpush1.msra.mxu0 0.0
        %6797 = vmatprep.subr.mxu0 0.0
        %6798 = vmatpush1.msra.mxu0 0.0
        %6799 = vmatprep.subr.mxu0 0.0
        %6800 = vmatpush1.msra.mxu0 0.0
        %6801 = vmatprep.mubr.f32.mxu0 0.0
        %6802 = vmatmul.mubr.f32.gmra.mrb[0].mxu0 %v6732
        %v6803 = vpop.f32.mrb[0].mxu0
        %v6804 = vadd.f32 0.0, %v6803
        %v6805 = vpop.f32.mrb[0].mxu0
        %6806 = vmatprep.mubr.f32.mxu0 0.0
        %6807 = vmatmul.mubr.f32.gmra.mrb[0].mxu0 %v6735
        %v6808 = vpop.f32.mrb[0].mxu0
        %v6809 = vadd.f32 0.0, %v6808
        %v6810 = vpop.f32.mrb[0].mxu0
        %6811 = vdwg.mxu0
        %v6813 = vsel %vm4659, %v6622, 0
        %v6816 = vsel %vm4659, %v6623, 0
        %6818 = vmatprep.subr.mxu0 0.0
        %6819 = vmatpush1.msra.mxu0 %v4245
        %6820 = vmatprep.subr.mxu0 0.0
        %6821 = vmatpush1.msra.mxu0 %v4381
        %6822 = vmatprep.subr.mxu0 0.0
        %6823 = vmatpush1.msra.mxu0 0.0
        %6824 = vmatprep.subr.mxu0 0.0
        %6825 = vmatpush1.msra.mxu0 0.0
        %6826 = vmatprep.subr.mxu0 0.0
        %6827 = vmatpush1.msra.mxu0 0.0
        %6828 = vmatprep.subr.mxu0 0.0
        %6829 = vmatpush1.msra.mxu0 0.0
        %6830 = vmatprep.subr.mxu0 0.0
        %6831 = vmatpush1.msra.mxu0 0.0
        %6832 = vmatprep.subr.mxu0 0.0
        %6833 = vmatpush1.msra.mxu0 0.0
        %6834 = vmatprep.subr.mxu0 0.0
        %6835 = vmatpush1.msra.mxu0 0.0
        %6836 = vmatprep.subr.mxu0 0.0
        %6837 = vmatpush1.msra.mxu0 0.0
        %6838 = vmatprep.subr.mxu0 0.0
        %6839 = vmatpush1.msra.mxu0 0.0
        %6840 = vmatprep.subr.mxu0 0.0
        %6841 = vmatpush1.msra.mxu0 0.0
        %6842 = vmatprep.subr.mxu0 0.0
        %6843 = vmatpush1.msra.mxu0 0.0
        %6844 = vmatprep.subr.mxu0 0.0
        %6845 = vmatpush1.msra.mxu0 0.0
        %6846 = vmatprep.subr.mxu0 0.0
        %6847 = vmatpush1.msra.mxu0 0.0
        %6848 = vmatprep.subr.mxu0 0.0
        %6849 = vmatpush1.msra.mxu0 0.0
        %6850 = vmatprep.subr.mxu0 0.0
        %6851 = vmatpush1.msra.mxu0 0.0
        %6852 = vmatprep.subr.mxu0 0.0
        %6853 = vmatpush1.msra.mxu0 0.0
        %6854 = vmatprep.subr.mxu0 0.0
        %6855 = vmatpush1.msra.mxu0 0.0
        %6856 = vmatprep.subr.mxu0 0.0
        %6857 = vmatpush1.msra.mxu0 0.0
        %6858 = vmatprep.subr.mxu0 0.0
        %6859 = vmatpush1.msra.mxu0 0.0
        %6860 = vmatprep.subr.mxu0 0.0
        %6861 = vmatpush1.msra.mxu0 0.0
        %6862 = vmatprep.subr.mxu0 0.0
        %6863 = vmatpush1.msra.mxu0 0.0
        %6864 = vmatprep.subr.mxu0 0.0
        %6865 = vmatpush1.msra.mxu0 0.0
        %6866 = vmatprep.subr.mxu0 0.0
        %6867 = vmatpush1.msra.mxu0 0.0
        %6868 = vmatprep.subr.mxu0 0.0
        %6869 = vmatpush1.msra.mxu0 0.0
        %6870 = vmatprep.subr.mxu0 0.0
        %6871 = vmatpush1.msra.mxu0 0.0
        %6872 = vmatprep.subr.mxu0 0.0
        %6873 = vmatpush1.msra.mxu0 0.0
        %6874 = vmatprep.subr.mxu0 0.0
        %6875 = vmatpush1.msra.mxu0 0.0
        %6876 = vmatprep.subr.mxu0 0.0
        %6877 = vmatpush1.msra.mxu0 0.0
        %6878 = vmatprep.subr.mxu0 0.0
        %6879 = vmatpush1.msra.mxu0 0.0
        %6880 = vmatprep.subr.mxu0 0.0
        %6881 = vmatpush1.msra.mxu0 0.0
        %6882 = vmatprep.mubr.f32.mxu0 0.0
        %6883 = vmatmul.mubr.f32.gmra.mrb[0].mxu0 %v6813
        %v6884 = vpop.f32.mrb[0].mxu0
        %v6885 = vadd.f32 0.0, %v6884
        %v6886 = vpop.f32.mrb[0].mxu0
        %6887 = vmatprep.mubr.f32.mxu0 0.0
        %6888 = vmatmul.mubr.f32.gmra.mrb[0].mxu0 %v6816
        %v6889 = vpop.f32.mrb[0].mxu0
        %v6890 = vadd.f32 0.0, %v6889
        %v6891 = vpop.f32.mrb[0].mxu0
        %6892 = vdwg.mxu0
        %v6894 = vsel %vm4659, %v6624, 0
        %v6897 = vsel %vm4659, %v6625, 0
        %6899 = vmatprep.subr.mxu0 0.0
        %6900 = vmatpush1.msra.mxu0 %v4246
        %6901 = vmatprep.subr.mxu0 0.0
        %6902 = vmatpush1.msra.mxu0 %v4382
        %6903 = vmatprep.subr.mxu0 0.0
        %6904 = vmatpush1.msra.mxu0 0.0
        %6905 = vmatprep.subr.mxu0 0.0
        %6906 = vmatpush1.msra.mxu0 0.0
        %6907 = vmatprep.subr.mxu0 0.0
        %6908 = vmatpush1.msra.mxu0 0.0
        %6909 = vmatprep.subr.mxu0 0.0
        %6910 = vmatpush1.msra.mxu0 0.0
        %6911 = vmatprep.subr.mxu0 0.0
        %6912 = vmatpush1.msra.mxu0 0.0
        %6913 = vmatprep.subr.mxu0 0.0
        %6914 = vmatpush1.msra.mxu0 0.0
        %6915 = vmatprep.subr.mxu0 0.0
        %6916 = vmatpush1.msra.mxu0 0.0
        %6917 = vmatprep.subr.mxu0 0.0
        %6918 = vmatpush1.msra.mxu0 0.0
        %6919 = vmatprep.subr.mxu0 0.0
        %6920 = vmatpush1.msra.mxu0 0.0
        %6921 = vmatprep.subr.mxu0 0.0
        %6922 = vmatpush1.msra.mxu0 0.0
        %6923 = vmatprep.subr.mxu0 0.0
        %6924 = vmatpush1.msra.mxu0 0.0
        %6925 = vmatprep.subr.mxu0 0.0
        %6926 = vmatpush1.msra.mxu0 0.0
        %6927 = vmatprep.subr.mxu0 0.0
        %6928 = vmatpush1.msra.mxu0 0.0
        %6929 = vmatprep.subr.mxu0 0.0
        %6930 = vmatpush1.msra.mxu0 0.0
        %6931 = vmatprep.subr.mxu0 0.0
        %6932 = vmatpush1.msra.mxu0 0.0
        %6933 = vmatprep.subr.mxu0 0.0
        %6934 = vmatpush1.msra.mxu0 0.0
        %6935 = vmatprep.subr.mxu0 0.0
        %6936 = vmatpush1.msra.mxu0 0.0
        %6937 = vmatprep.subr.mxu0 0.0
        %6938 = vmatpush1.msra.mxu0 0.0
        %6939 = vmatprep.subr.mxu0 0.0
        %6940 = vmatpush1.msra.mxu0 0.0
        %6941 = vmatprep.subr.mxu0 0.0
        %6942 = vmatpush1.msra.mxu0 0.0
        %6943 = vmatprep.subr.mxu0 0.0
        %6944 = vmatpush1.msra.mxu0 0.0
        %6945 = vmatprep.subr.mxu0 0.0
        %6946 = vmatpush1.msra.mxu0 0.0
        %6947 = vmatprep.subr.mxu0 0.0
        %6948 = vmatpush1.msra.mxu0 0.0
        %6949 = vmatprep.subr.mxu0 0.0
        %6950 = vmatpush1.msra.mxu0 0.0
        %6951 = vmatprep.subr.mxu0 0.0
        %6952 = vmatpush1.msra.mxu0 0.0
        %6953 = vmatprep.subr.mxu0 0.0
        %6954 = vmatpush1.msra.mxu0 0.0
        %6955 = vmatprep.subr.mxu0 0.0
        %6956 = vmatpush1.msra.mxu0 0.0
        %6957 = vmatprep.subr.mxu0 0.0
        %6958 = vmatpush1.msra.mxu0 0.0
        %6959 = vmatprep.subr.mxu0 0.0
        %6960 = vmatpush1.msra.mxu0 0.0
        %6961 = vmatprep.subr.mxu0 0.0
        %6962 = vmatpush1.msra.mxu0 0.0
        %6963 = vmatprep.mubr.f32.mxu0 0.0
        %6964 = vmatmul.mubr.f32.gmra.mrb[0].mxu0 %v6894
        %v6965 = vpop.f32.mrb[0].mxu0
        %v6966 = vadd.f32 0.0, %v6965
        %v6967 = vpop.f32.mrb[0].mxu0
        %6968 = vmatprep.mubr.f32.mxu0 0.0
        %6969 = vmatmul.mubr.f32.gmra.mrb[0].mxu0 %v6897
        %v6970 = vpop.f32.mrb[0].mxu0
        %v6971 = vadd.f32 0.0, %v6970
        %v6972 = vpop.f32.mrb[0].mxu0
        %6973 = vdwg.mxu0
        %v6975 = vsel %vm4659, %v6626, 0
        %v6978 = vsel %vm4659, %v6627, 0
        %6980 = vmatprep.subr.mxu0 0.0
        %6981 = vmatpush1.msra.mxu0 %v4247
        %6982 = vmatprep.subr.mxu0 0.0
        %6983 = vmatpush1.msra.mxu0 %v4383
        %6984 = vmatprep.subr.mxu0 0.0
        %6985 = vmatpush1.msra.mxu0 0.0
        %6986 = vmatprep.subr.mxu0 0.0
        %6987 = vmatpush1.msra.mxu0 0.0
        %6988 = vmatprep.subr.mxu0 0.0
        %6989 = vmatpush1.msra.mxu0 0.0
        %6990 = vmatprep.subr.mxu0 0.0
        %6991 = vmatpush1.msra.mxu0 0.0
        %6992 = vmatprep.subr.mxu0 0.0
        %6993 = vmatpush1.msra.mxu0 0.0
        %6994 = vmatprep.subr.mxu0 0.0
        %6995 = vmatpush1.msra.mxu0 0.0
        %6996 = vmatprep.subr.mxu0 0.0
        %6997 = vmatpush1.msra.mxu0 0.0
        %6998 = vmatprep.subr.mxu0 0.0
        %6999 = vmatpush1.msra.mxu0 0.0
        %7000 = vmatprep.subr.mxu0 0.0
        %7001 = vmatpush1.msra.mxu0 0.0
        %7002 = vmatprep.subr.mxu0 0.0
        %7003 = vmatpush1.msra.mxu0 0.0
        %7004 = vmatprep.subr.mxu0 0.0
        %7005 = vmatpush1.msra.mxu0 0.0
        %7006 = vmatprep.subr.mxu0 0.0
        %7007 = vmatpush1.msra.mxu0 0.0
        %7008 = vmatprep.subr.mxu0 0.0
        %7009 = vmatpush1.msra.mxu0 0.0
        %7010 = vmatprep.subr.mxu0 0.0
        %7011 = vmatpush1.msra.mxu0 0.0
        %7012 = vmatprep.subr.mxu0 0.0
        %7013 = vmatpush1.msra.mxu0 0.0
        %7014 = vmatprep.subr.mxu0 0.0
        %7015 = vmatpush1.msra.mxu0 0.0
        %7016 = vmatprep.subr.mxu0 0.0
        %7017 = vmatpush1.msra.mxu0 0.0
        %7018 = vmatprep.subr.mxu0 0.0
        %7019 = vmatpush1.msra.mxu0 0.0
        %7020 = vmatprep.subr.mxu0 0.0
        %7021 = vmatpush1.msra.mxu0 0.0
        %7022 = vmatprep.subr.mxu0 0.0
        %7023 = vmatpush1.msra.mxu0 0.0
        %7024 = vmatprep.subr.mxu0 0.0
        %7025 = vmatpush1.msra.mxu0 0.0
        %7026 = vmatprep.subr.mxu0 0.0
        %7027 = vmatpush1.msra.mxu0 0.0
        %7028 = vmatprep.subr.mxu0 0.0
        %7029 = vmatpush1.msra.mxu0 0.0
        %7030 = vmatprep.subr.mxu0 0.0
        %7031 = vmatpush1.msra.mxu0 0.0
        %7032 = vmatprep.subr.mxu0 0.0
        %7033 = vmatpush1.msra.mxu0 0.0
        %7034 = vmatprep.subr.mxu0 0.0
        %7035 = vmatpush1.msra.mxu0 0.0
        %7036 = vmatprep.subr.mxu0 0.0
        %7037 = vmatpush1.msra.mxu0 0.0
        %7038 = vmatprep.subr.mxu0 0.0
        %7039 = vmatpush1.msra.mxu0 0.0
        %7040 = vmatprep.subr.mxu0 0.0
        %7041 = vmatpush1.msra.mxu0 0.0
        %7042 = vmatprep.subr.mxu0 0.0
        %7043 = vmatpush1.msra.mxu0 0.0
        %7044 = vmatprep.mubr.f32.mxu0 0.0
        %7045 = vmatmul.mubr.f32.gmra.mrb[0].mxu0 %v6975
        %v7046 = vpop.f32.mrb[0].mxu0
        %v7047 = vadd.f32 0.0, %v7046
        %v7048 = vpop.f32.mrb[0].mxu0
        %7049 = vmatprep.mubr.f32.mxu0 0.0
        %7050 = vmatmul.mubr.f32.gmra.mrb[0].mxu0 %v6978
        %v7051 = vpop.f32.mrb[0].mxu0
        %v7052 = vadd.f32 0.0, %v7051
        %v7053 = vpop.f32.mrb[0].mxu0
        %7054 = vdwg.mxu0
        %v7056 = vsel %vm4659, %v6628, 0
        %v7059 = vsel %vm4659, %v6629, 0
        %7061 = vmatprep.subr.mxu0 0.0
        %7062 = vmatpush1.msra.mxu0 %v4248
        %7063 = vmatprep.subr.mxu0 0.0
        %7064 = vmatpush1.msra.mxu0 %v4384
        %7065 = vmatprep.subr.mxu0 0.0
        %7066 = vmatpush1.msra.mxu0 0.0
        %7067 = vmatprep.subr.mxu0 0.0
        %7068 = vmatpush1.msra.mxu0 0.0
        %7069 = vmatprep.subr.mxu0 0.0
        %7070 = vmatpush1.msra.mxu0 0.0
        %7071 = vmatprep.subr.mxu0 0.0
        %7072 = vmatpush1.msra.mxu0 0.0
        %7073 = vmatprep.subr.mxu0 0.0
        %7074 = vmatpush1.msra.mxu0 0.0
        %7075 = vmatprep.subr.mxu0 0.0
        %7076 = vmatpush1.msra.mxu0 0.0
        %7077 = vmatprep.subr.mxu0 0.0
        %7078 = vmatpush1.msra.mxu0 0.0
        %7079 = vmatprep.subr.mxu0 0.0
        %7080 = vmatpush1.msra.mxu0 0.0
        %7081 = vmatprep.subr.mxu0 0.0
        %7082 = vmatpush1.msra.mxu0 0.0
        %7083 = vmatprep.subr.mxu0 0.0
        %7084 = vmatpush1.msra.mxu0 0.0
        %7085 = vmatprep.subr.mxu0 0.0
        %7086 = vmatpush1.msra.mxu0 0.0
        %7087 = vmatprep.subr.mxu0 0.0
        %7088 = vmatpush1.msra.mxu0 0.0
        %7089 = vmatprep.subr.mxu0 0.0
        %7090 = vmatpush1.msra.mxu0 0.0
        %7091 = vmatprep.subr.mxu0 0.0
        %7092 = vmatpush1.msra.mxu0 0.0
        %7093 = vmatprep.subr.mxu0 0.0
        %7094 = vmatpush1.msra.mxu0 0.0
        %7095 = vmatprep.subr.mxu0 0.0
        %7096 = vmatpush1.msra.mxu0 0.0
        %7097 = vmatprep.subr.mxu0 0.0
        %7098 = vmatpush1.msra.mxu0 0.0
        %7099 = vmatprep.subr.mxu0 0.0
        %7100 = vmatpush1.msra.mxu0 0.0
        %7101 = vmatprep.subr.mxu0 0.0
        %7102 = vmatpush1.msra.mxu0 0.0
        %7103 = vmatprep.subr.mxu0 0.0
        %7104 = vmatpush1.msra.mxu0 0.0
        %7105 = vmatprep.subr.mxu0 0.0
        %7106 = vmatpush1.msra.mxu0 0.0
        %7107 = vmatprep.subr.mxu0 0.0
        %7108 = vmatpush1.msra.mxu0 0.0
        %7109 = vmatprep.subr.mxu0 0.0
        %7110 = vmatpush1.msra.mxu0 0.0
        %7111 = vmatprep.subr.mxu0 0.0
        %7112 = vmatpush1.msra.mxu0 0.0
        %7113 = vmatprep.subr.mxu0 0.0
        %7114 = vmatpush1.msra.mxu0 0.0
        %7115 = vmatprep.subr.mxu0 0.0
        %7116 = vmatpush1.msra.mxu0 0.0
        %7117 = vmatprep.subr.mxu0 0.0
        %7118 = vmatpush1.msra.mxu0 0.0
        %7119 = vmatprep.subr.mxu0 0.0
        %7120 = vmatpush1.msra.mxu0 0.0
        %7121 = vmatprep.subr.mxu0 0.0
        %7122 = vmatpush1.msra.mxu0 0.0
        %7123 = vmatprep.subr.mxu0 0.0
        %7124 = vmatpush1.msra.mxu0 0.0
        %7125 = vmatprep.mubr.f32.mxu0 0.0
        %7126 = vmatmul.mubr.f32.gmra.mrb[0].mxu0 %v7056
        %v7127 = vpop.f32.mrb[0].mxu0
        %v7128 = vadd.f32 0.0, %v7127
        %v7129 = vpop.f32.mrb[0].mxu0
        %7130 = vmatprep.mubr.f32.mxu0 0.0
        %7131 = vmatmul.mubr.f32.gmra.mrb[0].mxu0 %v7059
        %v7132 = vpop.f32.mrb[0].mxu0
        %v7133 = vadd.f32 0.0, %v7132
        %v7134 = vpop.f32.mrb[0].mxu0
        %7135 = vdwg.mxu0
        %v7137 = vsel %vm4659, %v6630, 0
        %v7140 = vsel %vm4659, %v6631, 0
        %7142 = vmatprep.subr.mxu0 0.0
        %7143 = vmatpush1.msra.mxu0 %v4249
        %7144 = vmatprep.subr.mxu0 0.0
        %7145 = vmatpush1.msra.mxu0 %v4385
        %7146 = vmatprep.subr.mxu0 0.0
        %7147 = vmatpush1.msra.mxu0 0.0
        %7148 = vmatprep.subr.mxu0 0.0
        %7149 = vmatpush1.msra.mxu0 0.0
        %7150 = vmatprep.subr.mxu0 0.0
        %7151 = vmatpush1.msra.mxu0 0.0
        %7152 = vmatprep.subr.mxu0 0.0
        %7153 = vmatpush1.msra.mxu0 0.0
        %7154 = vmatprep.subr.mxu0 0.0
        %7155 = vmatpush1.msra.mxu0 0.0
        %7156 = vmatprep.subr.mxu0 0.0
        %7157 = vmatpush1.msra.mxu0 0.0
        %7158 = vmatprep.subr.mxu0 0.0
        %7159 = vmatpush1.msra.mxu0 0.0
        %7160 = vmatprep.subr.mxu0 0.0
        %7161 = vmatpush1.msra.mxu0 0.0
        %7162 = vmatprep.subr.mxu0 0.0
        %7163 = vmatpush1.msra.mxu0 0.0
        %7164 = vmatprep.subr.mxu0 0.0
        %7165 = vmatpush1.msra.mxu0 0.0
        %7166 = vmatprep.subr.mxu0 0.0
        %7167 = vmatpush1.msra.mxu0 0.0
        %7168 = vmatprep.subr.mxu0 0.0
        %7169 = vmatpush1.msra.mxu0 0.0
        %7170 = vmatprep.subr.mxu0 0.0
        %7171 = vmatpush1.msra.mxu0 0.0
        %7172 = vmatprep.subr.mxu0 0.0
        %7173 = vmatpush1.msra.mxu0 0.0
        %7174 = vmatprep.subr.mxu0 0.0
        %7175 = vmatpush1.msra.mxu0 0.0
        %7176 = vmatprep.subr.mxu0 0.0
        %7177 = vmatpush1.msra.mxu0 0.0
        %7178 = vmatprep.subr.mxu0 0.0
        %7179 = vmatpush1.msra.mxu0 0.0
        %7180 = vmatprep.subr.mxu0 0.0
        %7181 = vmatpush1.msra.mxu0 0.0
        %7182 = vmatprep.subr.mxu0 0.0
        %7183 = vmatpush1.msra.mxu0 0.0
        %7184 = vmatprep.subr.mxu0 0.0
        %7185 = vmatpush1.msra.mxu0 0.0
        %7186 = vmatprep.subr.mxu0 0.0
        %7187 = vmatpush1.msra.mxu0 0.0
        %7188 = vmatprep.subr.mxu0 0.0
        %7189 = vmatpush1.msra.mxu0 0.0
        %7190 = vmatprep.subr.mxu0 0.0
        %7191 = vmatpush1.msra.mxu0 0.0
        %7192 = vmatprep.subr.mxu0 0.0
        %7193 = vmatpush1.msra.mxu0 0.0
        %7194 = vmatprep.subr.mxu0 0.0
        %7195 = vmatpush1.msra.mxu0 0.0
        %7196 = vmatprep.subr.mxu0 0.0
        %7197 = vmatpush1.msra.mxu0 0.0
        %7198 = vmatprep.subr.mxu0 0.0
        %7199 = vmatpush1.msra.mxu0 0.0
        %7200 = vmatprep.subr.mxu0 0.0
        %7201 = vmatpush1.msra.mxu0 0.0
        %7202 = vmatprep.subr.mxu0 0.0
        %7203 = vmatpush1.msra.mxu0 0.0
        %7204 = vmatprep.subr.mxu0 0.0
        %7205 = vmatpush1.msra.mxu0 0.0
        %7206 = vmatprep.mubr.f32.mxu0 0.0
        %7207 = vmatmul.mubr.f32.gmra.mrb[0].mxu0 %v7137
        %v7208 = vpop.f32.mrb[0].mxu0
        %v7209 = vadd.f32 0.0, %v7208
        %v7210 = vpop.f32.mrb[0].mxu0
        %7211 = vmatprep.mubr.f32.mxu0 0.0
        %7212 = vmatmul.mubr.f32.gmra.mrb[0].mxu0 %v7140
        %v7213 = vpop.f32.mrb[0].mxu0
        %v7214 = vadd.f32 0.0, %v7213
        %v7215 = vpop.f32.mrb[0].mxu0
        %7216 = vdwg.mxu0
        %v7218 = vsel %vm4659, %v6632, 0
        %v7221 = vsel %vm4659, %v6633, 0
        %7223 = vmatprep.subr.mxu0 0.0
        %7224 = vmatpush1.msra.mxu0 %v4250
        %7225 = vmatprep.subr.mxu0 0.0
        %7226 = vmatpush1.msra.mxu0 %v4386
        %7227 = vmatprep.subr.mxu0 0.0
        %7228 = vmatpush1.msra.mxu0 0.0
        %7229 = vmatprep.subr.mxu0 0.0
        %7230 = vmatpush1.msra.mxu0 0.0
        %7231 = vmatprep.subr.mxu0 0.0
        %7232 = vmatpush1.msra.mxu0 0.0
        %7233 = vmatprep.subr.mxu0 0.0
        %7234 = vmatpush1.msra.mxu0 0.0
        %7235 = vmatprep.subr.mxu0 0.0
        %7236 = vmatpush1.msra.mxu0 0.0
        %7237 = vmatprep.subr.mxu0 0.0
        %7238 = vmatpush1.msra.mxu0 0.0
        %7239 = vmatprep.subr.mxu0 0.0
        %7240 = vmatpush1.msra.mxu0 0.0
        %7241 = vmatprep.subr.mxu0 0.0
        %7242 = vmatpush1.msra.mxu0 0.0
        %7243 = vmatprep.subr.mxu0 0.0
        %7244 = vmatpush1.msra.mxu0 0.0
        %7245 = vmatprep.subr.mxu0 0.0
        %7246 = vmatpush1.msra.mxu0 0.0
        %7247 = vmatprep.subr.mxu0 0.0
        %7248 = vmatpush1.msra.mxu0 0.0
        %7249 = vmatprep.subr.mxu0 0.0
        %7250 = vmatpush1.msra.mxu0 0.0
        %7251 = vmatprep.subr.mxu0 0.0
        %7252 = vmatpush1.msra.mxu0 0.0
        %7253 = vmatprep.subr.mxu0 0.0
        %7254 = vmatpush1.msra.mxu0 0.0
        %7255 = vmatprep.subr.mxu0 0.0
        %7256 = vmatpush1.msra.mxu0 0.0
        %7257 = vmatprep.subr.mxu0 0.0
        %7258 = vmatpush1.msra.mxu0 0.0
        %7259 = vmatprep.subr.mxu0 0.0
        %7260 = vmatpush1.msra.mxu0 0.0
        %7261 = vmatprep.subr.mxu0 0.0
        %7262 = vmatpush1.msra.mxu0 0.0
        %7263 = vmatprep.subr.mxu0 0.0
        %7264 = vmatpush1.msra.mxu0 0.0
        %7265 = vmatprep.subr.mxu0 0.0
        %7266 = vmatpush1.msra.mxu0 0.0
        %7267 = vmatprep.subr.mxu0 0.0
        %7268 = vmatpush1.msra.mxu0 0.0
        %7269 = vmatprep.subr.mxu0 0.0
        %7270 = vmatpush1.msra.mxu0 0.0
        %7271 = vmatprep.subr.mxu0 0.0
        %7272 = vmatpush1.msra.mxu0 0.0
        %7273 = vmatprep.subr.mxu0 0.0
        %7274 = vmatpush1.msra.mxu0 0.0
        %7275 = vmatprep.subr.mxu0 0.0
        %7276 = vmatpush1.msra.mxu0 0.0
        %7277 = vmatprep.subr.mxu0 0.0
        %7278 = vmatpush1.msra.mxu0 0.0
        %7279 = vmatprep.subr.mxu0 0.0
        %7280 = vmatpush1.msra.mxu0 0.0
        %7281 = vmatprep.subr.mxu0 0.0
        %7282 = vmatpush1.msra.mxu0 0.0
        %7283 = vmatprep.subr.mxu0 0.0
        %7284 = vmatpush1.msra.mxu0 0.0
        %7285 = vmatprep.subr.mxu0 0.0
        %7286 = vmatpush1.msra.mxu0 0.0
        %7287 = vmatprep.mubr.f32.mxu0 0.0
        %7288 = vmatmul.mubr.f32.gmra.mrb[0].mxu0 %v7218
        %v7289 = vpop.f32.mrb[0].mxu0
        %v7290 = vadd.f32 0.0, %v7289
        %v7291 = vpop.f32.mrb[0].mxu0
        %7292 = vmatprep.mubr.f32.mxu0 0.0
        %7293 = vmatmul.mubr.f32.gmra.mrb[0].mxu0 %v7221
        %v7294 = vpop.f32.mrb[0].mxu0
        %v7295 = vadd.f32 0.0, %v7294
        %v7296 = vpop.f32.mrb[0].mxu0
        %7297 = vdwg.mxu0
        %v7299 = vsel %vm4659, %v6634, 0
        %v7302 = vsel %vm4659, %v6635, 0
        %7304 = vmatprep.subr.mxu0 0.0
        %7305 = vmatpush1.msra.mxu0 %v4515
        %7306 = vmatprep.subr.mxu0 0.0
        %7307 = vmatpush1.msra.mxu0 %v4651
        %7308 = vmatprep.subr.mxu0 0.0
        %7309 = vmatpush1.msra.mxu0 0.0
        %7310 = vmatprep.subr.mxu0 0.0
        %7311 = vmatpush1.msra.mxu0 0.0
        %7312 = vmatprep.subr.mxu0 0.0
        %7313 = vmatpush1.msra.mxu0 0.0
        %7314 = vmatprep.subr.mxu0 0.0
        %7315 = vmatpush1.msra.mxu0 0.0
        %7316 = vmatprep.subr.mxu0 0.0
        %7317 = vmatpush1.msra.mxu0 0.0
        %7318 = vmatprep.subr.mxu0 0.0
        %7319 = vmatpush1.msra.mxu0 0.0
        %7320 = vmatprep.subr.mxu0 0.0
        %7321 = vmatpush1.msra.mxu0 0.0
        %7322 = vmatprep.subr.mxu0 0.0
        %7323 = vmatpush1.msra.mxu0 0.0
        %7324 = vmatprep.subr.mxu0 0.0
        %7325 = vmatpush1.msra.mxu0 0.0
        %7326 = vmatprep.subr.mxu0 0.0
        %7327 = vmatpush1.msra.mxu0 0.0
        %7328 = vmatprep.subr.mxu0 0.0
        %7329 = vmatpush1.msra.mxu0 0.0
        %7330 = vmatprep.subr.mxu0 0.0
        %7331 = vmatpush1.msra.mxu0 0.0
        %7332 = vmatprep.subr.mxu0 0.0
        %7333 = vmatpush1.msra.mxu0 0.0
        %7334 = vmatprep.subr.mxu0 0.0
        %7335 = vmatpush1.msra.mxu0 0.0
        %7336 = vmatprep.subr.mxu0 0.0
        %7337 = vmatpush1.msra.mxu0 0.0
        %7338 = vmatprep.subr.mxu0 0.0
        %7339 = vmatpush1.msra.mxu0 0.0
        %7340 = vmatprep.subr.mxu0 0.0
        %7341 = vmatpush1.msra.mxu0 0.0
        %7342 = vmatprep.subr.mxu0 0.0
        %7343 = vmatpush1.msra.mxu0 0.0
        %7344 = vmatprep.subr.mxu0 0.0
        %7345 = vmatpush1.msra.mxu0 0.0
        %7346 = vmatprep.subr.mxu0 0.0
        %7347 = vmatpush1.msra.mxu0 0.0
        %7348 = vmatprep.subr.mxu0 0.0
        %7349 = vmatpush1.msra.mxu0 0.0
        %7350 = vmatprep.subr.mxu0 0.0
        %7351 = vmatpush1.msra.mxu0 0.0
        %7352 = vmatprep.subr.mxu0 0.0
        %7353 = vmatpush1.msra.mxu0 0.0
        %7354 = vmatprep.subr.mxu0 0.0
        %7355 = vmatpush1.msra.mxu0 0.0
        %7356 = vmatprep.subr.mxu0 0.0
        %7357 = vmatpush1.msra.mxu0 0.0
        %7358 = vmatprep.subr.mxu0 0.0
        %7359 = vmatpush1.msra.mxu0 0.0
        %7360 = vmatprep.subr.mxu0 0.0
        %7361 = vmatpush1.msra.mxu0 0.0
        %7362 = vmatprep.subr.mxu0 0.0
        %7363 = vmatpush1.msra.mxu0 0.0
        %7364 = vmatprep.subr.mxu0 0.0
        %7365 = vmatpush1.msra.mxu0 0.0
        %7366 = vmatprep.subr.mxu0 0.0
        %7367 = vmatpush1.msra.mxu0 0.0
        %7368 = vmatprep.mubr.f32.mxu0 0.0
        %7369 = vmatmul.mubr.f32.gmra.mrb[0].mxu0 %v7299
        %v7370 = vpop.f32.mrb[0].mxu0
        %v7371 = vadd.f32 0.0, %v7370
        %v7372 = vpop.f32.mrb[0].mxu0
        %7373 = vmatprep.mubr.f32.mxu0 0.0
        %7374 = vmatmul.mubr.f32.gmra.mrb[0].mxu0 %v7302
        %v7375 = vpop.f32.mrb[0].mxu0
        %v7376 = vadd.f32 0.0, %v7375
        %v7377 = vpop.f32.mrb[0].mxu0
        %7378 = vdwg.mxu0
        %v7380 = vsel %vm4659, %v6636, 0
        %v7383 = vsel %vm4659, %v6637, 0
        %7385 = vmatprep.subr.mxu0 0.0
        %7386 = vmatpush1.msra.mxu0 %v4516
        %7387 = vmatprep.subr.mxu0 0.0
        %7388 = vmatpush1.msra.mxu0 %v4652
        %7389 = vmatprep.subr.mxu0 0.0
        %7390 = vmatpush1.msra.mxu0 0.0
        %7391 = vmatprep.subr.mxu0 0.0
        %7392 = vmatpush1.msra.mxu0 0.0
        %7393 = vmatprep.subr.mxu0 0.0
        %7394 = vmatpush1.msra.mxu0 0.0
        %7395 = vmatprep.subr.mxu0 0.0
        %7396 = vmatpush1.msra.mxu0 0.0
        %7397 = vmatprep.subr.mxu0 0.0
        %7398 = vmatpush1.msra.mxu0 0.0
        %7399 = vmatprep.subr.mxu0 0.0
        %7400 = vmatpush1.msra.mxu0 0.0
        %7401 = vmatprep.subr.mxu0 0.0
        %7402 = vmatpush1.msra.mxu0 0.0
        %7403 = vmatprep.subr.mxu0 0.0
        %7404 = vmatpush1.msra.mxu0 0.0
        %7405 = vmatprep.subr.mxu0 0.0
        %7406 = vmatpush1.msra.mxu0 0.0
        %7407 = vmatprep.subr.mxu0 0.0
        %7408 = vmatpush1.msra.mxu0 0.0
        %7409 = vmatprep.subr.mxu0 0.0
        %7410 = vmatpush1.msra.mxu0 0.0
        %7411 = vmatprep.subr.mxu0 0.0
        %7412 = vmatpush1.msra.mxu0 0.0
        %7413 = vmatprep.subr.mxu0 0.0
        %7414 = vmatpush1.msra.mxu0 0.0
        %7415 = vmatprep.subr.mxu0 0.0
        %7416 = vmatpush1.msra.mxu0 0.0
        %7417 = vmatprep.subr.mxu0 0.0
        %7418 = vmatpush1.msra.mxu0 0.0
        %7419 = vmatprep.subr.mxu0 0.0
        %7420 = vmatpush1.msra.mxu0 0.0
        %7421 = vmatprep.subr.mxu0 0.0
        %7422 = vmatpush1.msra.mxu0 0.0
        %7423 = vmatprep.subr.mxu0 0.0
        %7424 = vmatpush1.msra.mxu0 0.0
        %7425 = vmatprep.subr.mxu0 0.0
        %7426 = vmatpush1.msra.mxu0 0.0
        %7427 = vmatprep.subr.mxu0 0.0
        %7428 = vmatpush1.msra.mxu0 0.0
        %7429 = vmatprep.subr.mxu0 0.0
        %7430 = vmatpush1.msra.mxu0 0.0
        %7431 = vmatprep.subr.mxu0 0.0
        %7432 = vmatpush1.msra.mxu0 0.0
        %7433 = vmatprep.subr.mxu0 0.0
        %7434 = vmatpush1.msra.mxu0 0.0
        %7435 = vmatprep.subr.mxu0 0.0
        %7436 = vmatpush1.msra.mxu0 0.0
        %7437 = vmatprep.subr.mxu0 0.0
        %7438 = vmatpush1.msra.mxu0 0.0
        %7439 = vmatprep.subr.mxu0 0.0
        %7440 = vmatpush1.msra.mxu0 0.0
        %7441 = vmatprep.subr.mxu0 0.0
        %7442 = vmatpush1.msra.mxu0 0.0
        %7443 = vmatprep.subr.mxu0 0.0
        %7444 = vmatpush1.msra.mxu0 0.0
        %7445 = vmatprep.subr.mxu0 0.0
        %7446 = vmatpush1.msra.mxu0 0.0
        %7447 = vmatprep.subr.mxu0 0.0
        %7448 = vmatpush1.msra.mxu0 0.0
        %7449 = vmatprep.mubr.f32.mxu0 0.0
        %7450 = vmatmul.mubr.f32.gmra.mrb[0].mxu0 %v7380
        %v7451 = vpop.f32.mrb[0].mxu0
        %v7452 = vadd.f32 0.0, %v7451
        %v7453 = vpop.f32.mrb[0].mxu0
        %7454 = vmatprep.mubr.f32.mxu0 0.0
        %7455 = vmatmul.mubr.f32.gmra.mrb[0].mxu0 %v7383
        %v7456 = vpop.f32.mrb[0].mxu0
        %v7457 = vadd.f32 0.0, %v7456
        %v7458 = vpop.f32.mrb[0].mxu0
        %7459 = vdwg.mxu0
        %v7461 = vsel %vm4659, %v6638, 0
        %v7464 = vsel %vm4659, %v6639, 0
        %7466 = vmatprep.subr.mxu0 0.0
        %7467 = vmatpush1.msra.mxu0 %v4517
        %7468 = vmatprep.subr.mxu0 0.0
        %7469 = vmatpush1.msra.mxu0 %v4653
        %7470 = vmatprep.subr.mxu0 0.0
        %7471 = vmatpush1.msra.mxu0 0.0
        %7472 = vmatprep.subr.mxu0 0.0
        %7473 = vmatpush1.msra.mxu0 0.0
        %7474 = vmatprep.subr.mxu0 0.0
        %7475 = vmatpush1.msra.mxu0 0.0
        %7476 = vmatprep.subr.mxu0 0.0
        %7477 = vmatpush1.msra.mxu0 0.0
        %7478 = vmatprep.subr.mxu0 0.0
        %7479 = vmatpush1.msra.mxu0 0.0
        %7480 = vmatprep.subr.mxu0 0.0
        %7481 = vmatpush1.msra.mxu0 0.0
        %7482 = vmatprep.subr.mxu0 0.0
        %7483 = vmatpush1.msra.mxu0 0.0
        %7484 = vmatprep.subr.mxu0 0.0
        %7485 = vmatpush1.msra.mxu0 0.0
        %7486 = vmatprep.subr.mxu0 0.0
        %7487 = vmatpush1.msra.mxu0 0.0
        %7488 = vmatprep.subr.mxu0 0.0
        %7489 = vmatpush1.msra.mxu0 0.0
        %7490 = vmatprep.subr.mxu0 0.0
        %7491 = vmatpush1.msra.mxu0 0.0
        %7492 = vmatprep.subr.mxu0 0.0
        %7493 = vmatpush1.msra.mxu0 0.0
        %7494 = vmatprep.subr.mxu0 0.0
        %7495 = vmatpush1.msra.mxu0 0.0
        %7496 = vmatprep.subr.mxu0 0.0
        %7497 = vmatpush1.msra.mxu0 0.0
        %7498 = vmatprep.subr.mxu0 0.0
        %7499 = vmatpush1.msra.mxu0 0.0
        %7500 = vmatprep.subr.mxu0 0.0
        %7501 = vmatpush1.msra.mxu0 0.0
        %7502 = vmatprep.subr.mxu0 0.0
        %7503 = vmatpush1.msra.mxu0 0.0
        %7504 = vmatprep.subr.mxu0 0.0
        %7505 = vmatpush1.msra.mxu0 0.0
        %7506 = vmatprep.subr.mxu0 0.0
        %7507 = vmatpush1.msra.mxu0 0.0
        %7508 = vmatprep.subr.mxu0 0.0
        %7509 = vmatpush1.msra.mxu0 0.0
        %7510 = vmatprep.subr.mxu0 0.0
        %7511 = vmatpush1.msra.mxu0 0.0
        %7512 = vmatprep.subr.mxu0 0.0
        %7513 = vmatpush1.msra.mxu0 0.0
        %7514 = vmatprep.subr.mxu0 0.0
        %7515 = vmatpush1.msra.mxu0 0.0
        %7516 = vmatprep.subr.mxu0 0.0
        %7517 = vmatpush1.msra.mxu0 0.0
        %7518 = vmatprep.subr.mxu0 0.0
        %7519 = vmatpush1.msra.mxu0 0.0
        %7520 = vmatprep.subr.mxu0 0.0
        %7521 = vmatpush1.msra.mxu0 0.0
        %7522 = vmatprep.subr.mxu0 0.0
        %7523 = vmatpush1.msra.mxu0 0.0
        %7524 = vmatprep.subr.mxu0 0.0
        %7525 = vmatpush1.msra.mxu0 0.0
        %7526 = vmatprep.subr.mxu0 0.0
        %7527 = vmatpush1.msra.mxu0 0.0
        %7528 = vmatprep.subr.mxu0 0.0
        %7529 = vmatpush1.msra.mxu0 0.0
        %7530 = vmatprep.mubr.f32.mxu0 0.0
        %7531 = vmatmul.mubr.f32.gmra.mrb[0].mxu0 %v7461
        %v7532 = vpop.f32.mrb[0].mxu0
        %v7533 = vadd.f32 0.0, %v7532
        %v7534 = vpop.f32.mrb[0].mxu0
        %7535 = vmatprep.mubr.f32.mxu0 0.0
        %7536 = vmatmul.mubr.f32.gmra.mrb[0].mxu0 %v7464
        %v7537 = vpop.f32.mrb[0].mxu0
        %v7538 = vadd.f32 0.0, %v7537
        %v7539 = vpop.f32.mrb[0].mxu0
        %7540 = vdwg.mxu0
        %v7542 = vsel %vm4659, %v6640, 0
        %v7545 = vsel %vm4659, %v6641, 0
        %7547 = vmatprep.subr.mxu0 0.0
        %7548 = vmatpush1.msra.mxu0 %v4518
        %7549 = vmatprep.subr.mxu0 0.0
        %7550 = vmatpush1.msra.mxu0 %v4654
        %7551 = vmatprep.subr.mxu0 0.0
        %7552 = vmatpush1.msra.mxu0 0.0
        %7553 = vmatprep.subr.mxu0 0.0
        %7554 = vmatpush1.msra.mxu0 0.0
        %7555 = vmatprep.subr.mxu0 0.0
        %7556 = vmatpush1.msra.mxu0 0.0
        %7557 = vmatprep.subr.mxu0 0.0
        %7558 = vmatpush1.msra.mxu0 0.0
        %7559 = vmatprep.subr.mxu0 0.0
        %7560 = vmatpush1.msra.mxu0 0.0
        %7561 = vmatprep.subr.mxu0 0.0
        %7562 = vmatpush1.msra.mxu0 0.0
        %7563 = vmatprep.subr.mxu0 0.0
        %7564 = vmatpush1.msra.mxu0 0.0
        %7565 = vmatprep.subr.mxu0 0.0
        %7566 = vmatpush1.msra.mxu0 0.0
        %7567 = vmatprep.subr.mxu0 0.0
        %7568 = vmatpush1.msra.mxu0 0.0
        %7569 = vmatprep.subr.mxu0 0.0
        %7570 = vmatpush1.msra.mxu0 0.0
        %7571 = vmatprep.subr.mxu0 0.0
        %7572 = vmatpush1.msra.mxu0 0.0
        %7573 = vmatprep.subr.mxu0 0.0
        %7574 = vmatpush1.msra.mxu0 0.0
        %7575 = vmatprep.subr.mxu0 0.0
        %7576 = vmatpush1.msra.mxu0 0.0
        %7577 = vmatprep.subr.mxu0 0.0
        %7578 = vmatpush1.msra.mxu0 0.0
        %7579 = vmatprep.subr.mxu0 0.0
        %7580 = vmatpush1.msra.mxu0 0.0
        %7581 = vmatprep.subr.mxu0 0.0
        %7582 = vmatpush1.msra.mxu0 0.0
        %7583 = vmatprep.subr.mxu0 0.0
        %7584 = vmatpush1.msra.mxu0 0.0
        %7585 = vmatprep.subr.mxu0 0.0
        %7586 = vmatpush1.msra.mxu0 0.0
        %7587 = vmatprep.subr.mxu0 0.0
        %7588 = vmatpush1.msra.mxu0 0.0
        %7589 = vmatprep.subr.mxu0 0.0
        %7590 = vmatpush1.msra.mxu0 0.0
        %7591 = vmatprep.subr.mxu0 0.0
        %7592 = vmatpush1.msra.mxu0 0.0
        %7593 = vmatprep.subr.mxu0 0.0
        %7594 = vmatpush1.msra.mxu0 0.0
        %7595 = vmatprep.subr.mxu0 0.0
        %7596 = vmatpush1.msra.mxu0 0.0
        %7597 = vmatprep.subr.mxu0 0.0
        %7598 = vmatpush1.msra.mxu0 0.0
        %7599 = vmatprep.subr.mxu0 0.0
        %7600 = vmatpush1.msra.mxu0 0.0
        %7601 = vmatprep.subr.mxu0 0.0
        %7602 = vmatpush1.msra.mxu0 0.0
        %7603 = vmatprep.subr.mxu0 0.0
        %7604 = vmatpush1.msra.mxu0 0.0
        %7605 = vmatprep.subr.mxu0 0.0
        %7606 = vmatpush1.msra.mxu0 0.0
        %7607 = vmatprep.subr.mxu0 0.0
        %7608 = vmatpush1.msra.mxu0 0.0
        %7609 = vmatprep.subr.mxu0 0.0
        %7610 = vmatpush1.msra.mxu0 0.0
        %7611 = vmatprep.mubr.f32.mxu0 0.0
        %7612 = vmatmul.mubr.f32.gmra.mrb[0].mxu0 %v7542
        %v7613 = vpop.f32.mrb[0].mxu0
        %v7614 = vadd.f32 0.0, %v7613
        %v7615 = vpop.f32.mrb[0].mxu0
        %7616 = vmatprep.mubr.f32.mxu0 0.0
        %7617 = vmatmul.mubr.f32.gmra.mrb[0].mxu0 %v7545
        %v7618 = vpop.f32.mrb[0].mxu0
        %v7619 = vadd.f32 0.0, %v7618
        %v7620 = vpop.f32.mrb[0].mxu0
        %7621 = vdwg.mxu0
        %v7623 = vsel %vm4659, %v6642, 0
        %v7626 = vsel %vm4659, %v6643, 0
        %7628 = vmatprep.subr.mxu0 0.0
        %7629 = vmatpush1.msra.mxu0 %v4519
        %7630 = vmatprep.subr.mxu0 0.0
        %7631 = vmatpush1.msra.mxu0 %v4655
        %7632 = vmatprep.subr.mxu0 0.0
        %7633 = vmatpush1.msra.mxu0 0.0
        %7634 = vmatprep.subr.mxu0 0.0
        %7635 = vmatpush1.msra.mxu0 0.0
        %7636 = vmatprep.subr.mxu0 0.0
        %7637 = vmatpush1.msra.mxu0 0.0
        %7638 = vmatprep.subr.mxu0 0.0
        %7639 = vmatpush1.msra.mxu0 0.0
        %7640 = vmatprep.subr.mxu0 0.0
        %7641 = vmatpush1.msra.mxu0 0.0
        %7642 = vmatprep.subr.mxu0 0.0
        %7643 = vmatpush1.msra.mxu0 0.0
        %7644 = vmatprep.subr.mxu0 0.0
        %7645 = vmatpush1.msra.mxu0 0.0
        %7646 = vmatprep.subr.mxu0 0.0
        %7647 = vmatpush1.msra.mxu0 0.0
        %7648 = vmatprep.subr.mxu0 0.0
        %7649 = vmatpush1.msra.mxu0 0.0
        %7650 = vmatprep.subr.mxu0 0.0
        %7651 = vmatpush1.msra.mxu0 0.0
        %7652 = vmatprep.subr.mxu0 0.0
        %7653 = vmatpush1.msra.mxu0 0.0
        %7654 = vmatprep.subr.mxu0 0.0
        %7655 = vmatpush1.msra.mxu0 0.0
        %7656 = vmatprep.subr.mxu0 0.0
        %7657 = vmatpush1.msra.mxu0 0.0
        %7658 = vmatprep.subr.mxu0 0.0
        %7659 = vmatpush1.msra.mxu0 0.0
        %7660 = vmatprep.subr.mxu0 0.0
        %7661 = vmatpush1.msra.mxu0 0.0
        %7662 = vmatprep.subr.mxu0 0.0
        %7663 = vmatpush1.msra.mxu0 0.0
        %7664 = vmatprep.subr.mxu0 0.0
        %7665 = vmatpush1.msra.mxu0 0.0
        %7666 = vmatprep.subr.mxu0 0.0
        %7667 = vmatpush1.msra.mxu0 0.0
        %7668 = vmatprep.subr.mxu0 0.0
        %7669 = vmatpush1.msra.mxu0 0.0
        %7670 = vmatprep.subr.mxu0 0.0
        %7671 = vmatpush1.msra.mxu0 0.0
        %7672 = vmatprep.subr.mxu0 0.0
        %7673 = vmatpush1.msra.mxu0 0.0
        %7674 = vmatprep.subr.mxu0 0.0
        %7675 = vmatpush1.msra.mxu0 0.0
        %7676 = vmatprep.subr.mxu0 0.0
        %7677 = vmatpush1.msra.mxu0 0.0
        %7678 = vmatprep.subr.mxu0 0.0
        %7679 = vmatpush1.msra.mxu0 0.0
        %7680 = vmatprep.subr.mxu0 0.0
        %7681 = vmatpush1.msra.mxu0 0.0
        %7682 = vmatprep.subr.mxu0 0.0
        %7683 = vmatpush1.msra.mxu0 0.0
        %7684 = vmatprep.subr.mxu0 0.0
        %7685 = vmatpush1.msra.mxu0 0.0
        %7686 = vmatprep.subr.mxu0 0.0
        %7687 = vmatpush1.msra.mxu0 0.0
        %7688 = vmatprep.subr.mxu0 0.0
        %7689 = vmatpush1.msra.mxu0 0.0
        %7690 = vmatprep.subr.mxu0 0.0
        %7691 = vmatpush1.msra.mxu0 0.0
        %7692 = vmatprep.mubr.f32.mxu0 0.0
        %7693 = vmatmul.mubr.f32.gmra.mrb[0].mxu0 %v7623
        %v7694 = vpop.f32.mrb[0].mxu0
        %v7695 = vadd.f32 0.0, %v7694
        %v7696 = vpop.f32.mrb[0].mxu0
        %7697 = vmatprep.mubr.f32.mxu0 0.0
        %7698 = vmatmul.mubr.f32.gmra.mrb[0].mxu0 %v7626
        %v7699 = vpop.f32.mrb[0].mxu0
        %v7700 = vadd.f32 0.0, %v7699
        %v7701 = vpop.f32.mrb[0].mxu0
        %7702 = vdwg.mxu0
        %v7704 = vsel %vm4659, %v6644, 0
        %v7707 = vsel %vm4659, %v6645, 0
        %7709 = vmatprep.subr.mxu0 0.0
        %7710 = vmatpush1.msra.mxu0 %v4520
        %7711 = vmatprep.subr.mxu0 0.0
        %7712 = vmatpush1.msra.mxu0 %v4656
        %7713 = vmatprep.subr.mxu0 0.0
        %7714 = vmatpush1.msra.mxu0 0.0
        %7715 = vmatprep.subr.mxu0 0.0
        %7716 = vmatpush1.msra.mxu0 0.0
        %7717 = vmatprep.subr.mxu0 0.0
        %7718 = vmatpush1.msra.mxu0 0.0
        %7719 = vmatprep.subr.mxu0 0.0
        %7720 = vmatpush1.msra.mxu0 0.0
        %7721 = vmatprep.subr.mxu0 0.0
        %7722 = vmatpush1.msra.mxu0 0.0
        %7723 = vmatprep.subr.mxu0 0.0
        %7724 = vmatpush1.msra.mxu0 0.0
        %7725 = vmatprep.subr.mxu0 0.0
        %7726 = vmatpush1.msra.mxu0 0.0
        %7727 = vmatprep.subr.mxu0 0.0
        %7728 = vmatpush1.msra.mxu0 0.0
        %7729 = vmatprep.subr.mxu0 0.0
        %7730 = vmatpush1.msra.mxu0 0.0
        %7731 = vmatprep.subr.mxu0 0.0
        %7732 = vmatpush1.msra.mxu0 0.0
        %7733 = vmatprep.subr.mxu0 0.0
        %7734 = vmatpush1.msra.mxu0 0.0
        %7735 = vmatprep.subr.mxu0 0.0
        %7736 = vmatpush1.msra.mxu0 0.0
        %7737 = vmatprep.subr.mxu0 0.0
        %7738 = vmatpush1.msra.mxu0 0.0
        %7739 = vmatprep.subr.mxu0 0.0
        %7740 = vmatpush1.msra.mxu0 0.0
        %7741 = vmatprep.subr.mxu0 0.0
        %7742 = vmatpush1.msra.mxu0 0.0
        %7743 = vmatprep.subr.mxu0 0.0
        %7744 = vmatpush1.msra.mxu0 0.0
        %7745 = vmatprep.subr.mxu0 0.0
        %7746 = vmatpush1.msra.mxu0 0.0
        %7747 = vmatprep.subr.mxu0 0.0
        %7748 = vmatpush1.msra.mxu0 0.0
        %7749 = vmatprep.subr.mxu0 0.0
        %7750 = vmatpush1.msra.mxu0 0.0
        %7751 = vmatprep.subr.mxu0 0.0
        %7752 = vmatpush1.msra.mxu0 0.0
        %7753 = vmatprep.subr.mxu0 0.0
        %7754 = vmatpush1.msra.mxu0 0.0
        %7755 = vmatprep.subr.mxu0 0.0
        %7756 = vmatpush1.msra.mxu0 0.0
        %7757 = vmatprep.subr.mxu0 0.0
        %7758 = vmatpush1.msra.mxu0 0.0
        %7759 = vmatprep.subr.mxu0 0.0
        %7760 = vmatpush1.msra.mxu0 0.0
        %7761 = vmatprep.subr.mxu0 0.0
        %7762 = vmatpush1.msra.mxu0 0.0
        %7763 = vmatprep.subr.mxu0 0.0
        %7764 = vmatpush1.msra.mxu0 0.0
        %7765 = vmatprep.subr.mxu0 0.0
        %7766 = vmatpush1.msra.mxu0 0.0
        %7767 = vmatprep.subr.mxu0 0.0
        %7768 = vmatpush1.msra.mxu0 0.0
        %7769 = vmatprep.subr.mxu0 0.0
        %7770 = vmatpush1.msra.mxu0 0.0
        %7771 = vmatprep.subr.mxu0 0.0
        %7772 = vmatpush1.msra.mxu0 0.0
        %7773 = vmatprep.mubr.f32.mxu0 0.0
        %7774 = vmatmul.mubr.f32.gmra.mrb[0].mxu0 %v7704
        %v7775 = vpop.f32.mrb[0].mxu0
        %v7776 = vadd.f32 0.0, %v7775
        %v7777 = vpop.f32.mrb[0].mxu0
        %7778 = vmatprep.mubr.f32.mxu0 0.0
        %7779 = vmatmul.mubr.f32.gmra.mrb[0].mxu0 %v7707
        %v7780 = vpop.f32.mrb[0].mxu0
        %v7781 = vadd.f32 0.0, %v7780
        %v7782 = vpop.f32.mrb[0].mxu0
        %7783 = vdwg.mxu0
        %v7785 = vsel %vm4659, %v6646, 0
        %v7788 = vsel %vm4659, %v6647, 0
        %7790 = vmatprep.subr.mxu0 0.0
        %7791 = vmatpush1.msra.mxu0 %v4521
        %7792 = vmatprep.subr.mxu0 0.0
        %7793 = vmatpush1.msra.mxu0 %v4657
        %7794 = vmatprep.subr.mxu0 0.0
        %7795 = vmatpush1.msra.mxu0 0.0
        %7796 = vmatprep.subr.mxu0 0.0
        %7797 = vmatpush1.msra.mxu0 0.0
        %7798 = vmatprep.subr.mxu0 0.0
        %7799 = vmatpush1.msra.mxu0 0.0
        %7800 = vmatprep.subr.mxu0 0.0
        %7801 = vmatpush1.msra.mxu0 0.0
        %7802 = vmatprep.subr.mxu0 0.0
        %7803 = vmatpush1.msra.mxu0 0.0
        %7804 = vmatprep.subr.mxu0 0.0
        %7805 = vmatpush1.msra.mxu0 0.0
        %7806 = vmatprep.subr.mxu0 0.0
        %7807 = vmatpush1.msra.mxu0 0.0
        %7808 = vmatprep.subr.mxu0 0.0
        %7809 = vmatpush1.msra.mxu0 0.0
        %7810 = vmatprep.subr.mxu0 0.0
        %7811 = vmatpush1.msra.mxu0 0.0
        %7812 = vmatprep.subr.mxu0 0.0
        %7813 = vmatpush1.msra.mxu0 0.0
        %7814 = vmatprep.subr.mxu0 0.0
        %7815 = vmatpush1.msra.mxu0 0.0
        %7816 = vmatprep.subr.mxu0 0.0
        %7817 = vmatpush1.msra.mxu0 0.0
        %7818 = vmatprep.subr.mxu0 0.0
        %7819 = vmatpush1.msra.mxu0 0.0
        %7820 = vmatprep.subr.mxu0 0.0
        %7821 = vmatpush1.msra.mxu0 0.0
        %7822 = vmatprep.subr.mxu0 0.0
        %7823 = vmatpush1.msra.mxu0 0.0
        %7824 = vmatprep.subr.mxu0 0.0
        %7825 = vmatpush1.msra.mxu0 0.0
        %7826 = vmatprep.subr.mxu0 0.0
        %7827 = vmatpush1.msra.mxu0 0.0
        %7828 = vmatprep.subr.mxu0 0.0
        %7829 = vmatpush1.msra.mxu0 0.0
        %7830 = vmatprep.subr.mxu0 0.0
        %7831 = vmatpush1.msra.mxu0 0.0
        %7832 = vmatprep.subr.mxu0 0.0
        %7833 = vmatpush1.msra.mxu0 0.0
        %7834 = vmatprep.subr.mxu0 0.0
        %7835 = vmatpush1.msra.mxu0 0.0
        %7836 = vmatprep.subr.mxu0 0.0
        %7837 = vmatpush1.msra.mxu0 0.0
        %7838 = vmatprep.subr.mxu0 0.0
        %7839 = vmatpush1.msra.mxu0 0.0
        %7840 = vmatprep.subr.mxu0 0.0
        %7841 = vmatpush1.msra.mxu0 0.0
        %7842 = vmatprep.subr.mxu0 0.0
        %7843 = vmatpush1.msra.mxu0 0.0
        %7844 = vmatprep.subr.mxu0 0.0
        %7845 = vmatpush1.msra.mxu0 0.0
        %7846 = vmatprep.subr.mxu0 0.0
        %7847 = vmatpush1.msra.mxu0 0.0
        %7848 = vmatprep.subr.mxu0 0.0
        %7849 = vmatpush1.msra.mxu0 0.0
        %7850 = vmatprep.subr.mxu0 0.0
        %7851 = vmatpush1.msra.mxu0 0.0
        %7852 = vmatprep.subr.mxu0 0.0
        %7853 = vmatpush1.msra.mxu0 0.0
        %7854 = vmatprep.mubr.f32.mxu0 0.0
        %7855 = vmatmul.mubr.f32.gmra.mrb[0].mxu0 %v7785
        %v7856 = vpop.f32.mrb[0].mxu0
        %v7857 = vadd.f32 0.0, %v7856
        %v7858 = vpop.f32.mrb[0].mxu0
        %7859 = vmatprep.mubr.f32.mxu0 0.0
        %7860 = vmatmul.mubr.f32.gmra.mrb[0].mxu0 %v7788
        %v7861 = vpop.f32.mrb[0].mxu0
        %v7862 = vadd.f32 0.0, %v7861
        %v7863 = vpop.f32.mrb[0].mxu0
        %7864 = vdwg.mxu0
        %v7866 = vsel %vm4659, %v6648, 0
        %v7869 = vsel %vm4659, %v6649, 0
        %7871 = vmatprep.subr.mxu0 0.0
        %7872 = vmatpush1.msra.mxu0 %v4522
        %7873 = vmatprep.subr.mxu0 0.0
        %7874 = vmatpush1.msra.mxu0 %v4658
        %7875 = vmatprep.subr.mxu0 0.0
        %7876 = vmatpush1.msra.mxu0 0.0
        %7877 = vmatprep.subr.mxu0 0.0
        %7878 = vmatpush1.msra.mxu0 0.0
        %7879 = vmatprep.subr.mxu0 0.0
        %7880 = vmatpush1.msra.mxu0 0.0
        %7881 = vmatprep.subr.mxu0 0.0
        %7882 = vmatpush1.msra.mxu0 0.0
        %7883 = vmatprep.subr.mxu0 0.0
        %7884 = vmatpush1.msra.mxu0 0.0
        %7885 = vmatprep.subr.mxu0 0.0
        %7886 = vmatpush1.msra.mxu0 0.0
        %7887 = vmatprep.subr.mxu0 0.0
        %7888 = vmatpush1.msra.mxu0 0.0
        %7889 = vmatprep.subr.mxu0 0.0
        %7890 = vmatpush1.msra.mxu0 0.0
        %7891 = vmatprep.subr.mxu0 0.0
        %7892 = vmatpush1.msra.mxu0 0.0
        %7893 = vmatprep.subr.mxu0 0.0
        %7894 = vmatpush1.msra.mxu0 0.0
        %7895 = vmatprep.subr.mxu0 0.0
        %7896 = vmatpush1.msra.mxu0 0.0
        %7897 = vmatprep.subr.mxu0 0.0
        %7898 = vmatpush1.msra.mxu0 0.0
        %7899 = vmatprep.subr.mxu0 0.0
        %7900 = vmatpush1.msra.mxu0 0.0
        %7901 = vmatprep.subr.mxu0 0.0
        %7902 = vmatpush1.msra.mxu0 0.0
        %7903 = vmatprep.subr.mxu0 0.0
        %7904 = vmatpush1.msra.mxu0 0.0
        %7905 = vmatprep.subr.mxu0 0.0
        %7906 = vmatpush1.msra.mxu0 0.0
        %7907 = vmatprep.subr.mxu0 0.0
        %7908 = vmatpush1.msra.mxu0 0.0
        %7909 = vmatprep.subr.mxu0 0.0
        %7910 = vmatpush1.msra.mxu0 0.0
        %7911 = vmatprep.subr.mxu0 0.0
        %7912 = vmatpush1.msra.mxu0 0.0
        %7913 = vmatprep.subr.mxu0 0.0
        %7914 = vmatpush1.msra.mxu0 0.0
        %7915 = vmatprep.subr.mxu0 0.0
        %7916 = vmatpush1.msra.mxu0 0.0
        %7917 = vmatprep.subr.mxu0 0.0
        %7918 = vmatpush1.msra.mxu0 0.0
        %7919 = vmatprep.subr.mxu0 0.0
        %7920 = vmatpush1.msra.mxu0 0.0
        %7921 = vmatprep.subr.mxu0 0.0
        %7922 = vmatpush1.msra.mxu0 0.0
        %7923 = vmatprep.subr.mxu0 0.0
        %7924 = vmatpush1.msra.mxu0 0.0
        %7925 = vmatprep.subr.mxu0 0.0
        %7926 = vmatpush1.msra.mxu0 0.0
        %7927 = vmatprep.subr.mxu0 0.0
        %7928 = vmatpush1.msra.mxu0 0.0
        %7929 = vmatprep.subr.mxu0 0.0
        %7930 = vmatpush1.msra.mxu0 0.0
        %7931 = vmatprep.subr.mxu0 0.0
        %7932 = vmatpush1.msra.mxu0 0.0
        %7933 = vmatprep.subr.mxu0 0.0
        %7934 = vmatpush1.msra.mxu0 0.0
        %7935 = vmatprep.mubr.f32.mxu0 0.0
        %7936 = vmatmul.mubr.f32.gmra.mrb[0].mxu0 %v7866
        %v7937 = vpop.f32.mrb[0].mxu0
        %v7938 = vadd.f32 0.0, %v7937
        %v7939 = vpop.f32.mrb[0].mxu0
        %7940 = vmatprep.mubr.f32.mxu0 0.0
        %7941 = vmatmul.mubr.f32.gmra.mrb[0].mxu0 %v7869
        %v7942 = vpop.f32.mrb[0].mxu0
        %v7943 = vadd.f32 0.0, %v7942
        %v7944 = vpop.f32.mrb[0].mxu0
        %7945 = vdwg.mxu0
        %v7946 = vcombine.low %v6723, %v6885
        %v7947 = vcombine.high %v6723, %v6885
        %v7949 = vunpack.c.l.s4 1983009808
        %v7950 = vunpack.c.0.s8 %v7949
        %v7951 = vlaneseq
        %v7952 = vshrl.u32 %v7951, 7
        %v7953 = vsub.s32 %v7950, %v7952
        %v7954 = vrot.slane %v7946, %v7953
        %v7956 = vunpack.c.l.s4 1983009808
        %v7957 = vunpack.c.0.s8 %v7956
        %v7958 = vlaneseq
        %v7959 = vshrl.u32 %v7958, 7
        %v7960 = vsub.s32 %v7957, %v7959
        %v7961 = vrot.slane %v7947, %v7960
        %v7962 = vcombine.low %v6804, %v6966
        %v7963 = vcombine.high %v6804, %v6966
        %v7965 = vunpack.c.l.s4 1983009808
        %v7966 = vunpack.c.0.s8 %v7965
        %v7967 = vlaneseq
        %v7968 = vshrl.u32 %v7967, 7
        %v7969 = vsub.s32 %v7966, %v7968
        %v7970 = vrot.slane %v7962, %v7969
        %v7972 = vunpack.c.l.s4 1983009808
        %v7973 = vunpack.c.0.s8 %v7972
        %v7974 = vlaneseq
        %v7975 = vshrl.u32 %v7974, 7
        %v7976 = vsub.s32 %v7973, %v7975
        %v7977 = vrot.slane %v7963, %v7976
        %v7978 = vcombine.low %v7047, %v7209
        %v7979 = vcombine.high %v7047, %v7209
        %v7981 = vunpack.c.l.s4 1983009808
        %v7982 = vunpack.c.0.s8 %v7981
        %v7983 = vlaneseq
        %v7984 = vshrl.u32 %v7983, 7
        %v7985 = vsub.s32 %v7982, %v7984
        %v7986 = vrot.slane %v7978, %v7985
        %v7988 = vunpack.c.l.s4 1983009808
        %v7989 = vunpack.c.0.s8 %v7988
        %v7990 = vlaneseq
        %v7991 = vshrl.u32 %v7990, 7
        %v7992 = vsub.s32 %v7989, %v7991
        %v7993 = vrot.slane %v7979, %v7992
        %v7994 = vcombine.low %v7128, %v7290
        %v7995 = vcombine.high %v7128, %v7290
        %v7997 = vunpack.c.l.s4 1983009808
        %v7998 = vunpack.c.0.s8 %v7997
        %v7999 = vlaneseq
        %v8000 = vshrl.u32 %v7999, 7
        %v8001 = vsub.s32 %v7998, %v8000
        %v8002 = vrot.slane %v7994, %v8001
        %v8004 = vunpack.c.l.s4 1983009808
        %v8005 = vunpack.c.0.s8 %v8004
        %v8006 = vlaneseq
        %v8007 = vshrl.u32 %v8006, 7
        %v8008 = vsub.s32 %v8005, %v8007
        %v8009 = vrot.slane %v7995, %v8008
        %v8010 = vcombine.low %v7954, %v7970
        %v8011 = vcombine.high %v7954, %v7970
        %v8013 = vunpack.c.l.s4 1934713408
        %v8014 = vunpack.c.0.s8 %v8013
        %v8015 = vlaneseq
        %v8016 = vshrl.u32 %v8015, 7
        %v8017 = vsub.s32 %v8014, %v8016
        %v8018 = vrot.slane %v8010, %v8017
        %v8020 = vunpack.c.l.s4 1934713408
        %v8021 = vunpack.c.0.s8 %v8020
        %v8022 = vlaneseq
        %v8023 = vshrl.u32 %v8022, 7
        %v8024 = vsub.s32 %v8021, %v8023
        %v8025 = vrot.slane %v8011, %v8024
        %v8026 = vcombine.low %v7961, %v7977
        %v8027 = vcombine.high %v7961, %v7977
        %v8029 = vunpack.c.l.s4 1934713408
        %v8030 = vunpack.c.0.s8 %v8029
        %v8031 = vlaneseq
        %v8032 = vshrl.u32 %v8031, 7
        %v8033 = vsub.s32 %v8030, %v8032
        %v8034 = vrot.slane %v8026, %v8033
        %v8036 = vunpack.c.l.s4 1934713408
        %v8037 = vunpack.c.0.s8 %v8036
        %v8038 = vlaneseq
        %v8039 = vshrl.u32 %v8038, 7
        %v8040 = vsub.s32 %v8037, %v8039
        %v8041 = vrot.slane %v8027, %v8040
        %v8042 = vcombine.low %v7986, %v8002
        %v8043 = vcombine.high %v7986, %v8002
        %v8045 = vunpack.c.l.s4 1934713408
        %v8046 = vunpack.c.0.s8 %v8045
        %v8047 = vlaneseq
        %v8048 = vshrl.u32 %v8047, 7
        %v8049 = vsub.s32 %v8046, %v8048
        %v8050 = vrot.slane %v8042, %v8049
        %v8052 = vunpack.c.l.s4 1934713408
        %v8053 = vunpack.c.0.s8 %v8052
        %v8054 = vlaneseq
        %v8055 = vshrl.u32 %v8054, 7
        %v8056 = vsub.s32 %v8053, %v8055
        %v8057 = vrot.slane %v8043, %v8056
        %v8058 = vcombine.low %v7993, %v8009
        %v8059 = vcombine.high %v7993, %v8009
        %v8061 = vunpack.c.l.s4 1934713408
        %v8062 = vunpack.c.0.s8 %v8061
        %v8063 = vlaneseq
        %v8064 = vshrl.u32 %v8063, 7
        %v8065 = vsub.s32 %v8062, %v8064
        %v8066 = vrot.slane %v8058, %v8065
        %v8068 = vunpack.c.l.s4 1934713408
        %v8069 = vunpack.c.0.s8 %v8068
        %v8070 = vlaneseq
        %v8071 = vshrl.u32 %v8070, 7
        %v8072 = vsub.s32 %v8069, %v8071
        %v8073 = vrot.slane %v8059, %v8072
        %v8074 = vcombine.low %v8018, %v8050
        %v8075 = vcombine.high %v8018, %v8050
        %v8076 = vcombine.low %v8025, %v8057
        %v8077 = vcombine.high %v8025, %v8057
        %v8078 = vcombine.low %v8034, %v8066
        %v8079 = vcombine.high %v8034, %v8066
        %v8080 = vcombine.low %v8041, %v8073
        %v8081 = vcombine.high %v8041, %v8073
        %v8082 = vcombine.low %v6728, %v6890
        %v8083 = vcombine.high %v6728, %v6890
        %v8085 = vunpack.c.l.s4 1983009808
        %v8086 = vunpack.c.0.s8 %v8085
        %v8087 = vlaneseq
        %v8088 = vshrl.u32 %v8087, 7
        %v8089 = vsub.s32 %v8086, %v8088
        %v8090 = vrot.slane %v8082, %v8089
        %v8092 = vunpack.c.l.s4 1983009808
        %v8093 = vunpack.c.0.s8 %v8092
        %v8094 = vlaneseq
        %v8095 = vshrl.u32 %v8094, 7
        %v8096 = vsub.s32 %v8093, %v8095
        %v8097 = vrot.slane %v8083, %v8096
        %v8098 = vcombine.low %v6809, %v6971
        %v8099 = vcombine.high %v6809, %v6971
        %v8101 = vunpack.c.l.s4 1983009808
        %v8102 = vunpack.c.0.s8 %v8101
        %v8103 = vlaneseq
        %v8104 = vshrl.u32 %v8103, 7
        %v8105 = vsub.s32 %v8102, %v8104
        %v8106 = vrot.slane %v8098, %v8105
        %v8108 = vunpack.c.l.s4 1983009808
        %v8109 = vunpack.c.0.s8 %v8108
        %v8110 = vlaneseq
        %v8111 = vshrl.u32 %v8110, 7
        %v8112 = vsub.s32 %v8109, %v8111
        %v8113 = vrot.slane %v8099, %v8112
        %v8114 = vcombine.low %v7052, %v7214
        %v8115 = vcombine.high %v7052, %v7214
        %v8117 = vunpack.c.l.s4 1983009808
        %v8118 = vunpack.c.0.s8 %v8117
        %v8119 = vlaneseq
        %v8120 = vshrl.u32 %v8119, 7
        %v8121 = vsub.s32 %v8118, %v8120
        %v8122 = vrot.slane %v8114, %v8121
        %v8124 = vunpack.c.l.s4 1983009808
        %v8125 = vunpack.c.0.s8 %v8124
        %v8126 = vlaneseq
        %v8127 = vshrl.u32 %v8126, 7
        %v8128 = vsub.s32 %v8125, %v8127
        %v8129 = vrot.slane %v8115, %v8128
        %v8130 = vcombine.low %v7133, %v7295
        %v8131 = vcombine.high %v7133, %v7295
        %v8133 = vunpack.c.l.s4 1983009808
        %v8134 = vunpack.c.0.s8 %v8133
        %v8135 = vlaneseq
        %v8136 = vshrl.u32 %v8135, 7
        %v8137 = vsub.s32 %v8134, %v8136
        %v8138 = vrot.slane %v8130, %v8137
        %v8140 = vunpack.c.l.s4 1983009808
        %v8141 = vunpack.c.0.s8 %v8140
        %v8142 = vlaneseq
        %v8143 = vshrl.u32 %v8142, 7
        %v8144 = vsub.s32 %v8141, %v8143
        %v8145 = vrot.slane %v8131, %v8144
        %v8146 = vcombine.low %v8090, %v8106
        %v8147 = vcombine.high %v8090, %v8106
        %v8149 = vunpack.c.l.s4 1934713408
        %v8150 = vunpack.c.0.s8 %v8149
        %v8151 = vlaneseq
        %v8152 = vshrl.u32 %v8151, 7
        %v8153 = vsub.s32 %v8150, %v8152
        %v8154 = vrot.slane %v8146, %v8153
        %v8156 = vunpack.c.l.s4 1934713408
        %v8157 = vunpack.c.0.s8 %v8156
        %v8158 = vlaneseq
        %v8159 = vshrl.u32 %v8158, 7
        %v8160 = vsub.s32 %v8157, %v8159
        %v8161 = vrot.slane %v8147, %v8160
        %v8162 = vcombine.low %v8097, %v8113
        %v8163 = vcombine.high %v8097, %v8113
        %v8165 = vunpack.c.l.s4 1934713408
        %v8166 = vunpack.c.0.s8 %v8165
        %v8167 = vlaneseq
        %v8168 = vshrl.u32 %v8167, 7
        %v8169 = vsub.s32 %v8166, %v8168
        %v8170 = vrot.slane %v8162, %v8169
        %v8172 = vunpack.c.l.s4 1934713408
        %v8173 = vunpack.c.0.s8 %v8172
        %v8174 = vlaneseq
        %v8175 = vshrl.u32 %v8174, 7
        %v8176 = vsub.s32 %v8173, %v8175
        %v8177 = vrot.slane %v8163, %v8176
        %v8178 = vcombine.low %v8122, %v8138
        %v8179 = vcombine.high %v8122, %v8138
        %v8181 = vunpack.c.l.s4 1934713408
        %v8182 = vunpack.c.0.s8 %v8181
        %v8183 = vlaneseq
        %v8184 = vshrl.u32 %v8183, 7
        %v8185 = vsub.s32 %v8182, %v8184
        %v8186 = vrot.slane %v8178, %v8185
        %v8188 = vunpack.c.l.s4 1934713408
        %v8189 = vunpack.c.0.s8 %v8188
        %v8190 = vlaneseq
        %v8191 = vshrl.u32 %v8190, 7
        %v8192 = vsub.s32 %v8189, %v8191
        %v8193 = vrot.slane %v8179, %v8192
        %v8194 = vcombine.low %v8129, %v8145
        %v8195 = vcombine.high %v8129, %v8145
        %v8197 = vunpack.c.l.s4 1934713408
        %v8198 = vunpack.c.0.s8 %v8197
        %v8199 = vlaneseq
        %v8200 = vshrl.u32 %v8199, 7
        %v8201 = vsub.s32 %v8198, %v8200
        %v8202 = vrot.slane %v8194, %v8201
        %v8204 = vunpack.c.l.s4 1934713408
        %v8205 = vunpack.c.0.s8 %v8204
        %v8206 = vlaneseq
        %v8207 = vshrl.u32 %v8206, 7
        %v8208 = vsub.s32 %v8205, %v8207
        %v8209 = vrot.slane %v8195, %v8208
        %v8210 = vcombine.low %v8154, %v8186
        %v8211 = vcombine.high %v8154, %v8186
        %v8212 = vcombine.low %v8161, %v8193
        %v8213 = vcombine.high %v8161, %v8193
        %v8214 = vcombine.low %v8170, %v8202
        %v8215 = vcombine.high %v8170, %v8202
        %v8216 = vcombine.low %v8177, %v8209
        %v8217 = vcombine.high %v8177, %v8209
        %v8218 = vcombine.low %v7371, %v7533
        %v8219 = vcombine.high %v7371, %v7533
        %v8221 = vunpack.c.l.s4 1983009808
        %v8222 = vunpack.c.0.s8 %v8221
        %v8223 = vlaneseq
        %v8224 = vshrl.u32 %v8223, 7
        %v8225 = vsub.s32 %v8222, %v8224
        %v8226 = vrot.slane %v8218, %v8225
        %v8228 = vunpack.c.l.s4 1983009808
        %v8229 = vunpack.c.0.s8 %v8228
        %v8230 = vlaneseq
        %v8231 = vshrl.u32 %v8230, 7
        %v8232 = vsub.s32 %v8229, %v8231
        %v8233 = vrot.slane %v8219, %v8232
        %v8234 = vcombine.low %v7452, %v7614
        %v8235 = vcombine.high %v7452, %v7614
        %v8237 = vunpack.c.l.s4 1983009808
        %v8238 = vunpack.c.0.s8 %v8237
        %v8239 = vlaneseq
        %v8240 = vshrl.u32 %v8239, 7
        %v8241 = vsub.s32 %v8238, %v8240
        %v8242 = vrot.slane %v8234, %v8241
        %v8244 = vunpack.c.l.s4 1983009808
        %v8245 = vunpack.c.0.s8 %v8244
        %v8246 = vlaneseq
        %v8247 = vshrl.u32 %v8246, 7
        %v8248 = vsub.s32 %v8245, %v8247
        %v8249 = vrot.slane %v8235, %v8248
        %v8250 = vcombine.low %v7695, %v7857
        %v8251 = vcombine.high %v7695, %v7857
        %v8253 = vunpack.c.l.s4 1983009808
        %v8254 = vunpack.c.0.s8 %v8253
        %v8255 = vlaneseq
        %v8256 = vshrl.u32 %v8255, 7
        %v8257 = vsub.s32 %v8254, %v8256
        %v8258 = vrot.slane %v8250, %v8257
        %v8260 = vunpack.c.l.s4 1983009808
        %v8261 = vunpack.c.0.s8 %v8260
        %v8262 = vlaneseq
        %v8263 = vshrl.u32 %v8262, 7
        %v8264 = vsub.s32 %v8261, %v8263
        %v8265 = vrot.slane %v8251, %v8264
        %v8266 = vcombine.low %v7776, %v7938
        %v8267 = vcombine.high %v7776, %v7938
        %v8269 = vunpack.c.l.s4 1983009808
        %v8270 = vunpack.c.0.s8 %v8269
        %v8271 = vlaneseq
        %v8272 = vshrl.u32 %v8271, 7
        %v8273 = vsub.s32 %v8270, %v8272
        %v8274 = vrot.slane %v8266, %v8273
        %v8276 = vunpack.c.l.s4 1983009808
        %v8277 = vunpack.c.0.s8 %v8276
        %v8278 = vlaneseq
        %v8279 = vshrl.u32 %v8278, 7
        %v8280 = vsub.s32 %v8277, %v8279
        %v8281 = vrot.slane %v8267, %v8280
        %v8282 = vcombine.low %v8226, %v8242
        %v8283 = vcombine.high %v8226, %v8242
        %v8285 = vunpack.c.l.s4 1934713408
        %v8286 = vunpack.c.0.s8 %v8285
        %v8287 = vlaneseq
        %v8288 = vshrl.u32 %v8287, 7
        %v8289 = vsub.s32 %v8286, %v8288
        %v8290 = vrot.slane %v8282, %v8289
        %v8292 = vunpack.c.l.s4 1934713408
        %v8293 = vunpack.c.0.s8 %v8292
        %v8294 = vlaneseq
        %v8295 = vshrl.u32 %v8294, 7
        %v8296 = vsub.s32 %v8293, %v8295
        %v8297 = vrot.slane %v8283, %v8296
        %v8298 = vcombine.low %v8233, %v8249
        %v8299 = vcombine.high %v8233, %v8249
        %v8301 = vunpack.c.l.s4 1934713408
        %v8302 = vunpack.c.0.s8 %v8301
        %v8303 = vlaneseq
        %v8304 = vshrl.u32 %v8303, 7
        %v8305 = vsub.s32 %v8302, %v8304
        %v8306 = vrot.slane %v8298, %v8305
        %v8308 = vunpack.c.l.s4 1934713408
        %v8309 = vunpack.c.0.s8 %v8308
        %v8310 = vlaneseq
        %v8311 = vshrl.u32 %v8310, 7
        %v8312 = vsub.s32 %v8309, %v8311
        %v8313 = vrot.slane %v8299, %v8312
        %v8314 = vcombine.low %v8258, %v8274
        %v8315 = vcombine.high %v8258, %v8274
        %v8317 = vunpack.c.l.s4 1934713408
        %v8318 = vunpack.c.0.s8 %v8317
        %v8319 = vlaneseq
        %v8320 = vshrl.u32 %v8319, 7
        %v8321 = vsub.s32 %v8318, %v8320
        %v8322 = vrot.slane %v8314, %v8321
        %v8324 = vunpack.c.l.s4 1934713408
        %v8325 = vunpack.c.0.s8 %v8324
        %v8326 = vlaneseq
        %v8327 = vshrl.u32 %v8326, 7
        %v8328 = vsub.s32 %v8325, %v8327
        %v8329 = vrot.slane %v8315, %v8328
        %v8330 = vcombine.low %v8265, %v8281
        %v8331 = vcombine.high %v8265, %v8281
        %v8333 = vunpack.c.l.s4 1934713408
        %v8334 = vunpack.c.0.s8 %v8333
        %v8335 = vlaneseq
        %v8336 = vshrl.u32 %v8335, 7
        %v8337 = vsub.s32 %v8334, %v8336
        %v8338 = vrot.slane %v8330, %v8337
        %v8340 = vunpack.c.l.s4 1934713408
        %v8341 = vunpack.c.0.s8 %v8340
        %v8342 = vlaneseq
        %v8343 = vshrl.u32 %v8342, 7
        %v8344 = vsub.s32 %v8341, %v8343
        %v8345 = vrot.slane %v8331, %v8344
        %v8346 = vcombine.low %v8290, %v8322
        %v8347 = vcombine.high %v8290, %v8322
        %v8348 = vcombine.low %v8297, %v8329
        %v8349 = vcombine.high %v8297, %v8329
        %v8350 = vcombine.low %v8306, %v8338
        %v8351 = vcombine.high %v8306, %v8338
        %v8352 = vcombine.low %v8313, %v8345
        %v8353 = vcombine.high %v8313, %v8345
        %v8354 = vcombine.low %v7376, %v7538
        %v8355 = vcombine.high %v7376, %v7538
        %v8357 = vunpack.c.l.s4 1983009808
        %v8358 = vunpack.c.0.s8 %v8357
        %v8359 = vlaneseq
        %v8360 = vshrl.u32 %v8359, 7
        %v8361 = vsub.s32 %v8358, %v8360
        %v8362 = vrot.slane %v8354, %v8361
        %v8364 = vunpack.c.l.s4 1983009808
        %v8365 = vunpack.c.0.s8 %v8364
        %v8366 = vlaneseq
        %v8367 = vshrl.u32 %v8366, 7
        %v8368 = vsub.s32 %v8365, %v8367
        %v8369 = vrot.slane %v8355, %v8368
        %v8370 = vcombine.low %v7457, %v7619
        %v8371 = vcombine.high %v7457, %v7619
        %v8373 = vunpack.c.l.s4 1983009808
        %v8374 = vunpack.c.0.s8 %v8373
        %v8375 = vlaneseq
        %v8376 = vshrl.u32 %v8375, 7
        %v8377 = vsub.s32 %v8374, %v8376
        %v8378 = vrot.slane %v8370, %v8377
        %v8380 = vunpack.c.l.s4 1983009808
        %v8381 = vunpack.c.0.s8 %v8380
        %v8382 = vlaneseq
        %v8383 = vshrl.u32 %v8382, 7
        %v8384 = vsub.s32 %v8381, %v8383
        %v8385 = vrot.slane %v8371, %v8384
        %v8386 = vcombine.low %v7700, %v7862
        %v8387 = vcombine.high %v7700, %v7862
        %v8389 = vunpack.c.l.s4 1983009808
        %v8390 = vunpack.c.0.s8 %v8389
        %v8391 = vlaneseq
        %v8392 = vshrl.u32 %v8391, 7
        %v8393 = vsub.s32 %v8390, %v8392
        %v8394 = vrot.slane %v8386, %v8393
        %v8396 = vunpack.c.l.s4 1983009808
        %v8397 = vunpack.c.0.s8 %v8396
        %v8398 = vlaneseq
        %v8399 = vshrl.u32 %v8398, 7
        %v8400 = vsub.s32 %v8397, %v8399
        %v8401 = vrot.slane %v8387, %v8400
        %v8402 = vcombine.low %v7781, %v7943
        %v8403 = vcombine.high %v7781, %v7943
        %v8405 = vunpack.c.l.s4 1983009808
        %v8406 = vunpack.c.0.s8 %v8405
        %v8407 = vlaneseq
        %v8408 = vshrl.u32 %v8407, 7
        %v8409 = vsub.s32 %v8406, %v8408
        %v8410 = vrot.slane %v8402, %v8409
        %v8412 = vunpack.c.l.s4 1983009808
        %v8413 = vunpack.c.0.s8 %v8412
        %v8414 = vlaneseq
        %v8415 = vshrl.u32 %v8414, 7
        %v8416 = vsub.s32 %v8413, %v8415
        %v8417 = vrot.slane %v8403, %v8416
        %v8418 = vcombine.low %v8362, %v8378
        %v8419 = vcombine.high %v8362, %v8378
        %v8421 = vunpack.c.l.s4 1934713408
        %v8422 = vunpack.c.0.s8 %v8421
        %v8423 = vlaneseq
        %v8424 = vshrl.u32 %v8423, 7
        %v8425 = vsub.s32 %v8422, %v8424
        %v8426 = vrot.slane %v8418, %v8425
        %v8428 = vunpack.c.l.s4 1934713408
        %v8429 = vunpack.c.0.s8 %v8428
        %v8430 = vlaneseq
        %v8431 = vshrl.u32 %v8430, 7
        %v8432 = vsub.s32 %v8429, %v8431
        %v8433 = vrot.slane %v8419, %v8432
        %v8434 = vcombine.low %v8369, %v8385
        %v8435 = vcombine.high %v8369, %v8385
        %v8437 = vunpack.c.l.s4 1934713408
        %v8438 = vunpack.c.0.s8 %v8437
        %v8439 = vlaneseq
        %v8440 = vshrl.u32 %v8439, 7
        %v8441 = vsub.s32 %v8438, %v8440
        %v8442 = vrot.slane %v8434, %v8441
        %v8444 = vunpack.c.l.s4 1934713408
        %v8445 = vunpack.c.0.s8 %v8444
        %v8446 = vlaneseq
        %v8447 = vshrl.u32 %v8446, 7
        %v8448 = vsub.s32 %v8445, %v8447
        %v8449 = vrot.slane %v8435, %v8448
        %v8450 = vcombine.low %v8394, %v8410
        %v8451 = vcombine.high %v8394, %v8410
        %v8453 = vunpack.c.l.s4 1934713408
        %v8454 = vunpack.c.0.s8 %v8453
        %v8455 = vlaneseq
        %v8456 = vshrl.u32 %v8455, 7
        %v8457 = vsub.s32 %v8454, %v8456
        %v8458 = vrot.slane %v8450, %v8457
        %v8460 = vunpack.c.l.s4 1934713408
        %v8461 = vunpack.c.0.s8 %v8460
        %v8462 = vlaneseq
        %v8463 = vshrl.u32 %v8462, 7
        %v8464 = vsub.s32 %v8461, %v8463
        %v8465 = vrot.slane %v8451, %v8464
        %v8466 = vcombine.low %v8401, %v8417
        %v8467 = vcombine.high %v8401, %v8417
        %v8469 = vunpack.c.l.s4 1934713408
        %v8470 = vunpack.c.0.s8 %v8469
        %v8471 = vlaneseq
        %v8472 = vshrl.u32 %v8471, 7
        %v8473 = vsub.s32 %v8470, %v8472
        %v8474 = vrot.slane %v8466, %v8473
        %v8476 = vunpack.c.l.s4 1934713408
        %v8477 = vunpack.c.0.s8 %v8476
        %v8478 = vlaneseq
        %v8479 = vshrl.u32 %v8478, 7
        %v8480 = vsub.s32 %v8477, %v8479
        %v8481 = vrot.slane %v8467, %v8480
        %v8482 = vcombine.low %v8426, %v8458
        %v8483 = vcombine.high %v8426, %v8458
        %v8484 = vcombine.low %v8433, %v8465
        %v8485 = vcombine.high %v8433, %v8465
        %v8486 = vcombine.low %v8442, %v8474
        %v8487 = vcombine.high %v8442, %v8474
        %v8488 = vcombine.low %v8449, %v8481
        %v8489 = vcombine.high %v8449, %v8481
        %v8490 = vcombine.low %v8074, %v8076
        %v8491 = vcombine.high %v8074, %v8076
        %v8493 = vunpack.c.l.s4 1983009808
        %v8494 = vunpack.c.0.s8 %v8493
        %v8495 = vlaneseq
        %v8496 = vshrl.u32 %v8495, 7
        %v8497 = vsub.s32 %v8494, %v8496
        %v8498 = vrot.slane %v8490, %v8497
        %v8500 = vunpack.c.l.s4 1983009808
        %v8501 = vunpack.c.0.s8 %v8500
        %v8502 = vlaneseq
        %v8503 = vshrl.u32 %v8502, 7
        %v8504 = vsub.s32 %v8501, %v8503
        %v8505 = vrot.slane %v8491, %v8504
        %v8506 = vcombine.low %v8075, %v8077
        %v8507 = vcombine.high %v8075, %v8077
        %v8509 = vunpack.c.l.s4 1983009808
        %v8510 = vunpack.c.0.s8 %v8509
        %v8511 = vlaneseq
        %v8512 = vshrl.u32 %v8511, 7
        %v8513 = vsub.s32 %v8510, %v8512
        %v8514 = vrot.slane %v8506, %v8513
        %v8516 = vunpack.c.l.s4 1983009808
        %v8517 = vunpack.c.0.s8 %v8516
        %v8518 = vlaneseq
        %v8519 = vshrl.u32 %v8518, 7
        %v8520 = vsub.s32 %v8517, %v8519
        %v8521 = vrot.slane %v8507, %v8520
        %v8522 = vcombine.low %v8078, %v8080
        %v8523 = vcombine.high %v8078, %v8080
        %v8525 = vunpack.c.l.s4 1983009808
        %v8526 = vunpack.c.0.s8 %v8525
        %v8527 = vlaneseq
        %v8528 = vshrl.u32 %v8527, 7
        %v8529 = vsub.s32 %v8526, %v8528
        %v8530 = vrot.slane %v8522, %v8529
        %v8532 = vunpack.c.l.s4 1983009808
        %v8533 = vunpack.c.0.s8 %v8532
        %v8534 = vlaneseq
        %v8535 = vshrl.u32 %v8534, 7
        %v8536 = vsub.s32 %v8533, %v8535
        %v8537 = vrot.slane %v8523, %v8536
        %v8538 = vcombine.low %v8079, %v8081
        %v8539 = vcombine.high %v8079, %v8081
        %v8541 = vunpack.c.l.s4 1983009808
        %v8542 = vunpack.c.0.s8 %v8541
        %v8543 = vlaneseq
        %v8544 = vshrl.u32 %v8543, 7
        %v8545 = vsub.s32 %v8542, %v8544
        %v8546 = vrot.slane %v8538, %v8545
        %v8548 = vunpack.c.l.s4 1983009808
        %v8549 = vunpack.c.0.s8 %v8548
        %v8550 = vlaneseq
        %v8551 = vshrl.u32 %v8550, 7
        %v8552 = vsub.s32 %v8549, %v8551
        %v8553 = vrot.slane %v8539, %v8552
        %v8554 = vcombine.low %v8498, %v8514
        %v8555 = vcombine.high %v8498, %v8514
        %v8557 = vunpack.c.l.s4 1934713408
        %v8558 = vunpack.c.0.s8 %v8557
        %v8559 = vlaneseq
        %v8560 = vshrl.u32 %v8559, 7
        %v8561 = vsub.s32 %v8558, %v8560
        %v8562 = vrot.slane %v8554, %v8561
        %v8564 = vunpack.c.l.s4 1934713408
        %v8565 = vunpack.c.0.s8 %v8564
        %v8566 = vlaneseq
        %v8567 = vshrl.u32 %v8566, 7
        %v8568 = vsub.s32 %v8565, %v8567
        %v8569 = vrot.slane %v8555, %v8568
        %v8570 = vcombine.low %v8505, %v8521
        %v8571 = vcombine.high %v8505, %v8521
        %v8573 = vunpack.c.l.s4 1934713408
        %v8574 = vunpack.c.0.s8 %v8573
        %v8575 = vlaneseq
        %v8576 = vshrl.u32 %v8575, 7
        %v8577 = vsub.s32 %v8574, %v8576
        %v8578 = vrot.slane %v8570, %v8577
        %v8580 = vunpack.c.l.s4 1934713408
        %v8581 = vunpack.c.0.s8 %v8580
        %v8582 = vlaneseq
        %v8583 = vshrl.u32 %v8582, 7
        %v8584 = vsub.s32 %v8581, %v8583
        %v8585 = vrot.slane %v8571, %v8584
        %v8586 = vcombine.low %v8530, %v8546
        %v8587 = vcombine.high %v8530, %v8546
        %v8589 = vunpack.c.l.s4 1934713408
        %v8590 = vunpack.c.0.s8 %v8589
        %v8591 = vlaneseq
        %v8592 = vshrl.u32 %v8591, 7
        %v8593 = vsub.s32 %v8590, %v8592
        %v8594 = vrot.slane %v8586, %v8593
        %v8596 = vunpack.c.l.s4 1934713408
        %v8597 = vunpack.c.0.s8 %v8596
        %v8598 = vlaneseq
        %v8599 = vshrl.u32 %v8598, 7
        %v8600 = vsub.s32 %v8597, %v8599
        %v8601 = vrot.slane %v8587, %v8600
        %v8602 = vcombine.low %v8537, %v8553
        %v8603 = vcombine.high %v8537, %v8553
        %v8605 = vunpack.c.l.s4 1934713408
        %v8606 = vunpack.c.0.s8 %v8605
        %v8607 = vlaneseq
        %v8608 = vshrl.u32 %v8607, 7
        %v8609 = vsub.s32 %v8606, %v8608
        %v8610 = vrot.slane %v8602, %v8609
        %v8612 = vunpack.c.l.s4 1934713408
        %v8613 = vunpack.c.0.s8 %v8612
        %v8614 = vlaneseq
        %v8615 = vshrl.u32 %v8614, 7
        %v8616 = vsub.s32 %v8613, %v8615
        %v8617 = vrot.slane %v8603, %v8616
        %v8618 = vcombine.low %v8562, %v8594
        %v8619 = vcombine.high %v8562, %v8594
        %v8620 = vcombine.low %v8569, %v8601
        %v8621 = vcombine.high %v8569, %v8601
        %v8622 = vcombine.low %v8578, %v8610
        %v8623 = vcombine.high %v8578, %v8610
        %v8624 = vcombine.low %v8585, %v8617
        %v8625 = vcombine.high %v8585, %v8617
        %v8626 = vcombine.low %v8210, %v8212
        %v8627 = vcombine.high %v8210, %v8212
        %v8629 = vunpack.c.l.s4 1983009808
        %v8630 = vunpack.c.0.s8 %v8629
        %v8631 = vlaneseq
        %v8632 = vshrl.u32 %v8631, 7
        %v8633 = vsub.s32 %v8630, %v8632
        %v8634 = vrot.slane %v8626, %v8633
        %v8636 = vunpack.c.l.s4 1983009808
        %v8637 = vunpack.c.0.s8 %v8636
        %v8638 = vlaneseq
        %v8639 = vshrl.u32 %v8638, 7
        %v8640 = vsub.s32 %v8637, %v8639
        %v8641 = vrot.slane %v8627, %v8640
        %v8642 = vcombine.low %v8211, %v8213
        %v8643 = vcombine.high %v8211, %v8213
        %v8645 = vunpack.c.l.s4 1983009808
        %v8646 = vunpack.c.0.s8 %v8645
        %v8647 = vlaneseq
        %v8648 = vshrl.u32 %v8647, 7
        %v8649 = vsub.s32 %v8646, %v8648
        %v8650 = vrot.slane %v8642, %v8649
        %v8652 = vunpack.c.l.s4 1983009808
        %v8653 = vunpack.c.0.s8 %v8652
        %v8654 = vlaneseq
        %v8655 = vshrl.u32 %v8654, 7
        %v8656 = vsub.s32 %v8653, %v8655
        %v8657 = vrot.slane %v8643, %v8656
        %v8658 = vcombine.low %v8214, %v8216
        %v8659 = vcombine.high %v8214, %v8216
        %v8661 = vunpack.c.l.s4 1983009808
        %v8662 = vunpack.c.0.s8 %v8661
        %v8663 = vlaneseq
        %v8664 = vshrl.u32 %v8663, 7
        %v8665 = vsub.s32 %v8662, %v8664
        %v8666 = vrot.slane %v8658, %v8665
        %v8668 = vunpack.c.l.s4 1983009808
        %v8669 = vunpack.c.0.s8 %v8668
        %v8670 = vlaneseq
        %v8671 = vshrl.u32 %v8670, 7
        %v8672 = vsub.s32 %v8669, %v8671
        %v8673 = vrot.slane %v8659, %v8672
        %v8674 = vcombine.low %v8215, %v8217
        %v8675 = vcombine.high %v8215, %v8217
        %v8677 = vunpack.c.l.s4 1983009808
        %v8678 = vunpack.c.0.s8 %v8677
        %v8679 = vlaneseq
        %v8680 = vshrl.u32 %v8679, 7
        %v8681 = vsub.s32 %v8678, %v8680
        %v8682 = vrot.slane %v8674, %v8681
        %v8684 = vunpack.c.l.s4 1983009808
        %v8685 = vunpack.c.0.s8 %v8684
        %v8686 = vlaneseq
        %v8687 = vshrl.u32 %v8686, 7
        %v8688 = vsub.s32 %v8685, %v8687
        %v8689 = vrot.slane %v8675, %v8688
        %v8690 = vcombine.low %v8634, %v8650
        %v8691 = vcombine.high %v8634, %v8650
        %v8693 = vunpack.c.l.s4 1934713408
        %v8694 = vunpack.c.0.s8 %v8693
        %v8695 = vlaneseq
        %v8696 = vshrl.u32 %v8695, 7
        %v8697 = vsub.s32 %v8694, %v8696
        %v8698 = vrot.slane %v8690, %v8697
        %v8700 = vunpack.c.l.s4 1934713408
        %v8701 = vunpack.c.0.s8 %v8700
        %v8702 = vlaneseq
        %v8703 = vshrl.u32 %v8702, 7
        %v8704 = vsub.s32 %v8701, %v8703
        %v8705 = vrot.slane %v8691, %v8704
        %v8706 = vcombine.low %v8641, %v8657
        %v8707 = vcombine.high %v8641, %v8657
        %v8709 = vunpack.c.l.s4 1934713408
        %v8710 = vunpack.c.0.s8 %v8709
        %v8711 = vlaneseq
        %v8712 = vshrl.u32 %v8711, 7
        %v8713 = vsub.s32 %v8710, %v8712
        %v8714 = vrot.slane %v8706, %v8713
        %v8716 = vunpack.c.l.s4 1934713408
        %v8717 = vunpack.c.0.s8 %v8716
        %v8718 = vlaneseq
        %v8719 = vshrl.u32 %v8718, 7
        %v8720 = vsub.s32 %v8717, %v8719
        %v8721 = vrot.slane %v8707, %v8720
        %v8722 = vcombine.low %v8666, %v8682
        %v8723 = vcombine.high %v8666, %v8682
        %v8725 = vunpack.c.l.s4 1934713408
        %v8726 = vunpack.c.0.s8 %v8725
        %v8727 = vlaneseq
        %v8728 = vshrl.u32 %v8727, 7
        %v8729 = vsub.s32 %v8726, %v8728
        %v8730 = vrot.slane %v8722, %v8729
        %v8732 = vunpack.c.l.s4 1934713408
        %v8733 = vunpack.c.0.s8 %v8732
        %v8734 = vlaneseq
        %v8735 = vshrl.u32 %v8734, 7
        %v8736 = vsub.s32 %v8733, %v8735
        %v8737 = vrot.slane %v8723, %v8736
        %v8738 = vcombine.low %v8673, %v8689
        %v8739 = vcombine.high %v8673, %v8689
        %v8741 = vunpack.c.l.s4 1934713408
        %v8742 = vunpack.c.0.s8 %v8741
        %v8743 = vlaneseq
        %v8744 = vshrl.u32 %v8743, 7
        %v8745 = vsub.s32 %v8742, %v8744
        %v8746 = vrot.slane %v8738, %v8745
        %v8748 = vunpack.c.l.s4 1934713408
        %v8749 = vunpack.c.0.s8 %v8748
        %v8750 = vlaneseq
        %v8751 = vshrl.u32 %v8750, 7
        %v8752 = vsub.s32 %v8749, %v8751
        %v8753 = vrot.slane %v8739, %v8752
        %v8754 = vcombine.low %v8698, %v8730
        %v8755 = vcombine.high %v8698, %v8730
        %v8756 = vcombine.low %v8705, %v8737
        %v8757 = vcombine.high %v8705, %v8737
        %v8758 = vcombine.low %v8714, %v8746
        %v8759 = vcombine.high %v8714, %v8746
        %v8760 = vcombine.low %v8721, %v8753
        %v8761 = vcombine.high %v8721, %v8753
        %v8762 = vcombine.low %v8346, %v8348
        %v8763 = vcombine.high %v8346, %v8348
        %v8765 = vunpack.c.l.s4 1983009808
        %v8766 = vunpack.c.0.s8 %v8765
        %v8767 = vlaneseq
        %v8768 = vshrl.u32 %v8767, 7
        %v8769 = vsub.s32 %v8766, %v8768
        %v8770 = vrot.slane %v8762, %v8769
        %v8772 = vunpack.c.l.s4 1983009808
        %v8773 = vunpack.c.0.s8 %v8772
        %v8774 = vlaneseq
        %v8775 = vshrl.u32 %v8774, 7
        %v8776 = vsub.s32 %v8773, %v8775
        %v8777 = vrot.slane %v8763, %v8776
        %v8778 = vcombine.low %v8347, %v8349
        %v8779 = vcombine.high %v8347, %v8349
        %v8781 = vunpack.c.l.s4 1983009808
        %v8782 = vunpack.c.0.s8 %v8781
        %v8783 = vlaneseq
        %v8784 = vshrl.u32 %v8783, 7
        %v8785 = vsub.s32 %v8782, %v8784
        %v8786 = vrot.slane %v8778, %v8785
        %v8788 = vunpack.c.l.s4 1983009808
        %v8789 = vunpack.c.0.s8 %v8788
        %v8790 = vlaneseq
        %v8791 = vshrl.u32 %v8790, 7
        %v8792 = vsub.s32 %v8789, %v8791
        %v8793 = vrot.slane %v8779, %v8792
        %v8794 = vcombine.low %v8350, %v8352
        %v8795 = vcombine.high %v8350, %v8352
        %v8797 = vunpack.c.l.s4 1983009808
        %v8798 = vunpack.c.0.s8 %v8797
        %v8799 = vlaneseq
        %v8800 = vshrl.u32 %v8799, 7
        %v8801 = vsub.s32 %v8798, %v8800
        %v8802 = vrot.slane %v8794, %v8801
        %v8804 = vunpack.c.l.s4 1983009808
        %v8805 = vunpack.c.0.s8 %v8804
        %v8806 = vlaneseq
        %v8807 = vshrl.u32 %v8806, 7
        %v8808 = vsub.s32 %v8805, %v8807
        %v8809 = vrot.slane %v8795, %v8808
        %v8810 = vcombine.low %v8351, %v8353
        %v8811 = vcombine.high %v8351, %v8353
        %v8813 = vunpack.c.l.s4 1983009808
        %v8814 = vunpack.c.0.s8 %v8813
        %v8815 = vlaneseq
        %v8816 = vshrl.u32 %v8815, 7
        %v8817 = vsub.s32 %v8814, %v8816
        %v8818 = vrot.slane %v8810, %v8817
        %v8820 = vunpack.c.l.s4 1983009808
        %v8821 = vunpack.c.0.s8 %v8820
        %v8822 = vlaneseq
        %v8823 = vshrl.u32 %v8822, 7
        %v8824 = vsub.s32 %v8821, %v8823
        %v8825 = vrot.slane %v8811, %v8824
        %v8826 = vcombine.low %v8770, %v8786
        %v8827 = vcombine.high %v8770, %v8786
        %v8829 = vunpack.c.l.s4 1934713408
        %v8830 = vunpack.c.0.s8 %v8829
        %v8831 = vlaneseq
        %v8832 = vshrl.u32 %v8831, 7
        %v8833 = vsub.s32 %v8830, %v8832
        %v8834 = vrot.slane %v8826, %v8833
        %v8836 = vunpack.c.l.s4 1934713408
        %v8837 = vunpack.c.0.s8 %v8836
        %v8838 = vlaneseq
        %v8839 = vshrl.u32 %v8838, 7
        %v8840 = vsub.s32 %v8837, %v8839
        %v8841 = vrot.slane %v8827, %v8840
        %v8842 = vcombine.low %v8777, %v8793
        %v8843 = vcombine.high %v8777, %v8793
        %v8845 = vunpack.c.l.s4 1934713408
        %v8846 = vunpack.c.0.s8 %v8845
        %v8847 = vlaneseq
        %v8848 = vshrl.u32 %v8847, 7
        %v8849 = vsub.s32 %v8846, %v8848
        %v8850 = vrot.slane %v8842, %v8849
        %v8852 = vunpack.c.l.s4 1934713408
        %v8853 = vunpack.c.0.s8 %v8852
        %v8854 = vlaneseq
        %v8855 = vshrl.u32 %v8854, 7
        %v8856 = vsub.s32 %v8853, %v8855
        %v8857 = vrot.slane %v8843, %v8856
        %v8858 = vcombine.low %v8802, %v8818
        %v8859 = vcombine.high %v8802, %v8818
        %v8861 = vunpack.c.l.s4 1934713408
        %v8862 = vunpack.c.0.s8 %v8861
        %v8863 = vlaneseq
        %v8864 = vshrl.u32 %v8863, 7
        %v8865 = vsub.s32 %v8862, %v8864
        %v8866 = vrot.slane %v8858, %v8865
        %v8868 = vunpack.c.l.s4 1934713408
        %v8869 = vunpack.c.0.s8 %v8868
        %v8870 = vlaneseq
        %v8871 = vshrl.u32 %v8870, 7
        %v8872 = vsub.s32 %v8869, %v8871
        %v8873 = vrot.slane %v8859, %v8872
        %v8874 = vcombine.low %v8809, %v8825
        %v8875 = vcombine.high %v8809, %v8825
        %v8877 = vunpack.c.l.s4 1934713408
        %v8878 = vunpack.c.0.s8 %v8877
        %v8879 = vlaneseq
        %v8880 = vshrl.u32 %v8879, 7
        %v8881 = vsub.s32 %v8878, %v8880
        %v8882 = vrot.slane %v8874, %v8881
        %v8884 = vunpack.c.l.s4 1934713408
        %v8885 = vunpack.c.0.s8 %v8884
        %v8886 = vlaneseq
        %v8887 = vshrl.u32 %v8886, 7
        %v8888 = vsub.s32 %v8885, %v8887
        %v8889 = vrot.slane %v8875, %v8888
        %v8890 = vcombine.low %v8834, %v8866
        %v8891 = vcombine.high %v8834, %v8866
        %v8892 = vcombine.low %v8841, %v8873
        %v8893 = vcombine.high %v8841, %v8873
        %v8894 = vcombine.low %v8850, %v8882
        %v8895 = vcombine.high %v8850, %v8882
        %v8896 = vcombine.low %v8857, %v8889
        %v8897 = vcombine.high %v8857, %v8889
        %v8898 = vcombine.low %v8482, %v8484
        %v8899 = vcombine.high %v8482, %v8484
        %v8901 = vunpack.c.l.s4 1983009808
        %v8902 = vunpack.c.0.s8 %v8901
        %v8903 = vlaneseq
        %v8904 = vshrl.u32 %v8903, 7
        %v8905 = vsub.s32 %v8902, %v8904
        %v8906 = vrot.slane %v8898, %v8905
        %v8908 = vunpack.c.l.s4 1983009808
        %v8909 = vunpack.c.0.s8 %v8908
        %v8910 = vlaneseq
        %v8911 = vshrl.u32 %v8910, 7
        %v8912 = vsub.s32 %v8909, %v8911
        %v8913 = vrot.slane %v8899, %v8912
        %v8914 = vcombine.low %v8483, %v8485
        %v8915 = vcombine.high %v8483, %v8485
        %v8917 = vunpack.c.l.s4 1983009808
        %v8918 = vunpack.c.0.s8 %v8917
        %v8919 = vlaneseq
        %v8920 = vshrl.u32 %v8919, 7
        %v8921 = vsub.s32 %v8918, %v8920
        %v8922 = vrot.slane %v8914, %v8921
        %v8924 = vunpack.c.l.s4 1983009808
        %v8925 = vunpack.c.0.s8 %v8924
        %v8926 = vlaneseq
        %v8927 = vshrl.u32 %v8926, 7
        %v8928 = vsub.s32 %v8925, %v8927
        %v8929 = vrot.slane %v8915, %v8928
        %v8930 = vcombine.low %v8486, %v8488
        %v8931 = vcombine.high %v8486, %v8488
        %v8933 = vunpack.c.l.s4 1983009808
        %v8934 = vunpack.c.0.s8 %v8933
        %v8935 = vlaneseq
        %v8936 = vshrl.u32 %v8935, 7
        %v8937 = vsub.s32 %v8934, %v8936
        %v8938 = vrot.slane %v8930, %v8937
        %v8940 = vunpack.c.l.s4 1983009808
        %v8941 = vunpack.c.0.s8 %v8940
        %v8942 = vlaneseq
        %v8943 = vshrl.u32 %v8942, 7
        %v8944 = vsub.s32 %v8941, %v8943
        %v8945 = vrot.slane %v8931, %v8944
        %v8946 = vcombine.low %v8487, %v8489
        %v8947 = vcombine.high %v8487, %v8489
        %v8949 = vunpack.c.l.s4 1983009808
        %v8950 = vunpack.c.0.s8 %v8949
        %v8951 = vlaneseq
        %v8952 = vshrl.u32 %v8951, 7
        %v8953 = vsub.s32 %v8950, %v8952
        %v8954 = vrot.slane %v8946, %v8953
        %v8956 = vunpack.c.l.s4 1983009808
        %v8957 = vunpack.c.0.s8 %v8956
        %v8958 = vlaneseq
        %v8959 = vshrl.u32 %v8958, 7
        %v8960 = vsub.s32 %v8957, %v8959
        %v8961 = vrot.slane %v8947, %v8960
        %v8962 = vcombine.low %v8906, %v8922
        %v8963 = vcombine.high %v8906, %v8922
        %v8965 = vunpack.c.l.s4 1934713408
        %v8966 = vunpack.c.0.s8 %v8965
        %v8967 = vlaneseq
        %v8968 = vshrl.u32 %v8967, 7
        %v8969 = vsub.s32 %v8966, %v8968
        %v8970 = vrot.slane %v8962, %v8969
        %v8972 = vunpack.c.l.s4 1934713408
        %v8973 = vunpack.c.0.s8 %v8972
        %v8974 = vlaneseq
        %v8975 = vshrl.u32 %v8974, 7
        %v8976 = vsub.s32 %v8973, %v8975
        %v8977 = vrot.slane %v8963, %v8976
        %v8978 = vcombine.low %v8913, %v8929
        %v8979 = vcombine.high %v8913, %v8929
        %v8981 = vunpack.c.l.s4 1934713408
        %v8982 = vunpack.c.0.s8 %v8981
        %v8983 = vlaneseq
        %v8984 = vshrl.u32 %v8983, 7
        %v8985 = vsub.s32 %v8982, %v8984
        %v8986 = vrot.slane %v8978, %v8985
        %v8988 = vunpack.c.l.s4 1934713408
        %v8989 = vunpack.c.0.s8 %v8988
        %v8990 = vlaneseq
        %v8991 = vshrl.u32 %v8990, 7
        %v8992 = vsub.s32 %v8989, %v8991
        %v8993 = vrot.slane %v8979, %v8992
        %v8994 = vcombine.low %v8938, %v8954
        %v8995 = vcombine.high %v8938, %v8954
        %v8997 = vunpack.c.l.s4 1934713408
        %v8998 = vunpack.c.0.s8 %v8997
        %v8999 = vlaneseq
        %v9000 = vshrl.u32 %v8999, 7
        %v9001 = vsub.s32 %v8998, %v9000
        %v9002 = vrot.slane %v8994, %v9001
        %v9004 = vunpack.c.l.s4 1934713408
        %v9005 = vunpack.c.0.s8 %v9004
        %v9006 = vlaneseq
        %v9007 = vshrl.u32 %v9006, 7
        %v9008 = vsub.s32 %v9005, %v9007
        %v9009 = vrot.slane %v8995, %v9008
        %v9010 = vcombine.low %v8945, %v8961
        %v9011 = vcombine.high %v8945, %v8961
        %v9013 = vunpack.c.l.s4 1934713408
        %v9014 = vunpack.c.0.s8 %v9013
        %v9015 = vlaneseq
        %v9016 = vshrl.u32 %v9015, 7
        %v9017 = vsub.s32 %v9014, %v9016
        %v9018 = vrot.slane %v9010, %v9017
        %v9020 = vunpack.c.l.s4 1934713408
        %v9021 = vunpack.c.0.s8 %v9020
        %v9022 = vlaneseq
        %v9023 = vshrl.u32 %v9022, 7
        %v9024 = vsub.s32 %v9021, %v9023
        %v9025 = vrot.slane %v9011, %v9024
        %v9026 = vcombine.low %v8970, %v9002
        %v9027 = vcombine.high %v8970, %v9002
        %v9028 = vcombine.low %v8977, %v9009
        %v9029 = vcombine.high %v8977, %v9009
        %v9030 = vcombine.low %v8986, %v9018
        %v9031 = vcombine.high %v8986, %v9018
        %v9032 = vcombine.low %v8993, %v9025
        %v9033 = vcombine.high %v8993, %v9025
        %9038 = vrot.lane.b32.xlu0 %v8619, 16
        %v9039 = vpop.permute.xlu0 %9038
        %9040 = vrot.lane.b32.xlu0 %v8755, 16
        %v9041 = vpop.permute.xlu0 %9040
        %9042 = vrot.lane.b32.xlu0 %v8891, 16
        %v9043 = vpop.permute.xlu0 %9042
        %9044 = vrot.lane.b32.xlu0 %v9027, 16
        %v9045 = vpop.permute.xlu0 %9044
        %9054 = vrot.lane.b32.xlu0 %v8620, 32
        %v9055 = vpop.permute.xlu0 %9054
        %9056 = vrot.lane.b32.xlu0 %v8756, 32
        %v9057 = vpop.permute.xlu0 %9056
        %9058 = vrot.lane.b32.xlu0 %v8892, 32
        %v9059 = vpop.permute.xlu0 %9058
        %9060 = vrot.lane.b32.xlu0 %v9028, 32
        %v9061 = vpop.permute.xlu0 %9060
        %9070 = vrot.lane.b32.xlu0 %v8621, 48
        %v9071 = vpop.permute.xlu0 %9070
        %9072 = vrot.lane.b32.xlu0 %v8757, 48
        %v9073 = vpop.permute.xlu0 %9072
        %9074 = vrot.lane.b32.xlu0 %v8893, 48
        %v9075 = vpop.permute.xlu0 %9074
        %9076 = vrot.lane.b32.xlu0 %v9029, 48
        %v9077 = vpop.permute.xlu0 %9076
        %9086 = vrot.lane.b32.xlu0 %v8622, 64
        %v9087 = vpop.permute.xlu0 %9086
        %9088 = vrot.lane.b32.xlu0 %v8758, 64
        %v9089 = vpop.permute.xlu0 %9088
        %9090 = vrot.lane.b32.xlu0 %v8894, 64
        %v9091 = vpop.permute.xlu0 %9090
        %9092 = vrot.lane.b32.xlu0 %v9030, 64
        %v9093 = vpop.permute.xlu0 %9092
        %9102 = vrot.lane.b32.xlu0 %v8623, 80
        %v9103 = vpop.permute.xlu0 %9102
        %9104 = vrot.lane.b32.xlu0 %v8759, 80
        %v9105 = vpop.permute.xlu0 %9104
        %9106 = vrot.lane.b32.xlu0 %v8895, 80
        %v9107 = vpop.permute.xlu0 %9106
        %9108 = vrot.lane.b32.xlu0 %v9031, 80
        %v9109 = vpop.permute.xlu0 %9108
        %9118 = vrot.lane.b32.xlu0 %v8624, 96
        %v9119 = vpop.permute.xlu0 %9118
        %9120 = vrot.lane.b32.xlu0 %v8760, 96
        %v9121 = vpop.permute.xlu0 %9120
        %9122 = vrot.lane.b32.xlu0 %v8896, 96
        %v9123 = vpop.permute.xlu0 %9122
        %9124 = vrot.lane.b32.xlu0 %v9032, 96
        %v9125 = vpop.permute.xlu0 %9124
        %9134 = vrot.lane.b32.xlu0 %v8625, 112
        %v9135 = vpop.permute.xlu0 %9134
        %9136 = vrot.lane.b32.xlu0 %v8761, 112
        %v9137 = vpop.permute.xlu0 %9136
        %9138 = vrot.lane.b32.xlu0 %v8897, 112
        %v9139 = vpop.permute.xlu0 %9138
        %9140 = vrot.lane.b32.xlu0 %v9033, 112
        %v9141 = vpop.permute.xlu0 %9140
        %v9146 = vsel %vm4659, %v8618, %v9039
        %v9147 = vsel %vm4659, %v8754, %v9041
        %v9148 = vsel %vm4659, %v8890, %v9043
        %v9149 = vsel %vm4659, %v9026, %v9045
        %vm9150 = vcmask 261120
        %v9151 = vsel %vm9150, %v9146, %v9055
        %v9152 = vsel %vm9150, %v9147, %v9057
        %v9153 = vsel %vm9150, %v9148, %v9059
        %v9154 = vsel %vm9150, %v9149, %v9061
        %vm9155 = vcmask 392192
        %v9156 = vsel %vm9155, %v9151, %v9071
        %v9157 = vsel %vm9155, %v9152, %v9073
        %v9158 = vsel %vm9155, %v9153, %v9075
        %v9159 = vsel %vm9155, %v9154, %v9077
        %vm9160 = vcmask 523264
        %v9161 = vsel %vm9160, %v9156, %v9087
        %v9162 = vsel %vm9160, %v9157, %v9089
        %v9163 = vsel %vm9160, %v9158, %v9091
        %v9164 = vsel %vm9160, %v9159, %v9093
        %vm9165 = vcmask 654336
        %v9166 = vsel %vm9165, %v9161, %v9103
        %v9167 = vsel %vm9165, %v9162, %v9105
        %v9168 = vsel %vm9165, %v9163, %v9107
        %v9169 = vsel %vm9165, %v9164, %v9109
        %vm9170 = vcmask 785408
        %v9171 = vsel %vm9170, %v9166, %v9119
        %v9172 = vsel %vm9170, %v9167, %v9121
        %v9173 = vsel %vm9170, %v9168, %v9123
        %v9174 = vsel %vm9170, %v9169, %v9125
        %vm9175 = vcmask 916480
        %v9176 = vsel %vm9175, %v9171, %v9135
        %v9177 = vsel %vm9175, %v9172, %v9137
        %v9178 = vsel %vm9175, %v9173, %v9139
        %v9179 = vsel %vm9175, %v9174, %v9141
        %v9180 = vpack.c.bf16 %v9177, %v9176
        %v9181 = vpack.c.bf16 %v9179, %v9178
        %v9182 = vld [vmem:[%s690] sm:$0xf]
        %v9183 = vld [vmem:[%s690 + $0x4] sm:$0xf]
        %v9184 = vld [vmem:[%s690 + $0x8] sm:$0xf]
        %v9185 = vld [vmem:[%s690 + $0xc] sm:$0xf]
        %v9186 = vld [vmem:[%s690 + $0x10] sm:$0xf]
        %v9187 = vld [vmem:[%s690 + $0x14] sm:$0xf]
        %v9188 = vld [vmem:[%s690 + $0x18] sm:$0xf]
        %v9189 = vld [vmem:[%s690 + $0x1c] sm:$0xf]
        %v9190 = vld [vmem:[%s690 + $0x20] sm:$0xf]
        %v9191 = vld [vmem:[%s690 + $0x24] sm:$0xf]
        %v9192 = vld [vmem:[%s690 + $0x28] sm:$0xf]
        %v9193 = vld [vmem:[%s690 + $0x2c] sm:$0xf]
        %v9194 = vld [vmem:[%s690 + $0x30] sm:$0xf]
        %v9195 = vld [vmem:[%s690 + $0x34] sm:$0xf]
        %v9196 = vld [vmem:[%s690 + $0x38] sm:$0xf]
        %v9197 = vld [vmem:[%s690 + $0x3c] sm:$0xf]
        %v9198 = vld [vmem:[%s698] sm:$0x1]
        %v9200 = vlaneseq
        %v9201 = vshrl.u32 %v9200, 7
        %v9202 = vsub.s32 0, %v9201
        %v9203 = vrot.slane %v9198, %v9202
        %v9221 = vunpack.c.l.b16 %v9182
        %v9222 = vunpack.c.l.b16 %v9183
        %v9223 = vunpack.c.l.b16 %v9184
        %v9224 = vunpack.c.l.b16 %v9185
        %v9225 = vunpack.c.l.b16 %v9186
        %v9226 = vunpack.c.l.b16 %v9187
        %v9227 = vunpack.c.l.b16 %v9188
        %v9228 = vunpack.c.l.b16 %v9189
        %v9229 = vunpack.c.l.b16 %v9190
        %v9230 = vunpack.c.l.b16 %v9191
        %v9231 = vunpack.c.l.b16 %v9192
        %v9232 = vunpack.c.l.b16 %v9193
        %v9233 = vunpack.c.l.b16 %v9194
        %v9234 = vunpack.c.l.b16 %v9195
        %v9235 = vunpack.c.l.b16 %v9196
        %v9236 = vunpack.c.l.b16 %v9197
        %v9237 = vpack.c.b16 %v9222, %v9221
        %v9238 = vpack.c.b16 %v9224, %v9223
        %v9239 = vpack.c.b16 %v9226, %v9225
        %v9240 = vpack.c.b16 %v9228, %v9227
        %v9241 = vpack.c.b16 %v9230, %v9229
        %v9242 = vpack.c.b16 %v9232, %v9231
        %v9243 = vpack.c.b16 %v9234, %v9233
        %v9244 = vpack.c.b16 %v9236, %v9235
        %9253 = vmatprep.subr.bf16.mxu0 0
        %9254 = vmatpush1.bf16.msra.mxu0 %v9237
        %9255 = vmatprep.subr.bf16.mxu0 0
        %9256 = vmatpush1.bf16.msra.mxu0 %v9238
        %9257 = vmatprep.subr.bf16.mxu0 0
        %9258 = vmatpush1.bf16.msra.mxu0 %v9239
        %9259 = vmatprep.subr.bf16.mxu0 0
        %9260 = vmatpush1.bf16.msra.mxu0 %v9240
        %9261 = vmatprep.subr.bf16.mxu0 0
        %9262 = vmatpush1.bf16.msra.mxu0 %v9241
        %9263 = vmatprep.subr.bf16.mxu0 0
        %9264 = vmatpush1.bf16.msra.mxu0 %v9242
        %9265 = vmatprep.subr.bf16.mxu0 0
        %9266 = vmatpush1.bf16.msra.mxu0 %v9243
        %9267 = vmatprep.subr.bf16.mxu0 0
        %9268 = vmatpush1.bf16.msra.mxu0 %v9244
        %9269 = vmatprep.subr.bf16.mxu0 0
        %9270 = vmatpush1.bf16.msra.mxu0 0
        %9271 = vmatprep.subr.bf16.mxu0 0
        %9272 = vmatpush1.bf16.msra.mxu0 0
        %9273 = vmatprep.subr.bf16.mxu0 0
        %9274 = vmatpush1.bf16.msra.mxu0 0
        %9275 = vmatprep.subr.bf16.mxu0 0
        %9276 = vmatpush1.bf16.msra.mxu0 0
        %9277 = vmatprep.subr.bf16.mxu0 0
        %9278 = vmatpush1.bf16.msra.mxu0 0
        %9279 = vmatprep.subr.bf16.mxu0 0
        %9280 = vmatpush1.bf16.msra.mxu0 0
        %9281 = vmatprep.subr.bf16.mxu0 0
        %9282 = vmatpush1.bf16.msra.mxu0 0
        %9283 = vmatprep.subr.bf16.mxu0 0
        %9284 = vmatpush1.bf16.msra.mxu0 0
        %9285 = vmatprep.mubr.bf16.mxu0 0
        %9286 = vmatmul.mubr.bf16.gmra.mrb[0].mxu0 %v9180
        %v9287 = vpop.f32.mrb[0].mxu0
        %v9288 = vadd.f32 %v9203, %v9287
        %v9289 = vpop.f32.mrb[0].mxu0
        %v9290 = vpop.f32.mrb[0].mxu0
        %v9291 = vadd.f32 %v9203, %v9290
        %v9292 = vpop.f32.mrb[0].mxu0
        %9293 = vmatprep.mubr.bf16.mxu0 0
        %9294 = vmatmul.mubr.bf16.gmra.mrb[0].mxu0 %v9181
        %v9295 = vpop.f32.mrb[0].mxu0
        %v9296 = vadd.f32 %v9203, %v9295
        %v9297 = vpop.f32.mrb[0].mxu0
        %v9298 = vpop.f32.mrb[0].mxu0
        %v9299 = vadd.f32 %v9203, %v9298
        %v9300 = vpop.f32.mrb[0].mxu0
        %9301 = vdwg.mxu0
        %v9302 = vadd.f32 %v846, %v9288
        %v9303 = vadd.f32 %v847, %v9291
        %v9304 = vadd.f32 %v848, %v9296
        %v9305 = vadd.f32 %v849, %v9299
        %9306 = vadd.xlane.f32.xlu0 %v9302
        %v9307 = vpop.xlane.xlu0 %9306
        %9308 = vadd.xlane.f32.xlu0 %v9303
        %v9309 = vpop.xlane.xlu0 %9308
        %9310 = vadd.xlane.f32.xlu0 %v9304
        %v9311 = vpop.xlane.xlu0 %9310
        %9312 = vadd.xlane.f32.xlu0 %v9305
        %v9313 = vpop.xlane.xlu0 %9312
        %v9314 = vrcp.pop 128.0
        %v9315 = vmul.f32 %v9307, %v9314
        %v9316 = vmul.f32 %v9309, %v9314
        %v9317 = vmul.f32 %v9311, %v9314
        %v9318 = vmul.f32 %v9313, %v9314
        %v9319 = vmul.f32 %v9302, %v9302
        %v9320 = vmul.f32 %v9303, %v9303
        %v9321 = vmul.f32 %v9304, %v9304
        %v9322 = vmul.f32 %v9305, %v9305
        %9323 = vadd.xlane.f32.xlu0 %v9319
        %v9324 = vpop.xlane.xlu0 %9323
        %9325 = vadd.xlane.f32.xlu0 %v9320
        %v9326 = vpop.xlane.xlu0 %9325
        %9327 = vadd.xlane.f32.xlu0 %v9321
        %v9328 = vpop.xlane.xlu0 %9327
        %9329 = vadd.xlane.f32.xlu0 %v9322
        %v9330 = vpop.xlane.xlu0 %9329
        %v9331 = vmul.f32 %v9324, %v9314
        %v9332 = vmul.f32 %v9326, %v9314
        %v9333 = vmul.f32 %v9328, %v9314
        %v9334 = vmul.f32 %v9330, %v9314
        %v9335 = vmul.f32 %v9315, %v9315
        %v9336 = vmul.f32 %v9316, %v9316
        %v9337 = vmul.f32 %v9317, %v9317
        %v9338 = vmul.f32 %v9318, %v9318
        %v9339 = vsub.f32 %v9331, %v9335
        %v9340 = vsub.f32 %v9332, %v9336
        %v9341 = vsub.f32 %v9333, %v9337
        %v9342 = vsub.f32 %v9334, %v9338
        %v9343 = vsub.f32 %v9302, %v9315
        %v9344 = vsub.f32 %v9303, %v9316
        %v9345 = vsub.f32 %v9304, %v9317
        %v9346 = vsub.f32 %v9305, %v9318
        %v9347 = vadd.f32 %v9339, 1e-05
        %v9348 = vadd.f32 %v9340, 1e-05
        %v9349 = vadd.f32 %v9341, 1e-05
        %v9350 = vadd.f32 %v9342, 1e-05
        %v9351 = vrsqrt.pop %v9347
        %v9352 = vrsqrt.pop %v9348
        %v9353 = vrsqrt.pop %v9349
        %v9354 = vrsqrt.pop %v9350
        %v9355 = vmul.f32 %v9343, %v9351
        %v9356 = vmul.f32 %v9344, %v9352
        %v9357 = vmul.f32 %v9345, %v9353
        %v9358 = vmul.f32 %v9346, %v9354
        %v9359 = vld [vmem:[%s706] sm:$0x1]
        %v9361 = vlaneseq
        %v9362 = vshrl.u32 %v9361, 7
        %v9363 = vsub.s32 0, %v9362
        %v9364 = vrot.slane %v9359, %v9363
        %v9366 = vmul.f32 %v9355, %v9364
        %v9367 = vmul.f32 %v9356, %v9364
        %v9368 = vmul.f32 %v9357, %v9364
        %v9369 = vmul.f32 %v9358, %v9364
        %v9370 = vld [vmem:[%s817] sm:$0x1]
        %v9372 = vlaneseq
        %v9373 = vshrl.u32 %v9372, 7
        %v9374 = vsub.s32 0, %v9373
        %v9375 = vrot.slane %v9370, %v9374
        %v9377 = vadd.f32 %v9366, %v9375
        %v9378 = vadd.f32 %v9367, %v9375
        %v9379 = vadd.f32 %v9368, %v9375
        %v9380 = vadd.f32 %v9369, %v9375
        %v9381 = vpack.c.bf16 %v9378, %v9377
        %v9382 = vpack.c.bf16 %v9380, %v9379
        %v9383 = vld [vmem:[%s715] sm:$0xff]
        %v9384 = vld [vmem:[%s715 + $0x8] sm:$0xff]
        %v9385 = vld [vmem:[%s715 + $0x10] sm:$0xff]
        %v9386 = vld [vmem:[%s715 + $0x18] sm:$0xff]
        %v9387 = vld [vmem:[%s715 + $0x20] sm:$0xff]
        %v9388 = vld [vmem:[%s715 + $0x28] sm:$0xff]
        %v9389 = vld [vmem:[%s715 + $0x30] sm:$0xff]
        %v9390 = vld [vmem:[%s715 + $0x38] sm:$0xff]
        %v9391 = vld [vmem:[%s715 + $0x40] sm:$0xff]
        %v9392 = vld [vmem:[%s715 + $0x48] sm:$0xff]
        %v9393 = vld [vmem:[%s715 + $0x50] sm:$0xff]
        %v9394 = vld [vmem:[%s715 + $0x58] sm:$0xff]
        %v9395 = vld [vmem:[%s715 + $0x60] sm:$0xff]
        %v9396 = vld [vmem:[%s715 + $0x68] sm:$0xff]
        %v9397 = vld [vmem:[%s715 + $0x70] sm:$0xff]
        %v9398 = vld [vmem:[%s715 + $0x78] sm:$0xff]
        %v9399 = vld [vmem:[%s715 + $0x80] sm:$0xff]
        %v9400 = vld [vmem:[%s715 + $0x88] sm:$0xff]
        %v9401 = vld [vmem:[%s715 + $0x90] sm:$0xff]
        %v9402 = vld [vmem:[%s715 + $0x98] sm:$0xff]
        %v9403 = vld [vmem:[%s715 + $0xa0] sm:$0xff]
        %v9404 = vld [vmem:[%s715 + $0xa8] sm:$0xff]
        %v9405 = vld [vmem:[%s715 + $0xb0] sm:$0xff]
        %v9406 = vld [vmem:[%s715 + $0xb8] sm:$0xff]
        %v9407 = vld [vmem:[%s715 + $0xc0] sm:$0xff]
        %v9408 = vld [vmem:[%s715 + $0xc8] sm:$0xff]
        %v9409 = vld [vmem:[%s715 + $0xd0] sm:$0xff]
        %v9410 = vld [vmem:[%s715 + $0xd8] sm:$0xff]
        %v9411 = vld [vmem:[%s715 + $0xe0] sm:$0xff]
        %v9412 = vld [vmem:[%s715 + $0xe8] sm:$0xff]
        %v9413 = vld [vmem:[%s715 + $0xf0] sm:$0xff]
        %v9414 = vld [vmem:[%s715 + $0xf8] sm:$0xff]
        %v9415 = vld [vmem:[%s821] sm:$0xf]
        %v9417 = vlaneseq
        %v9418 = vshrl.u32 %v9417, 7
        %v9419 = vsub.s32 0, %v9418
        %v9420 = vrot.slane %v9415, %v9419
        %v9421 = vlaneseq
        %v9422 = vshrl.u32 %v9421, 7
        %v9423 = vsub.s32 1, %v9422
        %v9424 = vrot.slane %v9415, %v9423
        %v9425 = vlaneseq
        %v9426 = vshrl.u32 %v9425, 7
        %v9427 = vsub.s32 2, %v9426
        %v9428 = vrot.slane %v9415, %v9427
        %v9429 = vlaneseq
        %v9430 = vshrl.u32 %v9429, 7
        %v9431 = vsub.s32 3, %v9430
        %v9432 = vrot.slane %v9415, %v9431
        %v9469 = vunpack.c.l.b16 %v9383
        %v9470 = vunpack.c.h.b16 %v9383
        %v9471 = vunpack.c.l.b16 %v9384
        %v9472 = vunpack.c.h.b16 %v9384
        %v9473 = vunpack.c.l.b16 %v9385
        %v9474 = vunpack.c.h.b16 %v9385
        %v9475 = vunpack.c.l.b16 %v9386
        %v9476 = vunpack.c.h.b16 %v9386
        %v9477 = vunpack.c.l.b16 %v9387
        %v9478 = vunpack.c.h.b16 %v9387
        %v9479 = vunpack.c.l.b16 %v9388
        %v9480 = vunpack.c.h.b16 %v9388
        %v9481 = vunpack.c.l.b16 %v9389
        %v9482 = vunpack.c.h.b16 %v9389
        %v9483 = vunpack.c.l.b16 %v9390
        %v9484 = vunpack.c.h.b16 %v9390
        %v9485 = vunpack.c.l.b16 %v9391
        %v9486 = vunpack.c.h.b16 %v9391
        %v9487 = vunpack.c.l.b16 %v9392
        %v9488 = vunpack.c.h.b16 %v9392
        %v9489 = vunpack.c.l.b16 %v9393
        %v9490 = vunpack.c.h.b16 %v9393
        %v9491 = vunpack.c.l.b16 %v9394
        %v9492 = vunpack.c.h.b16 %v9394
        %v9493 = vunpack.c.l.b16 %v9395
        %v9494 = vunpack.c.h.b16 %v9395
        %v9495 = vunpack.c.l.b16 %v9396
        %v9496 = vunpack.c.h.b16 %v9396
        %v9497 = vunpack.c.l.b16 %v9397
        %v9498 = vunpack.c.h.b16 %v9397
        %v9499 = vunpack.c.l.b16 %v9398
        %v9500 = vunpack.c.h.b16 %v9398
        %v9501 = vunpack.c.l.b16 %v9399
        %v9502 = vunpack.c.h.b16 %v9399
        %v9503 = vunpack.c.l.b16 %v9400
        %v9504 = vunpack.c.h.b16 %v9400
        %v9505 = vunpack.c.l.b16 %v9401
        %v9506 = vunpack.c.h.b16 %v9401
        %v9507 = vunpack.c.l.b16 %v9402
        %v9508 = vunpack.c.h.b16 %v9402
        %v9509 = vunpack.c.l.b16 %v9403
        %v9510 = vunpack.c.h.b16 %v9403
        %v9511 = vunpack.c.l.b16 %v9404
        %v9512 = vunpack.c.h.b16 %v9404
        %v9513 = vunpack.c.l.b16 %v9405
        %v9514 = vunpack.c.h.b16 %v9405
        %v9515 = vunpack.c.l.b16 %v9406
        %v9516 = vunpack.c.h.b16 %v9406
        %v9517 = vunpack.c.l.b16 %v9407
        %v9518 = vunpack.c.h.b16 %v9407
        %v9519 = vunpack.c.l.b16 %v9408
        %v9520 = vunpack.c.h.b16 %v9408
        %v9521 = vunpack.c.l.b16 %v9409
        %v9522 = vunpack.c.h.b16 %v9409
        %v9523 = vunpack.c.l.b16 %v9410
        %v9524 = vunpack.c.h.b16 %v9410
        %v9525 = vunpack.c.l.b16 %v9411
        %v9526 = vunpack.c.h.b16 %v9411
        %v9527 = vunpack.c.l.b16 %v9412
        %v9528 = vunpack.c.h.b16 %v9412
        %v9529 = vunpack.c.l.b16 %v9413
        %v9530 = vunpack.c.h.b16 %v9413
        %v9531 = vunpack.c.l.b16 %v9414
        %v9532 = vunpack.c.h.b16 %v9414
        %v9533 = vpack.c.b16 %v9473, %v9469
        %v9534 = vpack.c.b16 %v9474, %v9470
        %v9535 = vpack.c.b16 %v9475, %v9471
        %v9536 = vpack.c.b16 %v9476, %v9472
        %v9537 = vpack.c.b16 %v9481, %v9477
        %v9538 = vpack.c.b16 %v9482, %v9478
        %v9539 = vpack.c.b16 %v9483, %v9479
        %v9540 = vpack.c.b16 %v9484, %v9480
        %v9541 = vpack.c.b16 %v9489, %v9485
        %v9542 = vpack.c.b16 %v9490, %v9486
        %v9543 = vpack.c.b16 %v9491, %v9487
        %v9544 = vpack.c.b16 %v9492, %v9488
        %v9545 = vpack.c.b16 %v9497, %v9493
        %v9546 = vpack.c.b16 %v9498, %v9494
        %v9547 = vpack.c.b16 %v9499, %v9495
        %v9548 = vpack.c.b16 %v9500, %v9496
        %v9549 = vpack.c.b16 %v9505, %v9501
        %v9550 = vpack.c.b16 %v9506, %v9502
        %v9551 = vpack.c.b16 %v9507, %v9503
        %v9552 = vpack.c.b16 %v9508, %v9504
        %v9553 = vpack.c.b16 %v9513, %v9509
        %v9554 = vpack.c.b16 %v9514, %v9510
        %v9555 = vpack.c.b16 %v9515, %v9511
        %v9556 = vpack.c.b16 %v9516, %v9512
        %v9557 = vpack.c.b16 %v9521, %v9517
        %v9558 = vpack.c.b16 %v9522, %v9518
        %v9559 = vpack.c.b16 %v9523, %v9519
        %v9560 = vpack.c.b16 %v9524, %v9520
        %v9561 = vpack.c.b16 %v9529, %v9525
        %v9562 = vpack.c.b16 %v9530, %v9526
        %v9563 = vpack.c.b16 %v9531, %v9527
        %v9564 = vpack.c.b16 %v9532, %v9528
        %9597 = vmatprep.subr.bf16.mxu0 %v9534
        %9598 = vmatpush1.bf16.msra.mxu0 %v9533
        %9599 = vmatprep.subr.bf16.mxu0 %v9538
        %9600 = vmatpush1.bf16.msra.mxu0 %v9537
        %9601 = vmatprep.subr.bf16.mxu0 %v9542
        %9602 = vmatpush1.bf16.msra.mxu0 %v9541
        %9603 = vmatprep.subr.bf16.mxu0 %v9546
        %9604 = vmatpush1.bf16.msra.mxu0 %v9545
        %9605 = vmatprep.subr.bf16.mxu0 %v9550
        %9606 = vmatpush1.bf16.msra.mxu0 %v9549
        %9607 = vmatprep.subr.bf16.mxu0 %v9554
        %9608 = vmatpush1.bf16.msra.mxu0 %v9553
        %9609 = vmatprep.subr.bf16.mxu0 %v9558
        %9610 = vmatpush1.bf16.msra.mxu0 %v9557
        %9611 = vmatprep.subr.bf16.mxu0 %v9562
        %9612 = vmatpush1.bf16.msra.mxu0 %v9561
        %9613 = vmatprep.subr.bf16.mxu0 0
        %9614 = vmatpush1.bf16.msra.mxu0 0
        %9615 = vmatprep.subr.bf16.mxu0 0
        %9616 = vmatpush1.bf16.msra.mxu0 0
        %9617 = vmatprep.subr.bf16.mxu0 0
        %9618 = vmatpush1.bf16.msra.mxu0 0
        %9619 = vmatprep.subr.bf16.mxu0 0
        %9620 = vmatpush1.bf16.msra.mxu0 0
        %9621 = vmatprep.subr.bf16.mxu0 0
        %9622 = vmatpush1.bf16.msra.mxu0 0
        %9623 = vmatprep.subr.bf16.mxu0 0
        %9624 = vmatpush1.bf16.msra.mxu0 0
        %9625 = vmatprep.subr.bf16.mxu0 0
        %9626 = vmatpush1.bf16.msra.mxu0 0
        %9627 = vmatprep.subr.bf16.mxu0 0
        %9628 = vmatpush1.bf16.msra.mxu0 0
        %9629 = vmatprep.mubr.bf16.mxu0 0
        %9630 = vmatmul.mubr.bf16.gmra.mrb[0].mxu0 %v9381
        %v9631 = vpop.f32.mrb[0].mxu0
        %v9632 = vadd.f32 %v9420, %v9631
        %v9633 = vpop.f32.mrb[0].mxu0
        %v9634 = vadd.f32 %v9424, %v9633
        %v9635 = vpop.f32.mrb[0].mxu0
        %v9636 = vadd.f32 %v9420, %v9635
        %v9637 = vpop.f32.mrb[0].mxu0
        %v9638 = vadd.f32 %v9424, %v9637
        %9639 = vmatprep.mubr.bf16.mxu0 0
        %9640 = vmatmul.mubr.bf16.gmra.mrb[0].mxu0 %v9382
        %v9641 = vpop.f32.mrb[0].mxu0
        %v9642 = vadd.f32 %v9420, %v9641
        %v9643 = vpop.f32.mrb[0].mxu0
        %v9644 = vadd.f32 %v9424, %v9643
        %v9645 = vpop.f32.mrb[0].mxu0
        %v9646 = vadd.f32 %v9420, %v9645
        %v9647 = vpop.f32.mrb[0].mxu0
        %v9648 = vadd.f32 %v9424, %v9647
        %9649 = vdwg.mxu0
        %9650 = vmatprep.subr.bf16.mxu0 %v9536
        %9651 = vmatpush1.bf16.msra.mxu0 %v9535
        %9652 = vmatprep.subr.bf16.mxu0 %v9540
        %9653 = vmatpush1.bf16.msra.mxu0 %v9539
        %9654 = vmatprep.subr.bf16.mxu0 %v9544
        %9655 = vmatpush1.bf16.msra.mxu0 %v9543
        %9656 = vmatprep.subr.bf16.mxu0 %v9548
        %9657 = vmatpush1.bf16.msra.mxu0 %v9547
        %9658 = vmatprep.subr.bf16.mxu0 %v9552
        %9659 = vmatpush1.bf16.msra.mxu0 %v9551
        %9660 = vmatprep.subr.bf16.mxu0 %v9556
        %9661 = vmatpush1.bf16.msra.mxu0 %v9555
        %9662 = vmatprep.subr.bf16.mxu0 %v9560
        %9663 = vmatpush1.bf16.msra.mxu0 %v9559
        %9664 = vmatprep.subr.bf16.mxu0 %v9564
        %9665 = vmatpush1.bf16.msra.mxu0 %v9563
        %9666 = vmatprep.subr.bf16.mxu0 0
        %9667 = vmatpush1.bf16.msra.mxu0 0
        %9668 = vmatprep.subr.bf16.mxu0 0
        %9669 = vmatpush1.bf16.msra.mxu0 0
        %9670 = vmatprep.subr.bf16.mxu0 0
        %9671 = vmatpush1.bf16.msra.mxu0 0
        %9672 = vmatprep.subr.bf16.mxu0 0
        %9673 = vmatpush1.bf16.msra.mxu0 0
        %9674 = vmatprep.subr.bf16.mxu0 0
        %9675 = vmatpush1.bf16.msra.mxu0 0
        %9676 = vmatprep.subr.bf16.mxu0 0
        %9677 = vmatpush1.bf16.msra.mxu0 0
        %9678 = vmatprep.subr.bf16.mxu0 0
        %9679 = vmatpush1.bf16.msra.mxu0 0
        %9680 = vmatprep.subr.bf16.mxu0 0
        %9681 = vmatpush1.bf16.msra.mxu0 0
        %9682 = vmatprep.mubr.bf16.mxu0 0
        %9683 = vmatmul.mubr.bf16.gmra.mrb[0].mxu0 %v9381
        %v9684 = vpop.f32.mrb[0].mxu0
        %v9685 = vadd.f32 %v9428, %v9684
        %v9686 = vpop.f32.mrb[0].mxu0
        %v9687 = vadd.f32 %v9432, %v9686
        %v9688 = vpop.f32.mrb[0].mxu0
        %v9689 = vadd.f32 %v9428, %v9688
        %v9690 = vpop.f32.mrb[0].mxu0
        %v9691 = vadd.f32 %v9432, %v9690
        %9692 = vmatprep.mubr.bf16.mxu0 0
        %9693 = vmatmul.mubr.bf16.gmra.mrb[0].mxu0 %v9382
        %v9694 = vpop.f32.mrb[0].mxu0
        %v9695 = vadd.f32 %v9428, %v9694
        %v9696 = vpop.f32.mrb[0].mxu0
        %v9697 = vadd.f32 %v9432, %v9696
        %v9698 = vpop.f32.mrb[0].mxu0
        %v9699 = vadd.f32 %v9428, %v9698
        %v9700 = vpop.f32.mrb[0].mxu0
        %v9701 = vadd.f32 %v9432, %v9700
        %9702 = vdwg.mxu0
        %v9703 = vmax.f32 %v9632, 0.0
        %v9704 = vmax.f32 %v9634, 0.0
        %v9705 = vmax.f32 %v9685, 0.0
        %v9706 = vmax.f32 %v9687, 0.0
        %v9707 = vmax.f32 %v9636, 0.0
        %v9708 = vmax.f32 %v9638, 0.0
        %v9709 = vmax.f32 %v9689, 0.0
        %v9710 = vmax.f32 %v9691, 0.0
        %v9711 = vmax.f32 %v9642, 0.0
        %v9712 = vmax.f32 %v9644, 0.0
        %v9713 = vmax.f32 %v9695, 0.0
        %v9714 = vmax.f32 %v9697, 0.0
        %v9715 = vmax.f32 %v9646, 0.0
        %v9716 = vmax.f32 %v9648, 0.0
        %v9717 = vmax.f32 %v9699, 0.0
        %v9718 = vmax.f32 %v9701, 0.0
        %v9719 = vpack.c.bf16 %v9707, %v9703
        %v9720 = vpack.c.bf16 %v9708, %v9704
        %v9721 = vpack.c.bf16 %v9709, %v9705
        %v9722 = vpack.c.bf16 %v9710, %v9706
        %v9723 = vpack.c.bf16 %v9715, %v9711
        %v9724 = vpack.c.bf16 %v9716, %v9712
        %v9725 = vpack.c.bf16 %v9717, %v9713
        %v9726 = vpack.c.bf16 %v9718, %v9714
        %v9727 = vld [vmem:[%s724] sm:$0xf]
        %v9728 = vld [vmem:[%s724 + $0x4] sm:$0xf]
        %v9729 = vld [vmem:[%s724 + $0x8] sm:$0xf]
        %v9730 = vld [vmem:[%s724 + $0xc] sm:$0xf]
        %v9731 = vld [vmem:[%s724 + $0x10] sm:$0xf]
        %v9732 = vld [vmem:[%s724 + $0x14] sm:$0xf]
        %v9733 = vld [vmem:[%s724 + $0x18] sm:$0xf]
        %v9734 = vld [vmem:[%s724 + $0x1c] sm:$0xf]
        %v9735 = vld [vmem:[%s724 + $0x20] sm:$0xf]
        %v9736 = vld [vmem:[%s724 + $0x24] sm:$0xf]
        %v9737 = vld [vmem:[%s724 + $0x28] sm:$0xf]
        %v9738 = vld [vmem:[%s724 + $0x2c] sm:$0xf]
        %v9739 = vld [vmem:[%s724 + $0x30] sm:$0xf]
        %v9740 = vld [vmem:[%s724 + $0x34] sm:$0xf]
        %v9741 = vld [vmem:[%s724 + $0x38] sm:$0xf]
        %v9742 = vld [vmem:[%s724 + $0x3c] sm:$0xf]
        %v9743 = vld [vmem:[%s724 + $0x40] sm:$0xf]
        %v9744 = vld [vmem:[%s724 + $0x44] sm:$0xf]
        %v9745 = vld [vmem:[%s724 + $0x48] sm:$0xf]
        %v9746 = vld [vmem:[%s724 + $0x4c] sm:$0xf]
        %v9747 = vld [vmem:[%s724 + $0x50] sm:$0xf]
        %v9748 = vld [vmem:[%s724 + $0x54] sm:$0xf]
        %v9749 = vld [vmem:[%s724 + $0x58] sm:$0xf]
        %v9750 = vld [vmem:[%s724 + $0x5c] sm:$0xf]
        %v9751 = vld [vmem:[%s724 + $0x60] sm:$0xf]
        %v9752 = vld [vmem:[%s724 + $0x64] sm:$0xf]
        %v9753 = vld [vmem:[%s724 + $0x68] sm:$0xf]
        %v9754 = vld [vmem:[%s724 + $0x6c] sm:$0xf]
        %v9755 = vld [vmem:[%s724 + $0x70] sm:$0xf]
        %v9756 = vld [vmem:[%s724 + $0x74] sm:$0xf]
        %v9757 = vld [vmem:[%s724 + $0x78] sm:$0xf]
        %v9758 = vld [vmem:[%s724 + $0x7c] sm:$0xf]
        %v9759 = vld [vmem:[%s724 + $0x80] sm:$0xf]
        %v9760 = vld [vmem:[%s724 + $0x84] sm:$0xf]
        %v9761 = vld [vmem:[%s724 + $0x88] sm:$0xf]
        %v9762 = vld [vmem:[%s724 + $0x8c] sm:$0xf]
        %v9763 = vld [vmem:[%s724 + $0x90] sm:$0xf]
        %v9764 = vld [vmem:[%s724 + $0x94] sm:$0xf]
        %v9765 = vld [vmem:[%s724 + $0x98] sm:$0xf]
        %v9766 = vld [vmem:[%s724 + $0x9c] sm:$0xf]
        %v9767 = vld [vmem:[%s724 + $0xa0] sm:$0xf]
        %v9768 = vld [vmem:[%s724 + $0xa4] sm:$0xf]
        %v9769 = vld [vmem:[%s724 + $0xa8] sm:$0xf]
        %v9770 = vld [vmem:[%s724 + $0xac] sm:$0xf]
        %v9771 = vld [vmem:[%s724 + $0xb0] sm:$0xf]
        %v9772 = vld [vmem:[%s724 + $0xb4] sm:$0xf]
        %v9773 = vld [vmem:[%s724 + $0xb8] sm:$0xf]
        %v9774 = vld [vmem:[%s724 + $0xbc] sm:$0xf]
        %v9775 = vld [vmem:[%s724 + $0xc0] sm:$0xf]
        %v9776 = vld [vmem:[%s724 + $0xc4] sm:$0xf]
        %v9777 = vld [vmem:[%s724 + $0xc8] sm:$0xf]
        %v9778 = vld [vmem:[%s724 + $0xcc] sm:$0xf]
        %v9779 = vld [vmem:[%s724 + $0xd0] sm:$0xf]
        %v9780 = vld [vmem:[%s724 + $0xd4] sm:$0xf]
        %v9781 = vld [vmem:[%s724 + $0xd8] sm:$0xf]
        %v9782 = vld [vmem:[%s724 + $0xdc] sm:$0xf]
        %v9783 = vld [vmem:[%s724 + $0xe0] sm:$0xf]
        %v9784 = vld [vmem:[%s724 + $0xe4] sm:$0xf]
        %v9785 = vld [vmem:[%s724 + $0xe8] sm:$0xf]
        %v9786 = vld [vmem:[%s724 + $0xec] sm:$0xf]
        %v9787 = vld [vmem:[%s724 + $0xf0] sm:$0xf]
        %v9788 = vld [vmem:[%s724 + $0xf4] sm:$0xf]
        %v9789 = vld [vmem:[%s724 + $0xf8] sm:$0xf]
        %v9790 = vld [vmem:[%s724 + $0xfc] sm:$0xf]
        %v9791 = vld [vmem:[%s824] sm:$0x1]
        %v9793 = vlaneseq
        %v9794 = vshrl.u32 %v9793, 7
        %v9795 = vsub.s32 0, %v9794
        %v9796 = vrot.slane %v9791, %v9795
        %v9862 = vunpack.c.l.b16 %v9727
        %v9863 = vunpack.c.l.b16 %v9728
        %v9864 = vunpack.c.l.b16 %v9729
        %v9865 = vunpack.c.l.b16 %v9730
        %v9866 = vunpack.c.l.b16 %v9731
        %v9867 = vunpack.c.l.b16 %v9732
        %v9868 = vunpack.c.l.b16 %v9733
        %v9869 = vunpack.c.l.b16 %v9734
        %v9870 = vunpack.c.l.b16 %v9735
        %v9871 = vunpack.c.l.b16 %v9736
        %v9872 = vunpack.c.l.b16 %v9737
        %v9873 = vunpack.c.l.b16 %v9738
        %v9874 = vunpack.c.l.b16 %v9739
        %v9875 = vunpack.c.l.b16 %v9740
        %v9876 = vunpack.c.l.b16 %v9741
        %v9877 = vunpack.c.l.b16 %v9742
        %v9878 = vunpack.c.l.b16 %v9743
        %v9879 = vunpack.c.l.b16 %v9744
        %v9880 = vunpack.c.l.b16 %v9745
        %v9881 = vunpack.c.l.b16 %v9746
        %v9882 = vunpack.c.l.b16 %v9747
        %v9883 = vunpack.c.l.b16 %v9748
        %v9884 = vunpack.c.l.b16 %v9749
        %v9885 = vunpack.c.l.b16 %v9750
        %v9886 = vunpack.c.l.b16 %v9751
        %v9887 = vunpack.c.l.b16 %v9752
        %v9888 = vunpack.c.l.b16 %v9753
        %v9889 = vunpack.c.l.b16 %v9754
        %v9890 = vunpack.c.l.b16 %v9755
        %v9891 = vunpack.c.l.b16 %v9756
        %v9892 = vunpack.c.l.b16 %v9757
        %v9893 = vunpack.c.l.b16 %v9758
        %v9894 = vunpack.c.l.b16 %v9759
        %v9895 = vunpack.c.l.b16 %v9760
        %v9896 = vunpack.c.l.b16 %v9761
        %v9897 = vunpack.c.l.b16 %v9762
        %v9898 = vunpack.c.l.b16 %v9763
        %v9899 = vunpack.c.l.b16 %v9764
        %v9900 = vunpack.c.l.b16 %v9765
        %v9901 = vunpack.c.l.b16 %v9766
        %v9902 = vunpack.c.l.b16 %v9767
        %v9903 = vunpack.c.l.b16 %v9768
        %v9904 = vunpack.c.l.b16 %v9769
        %v9905 = vunpack.c.l.b16 %v9770
        %v9906 = vunpack.c.l.b16 %v9771
        %v9907 = vunpack.c.l.b16 %v9772
        %v9908 = vunpack.c.l.b16 %v9773
        %v9909 = vunpack.c.l.b16 %v9774
        %v9910 = vunpack.c.l.b16 %v9775
        %v9911 = vunpack.c.l.b16 %v9776
        %v9912 = vunpack.c.l.b16 %v9777
        %v9913 = vunpack.c.l.b16 %v9778
        %v9914 = vunpack.c.l.b16 %v9779
        %v9915 = vunpack.c.l.b16 %v9780
        %v9916 = vunpack.c.l.b16 %v9781
        %v9917 = vunpack.c.l.b16 %v9782
        %v9918 = vunpack.c.l.b16 %v9783
        %v9919 = vunpack.c.l.b16 %v9784
        %v9920 = vunpack.c.l.b16 %v9785
        %v9921 = vunpack.c.l.b16 %v9786
        %v9922 = vunpack.c.l.b16 %v9787
        %v9923 = vunpack.c.l.b16 %v9788
        %v9924 = vunpack.c.l.b16 %v9789
        %v9925 = vunpack.c.l.b16 %v9790
        %v9926 = vpack.c.b16 %v9863, %v9862
        %v9927 = vpack.c.b16 %v9865, %v9864
        %v9928 = vpack.c.b16 %v9867, %v9866
        %v9929 = vpack.c.b16 %v9869, %v9868
        %v9930 = vpack.c.b16 %v9871, %v9870
        %v9931 = vpack.c.b16 %v9873, %v9872
        %v9932 = vpack.c.b16 %v9875, %v9874
        %v9933 = vpack.c.b16 %v9877, %v9876
        %v9934 = vpack.c.b16 %v9879, %v9878
        %v9935 = vpack.c.b16 %v9881, %v9880
        %v9936 = vpack.c.b16 %v9883, %v9882
        %v9937 = vpack.c.b16 %v9885, %v9884
        %v9938 = vpack.c.b16 %v9887, %v9886
        %v9939 = vpack.c.b16 %v9889, %v9888
        %v9940 = vpack.c.b16 %v9891, %v9890
        %v9941 = vpack.c.b16 %v9893, %v9892
        %v9942 = vpack.c.b16 %v9895, %v9894
        %v9943 = vpack.c.b16 %v9897, %v9896
        %v9944 = vpack.c.b16 %v9899, %v9898
        %v9945 = vpack.c.b16 %v9901, %v9900
        %v9946 = vpack.c.b16 %v9903, %v9902
        %v9947 = vpack.c.b16 %v9905, %v9904
        %v9948 = vpack.c.b16 %v9907, %v9906
        %v9949 = vpack.c.b16 %v9909, %v9908
        %v9950 = vpack.c.b16 %v9911, %v9910
        %v9951 = vpack.c.b16 %v9913, %v9912
        %v9952 = vpack.c.b16 %v9915, %v9914
        %v9953 = vpack.c.b16 %v9917, %v9916
        %v9954 = vpack.c.b16 %v9919, %v9918
        %v9955 = vpack.c.b16 %v9921, %v9920
        %v9956 = vpack.c.b16 %v9923, %v9922
        %v9957 = vpack.c.b16 %v9925, %v9924
        %9990 = vmatprep.subr.bf16.mxu0 0
        %9991 = vmatpush1.bf16.msra.mxu0 %v9926
        %9992 = vmatprep.subr.bf16.mxu0 0
        %9993 = vmatpush1.bf16.msra.mxu0 %v9927
        %9994 = vmatprep.subr.bf16.mxu0 0
        %9995 = vmatpush1.bf16.msra.mxu0 %v9928
        %9996 = vmatprep.subr.bf16.mxu0 0
        %9997 = vmatpush1.bf16.msra.mxu0 %v9929
        %9998 = vmatprep.subr.bf16.mxu0 0
        %9999 = vmatpush1.bf16.msra.mxu0 %v9930
        %10000 = vmatprep.subr.bf16.mxu0 0
        %10001 = vmatpush1.bf16.msra.mxu0 %v9931
        %10002 = vmatprep.subr.bf16.mxu0 0
        %10003 = vmatpush1.bf16.msra.mxu0 %v9932
        %10004 = vmatprep.subr.bf16.mxu0 0
        %10005 = vmatpush1.bf16.msra.mxu0 %v9933
        %10006 = vmatprep.subr.bf16.mxu0 0
        %10007 = vmatpush1.bf16.msra.mxu0 %v9934
        %10008 = vmatprep.subr.bf16.mxu0 0
        %10009 = vmatpush1.bf16.msra.mxu0 %v9935
        %10010 = vmatprep.subr.bf16.mxu0 0
        %10011 = vmatpush1.bf16.msra.mxu0 %v9936
        %10012 = vmatprep.subr.bf16.mxu0 0
        %10013 = vmatpush1.bf16.msra.mxu0 %v9937
        %10014 = vmatprep.subr.bf16.mxu0 0
        %10015 = vmatpush1.bf16.msra.mxu0 %v9938
        %10016 = vmatprep.subr.bf16.mxu0 0
        %10017 = vmatpush1.bf16.msra.mxu0 %v9939
        %10018 = vmatprep.subr.bf16.mxu0 0
        %10019 = vmatpush1.bf16.msra.mxu0 %v9940
        %10020 = vmatprep.subr.bf16.mxu0 0
        %10021 = vmatpush1.bf16.msra.mxu0 %v9941
        %10022 = vmatprep.mubr.bf16.mxu0 %v9720
        %10023 = vmatmul.mubr.bf16.gmra.mrb[0].mxu0 %v9719
        %v10024 = vpop.f32.mrb[0].mxu0
        %v10025 = vadd.f32 %v9796, %v10024
        %v10026 = vpop.f32.mrb[0].mxu0
        %v10027 = vpop.f32.mrb[0].mxu0
        %v10028 = vadd.f32 %v9796, %v10027
        %v10029 = vpop.f32.mrb[0].mxu0
        %10030 = vmatprep.mubr.bf16.mxu0 %v9724
        %10031 = vmatmul.mubr.bf16.gmra.mrb[0].mxu0 %v9723
        %v10032 = vpop.f32.mrb[0].mxu0
        %v10033 = vadd.f32 %v9796, %v10032
        %v10034 = vpop.f32.mrb[0].mxu0
        %v10035 = vpop.f32.mrb[0].mxu0
        %v10036 = vadd.f32 %v9796, %v10035
        %v10037 = vpop.f32.mrb[0].mxu0
        %10038 = vdwg.mxu0
        %10039 = vmatprep.subr.bf16.mxu0 0
        %10040 = vmatpush1.bf16.msra.mxu0 %v9942
        %10041 = vmatprep.subr.bf16.mxu0 0
        %10042 = vmatpush1.bf16.msra.mxu0 %v9943
        %10043 = vmatprep.subr.bf16.mxu0 0
        %10044 = vmatpush1.bf16.msra.mxu0 %v9944
        %10045 = vmatprep.subr.bf16.mxu0 0
        %10046 = vmatpush1.bf16.msra.mxu0 %v9945
        %10047 = vmatprep.subr.bf16.mxu0 0
        %10048 = vmatpush1.bf16.msra.mxu0 %v9946
        %10049 = vmatprep.subr.bf16.mxu0 0
        %10050 = vmatpush1.bf16.msra.mxu0 %v9947
        %10051 = vmatprep.subr.bf16.mxu0 0
        %10052 = vmatpush1.bf16.msra.mxu0 %v9948
        %10053 = vmatprep.subr.bf16.mxu0 0
        %10054 = vmatpush1.bf16.msra.mxu0 %v9949
        %10055 = vmatprep.subr.bf16.mxu0 0
        %10056 = vmatpush1.bf16.msra.mxu0 %v9950
        %10057 = vmatprep.subr.bf16.mxu0 0
        %10058 = vmatpush1.bf16.msra.mxu0 %v9951
        %10059 = vmatprep.subr.bf16.mxu0 0
        %10060 = vmatpush1.bf16.msra.mxu0 %v9952
        %10061 = vmatprep.subr.bf16.mxu0 0
        %10062 = vmatpush1.bf16.msra.mxu0 %v9953
        %10063 = vmatprep.subr.bf16.mxu0 0
        %10064 = vmatpush1.bf16.msra.mxu0 %v9954
        %10065 = vmatprep.subr.bf16.mxu0 0
        %10066 = vmatpush1.bf16.msra.mxu0 %v9955
        %10067 = vmatprep.subr.bf16.mxu0 0
        %10068 = vmatpush1.bf16.msra.mxu0 %v9956
        %10069 = vmatprep.subr.bf16.mxu0 0
        %10070 = vmatpush1.bf16.msra.mxu0 %v9957
        %10071 = vmatprep.mubr.bf16.mxu0 %v9722
        %10072 = vmatmul.mubr.bf16.gmra.mrb[0].mxu0 %v9721
        %v10073 = vpop.f32.mrb[0].mxu0
        %v10074 = vadd.f32 %v10025, %v10073
        %v10075 = vpop.f32.mrb[0].mxu0
        %v10076 = vpop.f32.mrb[0].mxu0
        %v10077 = vadd.f32 %v10028, %v10076
        %v10078 = vpop.f32.mrb[0].mxu0
        %10079 = vmatprep.mubr.bf16.mxu0 %v9726
        %10080 = vmatmul.mubr.bf16.gmra.mrb[0].mxu0 %v9725
        %v10081 = vpop.f32.mrb[0].mxu0
        %v10082 = vadd.f32 %v10033, %v10081
        %v10083 = vpop.f32.mrb[0].mxu0
        %v10084 = vpop.f32.mrb[0].mxu0
        %v10085 = vadd.f32 %v10036, %v10084
        %v10086 = vpop.f32.mrb[0].mxu0
        %10087 = vdwg.mxu0
        %v10088 = vadd.f32 %v9377, %v10074
        %v10089 = vadd.f32 %v9378, %v10077
        %v10090 = vadd.f32 %v9379, %v10082
        %v10091 = vadd.f32 %v9380, %v10085
        %10092 = vadd.xlane.f32.xlu0 %v10088
        %v10093 = vpop.xlane.xlu0 %10092
        %10094 = vadd.xlane.f32.xlu0 %v10089
        %v10095 = vpop.xlane.xlu0 %10094
        %10096 = vadd.xlane.f32.xlu0 %v10090
        %v10097 = vpop.xlane.xlu0 %10096
        %10098 = vadd.xlane.f32.xlu0 %v10091
        %v10099 = vpop.xlane.xlu0 %10098
        %v10100 = vmul.f32 %v10093, %v9314
        %v10101 = vmul.f32 %v10095, %v9314
        %v10102 = vmul.f32 %v10097, %v9314
        %v10103 = vmul.f32 %v10099, %v9314
        %v10104 = vmul.f32 %v10088, %v10088
        %v10105 = vmul.f32 %v10089, %v10089
        %v10106 = vmul.f32 %v10090, %v10090
        %v10107 = vmul.f32 %v10091, %v10091
        %10108 = vadd.xlane.f32.xlu0 %v10104
        %v10109 = vpop.xlane.xlu0 %10108
        %10110 = vadd.xlane.f32.xlu0 %v10105
        %v10111 = vpop.xlane.xlu0 %10110
        %10112 = vadd.xlane.f32.xlu0 %v10106
        %v10113 = vpop.xlane.xlu0 %10112
        %10114 = vadd.xlane.f32.xlu0 %v10107
        %v10115 = vpop.xlane.xlu0 %10114
        %v10116 = vmul.f32 %v10109, %v9314
        %v10117 = vmul.f32 %v10111, %v9314
        %v10118 = vmul.f32 %v10113, %v9314
        %v10119 = vmul.f32 %v10115, %v9314
        %v10120 = vmul.f32 %v10100, %v10100
        %v10121 = vmul.f32 %v10101, %v10101
        %v10122 = vmul.f32 %v10102, %v10102
        %v10123 = vmul.f32 %v10103, %v10103
        %v10124 = vsub.f32 %v10116, %v10120
        %v10125 = vsub.f32 %v10117, %v10121
        %v10126 = vsub.f32 %v10118, %v10122
        %v10127 = vsub.f32 %v10119, %v10123
        %v10128 = vsub.f32 %v10088, %v10100
        %v10129 = vsub.f32 %v10089, %v10101
        %v10130 = vsub.f32 %v10090, %v10102
        %v10131 = vsub.f32 %v10091, %v10103
        %v10132 = vadd.f32 %v10124, 1e-05
        %v10133 = vadd.f32 %v10125, 1e-05
        %v10134 = vadd.f32 %v10126, 1e-05
        %v10135 = vadd.f32 %v10127, 1e-05
        %v10136 = vrsqrt.pop %v10132
        %v10137 = vrsqrt.pop %v10133
        %v10138 = vrsqrt.pop %v10134
        %v10139 = vrsqrt.pop %v10135
        %v10140 = vmul.f32 %v10128, %v10136
        %v10141 = vmul.f32 %v10129, %v10137
        %v10142 = vmul.f32 %v10130, %v10138
        %v10143 = vmul.f32 %v10131, %v10139
        %v10144 = vld [vmem:[%s827] sm:$0x1]
        %v10146 = vlaneseq
        %v10147 = vshrl.u32 %v10146, 7
        %v10148 = vsub.s32 0, %v10147
        %v10149 = vrot.slane %v10144, %v10148
        %v10151 = vmul.f32 %v10140, %v10149
        %v10152 = vmul.f32 %v10141, %v10149
        %v10153 = vmul.f32 %v10142, %v10149
        %v10154 = vmul.f32 %v10143, %v10149
        %v10155 = vld [vmem:[%s830] sm:$0x1]
        %v10157 = vlaneseq
        %v10158 = vshrl.u32 %v10157, 7
        %v10159 = vsub.s32 0, %v10158
        %v10160 = vrot.slane %v10155, %v10159
        %v10162 = vadd.f32 %v10151, %v10160
        %v10163 = vadd.f32 %v10152, %v10160
        %v10164 = vadd.f32 %v10153, %v10160
        %v10165 = vadd.f32 %v10154, %v10160
        %10166 = vst [vmem:[#allocation2] sm:$0xff] %v10162
        %10167 = vst [vmem:[#allocation2 + $0x8] sm:$0xff] %v10163
        %10168 = vst [vmem:[#allocation2 + $0x10] sm:$0xff] %v10164
        %10169 = vst [vmem:[#allocation2 + $0x18] sm:$0xff] %v10165
        %p10170 = scmp.eq.s32.totalorder %s36, 2
        // Predicated region
        $region113: #{tpu_custom_call.1} parent=75 // pred_check
          %p10171 = pneg %p10170
        $region114: #{tpu_custom_call.1} parent=75 // pred_check_branch
          %10173 = sbr.rel (%p10171) target = $region116
        $region115: #{tpu_custom_call.1} parent=75 // pred_region
          %10174 = vst [vmem:[#allocation14] sm:$0xff] %v10162
          %10175 = vst [vmem:[#allocation14 + $0x8] sm:$0xff] %v10163
          %10176 = vst [vmem:[#allocation14 + $0x10] sm:$0xff] %v10164
          %10177 = vst [vmem:[#allocation14 + $0x18] sm:$0xff] %v10165
          %v10178 = vadd.f32 %v10162, %v10163
          %v10179 = vrot.slane %v10178, 4
          %v10180 = vadd.f32 %v10178, %v10179
          %v10181 = vrot.slane %v10180, 2
          %v10182 = vadd.f32 %v10180, %v10181
          %v10183 = vrot.slane %v10182, 1
          %v10184 = vadd.f32 %v10182, %v10183
          %v10185 = vadd.f32 %v10164, %v10165
          %v10186 = vrot.slane %v10185, 4
          %v10187 = vadd.f32 %v10185, %v10186
          %v10188 = vrot.slane %v10187, 2
          %v10189 = vadd.f32 %v10187, %v10188
          %v10190 = vrot.slane %v10189, 1
          %v10191 = vadd.f32 %v10189, %v10190
          %v10192 = vrcp.pop 16.0
          %v10193 = vmul.f32 %v10184, %v10192
          %v10194 = vmul.f32 %v10191, %v10192
          %10195 = vst [vmem:[#allocation15] sm:$0x1] %v10193
          %10196 = vst [vmem:[#allocation15 + $0x1] sm:$0x1] %v10194
        $region116: #{tpu_custom_call.1} parent=75 // pred_fallthru
          _
        // Predicated region
        $region117: #{tpu_custom_call.1} parent=75 // pred_check
          %p10197 = pneg %p425
        $region118: #{tpu_custom_call.1} parent=75 // pred_check_branch
          %10199 = sbr.rel (%p10197) target = $region120
        $region119: #{tpu_custom_call.1} parent=75 // pred_region
          %s10200 = smul.u32 2, %s35
          %s10202 = ssub.s32 512, 512
          %10203 = vsyncadd [#allocation5], %s10202
          %s10204 = smul.addr %s10200, 2
          %s10205 = smul.addr %s10204, 128
          %s10206 = scalar_lea.hbm %s14, %s10205
          %s10207 = sshll.u32 [#allocation14], 4
          %s10208 = int_to_ptr.vmem [resolvable:$true] %s10207
          %10213 = dma.vmem_to_hbm [thread:$0]  %s10208, 512, %s10206, [#allocation5], 128, 128, 8
        $region120: #{tpu_custom_call.1} parent=75 // pred_fallthru
          _
        // Predicated region
        $region121: #{tpu_custom_call.1} parent=75 // pred_check
          %p10214 = pneg %p451
        $region122: #{tpu_custom_call.1} parent=75 // pred_check_branch
          %10216 = sbr.rel (%p10214) target = $region124
        $region123: #{tpu_custom_call.1} parent=75 // pred_region
          %s10217 = smul.u32 2, %s35
          %s10219 = ssub.s32 32, 32
          %10220 = vsyncadd [#allocation16], %s10219
          %s10221 = smul.addr %s10217, 16
          %s10222 = scalar_lea.hbm %s15, %s10221
          %s10223 = sshll.u32 [#allocation15], 4
          %s10224 = int_to_ptr.vmem [resolvable:$true] %s10223
          %10229 = dma.vmem_to_hbm [thread:$0]  %s10224, 32, %s10222, [#allocation16], 16, 16, 1
        $region124: #{tpu_custom_call.1} parent=75 // pred_fallthru
          _
        // Predicated region
        $region125: #{tpu_custom_call.1} parent=75 // pred_check
          %p10230 = pneg %p425
        $region126: #{tpu_custom_call.1} parent=75 // pred_check_branch
          %10232 = sbr.rel (%p10230) target = $region128
        $region127: #{tpu_custom_call.1} parent=75 // pred_region
          %10233 = dma.done [#allocation5], 512
        $region128: #{tpu_custom_call.1} parent=75 // pred_fallthru
          _
        // Predicated region
        $region129: #{tpu_custom_call.1} parent=75 // pred_check
          %p10234 = pneg %p451
        $region130: #{tpu_custom_call.1} parent=75 // pred_check_branch
          %10236 = sbr.rel (%p10234) target = $region132
        $region131: #{tpu_custom_call.1} parent=75 // pred_region
          %10237 = dma.done [#allocation16], 32
        $region132: #{tpu_custom_call.1} parent=75 // pred_fallthru
          _
      $region76: #{tpu_custom_call.1} parent=5 // pred_fallthru
        _
      %p10238 = scmp.le.s32.totalorder 2, %s26
      // Predicated region
      $region133: #{tpu_custom_call.1} parent=5 // pred_check
        %p10239 = pneg %p10238
      $region134: #{tpu_custom_call.1} parent=5 // pred_check_branch
        %10241 = sbr.rel (%p10239) target = $region136
      $region135: #{tpu_custom_call.1} parent=5 // pred_region
        %s10242 = ssub.s32 %s26, 2
      $region136: #{tpu_custom_call.1} parent=5 // pred_fallthru
        _
    $region6: #{tpu_custom_call.1} parent=1 // loop_footer
      %s30 = sadd.s32 1, %s26
    $region7: #{tpu_custom_call.1} parent=1 // loop_footer_branch
      %25 = sbr.rel target = $region3
    $region8: #{tpu_custom_call.1} parent=1 // loop_exit
      _
    %10243 = vsyncpa [#allocation4], 1
    %s10244 = scalar_lea.sflag [#allocation4], 1
    %10245 = vsyncpa %s10244, 1
    %10246 = vsyncpa [#allocation7], 1
    %10247 = vsyncpa [#allocation5], 1
    %s10248 = scalar_lea.sflag [#allocation5], 1
    %10249 = vsyncpa %s10248, 1
    %10250 = vsyncpa [#allocation16], 1

</llo_original>
